<compile_context>
chip_gen: v7x
topology: tpu7x:2x2x1
jax: 0.10.0
libtpu: 0.0.40
codegen_flags: <defaults>
</compile_context>

<pallas_src>
import functools

import jax
import jax.numpy as jnp
from jax.experimental import pallas as pl
from jax.experimental.pallas import tpu as pltpu

LATENT = 100
K_PAD = 128                      # latent padded to a full lane tile
H1, H2, H3 = 256, 512, 1024
OUT = 28 * 28                    # 784 (written directly, no output padding)
B_OFF2 = H1                      # bias-slab offsets
B_OFF3 = H1 + H2
B_OFF4 = H1 + H2 + H3
B_SUM = H1 + H2 + H3 + OUT       # 2576
TB = 256                         # default batch rows per grid step (tunable)


def _round_up(n, m):
    return ((n + m - 1) // m) * m


def generator_kernel(x_ref,
                     w1_ref, w2_ref, w3_ref, w4_ref,
                     b_ref,
                     o_ref):
    # bf16 operands into the MXU, f32 accumulation, f32 bias add / ReLU on the
    # VPU, tanh in f32 on the EUP (portable to v5e), bf16 store.
    x = x_ref[...]                               # already bf16 from the wrapper

    b1 = b_ref[:, 0:B_OFF2]
    b2 = b_ref[:, B_OFF2:B_OFF3]
    b3 = b_ref[:, B_OFF3:B_OFF4]
    b4 = b_ref[:, B_OFF4:B_SUM]

    h = jnp.dot(x, w1_ref[...], preferred_element_type=jnp.float32) + b1
    h = jnp.maximum(h, 0.0).astype(jnp.bfloat16)

    h = jnp.dot(h, w2_ref[...], preferred_element_type=jnp.float32) + b2
    h = jnp.maximum(h, 0.0).astype(jnp.bfloat16)

    h = jnp.dot(h, w3_ref[...], preferred_element_type=jnp.float32) + b3
    h = jnp.maximum(h, 0.0).astype(jnp.bfloat16)

    h = jnp.dot(h, w4_ref[...], preferred_element_type=jnp.float32) + b4
    o_ref[...] = jnp.tanh(h).astype(o_ref.dtype)


@functools.partial(jax.jit, static_argnames=("tb", "out_dtype"))
def generator_forward(x, packed, *, tb=TB, out_dtype=jnp.bfloat16):
    """x: (B, LATENT) f32.  packed: dict of padded bf16 weights + f32 bias slab.

    Returns (B, 784) out_dtype == tanh(relu(relu(relu(x@W1+b1)@W2+b2)@W3+b3)@W4+b4).
    """
    B = x.shape[0]

    # Ensure >= 2 batch tiles when possible (2 TensorCores on v7x) and avoid
    # over-padding small batches.
    tb_eff = min(tb, max(8, _round_up((B + 1) // 2, 8)))
    n_tiles = -(-B // tb_eff)
    b_pad = n_tiles * tb_eff

    # Cast to bf16 and pad batch -> b_pad, latent 100 -> 128 (zero columns).
    # Fuses into a single small producer op.
    x_p = jnp.pad(x.astype(jnp.bfloat16),
                  ((0, b_pad - B), (0, K_PAD - LATENT)))

    const = lambda i: (0, 0)          # weights/bias slab: resident, fetched once
    batch = lambda i: (i, 0)          # x / output: tiled over the batch axis

    w_elems = K_PAD * H1 + H1 * H2 + H2 * H3 + H3 * OUT
    cost = pl.CostEstimate(
        flops=2 * b_pad * w_elems,
        transcendentals=b_pad * OUT,
        bytes_accessed=(b_pad * K_PAD * 2            # x (bf16)
                        + w_elems * 2                # weights (bf16)
                        + B_SUM * 4                  # biases (f32)
                        + b_pad * OUT * jnp.dtype(out_dtype).itemsize),
    )

    out_p = pl.pallas_call(
        generator_kernel,
        out_shape=jax.ShapeDtypeStruct((b_pad, OUT), out_dtype),
        grid=(n_tiles,),
        in_specs=[
            pl.BlockSpec((tb_eff, K_PAD), batch),    # x tile (bf16)
            pl.BlockSpec((K_PAD, H1), const),        # w1
            pl.BlockSpec((H1, H2), const),           # w2
            pl.BlockSpec((H2, H3), const),           # w3
            pl.BlockSpec((H3, OUT), const),          # w4
            pl.BlockSpec((1, B_SUM), const),         # concatenated biases (f32)
        ],
        out_specs=pl.BlockSpec((tb_eff, OUT), batch),
        compiler_params=pltpu.CompilerParams(
            dimension_semantics=("parallel",),
            vmem_limit_bytes=32 << 20,
        ),
        cost_estimate=cost,
    )(x_p,
      packed["w1"], packed["w2"], packed["w3"], packed["w4"],
      packed["b"])

    return out_p if b_pad == B else out_p[:B]


def init_params(key):
    """PyTorch nn.Linear default init: U(-1/sqrt(fan_in), 1/sqrt(fan_in)).
    Weights stored as (in, out) so the kernel computes x @ W + b."""
    dims = [(LATENT, H1), (H1, H2), (H2, H3), (H3, OUT)]
    params = {}
    for i, (fin, fout) in enumerate(dims, start=1):
        key, kw, kb = jax.random.split(key, 3)
        bound = 1.0 / jnp.sqrt(jnp.float32(fin))
        params[f"w{i}"] = jax.random.uniform(
            kw, (fin, fout), jnp.float32, minval=-bound, maxval=bound)
        params[f"b{i}"] = jax.random.uniform(
            kb, (1, fout), jnp.float32, minval=-bound, maxval=bound)
    return params


def pack_params(params):
    """Cast weights to bf16, zero-pad the latent dim of w1 to 128 rows, and
    concatenate the four biases into one resident f32 slab."""
    w1 = jnp.pad(params["w1"], ((0, K_PAD - LATENT), (0, 0))).astype(jnp.bfloat16)
    w2 = params["w2"].astype(jnp.bfloat16)
    w3 = params["w3"].astype(jnp.bfloat16)
    w4 = params["w4"].astype(jnp.bfloat16)
    b = jnp.concatenate(
        [params["b1"], params["b2"], params["b3"], params["b4"]], axis=1)
    return {"w1": w1, "w2": w2, "w3": w3, "w4": w4, "b": b}


def ref_forward(x, params):
    """Plain-JAX reference mirroring the kernel's mixed precision
    (bf16 operands, f32 accumulation / bias / activations, f32 output)."""
    w = lambda k: params[k].astype(jnp.bfloat16)
    h = jnp.dot(x.astype(jnp.bfloat16), w("w1"),
                preferred_element_type=jnp.float32) + params["b1"]
    h = jnp.maximum(h, 0.0)
    h = jnp.dot(h.astype(jnp.bfloat16), w("w2"),
                preferred_element_type=jnp.float32) + params["b2"]
    h = jnp.maximum(h, 0.0)
    h = jnp.dot(h.astype(jnp.bfloat16), w("w3"),
                preferred_element_type=jnp.float32) + params["b3"]
    h = jnp.maximum(h, 0.0)
    h = jnp.dot(h.astype(jnp.bfloat16), w("w4"),
                preferred_element_type=jnp.float32) + params["b4"]
    return jnp.tanh(h)


if __name__ == "__main__":
    key = jax.random.PRNGKey(0)
    key, kx = jax.random.split(key)

    params = init_params(key)
    packed = pack_params(params)

    # Main run: 2 batch tiles of TB=256 -> exercises the grid, weight residency
    # and megacore parallelism.
    B = 512
    x = jax.random.normal(kx, (B, LATENT), jnp.float32)
    out = jax.block_until_ready(generator_forward(x, packed))

    assert out.shape == (B, OUT), out.shape
    assert out.dtype == jnp.bfloat16
    out_f32 = out.astype(jnp.float32)
    # tanh output must lie in [-1, 1]
    assert bool(jnp.all(jnp.abs(out_f32) <= 1.0))

    # Cross-check against a plain-JAX reference with identical mixed precision
    # (difference is only the final bf16 store + accumulation order).
    ref_out = ref_forward(x, params)
    assert bool(jnp.allclose(out_f32, ref_out, atol=2e-2, rtol=2e-2)), (
        float(jnp.max(jnp.abs(out_f32 - ref_out))))

    # Loose sanity check against the full-f32 PyTorch-equivalent math.
    def ref_f32(x, p):
        h = jnp.maximum(x @ p["w1"] + p["b1"], 0.0)
        h = jnp.maximum(h @ p["w2"] + p["b2"], 0.0)
        h = jnp.maximum(h @ p["w3"] + p["b3"], 0.0)
        return jnp.tanh(h @ p["w4"] + p["b4"])
    assert bool(jnp.max(jnp.abs(out_f32 - ref_f32(x, params))) < 0.1)

    # Secondary run: odd batch size -> exercises batch padding + tile clamping.
    B2 = 200
    x2 = jax.random.normal(jax.random.PRNGKey(1), (B2, LATENT), jnp.float32)
    out2 = jax.block_until_ready(generator_forward(x2, packed))
    assert out2.shape == (B2, OUT), out2.shape
    assert bool(jnp.allclose(out2.astype(jnp.float32), ref_forward(x2, params),
                             atol=2e-2, rtol=2e-2))

    print("KERNEL_OK")
</pallas_src>

<mosaic_0001>
module attributes {stable_mosaic.version = 11 : i64} {
  func.func @generator_kernel(%arg0: i32, %arg1: memref<256x128xbf16, #tpu.memory_space<vmem>>, %arg2: memref<128x256xbf16, #tpu.memory_space<vmem>>, %arg3: memref<256x512xbf16, #tpu.memory_space<vmem>>, %arg4: memref<512x1024xbf16, #tpu.memory_space<vmem>>, %arg5: memref<1024x784xbf16, #tpu.memory_space<vmem>>, %arg6: memref<1x2576xf32, #tpu.memory_space<vmem>>, %arg7: memref<256x784xbf16, #tpu.memory_space<vmem>>) attributes {dimension_semantics = [#tpu.dimension_semantics<parallel>], iteration_bounds = array<i64: 2>, scalar_prefetch = 0 : i64, scratch_operands = 0 : i64, tpu.core_type = #tpu.core_type<tc>, window_params = [{transform_indices = @transform_0, window_bounds = array<i64: 256, 128>}, {pipeline_mode = #tpu.pipeline_mode<synchronous>, transform_indices = @transform_1, window_bounds = array<i64: 128, 256>}, {pipeline_mode = #tpu.pipeline_mode<synchronous>, transform_indices = @transform_2, window_bounds = array<i64: 256, 512>}, {pipeline_mode = #tpu.pipeline_mode<synchronous>, transform_indices = @transform_3, window_bounds = array<i64: 512, 1024>}, {pipeline_mode = #tpu.pipeline_mode<synchronous>, transform_indices = @transform_4, window_bounds = array<i64: 1024, 784>}, {pipeline_mode = #tpu.pipeline_mode<synchronous>, transform_indices = @transform_5, window_bounds = array<i64: 1, 2576>}, {transform_indices = @transform_6, window_bounds = array<i64: 256, 784>}]} {
    %c0 = arith.constant 0 : index
    %c0_0 = arith.constant 0 : index
    %0 = vector.load %arg1[%c0, %c0_0] : memref<256x128xbf16, #tpu.memory_space<vmem>>, vector<256x128xbf16>
    %c0_1 = arith.constant 0 : index
    %c0_2 = arith.constant 0 : index
    %1 = vector.load %arg6[%c0_1, %c0_2] : memref<1x2576xf32, #tpu.memory_space<vmem>>, vector<1x256xf32>
    %c0_3 = arith.constant 0 : index
    %c256 = arith.constant 256 : index
    %2 = vector.load %arg6[%c0_3, %c256] : memref<1x2576xf32, #tpu.memory_space<vmem>>, vector<1x512xf32>
    %c0_4 = arith.constant 0 : index
    %c768 = arith.constant 768 : index
    %3 = vector.load %arg6[%c0_4, %c768] : memref<1x2576xf32, #tpu.memory_space<vmem>>, vector<1x1024xf32>
    %c0_5 = arith.constant 0 : index
    %c1792 = arith.constant 1792 : index
    %4 = vector.load %arg6[%c0_5, %c1792] : memref<1x2576xf32, #tpu.memory_space<vmem>>, vector<1x784xf32>
    %c0_6 = arith.constant 0 : index
    %c0_7 = arith.constant 0 : index
    %5 = vector.load %arg2[%c0_6, %c0_7] : memref<128x256xbf16, #tpu.memory_space<vmem>>, vector<128x256xbf16>
    %cst = arith.constant dense<0.000000e+00> : vector<256x256xf32>
    %6 = tpu.matmul %0, %5, %cst {dimension_numbers = #tpu.dot_dimension_numbers<[1], [0], [0], [1], [0, 0, 1, 1], [], []>} : vector<256x128xbf16>, vector<128x256xbf16>, vector<256x256xf32> -> vector<256x256xf32>
    %7 = vector.broadcast %1 : vector<1x256xf32> to vector<256x256xf32>
    %8 = arith.addf %6, %7 : vector<256x256xf32>
    %cst_8 = arith.constant 0.000000e+00 : f32
    %9 = vector.broadcast %cst_8 : f32 to vector<256x256xf32>
    %10 = arith.maximumf %8, %9 : vector<256x256xf32>
    %11 = arith.truncf %10 : vector<256x256xf32> to vector<256x256xbf16>
    %c0_9 = arith.constant 0 : index
    %c0_10 = arith.constant 0 : index
    %12 = vector.load %arg3[%c0_9, %c0_10] : memref<256x512xbf16, #tpu.memory_space<vmem>>, vector<256x512xbf16>
    %cst_11 = arith.constant dense<0.000000e+00> : vector<256x512xf32>
    %13 = tpu.matmul %11, %12, %cst_11 {dimension_numbers = #tpu.dot_dimension_numbers<[1], [0], [0], [1], [0, 0, 1, 1], [], []>} : vector<256x256xbf16>, vector<256x512xbf16>, vector<256x512xf32> -> vector<256x512xf32>
    %14 = vector.broadcast %2 : vector<1x512xf32> to vector<256x512xf32>
    %15 = arith.addf %13, %14 : vector<256x512xf32>
    %cst_12 = arith.constant 0.000000e+00 : f32
    %16 = vector.broadcast %cst_12 : f32 to vector<256x512xf32>
    %17 = arith.maximumf %15, %16 : vector<256x512xf32>
    %18 = arith.truncf %17 : vector<256x512xf32> to vector<256x512xbf16>
    %c0_13 = arith.constant 0 : index
    %c0_14 = arith.constant 0 : index
    %19 = vector.load %arg4[%c0_13, %c0_14] : memref<512x1024xbf16, #tpu.memory_space<vmem>>, vector<512x1024xbf16>
    %cst_15 = arith.constant dense<0.000000e+00> : vector<256x1024xf32>
    %20 = tpu.matmul %18, %19, %cst_15 {dimension_numbers = #tpu.dot_dimension_numbers<[1], [0], [0], [1], [0, 0, 1, 1], [], []>} : vector<256x512xbf16>, vector<512x1024xbf16>, vector<256x1024xf32> -> vector<256x1024xf32>
    %21 = vector.broadcast %3 : vector<1x1024xf32> to vector<256x1024xf32>
    %22 = arith.addf %20, %21 : vector<256x1024xf32>
    %cst_16 = arith.constant 0.000000e+00 : f32
    %23 = vector.broadcast %cst_16 : f32 to vector<256x1024xf32>
    %24 = arith.maximumf %22, %23 : vector<256x1024xf32>
    %25 = arith.truncf %24 : vector<256x1024xf32> to vector<256x1024xbf16>
    %c0_17 = arith.constant 0 : index
    %c0_18 = arith.constant 0 : index
    %26 = vector.load %arg5[%c0_17, %c0_18] : memref<1024x784xbf16, #tpu.memory_space<vmem>>, vector<1024x784xbf16>
    %cst_19 = arith.constant dense<0.000000e+00> : vector<256x784xf32>
    %27 = tpu.matmul %25, %26, %cst_19 {dimension_numbers = #tpu.dot_dimension_numbers<[1], [0], [0], [1], [0, 0, 1, 1], [], []>} : vector<256x1024xbf16>, vector<1024x784xbf16>, vector<256x784xf32> -> vector<256x784xf32>
    %28 = vector.broadcast %4 : vector<1x784xf32> to vector<256x784xf32>
    %29 = arith.addf %27, %28 : vector<256x784xf32>
    %30 = math.tanh %29 : vector<256x784xf32>
    %31 = arith.truncf %30 : vector<256x784xf32> to vector<256x784xbf16>
    %c0_20 = arith.constant 0 : index
    %c0_21 = arith.constant 0 : index
    %32 = vector.load %arg7[%c0_20, %c0_21] : memref<256x784xbf16, #tpu.memory_space<vmem>>, vector<256x784xbf16>
    tpu.vector_store %arg7[%c0_20, %c0_21], %31 {strides = array<i32>} : memref<256x784xbf16, #tpu.memory_space<vmem>>, vector<256x784xbf16>,
    return
  }
  func.func @transform_0(%arg0: i32) -> (i32, i32) {
    %c0_i32 = arith.constant 0 : i32
    %c0_i32_0 = arith.constant 0 : i32
    return %arg0, %c0_i32 : i32, i32
  }
  func.func @transform_1(%arg0: i32) -> (i32, i32) {
    %c0_i32 = arith.constant 0 : i32
    %c0_i32_0 = arith.constant 0 : i32
    %c0_i32_1 = arith.constant 0 : i32
    return %c0_i32, %c0_i32_0 : i32, i32
  }
  func.func @transform_2(%arg0: i32) -> (i32, i32) {
    %c0_i32 = arith.constant 0 : i32
    %c0_i32_0 = arith.constant 0 : i32
    %c0_i32_1 = arith.constant 0 : i32
    return %c0_i32, %c0_i32_0 : i32, i32
  }
  func.func @transform_3(%arg0: i32) -> (i32, i32) {
    %c0_i32 = arith.constant 0 : i32
    %c0_i32_0 = arith.constant 0 : i32
    %c0_i32_1 = arith.constant 0 : i32
    return %c0_i32, %c0_i32_0 : i32, i32
  }
  func.func @transform_4(%arg0: i32) -> (i32, i32) {
    %c0_i32 = arith.constant 0 : i32
    %c0_i32_0 = arith.constant 0 : i32
    %c0_i32_1 = arith.constant 0 : i32
    return %c0_i32, %c0_i32_0 : i32, i32
  }
  func.func @transform_5(%arg0: i32) -> (i32, i32) {
    %c0_i32 = arith.constant 0 : i32
    %c0_i32_0 = arith.constant 0 : i32
    %c0_i32_1 = arith.constant 0 : i32
    return %c0_i32, %c0_i32_0 : i32, i32
  }
  func.func @transform_6(%arg0: i32) -> (i32, i32) {
    %c0_i32 = arith.constant 0 : i32
    %c0_i32_0 = arith.constant 0 : i32
    return %arg0, %c0_i32 : i32, i32
  }
}

</mosaic_0001>

<llo_original>
// kernel: generator_forward.1
$region0: #{generator_forward.1}
  #allocation0 [shape = 'u32[]', space=smem, size = 0x4, offset = 0x4, fixed_abs, tag = 'smem constant byte address 0x4 - core index']
  #allocation1 [shape = 'u32[144,128]{1,0:T(1,128)}', space=vmem, size = 0x12000, scoped, tag = 'internal scratch']
  %s0 = inlined_call_operand.vmem [shape: bf16[512,128], index: 0, kind: input, shape index: {}]
  %s1 = inlined_call_operand.vmem [shape: bf16[128,256], index: 1, kind: input, shape index: {}]
  %s2 = inlined_call_operand.vmem [shape: bf16[256,512], index: 2, kind: input, shape index: {}]
  %s3 = inlined_call_operand.vmem [shape: bf16[512,1024], index: 3, kind: input, shape index: {}]
  %s4 = inlined_call_operand.vmem [shape: bf16[1024,784], index: 4, kind: input, shape index: {}]
  %s5 = inlined_call_operand.vmem [shape: f32[1,2576], index: 5, kind: input, shape index: {}]
  %s6 = inlined_call_operand.vmem [shape: bf16[512,784], index: 6, kind: output, shape index: {}]
  %s7 = sld [smem:[#allocation0]]
  $region57: #{generator_forward.1} parent=0
    _
  %s9 = ssub.s32 1, %s7
  %s10 = scalar_select 0, %s9, %s7
  loop: start=0, step=1, limit=4
  $region2: #{generator_forward.1} parent=0 // loop_pre_header
    _
  $region3: #{generator_forward.1} parent=0 // loop_header
    %s12 = sphi 0, %s16
    %p13 = scmp.ge.s32.totalorder %s12, 4
    %s22 = sphi 0, %s24
    %s25 = sphi 0, %s22
    %s26 = sphi 0, %s25
    %s42 = sphi 0, %s26
    %s46 = sphi 0, %s46
    %s48 = sphi 0, %s46
    %s49 = sphi 0, %s48
    %s63 = sphi 0, %s49
    %s67 = sphi 0, %s67
    %s69 = sphi 0, %s67
    %s70 = sphi 0, %s69
    %s84 = sphi 0, %s70
    %s88 = sphi 0, %s88
    %s90 = sphi 0, %s88
    %s91 = sphi 0, %s90
    %s105 = sphi 0, %s91
    %s109 = sphi 0, %s109
    %s111 = sphi 0, %s109
    %s112 = sphi 0, %s111
    %s126 = sphi 0, %s112
    %s130 = sphi 0, %s130
    %s132 = sphi 0, %s130
    %s133 = sphi 0, %s132
    %s147 = sphi 0, %s133
    %s153 = sphi 0, %s155
    %s156 = sphi 0, %s153
    %s157 = sphi 0, %s156
    %s173 = sphi 0, %s157
  $region4: #{generator_forward.1} parent=0 // loop_header_branch
    %15 = sbr.rel (%p13) target = $region8
  $region5: #{generator_forward.1} parent=0 // loop_body
    %s17 = ssub.s32 %s12, 1
    %s18 = ssub.s32 %s12, 2
    %s19 = sadd.s32 %s12, 1
    %s20 = ssub.s32 %s12, %s19
    %p21 = scmp.eq.s32.totalorder %s20, 0
    %s23 = sadd.s32 %s22, 1
    %s24 = scalar_select %p21, %s22, %s23
    %p27 = pneg %p21
    %p28 = scmp.eq.s32.totalorder %s12, 1
    %p29 = por %p27, %p28
    %p30 = scmp.ne.s32.totalorder %s22, %s25
    %p31 = scmp.eq.s32.totalorder %s12, 0
    %p32 = por %p30, %p31
    %p33 = scmp.ne.s32.totalorder %s22, %s25
    %p34 = scmp.eq.s32.totalorder %s17, 1
    %p35 = por %p33, %p34
    %p36 = scmp.ne.s32.totalorder %s25, %s26
    %p37 = scmp.eq.s32.totalorder %s17, 0
    %p38 = por %p36, %p37
    %p39 = scmp.ne.s32.totalorder %s25, %s26
    %p40 = scmp.eq.s32.totalorder %s18, 1
    %p41 = por %p39, %p40
    %p43 = scmp.ne.s32.totalorder %s26, %s42
    %p44 = scmp.eq.s32.totalorder %s18, 0
    %p45 = por %p43, %p44
    %s47 = sadd.s32 %s46, 1
    %p50 = scmp.eq.s32.totalorder %s12, 1
    %p51 = scmp.ne.s32.totalorder %s46, %s48
    %p52 = scmp.eq.s32.totalorder %s12, 0
    %p53 = por %p51, %p52
    %p54 = scmp.ne.s32.totalorder %s46, %s48
    %p55 = scmp.eq.s32.totalorder %s17, 1
    %p56 = por %p54, %p55
    %p57 = scmp.ne.s32.totalorder %s48, %s49
    %p58 = scmp.eq.s32.totalorder %s17, 0
    %p59 = por %p57, %p58
    %p60 = scmp.ne.s32.totalorder %s48, %s49
    %p61 = scmp.eq.s32.totalorder %s18, 1
    %p62 = por %p60, %p61
    %p64 = scmp.ne.s32.totalorder %s49, %s63
    %p65 = scmp.eq.s32.totalorder %s18, 0
    %p66 = por %p64, %p65
    %s68 = sadd.s32 %s67, 1
    %p71 = scmp.eq.s32.totalorder %s12, 1
    %p72 = scmp.ne.s32.totalorder %s67, %s69
    %p73 = scmp.eq.s32.totalorder %s12, 0
    %p74 = por %p72, %p73
    %p75 = scmp.ne.s32.totalorder %s67, %s69
    %p76 = scmp.eq.s32.totalorder %s17, 1
    %p77 = por %p75, %p76
    %p78 = scmp.ne.s32.totalorder %s69, %s70
    %p79 = scmp.eq.s32.totalorder %s17, 0
    %p80 = por %p78, %p79
    %p81 = scmp.ne.s32.totalorder %s69, %s70
    %p82 = scmp.eq.s32.totalorder %s18, 1
    %p83 = por %p81, %p82
    %p85 = scmp.ne.s32.totalorder %s70, %s84
    %p86 = scmp.eq.s32.totalorder %s18, 0
    %p87 = por %p85, %p86
    %s89 = sadd.s32 %s88, 1
    %p92 = scmp.eq.s32.totalorder %s12, 1
    %p93 = scmp.ne.s32.totalorder %s88, %s90
    %p94 = scmp.eq.s32.totalorder %s12, 0
    %p95 = por %p93, %p94
    %p96 = scmp.ne.s32.totalorder %s88, %s90
    %p97 = scmp.eq.s32.totalorder %s17, 1
    %p98 = por %p96, %p97
    %p99 = scmp.ne.s32.totalorder %s90, %s91
    %p100 = scmp.eq.s32.totalorder %s17, 0
    %p101 = por %p99, %p100
    %p102 = scmp.ne.s32.totalorder %s90, %s91
    %p103 = scmp.eq.s32.totalorder %s18, 1
    %p104 = por %p102, %p103
    %p106 = scmp.ne.s32.totalorder %s91, %s105
    %p107 = scmp.eq.s32.totalorder %s18, 0
    %p108 = por %p106, %p107
    %s110 = sadd.s32 %s109, 1
    %p113 = scmp.eq.s32.totalorder %s12, 1
    %p114 = scmp.ne.s32.totalorder %s109, %s111
    %p115 = scmp.eq.s32.totalorder %s12, 0
    %p116 = por %p114, %p115
    %p117 = scmp.ne.s32.totalorder %s109, %s111
    %p118 = scmp.eq.s32.totalorder %s17, 1
    %p119 = por %p117, %p118
    %p120 = scmp.ne.s32.totalorder %s111, %s112
    %p121 = scmp.eq.s32.totalorder %s17, 0
    %p122 = por %p120, %p121
    %p123 = scmp.ne.s32.totalorder %s111, %s112
    %p124 = scmp.eq.s32.totalorder %s18, 1
    %p125 = por %p123, %p124
    %p127 = scmp.ne.s32.totalorder %s112, %s126
    %p128 = scmp.eq.s32.totalorder %s18, 0
    %p129 = por %p127, %p128
    %s131 = sadd.s32 %s130, 1
    %p134 = scmp.eq.s32.totalorder %s12, 1
    %p135 = scmp.ne.s32.totalorder %s130, %s132
    %p136 = scmp.eq.s32.totalorder %s12, 0
    %p137 = por %p135, %p136
    %p138 = scmp.ne.s32.totalorder %s130, %s132
    %p139 = scmp.eq.s32.totalorder %s17, 1
    %p140 = por %p138, %p139
    %p141 = scmp.ne.s32.totalorder %s132, %s133
    %p142 = scmp.eq.s32.totalorder %s17, 0
    %p143 = por %p141, %p142
    %p144 = scmp.ne.s32.totalorder %s132, %s133
    %p145 = scmp.eq.s32.totalorder %s18, 1
    %p146 = por %p144, %p145
    %p148 = scmp.ne.s32.totalorder %s133, %s147
    %p149 = scmp.eq.s32.totalorder %s18, 0
    %p150 = por %p148, %p149
    %s151 = ssub.s32 %s12, %s19
    %p152 = scmp.eq.s32.totalorder %s151, 0
    %s154 = sadd.s32 %s153, 1
    %s155 = scalar_select %p152, %s153, %s154
    %p158 = pneg %p152
    %p159 = scmp.eq.s32.totalorder %s12, 1
    %p160 = por %p158, %p159
    %p161 = scmp.ne.s32.totalorder %s153, %s156
    %p162 = scmp.eq.s32.totalorder %s12, 0
    %p163 = por %p161, %p162
    %p164 = scmp.ne.s32.totalorder %s153, %s156
    %p165 = scmp.eq.s32.totalorder %s17, 1
    %p166 = por %p164, %p165
    %p167 = scmp.ne.s32.totalorder %s156, %s157
    %p168 = scmp.eq.s32.totalorder %s17, 0
    %p169 = por %p167, %p168
    %p170 = scmp.ne.s32.totalorder %s156, %s157
    %p171 = scmp.eq.s32.totalorder %s18, 1
    %p172 = por %p170, %p171
    %p174 = scmp.ne.s32.totalorder %s157, %s173
    %p175 = scmp.eq.s32.totalorder %s18, 0
    %p176 = por %p174, %p175
    %p177 = scmp.le.s32.totalorder 1, %s12
    %p178 = scmp.lt.s32.totalorder %s12, 3
    %p179 = pnand %p177, %p178
    %p180 = pneg %p179
    // Predicated region
    $region9: #{generator_forward.1} parent=5 // pred_check
      _
    $region10: #{generator_forward.1} parent=5 // pred_check_branch
      %182 = sbr.rel (%p179) target = $region12
    $region11: #{generator_forward.1} parent=5 // pred_region
      %s183 = ssub.s32 %s12, 1
      // Predicated region
      $region13: #{generator_forward.1} parent=11 // pred_check
        %p184 = pneg %p59
      $region14: #{generator_forward.1} parent=11 // pred_check_branch
        %186 = sbr.rel (%p184) target = $region16
      $region15: #{generator_forward.1} parent=11 // pred_region
        _
      $region16: #{generator_forward.1} parent=11 // pred_fallthru
        _
      // Predicated region
      $region17: #{generator_forward.1} parent=11 // pred_check
        %p187 = pneg %p80
      $region18: #{generator_forward.1} parent=11 // pred_check_branch
        %189 = sbr.rel (%p187) target = $region20
      $region19: #{generator_forward.1} parent=11 // pred_region
        _
      $region20: #{generator_forward.1} parent=11 // pred_fallthru
        _
      // Predicated region
      $region21: #{generator_forward.1} parent=11 // pred_check
        %p190 = pneg %p101
      $region22: #{generator_forward.1} parent=11 // pred_check_branch
        %192 = sbr.rel (%p190) target = $region24
      $region23: #{generator_forward.1} parent=11 // pred_region
        _
      $region24: #{generator_forward.1} parent=11 // pred_fallthru
        _
      // Predicated region
      $region25: #{generator_forward.1} parent=11 // pred_check
        %p193 = pneg %p122
      $region26: #{generator_forward.1} parent=11 // pred_check_branch
        %195 = sbr.rel (%p193) target = $region28
      $region27: #{generator_forward.1} parent=11 // pred_region
        _
      $region28: #{generator_forward.1} parent=11 // pred_fallthru
        _
      // Predicated region
      $region29: #{generator_forward.1} parent=11 // pred_check
        %p196 = pneg %p143
      $region30: #{generator_forward.1} parent=11 // pred_check_branch
        %198 = sbr.rel (%p196) target = $region32
      $region31: #{generator_forward.1} parent=11 // pred_region
        _
      $region32: #{generator_forward.1} parent=11 // pred_fallthru
        _
    $region12: #{generator_forward.1} parent=5 // pred_fallthru
      _
    %p199 = scmp.lt.s32.totalorder %s12, 2
    // Predicated region
    $region33: #{generator_forward.1} parent=5 // pred_check
      %p200 = pneg %p199
    $region34: #{generator_forward.1} parent=5 // pred_check_branch
      %202 = sbr.rel (%p200) target = $region36
    $region35: #{generator_forward.1} parent=5 // pred_region
      // Predicated region
      $region37: #{generator_forward.1} parent=35 // pred_check
        %p203 = pneg %p32
      $region38: #{generator_forward.1} parent=35 // pred_check_branch
        %205 = sbr.rel (%p203) target = $region40
      $region39: #{generator_forward.1} parent=35 // pred_region
        %s206 = smul.u32 32, %s12
        %p207 = scmp.lt.s32.totalorder %s206, 63
        %s208 = scalar_select %p207, %s206, 63
        %s209 = smul.addr %s208, 4
        %s210 = scalar_lea.vmem %s0, %s209
        %s211 = smul.u32 32, %s12
      $region40: #{generator_forward.1} parent=35 // pred_fallthru
        _
    $region36: #{generator_forward.1} parent=5 // pred_fallthru
      _
    %p212 = scmp.le.s32.totalorder 1, %s12
    %p213 = scmp.lt.s32.totalorder %s12, 3
    %p214 = pnand %p212, %p213
    %p215 = pneg %p214
    // Predicated region
    $region41: #{generator_forward.1} parent=5 // pred_check
      _
    $region42: #{generator_forward.1} parent=5 // pred_check_branch
      %217 = sbr.rel (%p214) target = $region44
    $region43: #{generator_forward.1} parent=5 // pred_region
      %s218 = ssub.s32 %s12, 1
      %s219 = smul.u32 32, %s17
      %p220 = scmp.lt.s32.totalorder %s219, 63
      %s221 = scalar_select %p220, %s219, 63
      %s222 = smul.addr %s221, 4
      %s223 = scalar_lea.vmem %s0, %s222
      %p224 = pneg %p38
      %p225 = pneg %p35
      %p226 = pneg %p59
      %p227 = pneg %p56
      %p228 = pneg %p80
      %p229 = pneg %p77
      %p230 = pneg %p101
      %p231 = pneg %p98
      %p232 = pneg %p122
      %p233 = pneg %p119
      %p234 = pneg %p143
      %p235 = pneg %p140
      %p236 = pneg %p169
      %p237 = pneg %p166
      %s238 = smul.u32 32, %s17
      %p239 = scmp.lt.s32.totalorder %s238, 63
      %s240 = scalar_select %p239, %s238, 63
      %s241 = smul.addr %s240, 7
      %s242 = smul.addr %s241, 4
      %s243 = scalar_lea.vmem %s6, %s242
      %s244 = smul.u32 32, %s17
      %p245 = scmp.lt.s32.totalorder %s244, 63
      %s246 = scalar_select %p245, %s244, 63
      %s247 = smul.addr %s246, 4
      %s248 = scalar_lea.vmem %s0, %s247
      %s249 = smul.u32 32, %s17
      %s250 = smul.u32 32, %s17
      %p251 = scmp.lt.s32.totalorder %s250, 63
      %s252 = scalar_select %p251, %s250, 63
      %s253 = smul.addr %s252, 7
      %s254 = smul.addr %s253, 4
      %s255 = scalar_lea.vmem %s6, %s254
      %s256 = smul.u32 32, %s17
      %v258 = vld [vmem:[%s248] sm:$0xf]
      %v259 = vld [vmem:[%s248 + $0x4] sm:$0xf]
      %v260 = vld [vmem:[%s248 + $0x8] sm:$0xf]
      %v261 = vld [vmem:[%s248 + $0xc] sm:$0xf]
      %v262 = vld [vmem:[%s248 + $0x10] sm:$0xf]
      %v263 = vld [vmem:[%s248 + $0x14] sm:$0xf]
      %v264 = vld [vmem:[%s248 + $0x18] sm:$0xf]
      %v265 = vld [vmem:[%s248 + $0x1c] sm:$0xf]
      %v266 = vld [vmem:[%s248 + $0x20] sm:$0xf]
      %v267 = vld [vmem:[%s248 + $0x24] sm:$0xf]
      %v268 = vld [vmem:[%s248 + $0x28] sm:$0xf]
      %v269 = vld [vmem:[%s248 + $0x2c] sm:$0xf]
      %v270 = vld [vmem:[%s248 + $0x30] sm:$0xf]
      %v271 = vld [vmem:[%s248 + $0x34] sm:$0xf]
      %v272 = vld [vmem:[%s248 + $0x38] sm:$0xf]
      %v273 = vld [vmem:[%s248 + $0x3c] sm:$0xf]
      %v274 = vld [vmem:[%s248 + $0x40] sm:$0xf]
      %v275 = vld [vmem:[%s248 + $0x44] sm:$0xf]
      %v276 = vld [vmem:[%s248 + $0x48] sm:$0xf]
      %v277 = vld [vmem:[%s248 + $0x4c] sm:$0xf]
      %v278 = vld [vmem:[%s248 + $0x50] sm:$0xf]
      %v279 = vld [vmem:[%s248 + $0x54] sm:$0xf]
      %v280 = vld [vmem:[%s248 + $0x58] sm:$0xf]
      %v281 = vld [vmem:[%s248 + $0x5c] sm:$0xf]
      %v282 = vld [vmem:[%s248 + $0x60] sm:$0xf]
      %v283 = vld [vmem:[%s248 + $0x64] sm:$0xf]
      %v284 = vld [vmem:[%s248 + $0x68] sm:$0xf]
      %v285 = vld [vmem:[%s248 + $0x6c] sm:$0xf]
      %v286 = vld [vmem:[%s248 + $0x70] sm:$0xf]
      %v287 = vld [vmem:[%s248 + $0x74] sm:$0xf]
      %v288 = vld [vmem:[%s248 + $0x78] sm:$0xf]
      %v289 = vld [vmem:[%s248 + $0x7c] sm:$0xf]
      %v290 = vld [vmem:[%s5] sm:$0x3]
      %v291 = vld [vmem:[%s5 + $0x2] sm:$0xf]
      %v292 = vld [vmem:[%s5 + $0x6] sm:$0xff]
      %v293 = vld [vmem:[%s5 + $0xe] sm:$0x7f]
      %v294 = vld [vmem:[%s1] sm:$0xff]
      %v295 = vld [vmem:[%s1 + $0x8] sm:$0xff]
      %v296 = vld [vmem:[%s1 + $0x10] sm:$0xff]
      %v297 = vld [vmem:[%s1 + $0x18] sm:$0xff]
      %v298 = vld [vmem:[%s1 + $0x20] sm:$0xff]
      %v299 = vld [vmem:[%s1 + $0x28] sm:$0xff]
      %v300 = vld [vmem:[%s1 + $0x30] sm:$0xff]
      %v301 = vld [vmem:[%s1 + $0x38] sm:$0xff]
      %v302 = vld [vmem:[%s1 + $0x40] sm:$0xff]
      %v303 = vld [vmem:[%s1 + $0x48] sm:$0xff]
      %v304 = vld [vmem:[%s1 + $0x50] sm:$0xff]
      %v305 = vld [vmem:[%s1 + $0x58] sm:$0xff]
      %v306 = vld [vmem:[%s1 + $0x60] sm:$0xff]
      %v307 = vld [vmem:[%s1 + $0x68] sm:$0xff]
      %v308 = vld [vmem:[%s1 + $0x70] sm:$0xff]
      %v309 = vld [vmem:[%s1 + $0x78] sm:$0xff]
      %v311 = vlaneseq
      %v312 = vshrl.u32 %v311, 7
      %v313 = vsub.s32 0, %v312
      %v314 = vrot.slane %v290, %v313
      %v315 = vlaneseq
      %v316 = vshrl.u32 %v315, 7
      %v317 = vsub.s32 1, %v316
      %v318 = vrot.slane %v290, %v317
      %v353 = vunpack.c.l.b16 %v258
      %v354 = vunpack.c.l.b16 %v259
      %v355 = vunpack.c.l.b16 %v260
      %v356 = vunpack.c.l.b16 %v261
      %v357 = vunpack.c.l.b16 %v262
      %v358 = vunpack.c.l.b16 %v263
      %v359 = vunpack.c.l.b16 %v264
      %v360 = vunpack.c.l.b16 %v265
      %v361 = vunpack.c.l.b16 %v266
      %v362 = vunpack.c.l.b16 %v267
      %v363 = vunpack.c.l.b16 %v268
      %v364 = vunpack.c.l.b16 %v269
      %v365 = vunpack.c.l.b16 %v270
      %v366 = vunpack.c.l.b16 %v271
      %v367 = vunpack.c.l.b16 %v272
      %v368 = vunpack.c.l.b16 %v273
      %v369 = vunpack.c.l.b16 %v274
      %v370 = vunpack.c.l.b16 %v275
      %v371 = vunpack.c.l.b16 %v276
      %v372 = vunpack.c.l.b16 %v277
      %v373 = vunpack.c.l.b16 %v278
      %v374 = vunpack.c.l.b16 %v279
      %v375 = vunpack.c.l.b16 %v280
      %v376 = vunpack.c.l.b16 %v281
      %v377 = vunpack.c.l.b16 %v282
      %v378 = vunpack.c.l.b16 %v283
      %v379 = vunpack.c.l.b16 %v284
      %v380 = vunpack.c.l.b16 %v285
      %v381 = vunpack.c.l.b16 %v286
      %v382 = vunpack.c.l.b16 %v287
      %v383 = vunpack.c.l.b16 %v288
      %v384 = vunpack.c.l.b16 %v289
      %v385 = vpack.c.b16 %v354, %v353
      %v386 = vpack.c.b16 %v356, %v355
      %v387 = vpack.c.b16 %v358, %v357
      %v388 = vpack.c.b16 %v360, %v359
      %v389 = vpack.c.b16 %v362, %v361
      %v390 = vpack.c.b16 %v364, %v363
      %v391 = vpack.c.b16 %v366, %v365
      %v392 = vpack.c.b16 %v368, %v367
      %v393 = vpack.c.b16 %v370, %v369
      %v394 = vpack.c.b16 %v372, %v371
      %v395 = vpack.c.b16 %v374, %v373
      %v396 = vpack.c.b16 %v376, %v375
      %v397 = vpack.c.b16 %v378, %v377
      %v398 = vpack.c.b16 %v380, %v379
      %v399 = vpack.c.b16 %v382, %v381
      %v400 = vpack.c.b16 %v384, %v383
      %v433 = vunpack.c.l.b16 %v294
      %v434 = vunpack.c.h.b16 %v294
      %v435 = vunpack.c.l.b16 %v295
      %v436 = vunpack.c.h.b16 %v295
      %v437 = vunpack.c.l.b16 %v296
      %v438 = vunpack.c.h.b16 %v296
      %v439 = vunpack.c.l.b16 %v297
      %v440 = vunpack.c.h.b16 %v297
      %v441 = vunpack.c.l.b16 %v298
      %v442 = vunpack.c.h.b16 %v298
      %v443 = vunpack.c.l.b16 %v299
      %v444 = vunpack.c.h.b16 %v299
      %v445 = vunpack.c.l.b16 %v300
      %v446 = vunpack.c.h.b16 %v300
      %v447 = vunpack.c.l.b16 %v301
      %v448 = vunpack.c.h.b16 %v301
      %v449 = vunpack.c.l.b16 %v302
      %v450 = vunpack.c.h.b16 %v302
      %v451 = vunpack.c.l.b16 %v303
      %v452 = vunpack.c.h.b16 %v303
      %v453 = vunpack.c.l.b16 %v304
      %v454 = vunpack.c.h.b16 %v304
      %v455 = vunpack.c.l.b16 %v305
      %v456 = vunpack.c.h.b16 %v305
      %v457 = vunpack.c.l.b16 %v306
      %v458 = vunpack.c.h.b16 %v306
      %v459 = vunpack.c.l.b16 %v307
      %v460 = vunpack.c.h.b16 %v307
      %v461 = vunpack.c.l.b16 %v308
      %v462 = vunpack.c.h.b16 %v308
      %v463 = vunpack.c.l.b16 %v309
      %v464 = vunpack.c.h.b16 %v309
      %v465 = vpack.c.b16 %v435, %v433
      %v466 = vpack.c.b16 %v436, %v434
      %v467 = vpack.c.b16 %v439, %v437
      %v468 = vpack.c.b16 %v440, %v438
      %v469 = vpack.c.b16 %v443, %v441
      %v470 = vpack.c.b16 %v444, %v442
      %v471 = vpack.c.b16 %v447, %v445
      %v472 = vpack.c.b16 %v448, %v446
      %v473 = vpack.c.b16 %v451, %v449
      %v474 = vpack.c.b16 %v452, %v450
      %v475 = vpack.c.b16 %v455, %v453
      %v476 = vpack.c.b16 %v456, %v454
      %v477 = vpack.c.b16 %v459, %v457
      %v478 = vpack.c.b16 %v460, %v458
      %v479 = vpack.c.b16 %v463, %v461
      %v480 = vpack.c.b16 %v464, %v462
      %497 = vmatprep.subr.bf16.mxu0 %v466
      %498 = vmatpush1.bf16.msra.mxu0 %v465
      %499 = vmatprep.subr.bf16.mxu0 %v468
      %500 = vmatpush1.bf16.msra.mxu0 %v467
      %501 = vmatprep.subr.bf16.mxu0 %v470
      %502 = vmatpush1.bf16.msra.mxu0 %v469
      %503 = vmatprep.subr.bf16.mxu0 %v472
      %504 = vmatpush1.bf16.msra.mxu0 %v471
      %505 = vmatprep.subr.bf16.mxu0 %v474
      %506 = vmatpush1.bf16.msra.mxu0 %v473
      %507 = vmatprep.subr.bf16.mxu0 %v476
      %508 = vmatpush1.bf16.msra.mxu0 %v475
      %509 = vmatprep.subr.bf16.mxu0 %v478
      %510 = vmatpush1.bf16.msra.mxu0 %v477
      %511 = vmatprep.subr.bf16.mxu0 %v480
      %512 = vmatpush1.bf16.msra.mxu0 %v479
      %513 = vmatprep.subr.bf16.mxu0 0
      %514 = vmatpush1.bf16.msra.mxu0 0
      %515 = vmatprep.subr.bf16.mxu0 0
      %516 = vmatpush1.bf16.msra.mxu0 0
      %517 = vmatprep.subr.bf16.mxu0 0
      %518 = vmatpush1.bf16.msra.mxu0 0
      %519 = vmatprep.subr.bf16.mxu0 0
      %520 = vmatpush1.bf16.msra.mxu0 0
      %521 = vmatprep.subr.bf16.mxu0 0
      %522 = vmatpush1.bf16.msra.mxu0 0
      %523 = vmatprep.subr.bf16.mxu0 0
      %524 = vmatpush1.bf16.msra.mxu0 0
      %525 = vmatprep.subr.bf16.mxu0 0
      %526 = vmatpush1.bf16.msra.mxu0 0
      %527 = vmatprep.subr.bf16.mxu0 0
      %528 = vmatpush1.bf16.msra.mxu0 0
      %529 = vmatprep.mubr.bf16.mxu0 0
      %530 = vmatmul.mubr.bf16.gmra.mrb[0].mxu0 %v385
      %v531 = vpop.f32.mrb[0].mxu0
      %v532 = vadd.f32 %v314, %v531
      %v533 = vpop.f32.mrb[0].mxu0
      %v534 = vadd.f32 %v318, %v533
      %v535 = vpop.f32.mrb[0].mxu0
      %v536 = vadd.f32 %v314, %v535
      %v537 = vpop.f32.mrb[0].mxu0
      %v538 = vadd.f32 %v318, %v537
      %539 = vmatprep.mubr.bf16.mxu0 0
      %540 = vmatmul.mubr.bf16.gmra.mrb[0].mxu0 %v386
      %v541 = vpop.f32.mrb[0].mxu0
      %v542 = vadd.f32 %v314, %v541
      %v543 = vpop.f32.mrb[0].mxu0
      %v544 = vadd.f32 %v318, %v543
      %v545 = vpop.f32.mrb[0].mxu0
      %v546 = vadd.f32 %v314, %v545
      %v547 = vpop.f32.mrb[0].mxu0
      %v548 = vadd.f32 %v318, %v547
      %549 = vmatprep.mubr.bf16.mxu0 0
      %550 = vmatmul.mubr.bf16.gmra.mrb[0].mxu0 %v387
      %v551 = vpop.f32.mrb[0].mxu0
      %v552 = vadd.f32 %v314, %v551
      %v553 = vpop.f32.mrb[0].mxu0
      %v554 = vadd.f32 %v318, %v553
      %v555 = vpop.f32.mrb[0].mxu0
      %v556 = vadd.f32 %v314, %v555
      %v557 = vpop.f32.mrb[0].mxu0
      %v558 = vadd.f32 %v318, %v557
      %559 = vmatprep.mubr.bf16.mxu0 0
      %560 = vmatmul.mubr.bf16.gmra.mrb[0].mxu0 %v388
      %v561 = vpop.f32.mrb[0].mxu0
      %v562 = vadd.f32 %v314, %v561
      %v563 = vpop.f32.mrb[0].mxu0
      %v564 = vadd.f32 %v318, %v563
      %v565 = vpop.f32.mrb[0].mxu0
      %v566 = vadd.f32 %v314, %v565
      %v567 = vpop.f32.mrb[0].mxu0
      %v568 = vadd.f32 %v318, %v567
      %569 = vmatprep.mubr.bf16.mxu0 0
      %570 = vmatmul.mubr.bf16.gmra.mrb[0].mxu0 %v389
      %v571 = vpop.f32.mrb[0].mxu0
      %v572 = vadd.f32 %v314, %v571
      %v573 = vpop.f32.mrb[0].mxu0
      %v574 = vadd.f32 %v318, %v573
      %v575 = vpop.f32.mrb[0].mxu0
      %v576 = vadd.f32 %v314, %v575
      %v577 = vpop.f32.mrb[0].mxu0
      %v578 = vadd.f32 %v318, %v577
      %579 = vmatprep.mubr.bf16.mxu0 0
      %580 = vmatmul.mubr.bf16.gmra.mrb[0].mxu0 %v390
      %v581 = vpop.f32.mrb[0].mxu0
      %v582 = vadd.f32 %v314, %v581
      %v583 = vpop.f32.mrb[0].mxu0
      %v584 = vadd.f32 %v318, %v583
      %v585 = vpop.f32.mrb[0].mxu0
      %v586 = vadd.f32 %v314, %v585
      %v587 = vpop.f32.mrb[0].mxu0
      %v588 = vadd.f32 %v318, %v587
      %589 = vmatprep.mubr.bf16.mxu0 0
      %590 = vmatmul.mubr.bf16.gmra.mrb[0].mxu0 %v391
      %v591 = vpop.f32.mrb[0].mxu0
      %v592 = vadd.f32 %v314, %v591
      %v593 = vpop.f32.mrb[0].mxu0
      %v594 = vadd.f32 %v318, %v593
      %v595 = vpop.f32.mrb[0].mxu0
      %v596 = vadd.f32 %v314, %v595
      %v597 = vpop.f32.mrb[0].mxu0
      %v598 = vadd.f32 %v318, %v597
      %599 = vmatprep.mubr.bf16.mxu0 0
      %600 = vmatmul.mubr.bf16.gmra.mrb[0].mxu0 %v392
      %v601 = vpop.f32.mrb[0].mxu0
      %v602 = vadd.f32 %v314, %v601
      %v603 = vpop.f32.mrb[0].mxu0
      %v604 = vadd.f32 %v318, %v603
      %v605 = vpop.f32.mrb[0].mxu0
      %v606 = vadd.f32 %v314, %v605
      %v607 = vpop.f32.mrb[0].mxu0
      %v608 = vadd.f32 %v318, %v607
      %609 = vmatprep.mubr.bf16.mxu0 0
      %610 = vmatmul.mubr.bf16.gmra.mrb[0].mxu0 %v393
      %v611 = vpop.f32.mrb[0].mxu0
      %v612 = vadd.f32 %v314, %v611
      %v613 = vpop.f32.mrb[0].mxu0
      %v614 = vadd.f32 %v318, %v613
      %v615 = vpop.f32.mrb[0].mxu0
      %v616 = vadd.f32 %v314, %v615
      %v617 = vpop.f32.mrb[0].mxu0
      %v618 = vadd.f32 %v318, %v617
      %619 = vmatprep.mubr.bf16.mxu0 0
      %620 = vmatmul.mubr.bf16.gmra.mrb[0].mxu0 %v394
      %v621 = vpop.f32.mrb[0].mxu0
      %v622 = vadd.f32 %v314, %v621
      %v623 = vpop.f32.mrb[0].mxu0
      %v624 = vadd.f32 %v318, %v623
      %v625 = vpop.f32.mrb[0].mxu0
      %v626 = vadd.f32 %v314, %v625
      %v627 = vpop.f32.mrb[0].mxu0
      %v628 = vadd.f32 %v318, %v627
      %629 = vmatprep.mubr.bf16.mxu0 0
      %630 = vmatmul.mubr.bf16.gmra.mrb[0].mxu0 %v395
      %v631 = vpop.f32.mrb[0].mxu0
      %v632 = vadd.f32 %v314, %v631
      %v633 = vpop.f32.mrb[0].mxu0
      %v634 = vadd.f32 %v318, %v633
      %v635 = vpop.f32.mrb[0].mxu0
      %v636 = vadd.f32 %v314, %v635
      %v637 = vpop.f32.mrb[0].mxu0
      %v638 = vadd.f32 %v318, %v637
      %639 = vmatprep.mubr.bf16.mxu0 0
      %640 = vmatmul.mubr.bf16.gmra.mrb[0].mxu0 %v396
      %v641 = vpop.f32.mrb[0].mxu0
      %v642 = vadd.f32 %v314, %v641
      %v643 = vpop.f32.mrb[0].mxu0
      %v644 = vadd.f32 %v318, %v643
      %v645 = vpop.f32.mrb[0].mxu0
      %v646 = vadd.f32 %v314, %v645
      %v647 = vpop.f32.mrb[0].mxu0
      %v648 = vadd.f32 %v318, %v647
      %649 = vmatprep.mubr.bf16.mxu0 0
      %650 = vmatmul.mubr.bf16.gmra.mrb[0].mxu0 %v397
      %v651 = vpop.f32.mrb[0].mxu0
      %v652 = vadd.f32 %v314, %v651
      %v653 = vpop.f32.mrb[0].mxu0
      %v654 = vadd.f32 %v318, %v653
      %v655 = vpop.f32.mrb[0].mxu0
      %v656 = vadd.f32 %v314, %v655
      %v657 = vpop.f32.mrb[0].mxu0
      %v658 = vadd.f32 %v318, %v657
      %659 = vmatprep.mubr.bf16.mxu0 0
      %660 = vmatmul.mubr.bf16.gmra.mrb[0].mxu0 %v398
      %v661 = vpop.f32.mrb[0].mxu0
      %v662 = vadd.f32 %v314, %v661
      %v663 = vpop.f32.mrb[0].mxu0
      %v664 = vadd.f32 %v318, %v663
      %v665 = vpop.f32.mrb[0].mxu0
      %v666 = vadd.f32 %v314, %v665
      %v667 = vpop.f32.mrb[0].mxu0
      %v668 = vadd.f32 %v318, %v667
      %669 = vmatprep.mubr.bf16.mxu0 0
      %670 = vmatmul.mubr.bf16.gmra.mrb[0].mxu0 %v399
      %v671 = vpop.f32.mrb[0].mxu0
      %v672 = vadd.f32 %v314, %v671
      %v673 = vpop.f32.mrb[0].mxu0
      %v674 = vadd.f32 %v318, %v673
      %v675 = vpop.f32.mrb[0].mxu0
      %v676 = vadd.f32 %v314, %v675
      %v677 = vpop.f32.mrb[0].mxu0
      %v678 = vadd.f32 %v318, %v677
      %679 = vmatprep.mubr.bf16.mxu0 0
      %680 = vmatmul.mubr.bf16.gmra.mrb[0].mxu0 %v400
      %v681 = vpop.f32.mrb[0].mxu0
      %v682 = vadd.f32 %v314, %v681
      %v683 = vpop.f32.mrb[0].mxu0
      %v684 = vadd.f32 %v318, %v683
      %v685 = vpop.f32.mrb[0].mxu0
      %v686 = vadd.f32 %v314, %v685
      %v687 = vpop.f32.mrb[0].mxu0
      %v688 = vadd.f32 %v318, %v687
      %689 = vdwg.mxu0
      %v690 = vmax.f32 %v532, 0.0
      %v691 = vmax.f32 %v534, 0.0
      %v692 = vmax.f32 %v536, 0.0
      %v693 = vmax.f32 %v538, 0.0
      %v694 = vmax.f32 %v542, 0.0
      %v695 = vmax.f32 %v544, 0.0
      %v696 = vmax.f32 %v546, 0.0
      %v697 = vmax.f32 %v548, 0.0
      %v698 = vmax.f32 %v552, 0.0
      %v699 = vmax.f32 %v554, 0.0
      %v700 = vmax.f32 %v556, 0.0
      %v701 = vmax.f32 %v558, 0.0
      %v702 = vmax.f32 %v562, 0.0
      %v703 = vmax.f32 %v564, 0.0
      %v704 = vmax.f32 %v566, 0.0
      %v705 = vmax.f32 %v568, 0.0
      %v706 = vmax.f32 %v572, 0.0
      %v707 = vmax.f32 %v574, 0.0
      %v708 = vmax.f32 %v576, 0.0
      %v709 = vmax.f32 %v578, 0.0
      %v710 = vmax.f32 %v582, 0.0
      %v711 = vmax.f32 %v584, 0.0
      %v712 = vmax.f32 %v586, 0.0
      %v713 = vmax.f32 %v588, 0.0
      %v714 = vmax.f32 %v592, 0.0
      %v715 = vmax.f32 %v594, 0.0
      %v716 = vmax.f32 %v596, 0.0
      %v717 = vmax.f32 %v598, 0.0
      %v718 = vmax.f32 %v602, 0.0
      %v719 = vmax.f32 %v604, 0.0
      %v720 = vmax.f32 %v606, 0.0
      %v721 = vmax.f32 %v608, 0.0
      %v722 = vmax.f32 %v612, 0.0
      %v723 = vmax.f32 %v614, 0.0
      %v724 = vmax.f32 %v616, 0.0
      %v725 = vmax.f32 %v618, 0.0
      %v726 = vmax.f32 %v622, 0.0
      %v727 = vmax.f32 %v624, 0.0
      %v728 = vmax.f32 %v626, 0.0
      %v729 = vmax.f32 %v628, 0.0
      %v730 = vmax.f32 %v632, 0.0
      %v731 = vmax.f32 %v634, 0.0
      %v732 = vmax.f32 %v636, 0.0
      %v733 = vmax.f32 %v638, 0.0
      %v734 = vmax.f32 %v642, 0.0
      %v735 = vmax.f32 %v644, 0.0
      %v736 = vmax.f32 %v646, 0.0
      %v737 = vmax.f32 %v648, 0.0
      %v738 = vmax.f32 %v652, 0.0
      %v739 = vmax.f32 %v654, 0.0
      %v740 = vmax.f32 %v656, 0.0
      %v741 = vmax.f32 %v658, 0.0
      %v742 = vmax.f32 %v662, 0.0
      %v743 = vmax.f32 %v664, 0.0
      %v744 = vmax.f32 %v666, 0.0
      %v745 = vmax.f32 %v668, 0.0
      %v746 = vmax.f32 %v672, 0.0
      %v747 = vmax.f32 %v674, 0.0
      %v748 = vmax.f32 %v676, 0.0
      %v749 = vmax.f32 %v678, 0.0
      %v750 = vmax.f32 %v682, 0.0
      %v751 = vmax.f32 %v684, 0.0
      %v752 = vmax.f32 %v686, 0.0
      %v753 = vmax.f32 %v688, 0.0
      %v754 = vpack.c.bf16 %v692, %v690
      %v755 = vpack.c.bf16 %v693, %v691
      %v756 = vpack.c.bf16 %v696, %v694
      %v757 = vpack.c.bf16 %v697, %v695
      %v758 = vpack.c.bf16 %v700, %v698
      %v759 = vpack.c.bf16 %v701, %v699
      %v760 = vpack.c.bf16 %v704, %v702
      %v761 = vpack.c.bf16 %v705, %v703
      %v762 = vpack.c.bf16 %v708, %v706
      %v763 = vpack.c.bf16 %v709, %v707
      %v764 = vpack.c.bf16 %v712, %v710
      %v765 = vpack.c.bf16 %v713, %v711
      %v766 = vpack.c.bf16 %v716, %v714
      %v767 = vpack.c.bf16 %v717, %v715
      %v768 = vpack.c.bf16 %v720, %v718
      %v769 = vpack.c.bf16 %v721, %v719
      %v770 = vpack.c.bf16 %v724, %v722
      %v771 = vpack.c.bf16 %v725, %v723
      %v772 = vpack.c.bf16 %v728, %v726
      %v773 = vpack.c.bf16 %v729, %v727
      %v774 = vpack.c.bf16 %v732, %v730
      %v775 = vpack.c.bf16 %v733, %v731
      %v776 = vpack.c.bf16 %v736, %v734
      %v777 = vpack.c.bf16 %v737, %v735
      %v778 = vpack.c.bf16 %v740, %v738
      %v779 = vpack.c.bf16 %v741, %v739
      %v780 = vpack.c.bf16 %v744, %v742
      %v781 = vpack.c.bf16 %v745, %v743
      %v782 = vpack.c.bf16 %v748, %v746
      %v783 = vpack.c.bf16 %v749, %v747
      %v784 = vpack.c.bf16 %v752, %v750
      %v785 = vpack.c.bf16 %v753, %v751
      %v786 = vld [vmem:[%s2] sm:$0xff]
      %v787 = vld [vmem:[%s2 + $0x8] sm:$0xff]
      %v788 = vld [vmem:[%s2 + $0x10] sm:$0xff]
      %v789 = vld [vmem:[%s2 + $0x18] sm:$0xff]
      %v790 = vld [vmem:[%s2 + $0x20] sm:$0xff]
      %v791 = vld [vmem:[%s2 + $0x28] sm:$0xff]
      %v792 = vld [vmem:[%s2 + $0x30] sm:$0xff]
      %v793 = vld [vmem:[%s2 + $0x38] sm:$0xff]
      %v794 = vld [vmem:[%s2 + $0x40] sm:$0xff]
      %v795 = vld [vmem:[%s2 + $0x48] sm:$0xff]
      %v796 = vld [vmem:[%s2 + $0x50] sm:$0xff]
      %v797 = vld [vmem:[%s2 + $0x58] sm:$0xff]
      %v798 = vld [vmem:[%s2 + $0x60] sm:$0xff]
      %v799 = vld [vmem:[%s2 + $0x68] sm:$0xff]
      %v800 = vld [vmem:[%s2 + $0x70] sm:$0xff]
      %v801 = vld [vmem:[%s2 + $0x78] sm:$0xff]
      %v802 = vld [vmem:[%s2 + $0x80] sm:$0xff]
      %v803 = vld [vmem:[%s2 + $0x88] sm:$0xff]
      %v804 = vld [vmem:[%s2 + $0x90] sm:$0xff]
      %v805 = vld [vmem:[%s2 + $0x98] sm:$0xff]
      %v806 = vld [vmem:[%s2 + $0xa0] sm:$0xff]
      %v807 = vld [vmem:[%s2 + $0xa8] sm:$0xff]
      %v808 = vld [vmem:[%s2 + $0xb0] sm:$0xff]
      %v809 = vld [vmem:[%s2 + $0xb8] sm:$0xff]
      %v810 = vld [vmem:[%s2 + $0xc0] sm:$0xff]
      %v811 = vld [vmem:[%s2 + $0xc8] sm:$0xff]
      %v812 = vld [vmem:[%s2 + $0xd0] sm:$0xff]
      %v813 = vld [vmem:[%s2 + $0xd8] sm:$0xff]
      %v814 = vld [vmem:[%s2 + $0xe0] sm:$0xff]
      %v815 = vld [vmem:[%s2 + $0xe8] sm:$0xff]
      %v816 = vld [vmem:[%s2 + $0xf0] sm:$0xff]
      %v817 = vld [vmem:[%s2 + $0xf8] sm:$0xff]
      %v818 = vld [vmem:[%s2 + $0x100] sm:$0xff]
      %v819 = vld [vmem:[%s2 + $0x108] sm:$0xff]
      %v820 = vld [vmem:[%s2 + $0x110] sm:$0xff]
      %v821 = vld [vmem:[%s2 + $0x118] sm:$0xff]
      %v822 = vld [vmem:[%s2 + $0x120] sm:$0xff]
      %v823 = vld [vmem:[%s2 + $0x128] sm:$0xff]
      %v824 = vld [vmem:[%s2 + $0x130] sm:$0xff]
      %v825 = vld [vmem:[%s2 + $0x138] sm:$0xff]
      %v826 = vld [vmem:[%s2 + $0x140] sm:$0xff]
      %v827 = vld [vmem:[%s2 + $0x148] sm:$0xff]
      %v828 = vld [vmem:[%s2 + $0x150] sm:$0xff]
      %v829 = vld [vmem:[%s2 + $0x158] sm:$0xff]
      %v830 = vld [vmem:[%s2 + $0x160] sm:$0xff]
      %v831 = vld [vmem:[%s2 + $0x168] sm:$0xff]
      %v832 = vld [vmem:[%s2 + $0x170] sm:$0xff]
      %v833 = vld [vmem:[%s2 + $0x178] sm:$0xff]
      %v834 = vld [vmem:[%s2 + $0x180] sm:$0xff]
      %v835 = vld [vmem:[%s2 + $0x188] sm:$0xff]
      %v836 = vld [vmem:[%s2 + $0x190] sm:$0xff]
      %v837 = vld [vmem:[%s2 + $0x198] sm:$0xff]
      %v838 = vld [vmem:[%s2 + $0x1a0] sm:$0xff]
      %v839 = vld [vmem:[%s2 + $0x1a8] sm:$0xff]
      %v840 = vld [vmem:[%s2 + $0x1b0] sm:$0xff]
      %v841 = vld [vmem:[%s2 + $0x1b8] sm:$0xff]
      %v842 = vld [vmem:[%s2 + $0x1c0] sm:$0xff]
      %v843 = vld [vmem:[%s2 + $0x1c8] sm:$0xff]
      %v844 = vld [vmem:[%s2 + $0x1d0] sm:$0xff]
      %v845 = vld [vmem:[%s2 + $0x1d8] sm:$0xff]
      %v846 = vld [vmem:[%s2 + $0x1e0] sm:$0xff]
      %v847 = vld [vmem:[%s2 + $0x1e8] sm:$0xff]
      %v848 = vld [vmem:[%s2 + $0x1f0] sm:$0xff]
      %v849 = vld [vmem:[%s2 + $0x1f8] sm:$0xff]
      %v851 = vlaneseq
      %v852 = vshrl.u32 %v851, 7
      %v853 = vsub.s32 0, %v852
      %v854 = vrot.slane %v291, %v853
      %v855 = vlaneseq
      %v856 = vshrl.u32 %v855, 7
      %v857 = vsub.s32 1, %v856
      %v858 = vrot.slane %v291, %v857
      %v859 = vlaneseq
      %v860 = vshrl.u32 %v859, 7
      %v861 = vsub.s32 2, %v860
      %v862 = vrot.slane %v291, %v861
      %v863 = vlaneseq
      %v864 = vshrl.u32 %v863, 7
      %v865 = vsub.s32 3, %v864
      %v866 = vrot.slane %v291, %v865
      %v935 = vunpack.c.l.b16 %v786
      %v936 = vunpack.c.h.b16 %v786
      %v937 = vunpack.c.l.b16 %v787
      %v938 = vunpack.c.h.b16 %v787
      %v939 = vunpack.c.l.b16 %v788
      %v940 = vunpack.c.h.b16 %v788
      %v941 = vunpack.c.l.b16 %v789
      %v942 = vunpack.c.h.b16 %v789
      %v943 = vunpack.c.l.b16 %v790
      %v944 = vunpack.c.h.b16 %v790
      %v945 = vunpack.c.l.b16 %v791
      %v946 = vunpack.c.h.b16 %v791
      %v947 = vunpack.c.l.b16 %v792
      %v948 = vunpack.c.h.b16 %v792
      %v949 = vunpack.c.l.b16 %v793
      %v950 = vunpack.c.h.b16 %v793
      %v951 = vunpack.c.l.b16 %v794
      %v952 = vunpack.c.h.b16 %v794
      %v953 = vunpack.c.l.b16 %v795
      %v954 = vunpack.c.h.b16 %v795
      %v955 = vunpack.c.l.b16 %v796
      %v956 = vunpack.c.h.b16 %v796
      %v957 = vunpack.c.l.b16 %v797
      %v958 = vunpack.c.h.b16 %v797
      %v959 = vunpack.c.l.b16 %v798
      %v960 = vunpack.c.h.b16 %v798
      %v961 = vunpack.c.l.b16 %v799
      %v962 = vunpack.c.h.b16 %v799
      %v963 = vunpack.c.l.b16 %v800
      %v964 = vunpack.c.h.b16 %v800
      %v965 = vunpack.c.l.b16 %v801
      %v966 = vunpack.c.h.b16 %v801
      %v967 = vunpack.c.l.b16 %v802
      %v968 = vunpack.c.h.b16 %v802
      %v969 = vunpack.c.l.b16 %v803
      %v970 = vunpack.c.h.b16 %v803
      %v971 = vunpack.c.l.b16 %v804
      %v972 = vunpack.c.h.b16 %v804
      %v973 = vunpack.c.l.b16 %v805
      %v974 = vunpack.c.h.b16 %v805
      %v975 = vunpack.c.l.b16 %v806
      %v976 = vunpack.c.h.b16 %v806
      %v977 = vunpack.c.l.b16 %v807
      %v978 = vunpack.c.h.b16 %v807
      %v979 = vunpack.c.l.b16 %v808
      %v980 = vunpack.c.h.b16 %v808
      %v981 = vunpack.c.l.b16 %v809
      %v982 = vunpack.c.h.b16 %v809
      %v983 = vunpack.c.l.b16 %v810
      %v984 = vunpack.c.h.b16 %v810
      %v985 = vunpack.c.l.b16 %v811
      %v986 = vunpack.c.h.b16 %v811
      %v987 = vunpack.c.l.b16 %v812
      %v988 = vunpack.c.h.b16 %v812
      %v989 = vunpack.c.l.b16 %v813
      %v990 = vunpack.c.h.b16 %v813
      %v991 = vunpack.c.l.b16 %v814
      %v992 = vunpack.c.h.b16 %v814
      %v993 = vunpack.c.l.b16 %v815
      %v994 = vunpack.c.h.b16 %v815
      %v995 = vunpack.c.l.b16 %v816
      %v996 = vunpack.c.h.b16 %v816
      %v997 = vunpack.c.l.b16 %v817
      %v998 = vunpack.c.h.b16 %v817
      %v999 = vunpack.c.l.b16 %v818
      %v1000 = vunpack.c.h.b16 %v818
      %v1001 = vunpack.c.l.b16 %v819
      %v1002 = vunpack.c.h.b16 %v819
      %v1003 = vunpack.c.l.b16 %v820
      %v1004 = vunpack.c.h.b16 %v820
      %v1005 = vunpack.c.l.b16 %v821
      %v1006 = vunpack.c.h.b16 %v821
      %v1007 = vunpack.c.l.b16 %v822
      %v1008 = vunpack.c.h.b16 %v822
      %v1009 = vunpack.c.l.b16 %v823
      %v1010 = vunpack.c.h.b16 %v823
      %v1011 = vunpack.c.l.b16 %v824
      %v1012 = vunpack.c.h.b16 %v824
      %v1013 = vunpack.c.l.b16 %v825
      %v1014 = vunpack.c.h.b16 %v825
      %v1015 = vunpack.c.l.b16 %v826
      %v1016 = vunpack.c.h.b16 %v826
      %v1017 = vunpack.c.l.b16 %v827
      %v1018 = vunpack.c.h.b16 %v827
      %v1019 = vunpack.c.l.b16 %v828
      %v1020 = vunpack.c.h.b16 %v828
      %v1021 = vunpack.c.l.b16 %v829
      %v1022 = vunpack.c.h.b16 %v829
      %v1023 = vunpack.c.l.b16 %v830
      %v1024 = vunpack.c.h.b16 %v830
      %v1025 = vunpack.c.l.b16 %v831
      %v1026 = vunpack.c.h.b16 %v831
      %v1027 = vunpack.c.l.b16 %v832
      %v1028 = vunpack.c.h.b16 %v832
      %v1029 = vunpack.c.l.b16 %v833
      %v1030 = vunpack.c.h.b16 %v833
      %v1031 = vunpack.c.l.b16 %v834
      %v1032 = vunpack.c.h.b16 %v834
      %v1033 = vunpack.c.l.b16 %v835
      %v1034 = vunpack.c.h.b16 %v835
      %v1035 = vunpack.c.l.b16 %v836
      %v1036 = vunpack.c.h.b16 %v836
      %v1037 = vunpack.c.l.b16 %v837
      %v1038 = vunpack.c.h.b16 %v837
      %v1039 = vunpack.c.l.b16 %v838
      %v1040 = vunpack.c.h.b16 %v838
      %v1041 = vunpack.c.l.b16 %v839
      %v1042 = vunpack.c.h.b16 %v839
      %v1043 = vunpack.c.l.b16 %v840
      %v1044 = vunpack.c.h.b16 %v840
      %v1045 = vunpack.c.l.b16 %v841
      %v1046 = vunpack.c.h.b16 %v841
      %v1047 = vunpack.c.l.b16 %v842
      %v1048 = vunpack.c.h.b16 %v842
      %v1049 = vunpack.c.l.b16 %v843
      %v1050 = vunpack.c.h.b16 %v843
      %v1051 = vunpack.c.l.b16 %v844
      %v1052 = vunpack.c.h.b16 %v844
      %v1053 = vunpack.c.l.b16 %v845
      %v1054 = vunpack.c.h.b16 %v845
      %v1055 = vunpack.c.l.b16 %v846
      %v1056 = vunpack.c.h.b16 %v846
      %v1057 = vunpack.c.l.b16 %v847
      %v1058 = vunpack.c.h.b16 %v847
      %v1059 = vunpack.c.l.b16 %v848
      %v1060 = vunpack.c.h.b16 %v848
      %v1061 = vunpack.c.l.b16 %v849
      %v1062 = vunpack.c.h.b16 %v849
      %v1063 = vpack.c.b16 %v939, %v935
      %v1064 = vpack.c.b16 %v940, %v936
      %v1065 = vpack.c.b16 %v941, %v937
      %v1066 = vpack.c.b16 %v942, %v938
      %v1067 = vpack.c.b16 %v947, %v943
      %v1068 = vpack.c.b16 %v948, %v944
      %v1069 = vpack.c.b16 %v949, %v945
      %v1070 = vpack.c.b16 %v950, %v946
      %v1071 = vpack.c.b16 %v955, %v951
      %v1072 = vpack.c.b16 %v956, %v952
      %v1073 = vpack.c.b16 %v957, %v953
      %v1074 = vpack.c.b16 %v958, %v954
      %v1075 = vpack.c.b16 %v963, %v959
      %v1076 = vpack.c.b16 %v964, %v960
      %v1077 = vpack.c.b16 %v965, %v961
      %v1078 = vpack.c.b16 %v966, %v962
      %v1079 = vpack.c.b16 %v971, %v967
      %v1080 = vpack.c.b16 %v972, %v968
      %v1081 = vpack.c.b16 %v973, %v969
      %v1082 = vpack.c.b16 %v974, %v970
      %v1083 = vpack.c.b16 %v979, %v975
      %v1084 = vpack.c.b16 %v980, %v976
      %v1085 = vpack.c.b16 %v981, %v977
      %v1086 = vpack.c.b16 %v982, %v978
      %v1087 = vpack.c.b16 %v987, %v983
      %v1088 = vpack.c.b16 %v988, %v984
      %v1089 = vpack.c.b16 %v989, %v985
      %v1090 = vpack.c.b16 %v990, %v986
      %v1091 = vpack.c.b16 %v995, %v991
      %v1092 = vpack.c.b16 %v996, %v992
      %v1093 = vpack.c.b16 %v997, %v993
      %v1094 = vpack.c.b16 %v998, %v994
      %v1095 = vpack.c.b16 %v1003, %v999
      %v1096 = vpack.c.b16 %v1004, %v1000
      %v1097 = vpack.c.b16 %v1005, %v1001
      %v1098 = vpack.c.b16 %v1006, %v1002
      %v1099 = vpack.c.b16 %v1011, %v1007
      %v1100 = vpack.c.b16 %v1012, %v1008
      %v1101 = vpack.c.b16 %v1013, %v1009
      %v1102 = vpack.c.b16 %v1014, %v1010
      %v1103 = vpack.c.b16 %v1019, %v1015
      %v1104 = vpack.c.b16 %v1020, %v1016
      %v1105 = vpack.c.b16 %v1021, %v1017
      %v1106 = vpack.c.b16 %v1022, %v1018
      %v1107 = vpack.c.b16 %v1027, %v1023
      %v1108 = vpack.c.b16 %v1028, %v1024
      %v1109 = vpack.c.b16 %v1029, %v1025
      %v1110 = vpack.c.b16 %v1030, %v1026
      %v1111 = vpack.c.b16 %v1035, %v1031
      %v1112 = vpack.c.b16 %v1036, %v1032
      %v1113 = vpack.c.b16 %v1037, %v1033
      %v1114 = vpack.c.b16 %v1038, %v1034
      %v1115 = vpack.c.b16 %v1043, %v1039
      %v1116 = vpack.c.b16 %v1044, %v1040
      %v1117 = vpack.c.b16 %v1045, %v1041
      %v1118 = vpack.c.b16 %v1046, %v1042
      %v1119 = vpack.c.b16 %v1051, %v1047
      %v1120 = vpack.c.b16 %v1052, %v1048
      %v1121 = vpack.c.b16 %v1053, %v1049
      %v1122 = vpack.c.b16 %v1054, %v1050
      %v1123 = vpack.c.b16 %v1059, %v1055
      %v1124 = vpack.c.b16 %v1060, %v1056
      %v1125 = vpack.c.b16 %v1061, %v1057
      %v1126 = vpack.c.b16 %v1062, %v1058
      %1191 = vmatprep.subr.bf16.mxu0 %v1064
      %1192 = vmatpush1.bf16.msra.mxu0 %v1063
      %1193 = vmatprep.subr.bf16.mxu0 %v1068
      %1194 = vmatpush1.bf16.msra.mxu0 %v1067
      %1195 = vmatprep.subr.bf16.mxu0 %v1072
      %1196 = vmatpush1.bf16.msra.mxu0 %v1071
      %1197 = vmatprep.subr.bf16.mxu0 %v1076
      %1198 = vmatpush1.bf16.msra.mxu0 %v1075
      %1199 = vmatprep.subr.bf16.mxu0 %v1080
      %1200 = vmatpush1.bf16.msra.mxu0 %v1079
      %1201 = vmatprep.subr.bf16.mxu0 %v1084
      %1202 = vmatpush1.bf16.msra.mxu0 %v1083
      %1203 = vmatprep.subr.bf16.mxu0 %v1088
      %1204 = vmatpush1.bf16.msra.mxu0 %v1087
      %1205 = vmatprep.subr.bf16.mxu0 %v1092
      %1206 = vmatpush1.bf16.msra.mxu0 %v1091
      %1207 = vmatprep.subr.bf16.mxu0 %v1096
      %1208 = vmatpush1.bf16.msra.mxu0 %v1095
      %1209 = vmatprep.subr.bf16.mxu0 %v1100
      %1210 = vmatpush1.bf16.msra.mxu0 %v1099
      %1211 = vmatprep.subr.bf16.mxu0 %v1104
      %1212 = vmatpush1.bf16.msra.mxu0 %v1103
      %1213 = vmatprep.subr.bf16.mxu0 %v1108
      %1214 = vmatpush1.bf16.msra.mxu0 %v1107
      %1215 = vmatprep.subr.bf16.mxu0 %v1112
      %1216 = vmatpush1.bf16.msra.mxu0 %v1111
      %1217 = vmatprep.subr.bf16.mxu0 %v1116
      %1218 = vmatpush1.bf16.msra.mxu0 %v1115
      %1219 = vmatprep.subr.bf16.mxu0 %v1120
      %1220 = vmatpush1.bf16.msra.mxu0 %v1119
      %1221 = vmatprep.subr.bf16.mxu0 %v1124
      %1222 = vmatpush1.bf16.msra.mxu0 %v1123
      %1223 = vmatprep.mubr.bf16.mxu0 %v755
      %1224 = vmatmul.mubr.bf16.gmra.mrb[0].mxu0 %v754
      %v1225 = vpop.f32.mrb[0].mxu0
      %v1226 = vadd.f32 %v854, %v1225
      %v1227 = vpop.f32.mrb[0].mxu0
      %v1228 = vadd.f32 %v858, %v1227
      %v1229 = vpop.f32.mrb[0].mxu0
      %v1230 = vadd.f32 %v854, %v1229
      %v1231 = vpop.f32.mrb[0].mxu0
      %v1232 = vadd.f32 %v858, %v1231
      %1233 = vmatprep.mubr.bf16.mxu0 %v757
      %1234 = vmatmul.mubr.bf16.gmra.mrb[0].mxu0 %v756
      %v1235 = vpop.f32.mrb[0].mxu0
      %v1236 = vadd.f32 %v854, %v1235
      %v1237 = vpop.f32.mrb[0].mxu0
      %v1238 = vadd.f32 %v858, %v1237
      %v1239 = vpop.f32.mrb[0].mxu0
      %v1240 = vadd.f32 %v854, %v1239
      %v1241 = vpop.f32.mrb[0].mxu0
      %v1242 = vadd.f32 %v858, %v1241
      %1243 = vmatprep.mubr.bf16.mxu0 %v759
      %1244 = vmatmul.mubr.bf16.gmra.mrb[0].mxu0 %v758
      %v1245 = vpop.f32.mrb[0].mxu0
      %v1246 = vadd.f32 %v854, %v1245
      %v1247 = vpop.f32.mrb[0].mxu0
      %v1248 = vadd.f32 %v858, %v1247
      %v1249 = vpop.f32.mrb[0].mxu0
      %v1250 = vadd.f32 %v854, %v1249
      %v1251 = vpop.f32.mrb[0].mxu0
      %v1252 = vadd.f32 %v858, %v1251
      %1253 = vmatprep.mubr.bf16.mxu0 %v761
      %1254 = vmatmul.mubr.bf16.gmra.mrb[0].mxu0 %v760
      %v1255 = vpop.f32.mrb[0].mxu0
      %v1256 = vadd.f32 %v854, %v1255
      %v1257 = vpop.f32.mrb[0].mxu0
      %v1258 = vadd.f32 %v858, %v1257
      %v1259 = vpop.f32.mrb[0].mxu0
      %v1260 = vadd.f32 %v854, %v1259
      %v1261 = vpop.f32.mrb[0].mxu0
      %v1262 = vadd.f32 %v858, %v1261
      %1263 = vmatprep.mubr.bf16.mxu0 %v763
      %1264 = vmatmul.mubr.bf16.gmra.mrb[0].mxu0 %v762
      %v1265 = vpop.f32.mrb[0].mxu0
      %v1266 = vadd.f32 %v854, %v1265
      %v1267 = vpop.f32.mrb[0].mxu0
      %v1268 = vadd.f32 %v858, %v1267
      %v1269 = vpop.f32.mrb[0].mxu0
      %v1270 = vadd.f32 %v854, %v1269
      %v1271 = vpop.f32.mrb[0].mxu0
      %v1272 = vadd.f32 %v858, %v1271
      %1273 = vmatprep.mubr.bf16.mxu0 %v765
      %1274 = vmatmul.mubr.bf16.gmra.mrb[0].mxu0 %v764
      %v1275 = vpop.f32.mrb[0].mxu0
      %v1276 = vadd.f32 %v854, %v1275
      %v1277 = vpop.f32.mrb[0].mxu0
      %v1278 = vadd.f32 %v858, %v1277
      %v1279 = vpop.f32.mrb[0].mxu0
      %v1280 = vadd.f32 %v854, %v1279
      %v1281 = vpop.f32.mrb[0].mxu0
      %v1282 = vadd.f32 %v858, %v1281
      %1283 = vmatprep.mubr.bf16.mxu0 %v767
      %1284 = vmatmul.mubr.bf16.gmra.mrb[0].mxu0 %v766
      %v1285 = vpop.f32.mrb[0].mxu0
      %v1286 = vadd.f32 %v854, %v1285
      %v1287 = vpop.f32.mrb[0].mxu0
      %v1288 = vadd.f32 %v858, %v1287
      %v1289 = vpop.f32.mrb[0].mxu0
      %v1290 = vadd.f32 %v854, %v1289
      %v1291 = vpop.f32.mrb[0].mxu0
      %v1292 = vadd.f32 %v858, %v1291
      %1293 = vmatprep.mubr.bf16.mxu0 %v769
      %1294 = vmatmul.mubr.bf16.gmra.mrb[0].mxu0 %v768
      %v1295 = vpop.f32.mrb[0].mxu0
      %v1296 = vadd.f32 %v854, %v1295
      %v1297 = vpop.f32.mrb[0].mxu0
      %v1298 = vadd.f32 %v858, %v1297
      %v1299 = vpop.f32.mrb[0].mxu0
      %v1300 = vadd.f32 %v854, %v1299
      %v1301 = vpop.f32.mrb[0].mxu0
      %v1302 = vadd.f32 %v858, %v1301
      %1303 = vmatprep.mubr.bf16.mxu0 %v771
      %1304 = vmatmul.mubr.bf16.gmra.mrb[0].mxu0 %v770
      %v1305 = vpop.f32.mrb[0].mxu0
      %v1306 = vadd.f32 %v854, %v1305
      %v1307 = vpop.f32.mrb[0].mxu0
      %v1308 = vadd.f32 %v858, %v1307
      %v1309 = vpop.f32.mrb[0].mxu0
      %v1310 = vadd.f32 %v854, %v1309
      %v1311 = vpop.f32.mrb[0].mxu0
      %v1312 = vadd.f32 %v858, %v1311
      %1313 = vmatprep.mubr.bf16.mxu0 %v773
      %1314 = vmatmul.mubr.bf16.gmra.mrb[0].mxu0 %v772
      %v1315 = vpop.f32.mrb[0].mxu0
      %v1316 = vadd.f32 %v854, %v1315
      %v1317 = vpop.f32.mrb[0].mxu0
      %v1318 = vadd.f32 %v858, %v1317
      %v1319 = vpop.f32.mrb[0].mxu0
      %v1320 = vadd.f32 %v854, %v1319
      %v1321 = vpop.f32.mrb[0].mxu0
      %v1322 = vadd.f32 %v858, %v1321
      %1323 = vmatprep.mubr.bf16.mxu0 %v775
      %1324 = vmatmul.mubr.bf16.gmra.mrb[0].mxu0 %v774
      %v1325 = vpop.f32.mrb[0].mxu0
      %v1326 = vadd.f32 %v854, %v1325
      %v1327 = vpop.f32.mrb[0].mxu0
      %v1328 = vadd.f32 %v858, %v1327
      %v1329 = vpop.f32.mrb[0].mxu0
      %v1330 = vadd.f32 %v854, %v1329
      %v1331 = vpop.f32.mrb[0].mxu0
      %v1332 = vadd.f32 %v858, %v1331
      %1333 = vmatprep.mubr.bf16.mxu0 %v777
      %1334 = vmatmul.mubr.bf16.gmra.mrb[0].mxu0 %v776
      %v1335 = vpop.f32.mrb[0].mxu0
      %v1336 = vadd.f32 %v854, %v1335
      %v1337 = vpop.f32.mrb[0].mxu0
      %v1338 = vadd.f32 %v858, %v1337
      %v1339 = vpop.f32.mrb[0].mxu0
      %v1340 = vadd.f32 %v854, %v1339
      %v1341 = vpop.f32.mrb[0].mxu0
      %v1342 = vadd.f32 %v858, %v1341
      %1343 = vmatprep.mubr.bf16.mxu0 %v779
      %1344 = vmatmul.mubr.bf16.gmra.mrb[0].mxu0 %v778
      %v1345 = vpop.f32.mrb[0].mxu0
      %v1346 = vadd.f32 %v854, %v1345
      %v1347 = vpop.f32.mrb[0].mxu0
      %v1348 = vadd.f32 %v858, %v1347
      %v1349 = vpop.f32.mrb[0].mxu0
      %v1350 = vadd.f32 %v854, %v1349
      %v1351 = vpop.f32.mrb[0].mxu0
      %v1352 = vadd.f32 %v858, %v1351
      %1353 = vmatprep.mubr.bf16.mxu0 %v781
      %1354 = vmatmul.mubr.bf16.gmra.mrb[0].mxu0 %v780
      %v1355 = vpop.f32.mrb[0].mxu0
      %v1356 = vadd.f32 %v854, %v1355
      %v1357 = vpop.f32.mrb[0].mxu0
      %v1358 = vadd.f32 %v858, %v1357
      %v1359 = vpop.f32.mrb[0].mxu0
      %v1360 = vadd.f32 %v854, %v1359
      %v1361 = vpop.f32.mrb[0].mxu0
      %v1362 = vadd.f32 %v858, %v1361
      %1363 = vmatprep.mubr.bf16.mxu0 %v783
      %1364 = vmatmul.mubr.bf16.gmra.mrb[0].mxu0 %v782
      %v1365 = vpop.f32.mrb[0].mxu0
      %v1366 = vadd.f32 %v854, %v1365
      %v1367 = vpop.f32.mrb[0].mxu0
      %v1368 = vadd.f32 %v858, %v1367
      %v1369 = vpop.f32.mrb[0].mxu0
      %v1370 = vadd.f32 %v854, %v1369
      %v1371 = vpop.f32.mrb[0].mxu0
      %v1372 = vadd.f32 %v858, %v1371
      %1373 = vmatprep.mubr.bf16.mxu0 %v785
      %1374 = vmatmul.mubr.bf16.gmra.mrb[0].mxu0 %v784
      %v1375 = vpop.f32.mrb[0].mxu0
      %v1376 = vadd.f32 %v854, %v1375
      %v1377 = vpop.f32.mrb[0].mxu0
      %v1378 = vadd.f32 %v858, %v1377
      %v1379 = vpop.f32.mrb[0].mxu0
      %v1380 = vadd.f32 %v854, %v1379
      %v1381 = vpop.f32.mrb[0].mxu0
      %v1382 = vadd.f32 %v858, %v1381
      %1383 = vdwg.mxu0
      %1384 = vmatprep.subr.bf16.mxu0 %v1066
      %1385 = vmatpush1.bf16.msra.mxu0 %v1065
      %1386 = vmatprep.subr.bf16.mxu0 %v1070
      %1387 = vmatpush1.bf16.msra.mxu0 %v1069
      %1388 = vmatprep.subr.bf16.mxu0 %v1074
      %1389 = vmatpush1.bf16.msra.mxu0 %v1073
      %1390 = vmatprep.subr.bf16.mxu0 %v1078
      %1391 = vmatpush1.bf16.msra.mxu0 %v1077
      %1392 = vmatprep.subr.bf16.mxu0 %v1082
      %1393 = vmatpush1.bf16.msra.mxu0 %v1081
      %1394 = vmatprep.subr.bf16.mxu0 %v1086
      %1395 = vmatpush1.bf16.msra.mxu0 %v1085
      %1396 = vmatprep.subr.bf16.mxu0 %v1090
      %1397 = vmatpush1.bf16.msra.mxu0 %v1089
      %1398 = vmatprep.subr.bf16.mxu0 %v1094
      %1399 = vmatpush1.bf16.msra.mxu0 %v1093
      %1400 = vmatprep.subr.bf16.mxu0 %v1098
      %1401 = vmatpush1.bf16.msra.mxu0 %v1097
      %1402 = vmatprep.subr.bf16.mxu0 %v1102
      %1403 = vmatpush1.bf16.msra.mxu0 %v1101
      %1404 = vmatprep.subr.bf16.mxu0 %v1106
      %1405 = vmatpush1.bf16.msra.mxu0 %v1105
      %1406 = vmatprep.subr.bf16.mxu0 %v1110
      %1407 = vmatpush1.bf16.msra.mxu0 %v1109
      %1408 = vmatprep.subr.bf16.mxu0 %v1114
      %1409 = vmatpush1.bf16.msra.mxu0 %v1113
      %1410 = vmatprep.subr.bf16.mxu0 %v1118
      %1411 = vmatpush1.bf16.msra.mxu0 %v1117
      %1412 = vmatprep.subr.bf16.mxu0 %v1122
      %1413 = vmatpush1.bf16.msra.mxu0 %v1121
      %1414 = vmatprep.subr.bf16.mxu0 %v1126
      %1415 = vmatpush1.bf16.msra.mxu0 %v1125
      %1416 = vmatprep.mubr.bf16.mxu0 %v755
      %1417 = vmatmul.mubr.bf16.gmra.mrb[0].mxu0 %v754
      %v1418 = vpop.f32.mrb[0].mxu0
      %v1419 = vadd.f32 %v862, %v1418
      %v1420 = vpop.f32.mrb[0].mxu0
      %v1421 = vadd.f32 %v866, %v1420
      %v1422 = vpop.f32.mrb[0].mxu0
      %v1423 = vadd.f32 %v862, %v1422
      %v1424 = vpop.f32.mrb[0].mxu0
      %v1425 = vadd.f32 %v866, %v1424
      %1426 = vmatprep.mubr.bf16.mxu0 %v757
      %1427 = vmatmul.mubr.bf16.gmra.mrb[0].mxu0 %v756
      %v1428 = vpop.f32.mrb[0].mxu0
      %v1429 = vadd.f32 %v862, %v1428
      %v1430 = vpop.f32.mrb[0].mxu0
      %v1431 = vadd.f32 %v866, %v1430
      %v1432 = vpop.f32.mrb[0].mxu0
      %v1433 = vadd.f32 %v862, %v1432
      %v1434 = vpop.f32.mrb[0].mxu0
      %v1435 = vadd.f32 %v866, %v1434
      %1436 = vmatprep.mubr.bf16.mxu0 %v759
      %1437 = vmatmul.mubr.bf16.gmra.mrb[0].mxu0 %v758
      %v1438 = vpop.f32.mrb[0].mxu0
      %v1439 = vadd.f32 %v862, %v1438
      %v1440 = vpop.f32.mrb[0].mxu0
      %v1441 = vadd.f32 %v866, %v1440
      %v1442 = vpop.f32.mrb[0].mxu0
      %v1443 = vadd.f32 %v862, %v1442
      %v1444 = vpop.f32.mrb[0].mxu0
      %v1445 = vadd.f32 %v866, %v1444
      %1446 = vmatprep.mubr.bf16.mxu0 %v761
      %1447 = vmatmul.mubr.bf16.gmra.mrb[0].mxu0 %v760
      %v1448 = vpop.f32.mrb[0].mxu0
      %v1449 = vadd.f32 %v862, %v1448
      %v1450 = vpop.f32.mrb[0].mxu0
      %v1451 = vadd.f32 %v866, %v1450
      %v1452 = vpop.f32.mrb[0].mxu0
      %v1453 = vadd.f32 %v862, %v1452
      %v1454 = vpop.f32.mrb[0].mxu0
      %v1455 = vadd.f32 %v866, %v1454
      %1456 = vmatprep.mubr.bf16.mxu0 %v763
      %1457 = vmatmul.mubr.bf16.gmra.mrb[0].mxu0 %v762
      %v1458 = vpop.f32.mrb[0].mxu0
      %v1459 = vadd.f32 %v862, %v1458
      %v1460 = vpop.f32.mrb[0].mxu0
      %v1461 = vadd.f32 %v866, %v1460
      %v1462 = vpop.f32.mrb[0].mxu0
      %v1463 = vadd.f32 %v862, %v1462
      %v1464 = vpop.f32.mrb[0].mxu0
      %v1465 = vadd.f32 %v866, %v1464
      %1466 = vmatprep.mubr.bf16.mxu0 %v765
      %1467 = vmatmul.mubr.bf16.gmra.mrb[0].mxu0 %v764
      %v1468 = vpop.f32.mrb[0].mxu0
      %v1469 = vadd.f32 %v862, %v1468
      %v1470 = vpop.f32.mrb[0].mxu0
      %v1471 = vadd.f32 %v866, %v1470
      %v1472 = vpop.f32.mrb[0].mxu0
      %v1473 = vadd.f32 %v862, %v1472
      %v1474 = vpop.f32.mrb[0].mxu0
      %v1475 = vadd.f32 %v866, %v1474
      %1476 = vmatprep.mubr.bf16.mxu0 %v767
      %1477 = vmatmul.mubr.bf16.gmra.mrb[0].mxu0 %v766
      %v1478 = vpop.f32.mrb[0].mxu0
      %v1479 = vadd.f32 %v862, %v1478
      %v1480 = vpop.f32.mrb[0].mxu0
      %v1481 = vadd.f32 %v866, %v1480
      %v1482 = vpop.f32.mrb[0].mxu0
      %v1483 = vadd.f32 %v862, %v1482
      %v1484 = vpop.f32.mrb[0].mxu0
      %v1485 = vadd.f32 %v866, %v1484
      %1486 = vmatprep.mubr.bf16.mxu0 %v769
      %1487 = vmatmul.mubr.bf16.gmra.mrb[0].mxu0 %v768
      %v1488 = vpop.f32.mrb[0].mxu0
      %v1489 = vadd.f32 %v862, %v1488
      %v1490 = vpop.f32.mrb[0].mxu0
      %v1491 = vadd.f32 %v866, %v1490
      %v1492 = vpop.f32.mrb[0].mxu0
      %v1493 = vadd.f32 %v862, %v1492
      %v1494 = vpop.f32.mrb[0].mxu0
      %v1495 = vadd.f32 %v866, %v1494
      %1496 = vmatprep.mubr.bf16.mxu0 %v771
      %1497 = vmatmul.mubr.bf16.gmra.mrb[0].mxu0 %v770
      %v1498 = vpop.f32.mrb[0].mxu0
      %v1499 = vadd.f32 %v862, %v1498
      %v1500 = vpop.f32.mrb[0].mxu0
      %v1501 = vadd.f32 %v866, %v1500
      %v1502 = vpop.f32.mrb[0].mxu0
      %v1503 = vadd.f32 %v862, %v1502
      %v1504 = vpop.f32.mrb[0].mxu0
      %v1505 = vadd.f32 %v866, %v1504
      %1506 = vmatprep.mubr.bf16.mxu0 %v773
      %1507 = vmatmul.mubr.bf16.gmra.mrb[0].mxu0 %v772
      %v1508 = vpop.f32.mrb[0].mxu0
      %v1509 = vadd.f32 %v862, %v1508
      %v1510 = vpop.f32.mrb[0].mxu0
      %v1511 = vadd.f32 %v866, %v1510
      %v1512 = vpop.f32.mrb[0].mxu0
      %v1513 = vadd.f32 %v862, %v1512
      %v1514 = vpop.f32.mrb[0].mxu0
      %v1515 = vadd.f32 %v866, %v1514
      %1516 = vmatprep.mubr.bf16.mxu0 %v775
      %1517 = vmatmul.mubr.bf16.gmra.mrb[0].mxu0 %v774
      %v1518 = vpop.f32.mrb[0].mxu0
      %v1519 = vadd.f32 %v862, %v1518
      %v1520 = vpop.f32.mrb[0].mxu0
      %v1521 = vadd.f32 %v866, %v1520
      %v1522 = vpop.f32.mrb[0].mxu0
      %v1523 = vadd.f32 %v862, %v1522
      %v1524 = vpop.f32.mrb[0].mxu0
      %v1525 = vadd.f32 %v866, %v1524
      %1526 = vmatprep.mubr.bf16.mxu0 %v777
      %1527 = vmatmul.mubr.bf16.gmra.mrb[0].mxu0 %v776
      %v1528 = vpop.f32.mrb[0].mxu0
      %v1529 = vadd.f32 %v862, %v1528
      %v1530 = vpop.f32.mrb[0].mxu0
      %v1531 = vadd.f32 %v866, %v1530
      %v1532 = vpop.f32.mrb[0].mxu0
      %v1533 = vadd.f32 %v862, %v1532
      %v1534 = vpop.f32.mrb[0].mxu0
      %v1535 = vadd.f32 %v866, %v1534
      %1536 = vmatprep.mubr.bf16.mxu0 %v779
      %1537 = vmatmul.mubr.bf16.gmra.mrb[0].mxu0 %v778
      %v1538 = vpop.f32.mrb[0].mxu0
      %v1539 = vadd.f32 %v862, %v1538
      %v1540 = vpop.f32.mrb[0].mxu0
      %v1541 = vadd.f32 %v866, %v1540
      %v1542 = vpop.f32.mrb[0].mxu0
      %v1543 = vadd.f32 %v862, %v1542
      %v1544 = vpop.f32.mrb[0].mxu0
      %v1545 = vadd.f32 %v866, %v1544
      %1546 = vmatprep.mubr.bf16.mxu0 %v781
      %1547 = vmatmul.mubr.bf16.gmra.mrb[0].mxu0 %v780
      %v1548 = vpop.f32.mrb[0].mxu0
      %v1549 = vadd.f32 %v862, %v1548
      %v1550 = vpop.f32.mrb[0].mxu0
      %v1551 = vadd.f32 %v866, %v1550
      %v1552 = vpop.f32.mrb[0].mxu0
      %v1553 = vadd.f32 %v862, %v1552
      %v1554 = vpop.f32.mrb[0].mxu0
      %v1555 = vadd.f32 %v866, %v1554
      %1556 = vmatprep.mubr.bf16.mxu0 %v783
      %1557 = vmatmul.mubr.bf16.gmra.mrb[0].mxu0 %v782
      %v1558 = vpop.f32.mrb[0].mxu0
      %v1559 = vadd.f32 %v862, %v1558
      %v1560 = vpop.f32.mrb[0].mxu0
      %v1561 = vadd.f32 %v866, %v1560
      %v1562 = vpop.f32.mrb[0].mxu0
      %v1563 = vadd.f32 %v862, %v1562
      %v1564 = vpop.f32.mrb[0].mxu0
      %v1565 = vadd.f32 %v866, %v1564
      %1566 = vmatprep.mubr.bf16.mxu0 %v785
      %1567 = vmatmul.mubr.bf16.gmra.mrb[0].mxu0 %v784
      %v1568 = vpop.f32.mrb[0].mxu0
      %v1569 = vadd.f32 %v862, %v1568
      %v1570 = vpop.f32.mrb[0].mxu0
      %v1571 = vadd.f32 %v866, %v1570
      %v1572 = vpop.f32.mrb[0].mxu0
      %v1573 = vadd.f32 %v862, %v1572
      %v1574 = vpop.f32.mrb[0].mxu0
      %v1575 = vadd.f32 %v866, %v1574
      %1576 = vdwg.mxu0
      %v1577 = vmax.f32 %v1226, 0.0
      %v1578 = vmax.f32 %v1228, 0.0
      %v1579 = vmax.f32 %v1419, 0.0
      %v1580 = vmax.f32 %v1421, 0.0
      %v1581 = vmax.f32 %v1230, 0.0
      %v1582 = vmax.f32 %v1232, 0.0
      %v1583 = vmax.f32 %v1423, 0.0
      %v1584 = vmax.f32 %v1425, 0.0
      %v1585 = vmax.f32 %v1236, 0.0
      %v1586 = vmax.f32 %v1238, 0.0
      %v1587 = vmax.f32 %v1429, 0.0
      %v1588 = vmax.f32 %v1431, 0.0
      %v1589 = vmax.f32 %v1240, 0.0
      %v1590 = vmax.f32 %v1242, 0.0
      %v1591 = vmax.f32 %v1433, 0.0
      %v1592 = vmax.f32 %v1435, 0.0
      %v1593 = vmax.f32 %v1246, 0.0
      %v1594 = vmax.f32 %v1248, 0.0
      %v1595 = vmax.f32 %v1439, 0.0
      %v1596 = vmax.f32 %v1441, 0.0
      %v1597 = vmax.f32 %v1250, 0.0
      %v1598 = vmax.f32 %v1252, 0.0
      %v1599 = vmax.f32 %v1443, 0.0
      %v1600 = vmax.f32 %v1445, 0.0
      %v1601 = vmax.f32 %v1256, 0.0
      %v1602 = vmax.f32 %v1258, 0.0
      %v1603 = vmax.f32 %v1449, 0.0
      %v1604 = vmax.f32 %v1451, 0.0
      %v1605 = vmax.f32 %v1260, 0.0
      %v1606 = vmax.f32 %v1262, 0.0
      %v1607 = vmax.f32 %v1453, 0.0
      %v1608 = vmax.f32 %v1455, 0.0
      %v1609 = vmax.f32 %v1266, 0.0
      %v1610 = vmax.f32 %v1268, 0.0
      %v1611 = vmax.f32 %v1459, 0.0
      %v1612 = vmax.f32 %v1461, 0.0
      %v1613 = vmax.f32 %v1270, 0.0
      %v1614 = vmax.f32 %v1272, 0.0
      %v1615 = vmax.f32 %v1463, 0.0
      %v1616 = vmax.f32 %v1465, 0.0
      %v1617 = vmax.f32 %v1276, 0.0
      %v1618 = vmax.f32 %v1278, 0.0
      %v1619 = vmax.f32 %v1469, 0.0
      %v1620 = vmax.f32 %v1471, 0.0
      %v1621 = vmax.f32 %v1280, 0.0
      %v1622 = vmax.f32 %v1282, 0.0
      %v1623 = vmax.f32 %v1473, 0.0
      %v1624 = vmax.f32 %v1475, 0.0
      %v1625 = vmax.f32 %v1286, 0.0
      %v1626 = vmax.f32 %v1288, 0.0
      %v1627 = vmax.f32 %v1479, 0.0
      %v1628 = vmax.f32 %v1481, 0.0
      %v1629 = vmax.f32 %v1290, 0.0
      %v1630 = vmax.f32 %v1292, 0.0
      %v1631 = vmax.f32 %v1483, 0.0
      %v1632 = vmax.f32 %v1485, 0.0
      %v1633 = vmax.f32 %v1296, 0.0
      %v1634 = vmax.f32 %v1298, 0.0
      %v1635 = vmax.f32 %v1489, 0.0
      %v1636 = vmax.f32 %v1491, 0.0
      %v1637 = vmax.f32 %v1300, 0.0
      %v1638 = vmax.f32 %v1302, 0.0
      %v1639 = vmax.f32 %v1493, 0.0
      %v1640 = vmax.f32 %v1495, 0.0
      %v1641 = vmax.f32 %v1306, 0.0
      %v1642 = vmax.f32 %v1308, 0.0
      %v1643 = vmax.f32 %v1499, 0.0
      %v1644 = vmax.f32 %v1501, 0.0
      %v1645 = vmax.f32 %v1310, 0.0
      %v1646 = vmax.f32 %v1312, 0.0
      %v1647 = vmax.f32 %v1503, 0.0
      %v1648 = vmax.f32 %v1505, 0.0
      %v1649 = vmax.f32 %v1316, 0.0
      %v1650 = vmax.f32 %v1318, 0.0
      %v1651 = vmax.f32 %v1509, 0.0
      %v1652 = vmax.f32 %v1511, 0.0
      %v1653 = vmax.f32 %v1320, 0.0
      %v1654 = vmax.f32 %v1322, 0.0
      %v1655 = vmax.f32 %v1513, 0.0
      %v1656 = vmax.f32 %v1515, 0.0
      %v1657 = vmax.f32 %v1326, 0.0
      %v1658 = vmax.f32 %v1328, 0.0
      %v1659 = vmax.f32 %v1519, 0.0
      %v1660 = vmax.f32 %v1521, 0.0
      %v1661 = vmax.f32 %v1330, 0.0
      %v1662 = vmax.f32 %v1332, 0.0
      %v1663 = vmax.f32 %v1523, 0.0
      %v1664 = vmax.f32 %v1525, 0.0
      %v1665 = vmax.f32 %v1336, 0.0
      %v1666 = vmax.f32 %v1338, 0.0
      %v1667 = vmax.f32 %v1529, 0.0
      %v1668 = vmax.f32 %v1531, 0.0
      %v1669 = vmax.f32 %v1340, 0.0
      %v1670 = vmax.f32 %v1342, 0.0
      %v1671 = vmax.f32 %v1533, 0.0
      %v1672 = vmax.f32 %v1535, 0.0
      %v1673 = vmax.f32 %v1346, 0.0
      %v1674 = vmax.f32 %v1348, 0.0
      %v1675 = vmax.f32 %v1539, 0.0
      %v1676 = vmax.f32 %v1541, 0.0
      %v1677 = vmax.f32 %v1350, 0.0
      %v1678 = vmax.f32 %v1352, 0.0
      %v1679 = vmax.f32 %v1543, 0.0
      %v1680 = vmax.f32 %v1545, 0.0
      %v1681 = vmax.f32 %v1356, 0.0
      %v1682 = vmax.f32 %v1358, 0.0
      %v1683 = vmax.f32 %v1549, 0.0
      %v1684 = vmax.f32 %v1551, 0.0
      %v1685 = vmax.f32 %v1360, 0.0
      %v1686 = vmax.f32 %v1362, 0.0
      %v1687 = vmax.f32 %v1553, 0.0
      %v1688 = vmax.f32 %v1555, 0.0
      %v1689 = vmax.f32 %v1366, 0.0
      %v1690 = vmax.f32 %v1368, 0.0
      %v1691 = vmax.f32 %v1559, 0.0
      %v1692 = vmax.f32 %v1561, 0.0
      %v1693 = vmax.f32 %v1370, 0.0
      %v1694 = vmax.f32 %v1372, 0.0
      %v1695 = vmax.f32 %v1563, 0.0
      %v1696 = vmax.f32 %v1565, 0.0
      %v1697 = vmax.f32 %v1376, 0.0
      %v1698 = vmax.f32 %v1378, 0.0
      %v1699 = vmax.f32 %v1569, 0.0
      %v1700 = vmax.f32 %v1571, 0.0
      %v1701 = vmax.f32 %v1380, 0.0
      %v1702 = vmax.f32 %v1382, 0.0
      %v1703 = vmax.f32 %v1573, 0.0
      %v1704 = vmax.f32 %v1575, 0.0
      %v1705 = vpack.c.bf16 %v1581, %v1577
      %v1706 = vpack.c.bf16 %v1582, %v1578
      %v1707 = vpack.c.bf16 %v1583, %v1579
      %v1708 = vpack.c.bf16 %v1584, %v1580
      %v1709 = vpack.c.bf16 %v1589, %v1585
      %v1710 = vpack.c.bf16 %v1590, %v1586
      %v1711 = vpack.c.bf16 %v1591, %v1587
      %v1712 = vpack.c.bf16 %v1592, %v1588
      %v1713 = vpack.c.bf16 %v1597, %v1593
      %v1714 = vpack.c.bf16 %v1598, %v1594
      %v1715 = vpack.c.bf16 %v1599, %v1595
      %v1716 = vpack.c.bf16 %v1600, %v1596
      %v1717 = vpack.c.bf16 %v1605, %v1601
      %v1718 = vpack.c.bf16 %v1606, %v1602
      %v1719 = vpack.c.bf16 %v1607, %v1603
      %v1720 = vpack.c.bf16 %v1608, %v1604
      %v1721 = vpack.c.bf16 %v1613, %v1609
      %v1722 = vpack.c.bf16 %v1614, %v1610
      %v1723 = vpack.c.bf16 %v1615, %v1611
      %v1724 = vpack.c.bf16 %v1616, %v1612
      %v1725 = vpack.c.bf16 %v1621, %v1617
      %v1726 = vpack.c.bf16 %v1622, %v1618
      %v1727 = vpack.c.bf16 %v1623, %v1619
      %v1728 = vpack.c.bf16 %v1624, %v1620
      %v1729 = vpack.c.bf16 %v1629, %v1625
      %v1730 = vpack.c.bf16 %v1630, %v1626
      %v1731 = vpack.c.bf16 %v1631, %v1627
      %v1732 = vpack.c.bf16 %v1632, %v1628
      %v1733 = vpack.c.bf16 %v1637, %v1633
      %v1734 = vpack.c.bf16 %v1638, %v1634
      %v1735 = vpack.c.bf16 %v1639, %v1635
      %v1736 = vpack.c.bf16 %v1640, %v1636
      %v1737 = vpack.c.bf16 %v1645, %v1641
      %v1738 = vpack.c.bf16 %v1646, %v1642
      %v1739 = vpack.c.bf16 %v1647, %v1643
      %v1740 = vpack.c.bf16 %v1648, %v1644
      %v1741 = vpack.c.bf16 %v1653, %v1649
      %v1742 = vpack.c.bf16 %v1654, %v1650
      %v1743 = vpack.c.bf16 %v1655, %v1651
      %v1744 = vpack.c.bf16 %v1656, %v1652
      %v1745 = vpack.c.bf16 %v1661, %v1657
      %v1746 = vpack.c.bf16 %v1662, %v1658
      %v1747 = vpack.c.bf16 %v1663, %v1659
      %v1748 = vpack.c.bf16 %v1664, %v1660
      %v1749 = vpack.c.bf16 %v1669, %v1665
      %v1750 = vpack.c.bf16 %v1670, %v1666
      %v1751 = vpack.c.bf16 %v1671, %v1667
      %v1752 = vpack.c.bf16 %v1672, %v1668
      %v1753 = vpack.c.bf16 %v1677, %v1673
      %v1754 = vpack.c.bf16 %v1678, %v1674
      %v1755 = vpack.c.bf16 %v1679, %v1675
      %v1756 = vpack.c.bf16 %v1680, %v1676
      %v1757 = vpack.c.bf16 %v1685, %v1681
      %v1758 = vpack.c.bf16 %v1686, %v1682
      %v1759 = vpack.c.bf16 %v1687, %v1683
      %v1760 = vpack.c.bf16 %v1688, %v1684
      %v1761 = vpack.c.bf16 %v1693, %v1689
      %v1762 = vpack.c.bf16 %v1694, %v1690
      %v1763 = vpack.c.bf16 %v1695, %v1691
      %v1764 = vpack.c.bf16 %v1696, %v1692
      %v1765 = vpack.c.bf16 %v1701, %v1697
      %v1766 = vpack.c.bf16 %v1702, %v1698
      %v1767 = vpack.c.bf16 %v1703, %v1699
      %v1768 = vpack.c.bf16 %v1704, %v1700
      %v1769 = vld [vmem:[%s3] sm:$0xff]
      %v1770 = vld [vmem:[%s3 + $0x8] sm:$0xff]
      %v1771 = vld [vmem:[%s3 + $0x10] sm:$0xff]
      %v1772 = vld [vmem:[%s3 + $0x18] sm:$0xff]
      %v1773 = vld [vmem:[%s3 + $0x20] sm:$0xff]
      %v1774 = vld [vmem:[%s3 + $0x28] sm:$0xff]
      %v1775 = vld [vmem:[%s3 + $0x30] sm:$0xff]
      %v1776 = vld [vmem:[%s3 + $0x38] sm:$0xff]
      %v1777 = vld [vmem:[%s3 + $0x40] sm:$0xff]
      %v1778 = vld [vmem:[%s3 + $0x48] sm:$0xff]
      %v1779 = vld [vmem:[%s3 + $0x50] sm:$0xff]
      %v1780 = vld [vmem:[%s3 + $0x58] sm:$0xff]
      %v1781 = vld [vmem:[%s3 + $0x60] sm:$0xff]
      %v1782 = vld [vmem:[%s3 + $0x68] sm:$0xff]
      %v1783 = vld [vmem:[%s3 + $0x70] sm:$0xff]
      %v1784 = vld [vmem:[%s3 + $0x78] sm:$0xff]
      %v1785 = vld [vmem:[%s3 + $0x80] sm:$0xff]
      %v1786 = vld [vmem:[%s3 + $0x88] sm:$0xff]
      %v1787 = vld [vmem:[%s3 + $0x90] sm:$0xff]
      %v1788 = vld [vmem:[%s3 + $0x98] sm:$0xff]
      %v1789 = vld [vmem:[%s3 + $0xa0] sm:$0xff]
      %v1790 = vld [vmem:[%s3 + $0xa8] sm:$0xff]
      %v1791 = vld [vmem:[%s3 + $0xb0] sm:$0xff]
      %v1792 = vld [vmem:[%s3 + $0xb8] sm:$0xff]
      %v1793 = vld [vmem:[%s3 + $0xc0] sm:$0xff]
      %v1794 = vld [vmem:[%s3 + $0xc8] sm:$0xff]
      %v1795 = vld [vmem:[%s3 + $0xd0] sm:$0xff]
      %v1796 = vld [vmem:[%s3 + $0xd8] sm:$0xff]
      %v1797 = vld [vmem:[%s3 + $0xe0] sm:$0xff]
      %v1798 = vld [vmem:[%s3 + $0xe8] sm:$0xff]
      %v1799 = vld [vmem:[%s3 + $0xf0] sm:$0xff]
      %v1800 = vld [vmem:[%s3 + $0xf8] sm:$0xff]
      %v1801 = vld [vmem:[%s3 + $0x100] sm:$0xff]
      %v1802 = vld [vmem:[%s3 + $0x108] sm:$0xff]
      %v1803 = vld [vmem:[%s3 + $0x110] sm:$0xff]
      %v1804 = vld [vmem:[%s3 + $0x118] sm:$0xff]
      %v1805 = vld [vmem:[%s3 + $0x120] sm:$0xff]
      %v1806 = vld [vmem:[%s3 + $0x128] sm:$0xff]
      %v1807 = vld [vmem:[%s3 + $0x130] sm:$0xff]
      %v1808 = vld [vmem:[%s3 + $0x138] sm:$0xff]
      %v1809 = vld [vmem:[%s3 + $0x140] sm:$0xff]
      %v1810 = vld [vmem:[%s3 + $0x148] sm:$0xff]
      %v1811 = vld [vmem:[%s3 + $0x150] sm:$0xff]
      %v1812 = vld [vmem:[%s3 + $0x158] sm:$0xff]
      %v1813 = vld [vmem:[%s3 + $0x160] sm:$0xff]
      %v1814 = vld [vmem:[%s3 + $0x168] sm:$0xff]
      %v1815 = vld [vmem:[%s3 + $0x170] sm:$0xff]
      %v1816 = vld [vmem:[%s3 + $0x178] sm:$0xff]
      %v1817 = vld [vmem:[%s3 + $0x180] sm:$0xff]
      %v1818 = vld [vmem:[%s3 + $0x188] sm:$0xff]
      %v1819 = vld [vmem:[%s3 + $0x190] sm:$0xff]
      %v1820 = vld [vmem:[%s3 + $0x198] sm:$0xff]
      %v1821 = vld [vmem:[%s3 + $0x1a0] sm:$0xff]
      %v1822 = vld [vmem:[%s3 + $0x1a8] sm:$0xff]
      %v1823 = vld [vmem:[%s3 + $0x1b0] sm:$0xff]
      %v1824 = vld [vmem:[%s3 + $0x1b8] sm:$0xff]
      %v1825 = vld [vmem:[%s3 + $0x1c0] sm:$0xff]
      %v1826 = vld [vmem:[%s3 + $0x1c8] sm:$0xff]
      %v1827 = vld [vmem:[%s3 + $0x1d0] sm:$0xff]
      %v1828 = vld [vmem:[%s3 + $0x1d8] sm:$0xff]
      %v1829 = vld [vmem:[%s3 + $0x1e0] sm:$0xff]
      %v1830 = vld [vmem:[%s3 + $0x1e8] sm:$0xff]
      %v1831 = vld [vmem:[%s3 + $0x1f0] sm:$0xff]
      %v1832 = vld [vmem:[%s3 + $0x1f8] sm:$0xff]
      %v1833 = vld [vmem:[%s3 + $0x200] sm:$0xff]
      %v1834 = vld [vmem:[%s3 + $0x208] sm:$0xff]
      %v1835 = vld [vmem:[%s3 + $0x210] sm:$0xff]
      %v1836 = vld [vmem:[%s3 + $0x218] sm:$0xff]
      %v1837 = vld [vmem:[%s3 + $0x220] sm:$0xff]
      %v1838 = vld [vmem:[%s3 + $0x228] sm:$0xff]
      %v1839 = vld [vmem:[%s3 + $0x230] sm:$0xff]
      %v1840 = vld [vmem:[%s3 + $0x238] sm:$0xff]
      %v1841 = vld [vmem:[%s3 + $0x240] sm:$0xff]
      %v1842 = vld [vmem:[%s3 + $0x248] sm:$0xff]
      %v1843 = vld [vmem:[%s3 + $0x250] sm:$0xff]
      %v1844 = vld [vmem:[%s3 + $0x258] sm:$0xff]
      %v1845 = vld [vmem:[%s3 + $0x260] sm:$0xff]
      %v1846 = vld [vmem:[%s3 + $0x268] sm:$0xff]
      %v1847 = vld [vmem:[%s3 + $0x270] sm:$0xff]
      %v1848 = vld [vmem:[%s3 + $0x278] sm:$0xff]
      %v1849 = vld [vmem:[%s3 + $0x280] sm:$0xff]
      %v1850 = vld [vmem:[%s3 + $0x288] sm:$0xff]
      %v1851 = vld [vmem:[%s3 + $0x290] sm:$0xff]
      %v1852 = vld [vmem:[%s3 + $0x298] sm:$0xff]
      %v1853 = vld [vmem:[%s3 + $0x2a0] sm:$0xff]
      %v1854 = vld [vmem:[%s3 + $0x2a8] sm:$0xff]
      %v1855 = vld [vmem:[%s3 + $0x2b0] sm:$0xff]
      %v1856 = vld [vmem:[%s3 + $0x2b8] sm:$0xff]
      %v1857 = vld [vmem:[%s3 + $0x2c0] sm:$0xff]
      %v1858 = vld [vmem:[%s3 + $0x2c8] sm:$0xff]
      %v1859 = vld [vmem:[%s3 + $0x2d0] sm:$0xff]
      %v1860 = vld [vmem:[%s3 + $0x2d8] sm:$0xff]
      %v1861 = vld [vmem:[%s3 + $0x2e0] sm:$0xff]
      %v1862 = vld [vmem:[%s3 + $0x2e8] sm:$0xff]
      %v1863 = vld [vmem:[%s3 + $0x2f0] sm:$0xff]
      %v1864 = vld [vmem:[%s3 + $0x2f8] sm:$0xff]
      %v1865 = vld [vmem:[%s3 + $0x300] sm:$0xff]
      %v1866 = vld [vmem:[%s3 + $0x308] sm:$0xff]
      %v1867 = vld [vmem:[%s3 + $0x310] sm:$0xff]
      %v1868 = vld [vmem:[%s3 + $0x318] sm:$0xff]
      %v1869 = vld [vmem:[%s3 + $0x320] sm:$0xff]
      %v1870 = vld [vmem:[%s3 + $0x328] sm:$0xff]
      %v1871 = vld [vmem:[%s3 + $0x330] sm:$0xff]
      %v1872 = vld [vmem:[%s3 + $0x338] sm:$0xff]
      %v1873 = vld [vmem:[%s3 + $0x340] sm:$0xff]
      %v1874 = vld [vmem:[%s3 + $0x348] sm:$0xff]
      %v1875 = vld [vmem:[%s3 + $0x350] sm:$0xff]
      %v1876 = vld [vmem:[%s3 + $0x358] sm:$0xff]
      %v1877 = vld [vmem:[%s3 + $0x360] sm:$0xff]
      %v1878 = vld [vmem:[%s3 + $0x368] sm:$0xff]
      %v1879 = vld [vmem:[%s3 + $0x370] sm:$0xff]
      %v1880 = vld [vmem:[%s3 + $0x378] sm:$0xff]
      %v1881 = vld [vmem:[%s3 + $0x380] sm:$0xff]
      %v1882 = vld [vmem:[%s3 + $0x388] sm:$0xff]
      %v1883 = vld [vmem:[%s3 + $0x390] sm:$0xff]
      %v1884 = vld [vmem:[%s3 + $0x398] sm:$0xff]
      %v1885 = vld [vmem:[%s3 + $0x3a0] sm:$0xff]
      %v1886 = vld [vmem:[%s3 + $0x3a8] sm:$0xff]
      %v1887 = vld [vmem:[%s3 + $0x3b0] sm:$0xff]
      %v1888 = vld [vmem:[%s3 + $0x3b8] sm:$0xff]
      %v1889 = vld [vmem:[%s3 + $0x3c0] sm:$0xff]
      %v1890 = vld [vmem:[%s3 + $0x3c8] sm:$0xff]
      %v1891 = vld [vmem:[%s3 + $0x3d0] sm:$0xff]
      %v1892 = vld [vmem:[%s3 + $0x3d8] sm:$0xff]
      %v1893 = vld [vmem:[%s3 + $0x3e0] sm:$0xff]
      %v1894 = vld [vmem:[%s3 + $0x3e8] sm:$0xff]
      %v1895 = vld [vmem:[%s3 + $0x3f0] sm:$0xff]
      %v1896 = vld [vmem:[%s3 + $0x3f8] sm:$0xff]
      %v1897 = vld [vmem:[%s3 + $0x400] sm:$0xff]
      %v1898 = vld [vmem:[%s3 + $0x408] sm:$0xff]
      %v1899 = vld [vmem:[%s3 + $0x410] sm:$0xff]
      %v1900 = vld [vmem:[%s3 + $0x418] sm:$0xff]
      %v1901 = vld [vmem:[%s3 + $0x420] sm:$0xff]
      %v1902 = vld [vmem:[%s3 + $0x428] sm:$0xff]
      %v1903 = vld [vmem:[%s3 + $0x430] sm:$0xff]
      %v1904 = vld [vmem:[%s3 + $0x438] sm:$0xff]
      %v1905 = vld [vmem:[%s3 + $0x440] sm:$0xff]
      %v1906 = vld [vmem:[%s3 + $0x448] sm:$0xff]
      %v1907 = vld [vmem:[%s3 + $0x450] sm:$0xff]
      %v1908 = vld [vmem:[%s3 + $0x458] sm:$0xff]
      %v1909 = vld [vmem:[%s3 + $0x460] sm:$0xff]
      %v1910 = vld [vmem:[%s3 + $0x468] sm:$0xff]
      %v1911 = vld [vmem:[%s3 + $0x470] sm:$0xff]
      %v1912 = vld [vmem:[%s3 + $0x478] sm:$0xff]
      %v1913 = vld [vmem:[%s3 + $0x480] sm:$0xff]
      %v1914 = vld [vmem:[%s3 + $0x488] sm:$0xff]
      %v1915 = vld [vmem:[%s3 + $0x490] sm:$0xff]
      %v1916 = vld [vmem:[%s3 + $0x498] sm:$0xff]
      %v1917 = vld [vmem:[%s3 + $0x4a0] sm:$0xff]
      %v1918 = vld [vmem:[%s3 + $0x4a8] sm:$0xff]
      %v1919 = vld [vmem:[%s3 + $0x4b0] sm:$0xff]
      %v1920 = vld [vmem:[%s3 + $0x4b8] sm:$0xff]
      %v1921 = vld [vmem:[%s3 + $0x4c0] sm:$0xff]
      %v1922 = vld [vmem:[%s3 + $0x4c8] sm:$0xff]
      %v1923 = vld [vmem:[%s3 + $0x4d0] sm:$0xff]
      %v1924 = vld [vmem:[%s3 + $0x4d8] sm:$0xff]
      %v1925 = vld [vmem:[%s3 + $0x4e0] sm:$0xff]
      %v1926 = vld [vmem:[%s3 + $0x4e8] sm:$0xff]
      %v1927 = vld [vmem:[%s3 + $0x4f0] sm:$0xff]
      %v1928 = vld [vmem:[%s3 + $0x4f8] sm:$0xff]
      %v1929 = vld [vmem:[%s3 + $0x500] sm:$0xff]
      %v1930 = vld [vmem:[%s3 + $0x508] sm:$0xff]
      %v1931 = vld [vmem:[%s3 + $0x510] sm:$0xff]
      %v1932 = vld [vmem:[%s3 + $0x518] sm:$0xff]
      %v1933 = vld [vmem:[%s3 + $0x520] sm:$0xff]
      %v1934 = vld [vmem:[%s3 + $0x528] sm:$0xff]
      %v1935 = vld [vmem:[%s3 + $0x530] sm:$0xff]
      %v1936 = vld [vmem:[%s3 + $0x538] sm:$0xff]
      %v1937 = vld [vmem:[%s3 + $0x540] sm:$0xff]
      %v1938 = vld [vmem:[%s3 + $0x548] sm:$0xff]
      %v1939 = vld [vmem:[%s3 + $0x550] sm:$0xff]
      %v1940 = vld [vmem:[%s3 + $0x558] sm:$0xff]
      %v1941 = vld [vmem:[%s3 + $0x560] sm:$0xff]
      %v1942 = vld [vmem:[%s3 + $0x568] sm:$0xff]
      %v1943 = vld [vmem:[%s3 + $0x570] sm:$0xff]
      %v1944 = vld [vmem:[%s3 + $0x578] sm:$0xff]
      %v1945 = vld [vmem:[%s3 + $0x580] sm:$0xff]
      %v1946 = vld [vmem:[%s3 + $0x588] sm:$0xff]
      %v1947 = vld [vmem:[%s3 + $0x590] sm:$0xff]
      %v1948 = vld [vmem:[%s3 + $0x598] sm:$0xff]
      %v1949 = vld [vmem:[%s3 + $0x5a0] sm:$0xff]
      %v1950 = vld [vmem:[%s3 + $0x5a8] sm:$0xff]
      %v1951 = vld [vmem:[%s3 + $0x5b0] sm:$0xff]
      %v1952 = vld [vmem:[%s3 + $0x5b8] sm:$0xff]
      %v1953 = vld [vmem:[%s3 + $0x5c0] sm:$0xff]
      %v1954 = vld [vmem:[%s3 + $0x5c8] sm:$0xff]
      %v1955 = vld [vmem:[%s3 + $0x5d0] sm:$0xff]
      %v1956 = vld [vmem:[%s3 + $0x5d8] sm:$0xff]
      %v1957 = vld [vmem:[%s3 + $0x5e0] sm:$0xff]
      %v1958 = vld [vmem:[%s3 + $0x5e8] sm:$0xff]
      %v1959 = vld [vmem:[%s3 + $0x5f0] sm:$0xff]
      %v1960 = vld [vmem:[%s3 + $0x5f8] sm:$0xff]
      %v1961 = vld [vmem:[%s3 + $0x600] sm:$0xff]
      %v1962 = vld [vmem:[%s3 + $0x608] sm:$0xff]
      %v1963 = vld [vmem:[%s3 + $0x610] sm:$0xff]
      %v1964 = vld [vmem:[%s3 + $0x618] sm:$0xff]
      %v1965 = vld [vmem:[%s3 + $0x620] sm:$0xff]
      %v1966 = vld [vmem:[%s3 + $0x628] sm:$0xff]
      %v1967 = vld [vmem:[%s3 + $0x630] sm:$0xff]
      %v1968 = vld [vmem:[%s3 + $0x638] sm:$0xff]
      %v1969 = vld [vmem:[%s3 + $0x640] sm:$0xff]
      %v1970 = vld [vmem:[%s3 + $0x648] sm:$0xff]
      %v1971 = vld [vmem:[%s3 + $0x650] sm:$0xff]
      %v1972 = vld [vmem:[%s3 + $0x658] sm:$0xff]
      %v1973 = vld [vmem:[%s3 + $0x660] sm:$0xff]
      %v1974 = vld [vmem:[%s3 + $0x668] sm:$0xff]
      %v1975 = vld [vmem:[%s3 + $0x670] sm:$0xff]
      %v1976 = vld [vmem:[%s3 + $0x678] sm:$0xff]
      %v1977 = vld [vmem:[%s3 + $0x680] sm:$0xff]
      %v1978 = vld [vmem:[%s3 + $0x688] sm:$0xff]
      %v1979 = vld [vmem:[%s3 + $0x690] sm:$0xff]
      %v1980 = vld [vmem:[%s3 + $0x698] sm:$0xff]
      %v1981 = vld [vmem:[%s3 + $0x6a0] sm:$0xff]
      %v1982 = vld [vmem:[%s3 + $0x6a8] sm:$0xff]
      %v1983 = vld [vmem:[%s3 + $0x6b0] sm:$0xff]
      %v1984 = vld [vmem:[%s3 + $0x6b8] sm:$0xff]
      %v1985 = vld [vmem:[%s3 + $0x6c0] sm:$0xff]
      %v1986 = vld [vmem:[%s3 + $0x6c8] sm:$0xff]
      %v1987 = vld [vmem:[%s3 + $0x6d0] sm:$0xff]
      %v1988 = vld [vmem:[%s3 + $0x6d8] sm:$0xff]
      %v1989 = vld [vmem:[%s3 + $0x6e0] sm:$0xff]
      %v1990 = vld [vmem:[%s3 + $0x6e8] sm:$0xff]
      %v1991 = vld [vmem:[%s3 + $0x6f0] sm:$0xff]
      %v1992 = vld [vmem:[%s3 + $0x6f8] sm:$0xff]
      %v1993 = vld [vmem:[%s3 + $0x700] sm:$0xff]
      %v1994 = vld [vmem:[%s3 + $0x708] sm:$0xff]
      %v1995 = vld [vmem:[%s3 + $0x710] sm:$0xff]
      %v1996 = vld [vmem:[%s3 + $0x718] sm:$0xff]
      %v1997 = vld [vmem:[%s3 + $0x720] sm:$0xff]
      %v1998 = vld [vmem:[%s3 + $0x728] sm:$0xff]
      %v1999 = vld [vmem:[%s3 + $0x730] sm:$0xff]
      %v2000 = vld [vmem:[%s3 + $0x738] sm:$0xff]
      %v2001 = vld [vmem:[%s3 + $0x740] sm:$0xff]
      %v2002 = vld [vmem:[%s3 + $0x748] sm:$0xff]
      %v2003 = vld [vmem:[%s3 + $0x750] sm:$0xff]
      %v2004 = vld [vmem:[%s3 + $0x758] sm:$0xff]
      %v2005 = vld [vmem:[%s3 + $0x760] sm:$0xff]
      %v2006 = vld [vmem:[%s3 + $0x768] sm:$0xff]
      %v2007 = vld [vmem:[%s3 + $0x770] sm:$0xff]
      %v2008 = vld [vmem:[%s3 + $0x778] sm:$0xff]
      %v2009 = vld [vmem:[%s3 + $0x780] sm:$0xff]
      %v2010 = vld [vmem:[%s3 + $0x788] sm:$0xff]
      %v2011 = vld [vmem:[%s3 + $0x790] sm:$0xff]
      %v2012 = vld [vmem:[%s3 + $0x798] sm:$0xff]
      %v2013 = vld [vmem:[%s3 + $0x7a0] sm:$0xff]
      %v2014 = vld [vmem:[%s3 + $0x7a8] sm:$0xff]
      %v2015 = vld [vmem:[%s3 + $0x7b0] sm:$0xff]
      %v2016 = vld [vmem:[%s3 + $0x7b8] sm:$0xff]
      %v2017 = vld [vmem:[%s3 + $0x7c0] sm:$0xff]
      %v2018 = vld [vmem:[%s3 + $0x7c8] sm:$0xff]
      %v2019 = vld [vmem:[%s3 + $0x7d0] sm:$0xff]
      %v2020 = vld [vmem:[%s3 + $0x7d8] sm:$0xff]
      %v2021 = vld [vmem:[%s3 + $0x7e0] sm:$0xff]
      %v2022 = vld [vmem:[%s3 + $0x7e8] sm:$0xff]
      %v2023 = vld [vmem:[%s3 + $0x7f0] sm:$0xff]
      %v2024 = vld [vmem:[%s3 + $0x7f8] sm:$0xff]
      %v2026 = vlaneseq
      %v2027 = vshrl.u32 %v2026, 7
      %v2028 = vsub.s32 0, %v2027
      %v2029 = vrot.slane %v292, %v2028
      %v2030 = vlaneseq
      %v2031 = vshrl.u32 %v2030, 7
      %v2032 = vsub.s32 1, %v2031
      %v2033 = vrot.slane %v292, %v2032
      %v2034 = vlaneseq
      %v2035 = vshrl.u32 %v2034, 7
      %v2036 = vsub.s32 2, %v2035
      %v2037 = vrot.slane %v292, %v2036
      %v2038 = vlaneseq
      %v2039 = vshrl.u32 %v2038, 7
      %v2040 = vsub.s32 3, %v2039
      %v2041 = vrot.slane %v292, %v2040
      %v2042 = vlaneseq
      %v2043 = vshrl.u32 %v2042, 7
      %v2044 = vsub.s32 4, %v2043
      %v2045 = vrot.slane %v292, %v2044
      %v2046 = vlaneseq
      %v2047 = vshrl.u32 %v2046, 7
      %v2048 = vsub.s32 5, %v2047
      %v2049 = vrot.slane %v292, %v2048
      %v2050 = vlaneseq
      %v2051 = vshrl.u32 %v2050, 7
      %v2052 = vsub.s32 6, %v2051
      %v2053 = vrot.slane %v292, %v2052
      %v2054 = vlaneseq
      %v2055 = vshrl.u32 %v2054, 7
      %v2056 = vsub.s32 7, %v2055
      %v2057 = vrot.slane %v292, %v2056
      %v2322 = vunpack.c.l.b16 %v1769
      %v2323 = vunpack.c.h.b16 %v1769
      %v2324 = vunpack.c.l.b16 %v1770
      %v2325 = vunpack.c.h.b16 %v1770
      %v2326 = vunpack.c.l.b16 %v1771
      %v2327 = vunpack.c.h.b16 %v1771
      %v2328 = vunpack.c.l.b16 %v1772
      %v2329 = vunpack.c.h.b16 %v1772
      %v2330 = vunpack.c.l.b16 %v1773
      %v2331 = vunpack.c.h.b16 %v1773
      %v2332 = vunpack.c.l.b16 %v1774
      %v2333 = vunpack.c.h.b16 %v1774
      %v2334 = vunpack.c.l.b16 %v1775
      %v2335 = vunpack.c.h.b16 %v1775
      %v2336 = vunpack.c.l.b16 %v1776
      %v2337 = vunpack.c.h.b16 %v1776
      %v2338 = vunpack.c.l.b16 %v1777
      %v2339 = vunpack.c.h.b16 %v1777
      %v2340 = vunpack.c.l.b16 %v1778
      %v2341 = vunpack.c.h.b16 %v1778
      %v2342 = vunpack.c.l.b16 %v1779
      %v2343 = vunpack.c.h.b16 %v1779
      %v2344 = vunpack.c.l.b16 %v1780
      %v2345 = vunpack.c.h.b16 %v1780
      %v2346 = vunpack.c.l.b16 %v1781
      %v2347 = vunpack.c.h.b16 %v1781
      %v2348 = vunpack.c.l.b16 %v1782
      %v2349 = vunpack.c.h.b16 %v1782
      %v2350 = vunpack.c.l.b16 %v1783
      %v2351 = vunpack.c.h.b16 %v1783
      %v2352 = vunpack.c.l.b16 %v1784
      %v2353 = vunpack.c.h.b16 %v1784
      %v2354 = vunpack.c.l.b16 %v1785
      %v2355 = vunpack.c.h.b16 %v1785
      %v2356 = vunpack.c.l.b16 %v1786
      %v2357 = vunpack.c.h.b16 %v1786
      %v2358 = vunpack.c.l.b16 %v1787
      %v2359 = vunpack.c.h.b16 %v1787
      %v2360 = vunpack.c.l.b16 %v1788
      %v2361 = vunpack.c.h.b16 %v1788
      %v2362 = vunpack.c.l.b16 %v1789
      %v2363 = vunpack.c.h.b16 %v1789
      %v2364 = vunpack.c.l.b16 %v1790
      %v2365 = vunpack.c.h.b16 %v1790
      %v2366 = vunpack.c.l.b16 %v1791
      %v2367 = vunpack.c.h.b16 %v1791
      %v2368 = vunpack.c.l.b16 %v1792
      %v2369 = vunpack.c.h.b16 %v1792
      %v2370 = vunpack.c.l.b16 %v1793
      %v2371 = vunpack.c.h.b16 %v1793
      %v2372 = vunpack.c.l.b16 %v1794
      %v2373 = vunpack.c.h.b16 %v1794
      %v2374 = vunpack.c.l.b16 %v1795
      %v2375 = vunpack.c.h.b16 %v1795
      %v2376 = vunpack.c.l.b16 %v1796
      %v2377 = vunpack.c.h.b16 %v1796
      %v2378 = vunpack.c.l.b16 %v1797
      %v2379 = vunpack.c.h.b16 %v1797
      %v2380 = vunpack.c.l.b16 %v1798
      %v2381 = vunpack.c.h.b16 %v1798
      %v2382 = vunpack.c.l.b16 %v1799
      %v2383 = vunpack.c.h.b16 %v1799
      %v2384 = vunpack.c.l.b16 %v1800
      %v2385 = vunpack.c.h.b16 %v1800
      %v2386 = vunpack.c.l.b16 %v1801
      %v2387 = vunpack.c.h.b16 %v1801
      %v2388 = vunpack.c.l.b16 %v1802
      %v2389 = vunpack.c.h.b16 %v1802
      %v2390 = vunpack.c.l.b16 %v1803
      %v2391 = vunpack.c.h.b16 %v1803
      %v2392 = vunpack.c.l.b16 %v1804
      %v2393 = vunpack.c.h.b16 %v1804
      %v2394 = vunpack.c.l.b16 %v1805
      %v2395 = vunpack.c.h.b16 %v1805
      %v2396 = vunpack.c.l.b16 %v1806
      %v2397 = vunpack.c.h.b16 %v1806
      %v2398 = vunpack.c.l.b16 %v1807
      %v2399 = vunpack.c.h.b16 %v1807
      %v2400 = vunpack.c.l.b16 %v1808
      %v2401 = vunpack.c.h.b16 %v1808
      %v2402 = vunpack.c.l.b16 %v1809
      %v2403 = vunpack.c.h.b16 %v1809
      %v2404 = vunpack.c.l.b16 %v1810
      %v2405 = vunpack.c.h.b16 %v1810
      %v2406 = vunpack.c.l.b16 %v1811
      %v2407 = vunpack.c.h.b16 %v1811
      %v2408 = vunpack.c.l.b16 %v1812
      %v2409 = vunpack.c.h.b16 %v1812
      %v2410 = vunpack.c.l.b16 %v1813
      %v2411 = vunpack.c.h.b16 %v1813
      %v2412 = vunpack.c.l.b16 %v1814
      %v2413 = vunpack.c.h.b16 %v1814
      %v2414 = vunpack.c.l.b16 %v1815
      %v2415 = vunpack.c.h.b16 %v1815
      %v2416 = vunpack.c.l.b16 %v1816
      %v2417 = vunpack.c.h.b16 %v1816
      %v2418 = vunpack.c.l.b16 %v1817
      %v2419 = vunpack.c.h.b16 %v1817
      %v2420 = vunpack.c.l.b16 %v1818
      %v2421 = vunpack.c.h.b16 %v1818
      %v2422 = vunpack.c.l.b16 %v1819
      %v2423 = vunpack.c.h.b16 %v1819
      %v2424 = vunpack.c.l.b16 %v1820
      %v2425 = vunpack.c.h.b16 %v1820
      %v2426 = vunpack.c.l.b16 %v1821
      %v2427 = vunpack.c.h.b16 %v1821
      %v2428 = vunpack.c.l.b16 %v1822
      %v2429 = vunpack.c.h.b16 %v1822
      %v2430 = vunpack.c.l.b16 %v1823
      %v2431 = vunpack.c.h.b16 %v1823
      %v2432 = vunpack.c.l.b16 %v1824
      %v2433 = vunpack.c.h.b16 %v1824
      %v2434 = vunpack.c.l.b16 %v1825
      %v2435 = vunpack.c.h.b16 %v1825
      %v2436 = vunpack.c.l.b16 %v1826
      %v2437 = vunpack.c.h.b16 %v1826
      %v2438 = vunpack.c.l.b16 %v1827
      %v2439 = vunpack.c.h.b16 %v1827
      %v2440 = vunpack.c.l.b16 %v1828
      %v2441 = vunpack.c.h.b16 %v1828
      %v2442 = vunpack.c.l.b16 %v1829
      %v2443 = vunpack.c.h.b16 %v1829
      %v2444 = vunpack.c.l.b16 %v1830
      %v2445 = vunpack.c.h.b16 %v1830
      %v2446 = vunpack.c.l.b16 %v1831
      %v2447 = vunpack.c.h.b16 %v1831
      %v2448 = vunpack.c.l.b16 %v1832
      %v2449 = vunpack.c.h.b16 %v1832
      %v2450 = vunpack.c.l.b16 %v1833
      %v2451 = vunpack.c.h.b16 %v1833
      %v2452 = vunpack.c.l.b16 %v1834
      %v2453 = vunpack.c.h.b16 %v1834
      %v2454 = vunpack.c.l.b16 %v1835
      %v2455 = vunpack.c.h.b16 %v1835
      %v2456 = vunpack.c.l.b16 %v1836
      %v2457 = vunpack.c.h.b16 %v1836
      %v2458 = vunpack.c.l.b16 %v1837
      %v2459 = vunpack.c.h.b16 %v1837
      %v2460 = vunpack.c.l.b16 %v1838
      %v2461 = vunpack.c.h.b16 %v1838
      %v2462 = vunpack.c.l.b16 %v1839
      %v2463 = vunpack.c.h.b16 %v1839
      %v2464 = vunpack.c.l.b16 %v1840
      %v2465 = vunpack.c.h.b16 %v1840
      %v2466 = vunpack.c.l.b16 %v1841
      %v2467 = vunpack.c.h.b16 %v1841
      %v2468 = vunpack.c.l.b16 %v1842
      %v2469 = vunpack.c.h.b16 %v1842
      %v2470 = vunpack.c.l.b16 %v1843
      %v2471 = vunpack.c.h.b16 %v1843
      %v2472 = vunpack.c.l.b16 %v1844
      %v2473 = vunpack.c.h.b16 %v1844
      %v2474 = vunpack.c.l.b16 %v1845
      %v2475 = vunpack.c.h.b16 %v1845
      %v2476 = vunpack.c.l.b16 %v1846
      %v2477 = vunpack.c.h.b16 %v1846
      %v2478 = vunpack.c.l.b16 %v1847
      %v2479 = vunpack.c.h.b16 %v1847
      %v2480 = vunpack.c.l.b16 %v1848
      %v2481 = vunpack.c.h.b16 %v1848
      %v2482 = vunpack.c.l.b16 %v1849
      %v2483 = vunpack.c.h.b16 %v1849
      %v2484 = vunpack.c.l.b16 %v1850
      %v2485 = vunpack.c.h.b16 %v1850
      %v2486 = vunpack.c.l.b16 %v1851
      %v2487 = vunpack.c.h.b16 %v1851
      %v2488 = vunpack.c.l.b16 %v1852
      %v2489 = vunpack.c.h.b16 %v1852
      %v2490 = vunpack.c.l.b16 %v1853
      %v2491 = vunpack.c.h.b16 %v1853
      %v2492 = vunpack.c.l.b16 %v1854
      %v2493 = vunpack.c.h.b16 %v1854
      %v2494 = vunpack.c.l.b16 %v1855
      %v2495 = vunpack.c.h.b16 %v1855
      %v2496 = vunpack.c.l.b16 %v1856
      %v2497 = vunpack.c.h.b16 %v1856
      %v2498 = vunpack.c.l.b16 %v1857
      %v2499 = vunpack.c.h.b16 %v1857
      %v2500 = vunpack.c.l.b16 %v1858
      %v2501 = vunpack.c.h.b16 %v1858
      %v2502 = vunpack.c.l.b16 %v1859
      %v2503 = vunpack.c.h.b16 %v1859
      %v2504 = vunpack.c.l.b16 %v1860
      %v2505 = vunpack.c.h.b16 %v1860
      %v2506 = vunpack.c.l.b16 %v1861
      %v2507 = vunpack.c.h.b16 %v1861
      %v2508 = vunpack.c.l.b16 %v1862
      %v2509 = vunpack.c.h.b16 %v1862
      %v2510 = vunpack.c.l.b16 %v1863
      %v2511 = vunpack.c.h.b16 %v1863
      %v2512 = vunpack.c.l.b16 %v1864
      %v2513 = vunpack.c.h.b16 %v1864
      %v2514 = vunpack.c.l.b16 %v1865
      %v2515 = vunpack.c.h.b16 %v1865
      %v2516 = vunpack.c.l.b16 %v1866
      %v2517 = vunpack.c.h.b16 %v1866
      %v2518 = vunpack.c.l.b16 %v1867
      %v2519 = vunpack.c.h.b16 %v1867
      %v2520 = vunpack.c.l.b16 %v1868
      %v2521 = vunpack.c.h.b16 %v1868
      %v2522 = vunpack.c.l.b16 %v1869
      %v2523 = vunpack.c.h.b16 %v1869
      %v2524 = vunpack.c.l.b16 %v1870
      %v2525 = vunpack.c.h.b16 %v1870
      %v2526 = vunpack.c.l.b16 %v1871
      %v2527 = vunpack.c.h.b16 %v1871
      %v2528 = vunpack.c.l.b16 %v1872
      %v2529 = vunpack.c.h.b16 %v1872
      %v2530 = vunpack.c.l.b16 %v1873
      %v2531 = vunpack.c.h.b16 %v1873
      %v2532 = vunpack.c.l.b16 %v1874
      %v2533 = vunpack.c.h.b16 %v1874
      %v2534 = vunpack.c.l.b16 %v1875
      %v2535 = vunpack.c.h.b16 %v1875
      %v2536 = vunpack.c.l.b16 %v1876
      %v2537 = vunpack.c.h.b16 %v1876
      %v2538 = vunpack.c.l.b16 %v1877
      %v2539 = vunpack.c.h.b16 %v1877
      %v2540 = vunpack.c.l.b16 %v1878
      %v2541 = vunpack.c.h.b16 %v1878
      %v2542 = vunpack.c.l.b16 %v1879
      %v2543 = vunpack.c.h.b16 %v1879
      %v2544 = vunpack.c.l.b16 %v1880
      %v2545 = vunpack.c.h.b16 %v1880
      %v2546 = vunpack.c.l.b16 %v1881
      %v2547 = vunpack.c.h.b16 %v1881
      %v2548 = vunpack.c.l.b16 %v1882
      %v2549 = vunpack.c.h.b16 %v1882
      %v2550 = vunpack.c.l.b16 %v1883
      %v2551 = vunpack.c.h.b16 %v1883
      %v2552 = vunpack.c.l.b16 %v1884
      %v2553 = vunpack.c.h.b16 %v1884
      %v2554 = vunpack.c.l.b16 %v1885
      %v2555 = vunpack.c.h.b16 %v1885
      %v2556 = vunpack.c.l.b16 %v1886
      %v2557 = vunpack.c.h.b16 %v1886
      %v2558 = vunpack.c.l.b16 %v1887
      %v2559 = vunpack.c.h.b16 %v1887
      %v2560 = vunpack.c.l.b16 %v1888
      %v2561 = vunpack.c.h.b16 %v1888
      %v2562 = vunpack.c.l.b16 %v1889
      %v2563 = vunpack.c.h.b16 %v1889
      %v2564 = vunpack.c.l.b16 %v1890
      %v2565 = vunpack.c.h.b16 %v1890
      %v2566 = vunpack.c.l.b16 %v1891
      %v2567 = vunpack.c.h.b16 %v1891
      %v2568 = vunpack.c.l.b16 %v1892
      %v2569 = vunpack.c.h.b16 %v1892
      %v2570 = vunpack.c.l.b16 %v1893
      %v2571 = vunpack.c.h.b16 %v1893
      %v2572 = vunpack.c.l.b16 %v1894
      %v2573 = vunpack.c.h.b16 %v1894
      %v2574 = vunpack.c.l.b16 %v1895
      %v2575 = vunpack.c.h.b16 %v1895
      %v2576 = vunpack.c.l.b16 %v1896
      %v2577 = vunpack.c.h.b16 %v1896
      %v2578 = vunpack.c.l.b16 %v1897
      %v2579 = vunpack.c.h.b16 %v1897
      %v2580 = vunpack.c.l.b16 %v1898
      %v2581 = vunpack.c.h.b16 %v1898
      %v2582 = vunpack.c.l.b16 %v1899
      %v2583 = vunpack.c.h.b16 %v1899
      %v2584 = vunpack.c.l.b16 %v1900
      %v2585 = vunpack.c.h.b16 %v1900
      %v2586 = vunpack.c.l.b16 %v1901
      %v2587 = vunpack.c.h.b16 %v1901
      %v2588 = vunpack.c.l.b16 %v1902
      %v2589 = vunpack.c.h.b16 %v1902
      %v2590 = vunpack.c.l.b16 %v1903
      %v2591 = vunpack.c.h.b16 %v1903
      %v2592 = vunpack.c.l.b16 %v1904
      %v2593 = vunpack.c.h.b16 %v1904
      %v2594 = vunpack.c.l.b16 %v1905
      %v2595 = vunpack.c.h.b16 %v1905
      %v2596 = vunpack.c.l.b16 %v1906
      %v2597 = vunpack.c.h.b16 %v1906
      %v2598 = vunpack.c.l.b16 %v1907
      %v2599 = vunpack.c.h.b16 %v1907
      %v2600 = vunpack.c.l.b16 %v1908
      %v2601 = vunpack.c.h.b16 %v1908
      %v2602 = vunpack.c.l.b16 %v1909
      %v2603 = vunpack.c.h.b16 %v1909
      %v2604 = vunpack.c.l.b16 %v1910
      %v2605 = vunpack.c.h.b16 %v1910
      %v2606 = vunpack.c.l.b16 %v1911
      %v2607 = vunpack.c.h.b16 %v1911
      %v2608 = vunpack.c.l.b16 %v1912
      %v2609 = vunpack.c.h.b16 %v1912
      %v2610 = vunpack.c.l.b16 %v1913
      %v2611 = vunpack.c.h.b16 %v1913
      %v2612 = vunpack.c.l.b16 %v1914
      %v2613 = vunpack.c.h.b16 %v1914
      %v2614 = vunpack.c.l.b16 %v1915
      %v2615 = vunpack.c.h.b16 %v1915
      %v2616 = vunpack.c.l.b16 %v1916
      %v2617 = vunpack.c.h.b16 %v1916
      %v2618 = vunpack.c.l.b16 %v1917
      %v2619 = vunpack.c.h.b16 %v1917
      %v2620 = vunpack.c.l.b16 %v1918
      %v2621 = vunpack.c.h.b16 %v1918
      %v2622 = vunpack.c.l.b16 %v1919
      %v2623 = vunpack.c.h.b16 %v1919
      %v2624 = vunpack.c.l.b16 %v1920
      %v2625 = vunpack.c.h.b16 %v1920
      %v2626 = vunpack.c.l.b16 %v1921
      %v2627 = vunpack.c.h.b16 %v1921
      %v2628 = vunpack.c.l.b16 %v1922
      %v2629 = vunpack.c.h.b16 %v1922
      %v2630 = vunpack.c.l.b16 %v1923
      %v2631 = vunpack.c.h.b16 %v1923
      %v2632 = vunpack.c.l.b16 %v1924
      %v2633 = vunpack.c.h.b16 %v1924
      %v2634 = vunpack.c.l.b16 %v1925
      %v2635 = vunpack.c.h.b16 %v1925
      %v2636 = vunpack.c.l.b16 %v1926
      %v2637 = vunpack.c.h.b16 %v1926
      %v2638 = vunpack.c.l.b16 %v1927
      %v2639 = vunpack.c.h.b16 %v1927
      %v2640 = vunpack.c.l.b16 %v1928
      %v2641 = vunpack.c.h.b16 %v1928
      %v2642 = vunpack.c.l.b16 %v1929
      %v2643 = vunpack.c.h.b16 %v1929
      %v2644 = vunpack.c.l.b16 %v1930
      %v2645 = vunpack.c.h.b16 %v1930
      %v2646 = vunpack.c.l.b16 %v1931
      %v2647 = vunpack.c.h.b16 %v1931
      %v2648 = vunpack.c.l.b16 %v1932
      %v2649 = vunpack.c.h.b16 %v1932
      %v2650 = vunpack.c.l.b16 %v1933
      %v2651 = vunpack.c.h.b16 %v1933
      %v2652 = vunpack.c.l.b16 %v1934
      %v2653 = vunpack.c.h.b16 %v1934
      %v2654 = vunpack.c.l.b16 %v1935
      %v2655 = vunpack.c.h.b16 %v1935
      %v2656 = vunpack.c.l.b16 %v1936
      %v2657 = vunpack.c.h.b16 %v1936
      %v2658 = vunpack.c.l.b16 %v1937
      %v2659 = vunpack.c.h.b16 %v1937
      %v2660 = vunpack.c.l.b16 %v1938
      %v2661 = vunpack.c.h.b16 %v1938
      %v2662 = vunpack.c.l.b16 %v1939
      %v2663 = vunpack.c.h.b16 %v1939
      %v2664 = vunpack.c.l.b16 %v1940
      %v2665 = vunpack.c.h.b16 %v1940
      %v2666 = vunpack.c.l.b16 %v1941
      %v2667 = vunpack.c.h.b16 %v1941
      %v2668 = vunpack.c.l.b16 %v1942
      %v2669 = vunpack.c.h.b16 %v1942
      %v2670 = vunpack.c.l.b16 %v1943
      %v2671 = vunpack.c.h.b16 %v1943
      %v2672 = vunpack.c.l.b16 %v1944
      %v2673 = vunpack.c.h.b16 %v1944
      %v2674 = vunpack.c.l.b16 %v1945
      %v2675 = vunpack.c.h.b16 %v1945
      %v2676 = vunpack.c.l.b16 %v1946
      %v2677 = vunpack.c.h.b16 %v1946
      %v2678 = vunpack.c.l.b16 %v1947
      %v2679 = vunpack.c.h.b16 %v1947
      %v2680 = vunpack.c.l.b16 %v1948
      %v2681 = vunpack.c.h.b16 %v1948
      %v2682 = vunpack.c.l.b16 %v1949
      %v2683 = vunpack.c.h.b16 %v1949
      %v2684 = vunpack.c.l.b16 %v1950
      %v2685 = vunpack.c.h.b16 %v1950
      %v2686 = vunpack.c.l.b16 %v1951
      %v2687 = vunpack.c.h.b16 %v1951
      %v2688 = vunpack.c.l.b16 %v1952
      %v2689 = vunpack.c.h.b16 %v1952
      %v2690 = vunpack.c.l.b16 %v1953
      %v2691 = vunpack.c.h.b16 %v1953
      %v2692 = vunpack.c.l.b16 %v1954
      %v2693 = vunpack.c.h.b16 %v1954
      %v2694 = vunpack.c.l.b16 %v1955
      %v2695 = vunpack.c.h.b16 %v1955
      %v2696 = vunpack.c.l.b16 %v1956
      %v2697 = vunpack.c.h.b16 %v1956
      %v2698 = vunpack.c.l.b16 %v1957
      %v2699 = vunpack.c.h.b16 %v1957
      %v2700 = vunpack.c.l.b16 %v1958
      %v2701 = vunpack.c.h.b16 %v1958
      %v2702 = vunpack.c.l.b16 %v1959
      %v2703 = vunpack.c.h.b16 %v1959
      %v2704 = vunpack.c.l.b16 %v1960
      %v2705 = vunpack.c.h.b16 %v1960
      %v2706 = vunpack.c.l.b16 %v1961
      %v2707 = vunpack.c.h.b16 %v1961
      %v2708 = vunpack.c.l.b16 %v1962
      %v2709 = vunpack.c.h.b16 %v1962
      %v2710 = vunpack.c.l.b16 %v1963
      %v2711 = vunpack.c.h.b16 %v1963
      %v2712 = vunpack.c.l.b16 %v1964
      %v2713 = vunpack.c.h.b16 %v1964
      %v2714 = vunpack.c.l.b16 %v1965
      %v2715 = vunpack.c.h.b16 %v1965
      %v2716 = vunpack.c.l.b16 %v1966
      %v2717 = vunpack.c.h.b16 %v1966
      %v2718 = vunpack.c.l.b16 %v1967
      %v2719 = vunpack.c.h.b16 %v1967
      %v2720 = vunpack.c.l.b16 %v1968
      %v2721 = vunpack.c.h.b16 %v1968
      %v2722 = vunpack.c.l.b16 %v1969
      %v2723 = vunpack.c.h.b16 %v1969
      %v2724 = vunpack.c.l.b16 %v1970
      %v2725 = vunpack.c.h.b16 %v1970
      %v2726 = vunpack.c.l.b16 %v1971
      %v2727 = vunpack.c.h.b16 %v1971
      %v2728 = vunpack.c.l.b16 %v1972
      %v2729 = vunpack.c.h.b16 %v1972
      %v2730 = vunpack.c.l.b16 %v1973
      %v2731 = vunpack.c.h.b16 %v1973
      %v2732 = vunpack.c.l.b16 %v1974
      %v2733 = vunpack.c.h.b16 %v1974
      %v2734 = vunpack.c.l.b16 %v1975
      %v2735 = vunpack.c.h.b16 %v1975
      %v2736 = vunpack.c.l.b16 %v1976
      %v2737 = vunpack.c.h.b16 %v1976
      %v2738 = vunpack.c.l.b16 %v1977
      %v2739 = vunpack.c.h.b16 %v1977
      %v2740 = vunpack.c.l.b16 %v1978
      %v2741 = vunpack.c.h.b16 %v1978
      %v2742 = vunpack.c.l.b16 %v1979
      %v2743 = vunpack.c.h.b16 %v1979
      %v2744 = vunpack.c.l.b16 %v1980
      %v2745 = vunpack.c.h.b16 %v1980
      %v2746 = vunpack.c.l.b16 %v1981
      %v2747 = vunpack.c.h.b16 %v1981
      %v2748 = vunpack.c.l.b16 %v1982
      %v2749 = vunpack.c.h.b16 %v1982
      %v2750 = vunpack.c.l.b16 %v1983
      %v2751 = vunpack.c.h.b16 %v1983
      %v2752 = vunpack.c.l.b16 %v1984
      %v2753 = vunpack.c.h.b16 %v1984
      %v2754 = vunpack.c.l.b16 %v1985
      %v2755 = vunpack.c.h.b16 %v1985
      %v2756 = vunpack.c.l.b16 %v1986
      %v2757 = vunpack.c.h.b16 %v1986
      %v2758 = vunpack.c.l.b16 %v1987
      %v2759 = vunpack.c.h.b16 %v1987
      %v2760 = vunpack.c.l.b16 %v1988
      %v2761 = vunpack.c.h.b16 %v1988
      %v2762 = vunpack.c.l.b16 %v1989
      %v2763 = vunpack.c.h.b16 %v1989
      %v2764 = vunpack.c.l.b16 %v1990
      %v2765 = vunpack.c.h.b16 %v1990
      %v2766 = vunpack.c.l.b16 %v1991
      %v2767 = vunpack.c.h.b16 %v1991
      %v2768 = vunpack.c.l.b16 %v1992
      %v2769 = vunpack.c.h.b16 %v1992
      %v2770 = vunpack.c.l.b16 %v1993
      %v2771 = vunpack.c.h.b16 %v1993
      %v2772 = vunpack.c.l.b16 %v1994
      %v2773 = vunpack.c.h.b16 %v1994
      %v2774 = vunpack.c.l.b16 %v1995
      %v2775 = vunpack.c.h.b16 %v1995
      %v2776 = vunpack.c.l.b16 %v1996
      %v2777 = vunpack.c.h.b16 %v1996
      %v2778 = vunpack.c.l.b16 %v1997
      %v2779 = vunpack.c.h.b16 %v1997
      %v2780 = vunpack.c.l.b16 %v1998
      %v2781 = vunpack.c.h.b16 %v1998
      %v2782 = vunpack.c.l.b16 %v1999
      %v2783 = vunpack.c.h.b16 %v1999
      %v2784 = vunpack.c.l.b16 %v2000
      %v2785 = vunpack.c.h.b16 %v2000
      %v2786 = vunpack.c.l.b16 %v2001
      %v2787 = vunpack.c.h.b16 %v2001
      %v2788 = vunpack.c.l.b16 %v2002
      %v2789 = vunpack.c.h.b16 %v2002
      %v2790 = vunpack.c.l.b16 %v2003
      %v2791 = vunpack.c.h.b16 %v2003
      %v2792 = vunpack.c.l.b16 %v2004
      %v2793 = vunpack.c.h.b16 %v2004
      %v2794 = vunpack.c.l.b16 %v2005
      %v2795 = vunpack.c.h.b16 %v2005
      %v2796 = vunpack.c.l.b16 %v2006
      %v2797 = vunpack.c.h.b16 %v2006
      %v2798 = vunpack.c.l.b16 %v2007
      %v2799 = vunpack.c.h.b16 %v2007
      %v2800 = vunpack.c.l.b16 %v2008
      %v2801 = vunpack.c.h.b16 %v2008
      %v2802 = vunpack.c.l.b16 %v2009
      %v2803 = vunpack.c.h.b16 %v2009
      %v2804 = vunpack.c.l.b16 %v2010
      %v2805 = vunpack.c.h.b16 %v2010
      %v2806 = vunpack.c.l.b16 %v2011
      %v2807 = vunpack.c.h.b16 %v2011
      %v2808 = vunpack.c.l.b16 %v2012
      %v2809 = vunpack.c.h.b16 %v2012
      %v2810 = vunpack.c.l.b16 %v2013
      %v2811 = vunpack.c.h.b16 %v2013
      %v2812 = vunpack.c.l.b16 %v2014
      %v2813 = vunpack.c.h.b16 %v2014
      %v2814 = vunpack.c.l.b16 %v2015
      %v2815 = vunpack.c.h.b16 %v2015
      %v2816 = vunpack.c.l.b16 %v2016
      %v2817 = vunpack.c.h.b16 %v2016
      %v2818 = vunpack.c.l.b16 %v2017
      %v2819 = vunpack.c.h.b16 %v2017
      %v2820 = vunpack.c.l.b16 %v2018
      %v2821 = vunpack.c.h.b16 %v2018
      %v2822 = vunpack.c.l.b16 %v2019
      %v2823 = vunpack.c.h.b16 %v2019
      %v2824 = vunpack.c.l.b16 %v2020
      %v2825 = vunpack.c.h.b16 %v2020
      %v2826 = vunpack.c.l.b16 %v2021
      %v2827 = vunpack.c.h.b16 %v2021
      %v2828 = vunpack.c.l.b16 %v2022
      %v2829 = vunpack.c.h.b16 %v2022
      %v2830 = vunpack.c.l.b16 %v2023
      %v2831 = vunpack.c.h.b16 %v2023
      %v2832 = vunpack.c.l.b16 %v2024
      %v2833 = vunpack.c.h.b16 %v2024
      %v2834 = vpack.c.b16 %v2330, %v2322
      %v2835 = vpack.c.b16 %v2331, %v2323
      %v2836 = vpack.c.b16 %v2332, %v2324
      %v2837 = vpack.c.b16 %v2333, %v2325
      %v2838 = vpack.c.b16 %v2334, %v2326
      %v2839 = vpack.c.b16 %v2335, %v2327
      %v2840 = vpack.c.b16 %v2336, %v2328
      %v2841 = vpack.c.b16 %v2337, %v2329
      %v2842 = vpack.c.b16 %v2346, %v2338
      %v2843 = vpack.c.b16 %v2347, %v2339
      %v2844 = vpack.c.b16 %v2348, %v2340
      %v2845 = vpack.c.b16 %v2349, %v2341
      %v2846 = vpack.c.b16 %v2350, %v2342
      %v2847 = vpack.c.b16 %v2351, %v2343
      %v2848 = vpack.c.b16 %v2352, %v2344
      %v2849 = vpack.c.b16 %v2353, %v2345
      %v2850 = vpack.c.b16 %v2362, %v2354
      %v2851 = vpack.c.b16 %v2363, %v2355
      %v2852 = vpack.c.b16 %v2364, %v2356
      %v2853 = vpack.c.b16 %v2365, %v2357
      %v2854 = vpack.c.b16 %v2366, %v2358
      %v2855 = vpack.c.b16 %v2367, %v2359
      %v2856 = vpack.c.b16 %v2368, %v2360
      %v2857 = vpack.c.b16 %v2369, %v2361
      %v2858 = vpack.c.b16 %v2378, %v2370
      %v2859 = vpack.c.b16 %v2379, %v2371
      %v2860 = vpack.c.b16 %v2380, %v2372
      %v2861 = vpack.c.b16 %v2381, %v2373
      %v2862 = vpack.c.b16 %v2382, %v2374
      %v2863 = vpack.c.b16 %v2383, %v2375
      %v2864 = vpack.c.b16 %v2384, %v2376
      %v2865 = vpack.c.b16 %v2385, %v2377
      %v2866 = vpack.c.b16 %v2394, %v2386
      %v2867 = vpack.c.b16 %v2395, %v2387
      %v2868 = vpack.c.b16 %v2396, %v2388
      %v2869 = vpack.c.b16 %v2397, %v2389
      %v2870 = vpack.c.b16 %v2398, %v2390
      %v2871 = vpack.c.b16 %v2399, %v2391
      %v2872 = vpack.c.b16 %v2400, %v2392
      %v2873 = vpack.c.b16 %v2401, %v2393
      %v2874 = vpack.c.b16 %v2410, %v2402
      %v2875 = vpack.c.b16 %v2411, %v2403
      %v2876 = vpack.c.b16 %v2412, %v2404
      %v2877 = vpack.c.b16 %v2413, %v2405
      %v2878 = vpack.c.b16 %v2414, %v2406
      %v2879 = vpack.c.b16 %v2415, %v2407
      %v2880 = vpack.c.b16 %v2416, %v2408
      %v2881 = vpack.c.b16 %v2417, %v2409
      %v2882 = vpack.c.b16 %v2426, %v2418
      %v2883 = vpack.c.b16 %v2427, %v2419
      %v2884 = vpack.c.b16 %v2428, %v2420
      %v2885 = vpack.c.b16 %v2429, %v2421
      %v2886 = vpack.c.b16 %v2430, %v2422
      %v2887 = vpack.c.b16 %v2431, %v2423
      %v2888 = vpack.c.b16 %v2432, %v2424
      %v2889 = vpack.c.b16 %v2433, %v2425
      %v2890 = vpack.c.b16 %v2442, %v2434
      %v2891 = vpack.c.b16 %v2443, %v2435
      %v2892 = vpack.c.b16 %v2444, %v2436
      %v2893 = vpack.c.b16 %v2445, %v2437
      %v2894 = vpack.c.b16 %v2446, %v2438
      %v2895 = vpack.c.b16 %v2447, %v2439
      %v2896 = vpack.c.b16 %v2448, %v2440
      %v2897 = vpack.c.b16 %v2449, %v2441
      %v2898 = vpack.c.b16 %v2458, %v2450
      %v2899 = vpack.c.b16 %v2459, %v2451
      %v2900 = vpack.c.b16 %v2460, %v2452
      %v2901 = vpack.c.b16 %v2461, %v2453
      %v2902 = vpack.c.b16 %v2462, %v2454
      %v2903 = vpack.c.b16 %v2463, %v2455
      %v2904 = vpack.c.b16 %v2464, %v2456
      %v2905 = vpack.c.b16 %v2465, %v2457
      %v2906 = vpack.c.b16 %v2474, %v2466
      %v2907 = vpack.c.b16 %v2475, %v2467
      %v2908 = vpack.c.b16 %v2476, %v2468
      %v2909 = vpack.c.b16 %v2477, %v2469
      %v2910 = vpack.c.b16 %v2478, %v2470
      %v2911 = vpack.c.b16 %v2479, %v2471
      %v2912 = vpack.c.b16 %v2480, %v2472
      %v2913 = vpack.c.b16 %v2481, %v2473
      %v2914 = vpack.c.b16 %v2490, %v2482
      %v2915 = vpack.c.b16 %v2491, %v2483
      %v2916 = vpack.c.b16 %v2492, %v2484
      %v2917 = vpack.c.b16 %v2493, %v2485
      %v2918 = vpack.c.b16 %v2494, %v2486
      %v2919 = vpack.c.b16 %v2495, %v2487
      %v2920 = vpack.c.b16 %v2496, %v2488
      %v2921 = vpack.c.b16 %v2497, %v2489
      %v2922 = vpack.c.b16 %v2506, %v2498
      %v2923 = vpack.c.b16 %v2507, %v2499
      %v2924 = vpack.c.b16 %v2508, %v2500
      %v2925 = vpack.c.b16 %v2509, %v2501
      %v2926 = vpack.c.b16 %v2510, %v2502
      %v2927 = vpack.c.b16 %v2511, %v2503
      %v2928 = vpack.c.b16 %v2512, %v2504
      %v2929 = vpack.c.b16 %v2513, %v2505
      %v2930 = vpack.c.b16 %v2522, %v2514
      %v2931 = vpack.c.b16 %v2523, %v2515
      %v2932 = vpack.c.b16 %v2524, %v2516
      %v2933 = vpack.c.b16 %v2525, %v2517
      %v2934 = vpack.c.b16 %v2526, %v2518
      %v2935 = vpack.c.b16 %v2527, %v2519
      %v2936 = vpack.c.b16 %v2528, %v2520
      %v2937 = vpack.c.b16 %v2529, %v2521
      %v2938 = vpack.c.b16 %v2538, %v2530
      %v2939 = vpack.c.b16 %v2539, %v2531
      %v2940 = vpack.c.b16 %v2540, %v2532
      %v2941 = vpack.c.b16 %v2541, %v2533
      %v2942 = vpack.c.b16 %v2542, %v2534
      %v2943 = vpack.c.b16 %v2543, %v2535
      %v2944 = vpack.c.b16 %v2544, %v2536
      %v2945 = vpack.c.b16 %v2545, %v2537
      %v2946 = vpack.c.b16 %v2554, %v2546
      %v2947 = vpack.c.b16 %v2555, %v2547
      %v2948 = vpack.c.b16 %v2556, %v2548
      %v2949 = vpack.c.b16 %v2557, %v2549
      %v2950 = vpack.c.b16 %v2558, %v2550
      %v2951 = vpack.c.b16 %v2559, %v2551
      %v2952 = vpack.c.b16 %v2560, %v2552
      %v2953 = vpack.c.b16 %v2561, %v2553
      %v2954 = vpack.c.b16 %v2570, %v2562
      %v2955 = vpack.c.b16 %v2571, %v2563
      %v2956 = vpack.c.b16 %v2572, %v2564
      %v2957 = vpack.c.b16 %v2573, %v2565
      %v2958 = vpack.c.b16 %v2574, %v2566
      %v2959 = vpack.c.b16 %v2575, %v2567
      %v2960 = vpack.c.b16 %v2576, %v2568
      %v2961 = vpack.c.b16 %v2577, %v2569
      %v2962 = vpack.c.b16 %v2586, %v2578
      %v2963 = vpack.c.b16 %v2587, %v2579
      %v2964 = vpack.c.b16 %v2588, %v2580
      %v2965 = vpack.c.b16 %v2589, %v2581
      %v2966 = vpack.c.b16 %v2590, %v2582
      %v2967 = vpack.c.b16 %v2591, %v2583
      %v2968 = vpack.c.b16 %v2592, %v2584
      %v2969 = vpack.c.b16 %v2593, %v2585
      %v2970 = vpack.c.b16 %v2602, %v2594
      %v2971 = vpack.c.b16 %v2603, %v2595
      %v2972 = vpack.c.b16 %v2604, %v2596
      %v2973 = vpack.c.b16 %v2605, %v2597
      %v2974 = vpack.c.b16 %v2606, %v2598
      %v2975 = vpack.c.b16 %v2607, %v2599
      %v2976 = vpack.c.b16 %v2608, %v2600
      %v2977 = vpack.c.b16 %v2609, %v2601
      %v2978 = vpack.c.b16 %v2618, %v2610
      %v2979 = vpack.c.b16 %v2619, %v2611
      %v2980 = vpack.c.b16 %v2620, %v2612
      %v2981 = vpack.c.b16 %v2621, %v2613
      %v2982 = vpack.c.b16 %v2622, %v2614
      %v2983 = vpack.c.b16 %v2623, %v2615
      %v2984 = vpack.c.b16 %v2624, %v2616
      %v2985 = vpack.c.b16 %v2625, %v2617
      %v2986 = vpack.c.b16 %v2634, %v2626
      %v2987 = vpack.c.b16 %v2635, %v2627
      %v2988 = vpack.c.b16 %v2636, %v2628
      %v2989 = vpack.c.b16 %v2637, %v2629
      %v2990 = vpack.c.b16 %v2638, %v2630
      %v2991 = vpack.c.b16 %v2639, %v2631
      %v2992 = vpack.c.b16 %v2640, %v2632
      %v2993 = vpack.c.b16 %v2641, %v2633
      %v2994 = vpack.c.b16 %v2650, %v2642
      %v2995 = vpack.c.b16 %v2651, %v2643
      %v2996 = vpack.c.b16 %v2652, %v2644
      %v2997 = vpack.c.b16 %v2653, %v2645
      %v2998 = vpack.c.b16 %v2654, %v2646
      %v2999 = vpack.c.b16 %v2655, %v2647
      %v3000 = vpack.c.b16 %v2656, %v2648
      %v3001 = vpack.c.b16 %v2657, %v2649
      %v3002 = vpack.c.b16 %v2666, %v2658
      %v3003 = vpack.c.b16 %v2667, %v2659
      %v3004 = vpack.c.b16 %v2668, %v2660
      %v3005 = vpack.c.b16 %v2669, %v2661
      %v3006 = vpack.c.b16 %v2670, %v2662
      %v3007 = vpack.c.b16 %v2671, %v2663
      %v3008 = vpack.c.b16 %v2672, %v2664
      %v3009 = vpack.c.b16 %v2673, %v2665
      %v3010 = vpack.c.b16 %v2682, %v2674
      %v3011 = vpack.c.b16 %v2683, %v2675
      %v3012 = vpack.c.b16 %v2684, %v2676
      %v3013 = vpack.c.b16 %v2685, %v2677
      %v3014 = vpack.c.b16 %v2686, %v2678
      %v3015 = vpack.c.b16 %v2687, %v2679
      %v3016 = vpack.c.b16 %v2688, %v2680
      %v3017 = vpack.c.b16 %v2689, %v2681
      %v3018 = vpack.c.b16 %v2698, %v2690
      %v3019 = vpack.c.b16 %v2699, %v2691
      %v3020 = vpack.c.b16 %v2700, %v2692
      %v3021 = vpack.c.b16 %v2701, %v2693
      %v3022 = vpack.c.b16 %v2702, %v2694
      %v3023 = vpack.c.b16 %v2703, %v2695
      %v3024 = vpack.c.b16 %v2704, %v2696
      %v3025 = vpack.c.b16 %v2705, %v2697
      %v3026 = vpack.c.b16 %v2714, %v2706
      %v3027 = vpack.c.b16 %v2715, %v2707
      %v3028 = vpack.c.b16 %v2716, %v2708
      %v3029 = vpack.c.b16 %v2717, %v2709
      %v3030 = vpack.c.b16 %v2718, %v2710
      %v3031 = vpack.c.b16 %v2719, %v2711
      %v3032 = vpack.c.b16 %v2720, %v2712
      %v3033 = vpack.c.b16 %v2721, %v2713
      %v3034 = vpack.c.b16 %v2730, %v2722
      %v3035 = vpack.c.b16 %v2731, %v2723
      %v3036 = vpack.c.b16 %v2732, %v2724
      %v3037 = vpack.c.b16 %v2733, %v2725
      %v3038 = vpack.c.b16 %v2734, %v2726
      %v3039 = vpack.c.b16 %v2735, %v2727
      %v3040 = vpack.c.b16 %v2736, %v2728
      %v3041 = vpack.c.b16 %v2737, %v2729
      %v3042 = vpack.c.b16 %v2746, %v2738
      %v3043 = vpack.c.b16 %v2747, %v2739
      %v3044 = vpack.c.b16 %v2748, %v2740
      %v3045 = vpack.c.b16 %v2749, %v2741
      %v3046 = vpack.c.b16 %v2750, %v2742
      %v3047 = vpack.c.b16 %v2751, %v2743
      %v3048 = vpack.c.b16 %v2752, %v2744
      %v3049 = vpack.c.b16 %v2753, %v2745
      %v3050 = vpack.c.b16 %v2762, %v2754
      %v3051 = vpack.c.b16 %v2763, %v2755
      %v3052 = vpack.c.b16 %v2764, %v2756
      %v3053 = vpack.c.b16 %v2765, %v2757
      %v3054 = vpack.c.b16 %v2766, %v2758
      %v3055 = vpack.c.b16 %v2767, %v2759
      %v3056 = vpack.c.b16 %v2768, %v2760
      %v3057 = vpack.c.b16 %v2769, %v2761
      %v3058 = vpack.c.b16 %v2778, %v2770
      %v3059 = vpack.c.b16 %v2779, %v2771
      %v3060 = vpack.c.b16 %v2780, %v2772
      %v3061 = vpack.c.b16 %v2781, %v2773
      %v3062 = vpack.c.b16 %v2782, %v2774
      %v3063 = vpack.c.b16 %v2783, %v2775
      %v3064 = vpack.c.b16 %v2784, %v2776
      %v3065 = vpack.c.b16 %v2785, %v2777
      %v3066 = vpack.c.b16 %v2794, %v2786
      %v3067 = vpack.c.b16 %v2795, %v2787
      %v3068 = vpack.c.b16 %v2796, %v2788
      %v3069 = vpack.c.b16 %v2797, %v2789
      %v3070 = vpack.c.b16 %v2798, %v2790
      %v3071 = vpack.c.b16 %v2799, %v2791
      %v3072 = vpack.c.b16 %v2800, %v2792
      %v3073 = vpack.c.b16 %v2801, %v2793
      %v3074 = vpack.c.b16 %v2810, %v2802
      %v3075 = vpack.c.b16 %v2811, %v2803
      %v3076 = vpack.c.b16 %v2812, %v2804
      %v3077 = vpack.c.b16 %v2813, %v2805
      %v3078 = vpack.c.b16 %v2814, %v2806
      %v3079 = vpack.c.b16 %v2815, %v2807
      %v3080 = vpack.c.b16 %v2816, %v2808
      %v3081 = vpack.c.b16 %v2817, %v2809
      %v3082 = vpack.c.b16 %v2826, %v2818
      %v3083 = vpack.c.b16 %v2827, %v2819
      %v3084 = vpack.c.b16 %v2828, %v2820
      %v3085 = vpack.c.b16 %v2829, %v2821
      %v3086 = vpack.c.b16 %v2830, %v2822
      %v3087 = vpack.c.b16 %v2831, %v2823
      %v3088 = vpack.c.b16 %v2832, %v2824
      %v3089 = vpack.c.b16 %v2833, %v2825
      %3346 = vmatprep.subr.bf16.mxu0 %v2835
      %3347 = vmatpush1.bf16.msra.mxu0 %v2834
      %3348 = vmatprep.subr.bf16.mxu0 %v2843
      %3349 = vmatpush1.bf16.msra.mxu0 %v2842
      %3350 = vmatprep.subr.bf16.mxu0 %v2851
      %3351 = vmatpush1.bf16.msra.mxu0 %v2850
      %3352 = vmatprep.subr.bf16.mxu0 %v2859
      %3353 = vmatpush1.bf16.msra.mxu0 %v2858
      %3354 = vmatprep.subr.bf16.mxu0 %v2867
      %3355 = vmatpush1.bf16.msra.mxu0 %v2866
      %3356 = vmatprep.subr.bf16.mxu0 %v2875
      %3357 = vmatpush1.bf16.msra.mxu0 %v2874
      %3358 = vmatprep.subr.bf16.mxu0 %v2883
      %3359 = vmatpush1.bf16.msra.mxu0 %v2882
      %3360 = vmatprep.subr.bf16.mxu0 %v2891
      %3361 = vmatpush1.bf16.msra.mxu0 %v2890
      %3362 = vmatprep.subr.bf16.mxu0 %v2899
      %3363 = vmatpush1.bf16.msra.mxu0 %v2898
      %3364 = vmatprep.subr.bf16.mxu0 %v2907
      %3365 = vmatpush1.bf16.msra.mxu0 %v2906
      %3366 = vmatprep.subr.bf16.mxu0 %v2915
      %3367 = vmatpush1.bf16.msra.mxu0 %v2914
      %3368 = vmatprep.subr.bf16.mxu0 %v2923
      %3369 = vmatpush1.bf16.msra.mxu0 %v2922
      %3370 = vmatprep.subr.bf16.mxu0 %v2931
      %3371 = vmatpush1.bf16.msra.mxu0 %v2930
      %3372 = vmatprep.subr.bf16.mxu0 %v2939
      %3373 = vmatpush1.bf16.msra.mxu0 %v2938
      %3374 = vmatprep.subr.bf16.mxu0 %v2947
      %3375 = vmatpush1.bf16.msra.mxu0 %v2946
      %3376 = vmatprep.subr.bf16.mxu0 %v2955
      %3377 = vmatpush1.bf16.msra.mxu0 %v2954
      %3378 = vmatprep.mubr.bf16.mxu0 %v1706
      %3379 = vmatmul.mubr.bf16.gmra.mrb[0].mxu0 %v1705
      %v3380 = vpop.f32.mrb[0].mxu0
      %v3381 = vadd.f32 %v2029, %v3380
      %v3382 = vpop.f32.mrb[0].mxu0
      %v3383 = vadd.f32 %v2033, %v3382
      %v3384 = vpop.f32.mrb[0].mxu0
      %v3385 = vadd.f32 %v2029, %v3384
      %v3386 = vpop.f32.mrb[0].mxu0
      %v3387 = vadd.f32 %v2033, %v3386
      %3388 = vmatprep.mubr.bf16.mxu0 %v1710
      %3389 = vmatmul.mubr.bf16.gmra.mrb[0].mxu0 %v1709
      %v3390 = vpop.f32.mrb[0].mxu0
      %v3391 = vadd.f32 %v2029, %v3390
      %v3392 = vpop.f32.mrb[0].mxu0
      %v3393 = vadd.f32 %v2033, %v3392
      %v3394 = vpop.f32.mrb[0].mxu0
      %v3395 = vadd.f32 %v2029, %v3394
      %v3396 = vpop.f32.mrb[0].mxu0
      %v3397 = vadd.f32 %v2033, %v3396
      %3398 = vmatprep.mubr.bf16.mxu0 %v1714
      %3399 = vmatmul.mubr.bf16.gmra.mrb[0].mxu0 %v1713
      %v3400 = vpop.f32.mrb[0].mxu0
      %v3401 = vadd.f32 %v2029, %v3400
      %v3402 = vpop.f32.mrb[0].mxu0
      %v3403 = vadd.f32 %v2033, %v3402
      %v3404 = vpop.f32.mrb[0].mxu0
      %v3405 = vadd.f32 %v2029, %v3404
      %v3406 = vpop.f32.mrb[0].mxu0
      %v3407 = vadd.f32 %v2033, %v3406
      %3408 = vmatprep.mubr.bf16.mxu0 %v1718
      %3409 = vmatmul.mubr.bf16.gmra.mrb[0].mxu0 %v1717
      %v3410 = vpop.f32.mrb[0].mxu0
      %v3411 = vadd.f32 %v2029, %v3410
      %v3412 = vpop.f32.mrb[0].mxu0
      %v3413 = vadd.f32 %v2033, %v3412
      %v3414 = vpop.f32.mrb[0].mxu0
      %v3415 = vadd.f32 %v2029, %v3414
      %v3416 = vpop.f32.mrb[0].mxu0
      %v3417 = vadd.f32 %v2033, %v3416
      %3418 = vmatprep.mubr.bf16.mxu0 %v1722
      %3419 = vmatmul.mubr.bf16.gmra.mrb[0].mxu0 %v1721
      %v3420 = vpop.f32.mrb[0].mxu0
      %v3421 = vadd.f32 %v2029, %v3420
      %v3422 = vpop.f32.mrb[0].mxu0
      %v3423 = vadd.f32 %v2033, %v3422
      %v3424 = vpop.f32.mrb[0].mxu0
      %v3425 = vadd.f32 %v2029, %v3424
      %v3426 = vpop.f32.mrb[0].mxu0
      %v3427 = vadd.f32 %v2033, %v3426
      %3428 = vmatprep.mubr.bf16.mxu0 %v1726
      %3429 = vmatmul.mubr.bf16.gmra.mrb[0].mxu0 %v1725
      %v3430 = vpop.f32.mrb[0].mxu0
      %v3431 = vadd.f32 %v2029, %v3430
      %v3432 = vpop.f32.mrb[0].mxu0
      %v3433 = vadd.f32 %v2033, %v3432
      %v3434 = vpop.f32.mrb[0].mxu0
      %v3435 = vadd.f32 %v2029, %v3434
      %v3436 = vpop.f32.mrb[0].mxu0
      %v3437 = vadd.f32 %v2033, %v3436
      %3438 = vmatprep.mubr.bf16.mxu0 %v1730
      %3439 = vmatmul.mubr.bf16.gmra.mrb[0].mxu0 %v1729
      %v3440 = vpop.f32.mrb[0].mxu0
      %v3441 = vadd.f32 %v2029, %v3440
      %v3442 = vpop.f32.mrb[0].mxu0
      %v3443 = vadd.f32 %v2033, %v3442
      %v3444 = vpop.f32.mrb[0].mxu0
      %v3445 = vadd.f32 %v2029, %v3444
      %v3446 = vpop.f32.mrb[0].mxu0
      %v3447 = vadd.f32 %v2033, %v3446
      %3448 = vmatprep.mubr.bf16.mxu0 %v1734
      %3449 = vmatmul.mubr.bf16.gmra.mrb[0].mxu0 %v1733
      %v3450 = vpop.f32.mrb[0].mxu0
      %v3451 = vadd.f32 %v2029, %v3450
      %v3452 = vpop.f32.mrb[0].mxu0
      %v3453 = vadd.f32 %v2033, %v3452
      %v3454 = vpop.f32.mrb[0].mxu0
      %v3455 = vadd.f32 %v2029, %v3454
      %v3456 = vpop.f32.mrb[0].mxu0
      %v3457 = vadd.f32 %v2033, %v3456
      %3458 = vmatprep.mubr.bf16.mxu0 %v1738
      %3459 = vmatmul.mubr.bf16.gmra.mrb[0].mxu0 %v1737
      %v3460 = vpop.f32.mrb[0].mxu0
      %v3461 = vadd.f32 %v2029, %v3460
      %v3462 = vpop.f32.mrb[0].mxu0
      %v3463 = vadd.f32 %v2033, %v3462
      %v3464 = vpop.f32.mrb[0].mxu0
      %v3465 = vadd.f32 %v2029, %v3464
      %v3466 = vpop.f32.mrb[0].mxu0
      %v3467 = vadd.f32 %v2033, %v3466
      %3468 = vmatprep.mubr.bf16.mxu0 %v1742
      %3469 = vmatmul.mubr.bf16.gmra.mrb[0].mxu0 %v1741
      %v3470 = vpop.f32.mrb[0].mxu0
      %v3471 = vadd.f32 %v2029, %v3470
      %v3472 = vpop.f32.mrb[0].mxu0
      %v3473 = vadd.f32 %v2033, %v3472
      %v3474 = vpop.f32.mrb[0].mxu0
      %v3475 = vadd.f32 %v2029, %v3474
      %v3476 = vpop.f32.mrb[0].mxu0
      %v3477 = vadd.f32 %v2033, %v3476
      %3478 = vmatprep.mubr.bf16.mxu0 %v1746
      %3479 = vmatmul.mubr.bf16.gmra.mrb[0].mxu0 %v1745
      %v3480 = vpop.f32.mrb[0].mxu0
      %v3481 = vadd.f32 %v2029, %v3480
      %v3482 = vpop.f32.mrb[0].mxu0
      %v3483 = vadd.f32 %v2033, %v3482
      %v3484 = vpop.f32.mrb[0].mxu0
      %v3485 = vadd.f32 %v2029, %v3484
      %v3486 = vpop.f32.mrb[0].mxu0
      %v3487 = vadd.f32 %v2033, %v3486
      %3488 = vmatprep.mubr.bf16.mxu0 %v1750
      %3489 = vmatmul.mubr.bf16.gmra.mrb[0].mxu0 %v1749
      %v3490 = vpop.f32.mrb[0].mxu0
      %v3491 = vadd.f32 %v2029, %v3490
      %v3492 = vpop.f32.mrb[0].mxu0
      %v3493 = vadd.f32 %v2033, %v3492
      %v3494 = vpop.f32.mrb[0].mxu0
      %v3495 = vadd.f32 %v2029, %v3494
      %v3496 = vpop.f32.mrb[0].mxu0
      %v3497 = vadd.f32 %v2033, %v3496
      %3498 = vmatprep.mubr.bf16.mxu0 %v1754
      %3499 = vmatmul.mubr.bf16.gmra.mrb[0].mxu0 %v1753
      %v3500 = vpop.f32.mrb[0].mxu0
      %v3501 = vadd.f32 %v2029, %v3500
      %v3502 = vpop.f32.mrb[0].mxu0
      %v3503 = vadd.f32 %v2033, %v3502
      %v3504 = vpop.f32.mrb[0].mxu0
      %v3505 = vadd.f32 %v2029, %v3504
      %v3506 = vpop.f32.mrb[0].mxu0
      %v3507 = vadd.f32 %v2033, %v3506
      %3508 = vmatprep.mubr.bf16.mxu0 %v1758
      %3509 = vmatmul.mubr.bf16.gmra.mrb[0].mxu0 %v1757
      %v3510 = vpop.f32.mrb[0].mxu0
      %v3511 = vadd.f32 %v2029, %v3510
      %v3512 = vpop.f32.mrb[0].mxu0
      %v3513 = vadd.f32 %v2033, %v3512
      %v3514 = vpop.f32.mrb[0].mxu0
      %v3515 = vadd.f32 %v2029, %v3514
      %v3516 = vpop.f32.mrb[0].mxu0
      %v3517 = vadd.f32 %v2033, %v3516
      %3518 = vmatprep.mubr.bf16.mxu0 %v1762
      %3519 = vmatmul.mubr.bf16.gmra.mrb[0].mxu0 %v1761
      %v3520 = vpop.f32.mrb[0].mxu0
      %v3521 = vadd.f32 %v2029, %v3520
      %v3522 = vpop.f32.mrb[0].mxu0
      %v3523 = vadd.f32 %v2033, %v3522
      %v3524 = vpop.f32.mrb[0].mxu0
      %v3525 = vadd.f32 %v2029, %v3524
      %v3526 = vpop.f32.mrb[0].mxu0
      %v3527 = vadd.f32 %v2033, %v3526
      %3528 = vmatprep.mubr.bf16.mxu0 %v1766
      %3529 = vmatmul.mubr.bf16.gmra.mrb[0].mxu0 %v1765
      %v3530 = vpop.f32.mrb[0].mxu0
      %v3531 = vadd.f32 %v2029, %v3530
      %v3532 = vpop.f32.mrb[0].mxu0
      %v3533 = vadd.f32 %v2033, %v3532
      %v3534 = vpop.f32.mrb[0].mxu0
      %v3535 = vadd.f32 %v2029, %v3534
      %v3536 = vpop.f32.mrb[0].mxu0
      %v3537 = vadd.f32 %v2033, %v3536
      %3538 = vdwg.mxu0
      %3539 = vmatprep.subr.bf16.mxu0 %v2963
      %3540 = vmatpush1.bf16.msra.mxu0 %v2962
      %3541 = vmatprep.subr.bf16.mxu0 %v2971
      %3542 = vmatpush1.bf16.msra.mxu0 %v2970
      %3543 = vmatprep.subr.bf16.mxu0 %v2979
      %3544 = vmatpush1.bf16.msra.mxu0 %v2978
      %3545 = vmatprep.subr.bf16.mxu0 %v2987
      %3546 = vmatpush1.bf16.msra.mxu0 %v2986
      %3547 = vmatprep.subr.bf16.mxu0 %v2995
      %3548 = vmatpush1.bf16.msra.mxu0 %v2994
      %3549 = vmatprep.subr.bf16.mxu0 %v3003
      %3550 = vmatpush1.bf16.msra.mxu0 %v3002
      %3551 = vmatprep.subr.bf16.mxu0 %v3011
      %3552 = vmatpush1.bf16.msra.mxu0 %v3010
      %3553 = vmatprep.subr.bf16.mxu0 %v3019
      %3554 = vmatpush1.bf16.msra.mxu0 %v3018
      %3555 = vmatprep.subr.bf16.mxu0 %v3027
      %3556 = vmatpush1.bf16.msra.mxu0 %v3026
      %3557 = vmatprep.subr.bf16.mxu0 %v3035
      %3558 = vmatpush1.bf16.msra.mxu0 %v3034
      %3559 = vmatprep.subr.bf16.mxu0 %v3043
      %3560 = vmatpush1.bf16.msra.mxu0 %v3042
      %3561 = vmatprep.subr.bf16.mxu0 %v3051
      %3562 = vmatpush1.bf16.msra.mxu0 %v3050
      %3563 = vmatprep.subr.bf16.mxu0 %v3059
      %3564 = vmatpush1.bf16.msra.mxu0 %v3058
      %3565 = vmatprep.subr.bf16.mxu0 %v3067
      %3566 = vmatpush1.bf16.msra.mxu0 %v3066
      %3567 = vmatprep.subr.bf16.mxu0 %v3075
      %3568 = vmatpush1.bf16.msra.mxu0 %v3074
      %3569 = vmatprep.subr.bf16.mxu0 %v3083
      %3570 = vmatpush1.bf16.msra.mxu0 %v3082
      %3571 = vmatprep.mubr.bf16.mxu0 %v1708
      %3572 = vmatmul.mubr.bf16.gmra.mrb[0].mxu0 %v1707
      %v3573 = vpop.f32.mrb[0].mxu0
      %v3574 = vadd.f32 %v3381, %v3573
      %v3575 = vpop.f32.mrb[0].mxu0
      %v3576 = vadd.f32 %v3383, %v3575
      %v3577 = vpop.f32.mrb[0].mxu0
      %v3578 = vadd.f32 %v3385, %v3577
      %v3579 = vpop.f32.mrb[0].mxu0
      %v3580 = vadd.f32 %v3387, %v3579
      %3581 = vmatprep.mubr.bf16.mxu0 %v1712
      %3582 = vmatmul.mubr.bf16.gmra.mrb[0].mxu0 %v1711
      %v3583 = vpop.f32.mrb[0].mxu0
      %v3584 = vadd.f32 %v3391, %v3583
      %v3585 = vpop.f32.mrb[0].mxu0
      %v3586 = vadd.f32 %v3393, %v3585
      %v3587 = vpop.f32.mrb[0].mxu0
      %v3588 = vadd.f32 %v3395, %v3587
      %v3589 = vpop.f32.mrb[0].mxu0
      %v3590 = vadd.f32 %v3397, %v3589
      %3591 = vmatprep.mubr.bf16.mxu0 %v1716
      %3592 = vmatmul.mubr.bf16.gmra.mrb[0].mxu0 %v1715
      %v3593 = vpop.f32.mrb[0].mxu0
      %v3594 = vadd.f32 %v3401, %v3593
      %v3595 = vpop.f32.mrb[0].mxu0
      %v3596 = vadd.f32 %v3403, %v3595
      %v3597 = vpop.f32.mrb[0].mxu0
      %v3598 = vadd.f32 %v3405, %v3597
      %v3599 = vpop.f32.mrb[0].mxu0
      %v3600 = vadd.f32 %v3407, %v3599
      %3601 = vmatprep.mubr.bf16.mxu0 %v1720
      %3602 = vmatmul.mubr.bf16.gmra.mrb[0].mxu0 %v1719
      %v3603 = vpop.f32.mrb[0].mxu0
      %v3604 = vadd.f32 %v3411, %v3603
      %v3605 = vpop.f32.mrb[0].mxu0
      %v3606 = vadd.f32 %v3413, %v3605
      %v3607 = vpop.f32.mrb[0].mxu0
      %v3608 = vadd.f32 %v3415, %v3607
      %v3609 = vpop.f32.mrb[0].mxu0
      %v3610 = vadd.f32 %v3417, %v3609
      %3611 = vmatprep.mubr.bf16.mxu0 %v1724
      %3612 = vmatmul.mubr.bf16.gmra.mrb[0].mxu0 %v1723
      %v3613 = vpop.f32.mrb[0].mxu0
      %v3614 = vadd.f32 %v3421, %v3613
      %v3615 = vpop.f32.mrb[0].mxu0
      %v3616 = vadd.f32 %v3423, %v3615
      %v3617 = vpop.f32.mrb[0].mxu0
      %v3618 = vadd.f32 %v3425, %v3617
      %v3619 = vpop.f32.mrb[0].mxu0
      %v3620 = vadd.f32 %v3427, %v3619
      %3621 = vmatprep.mubr.bf16.mxu0 %v1728
      %3622 = vmatmul.mubr.bf16.gmra.mrb[0].mxu0 %v1727
      %v3623 = vpop.f32.mrb[0].mxu0
      %v3624 = vadd.f32 %v3431, %v3623
      %v3625 = vpop.f32.mrb[0].mxu0
      %v3626 = vadd.f32 %v3433, %v3625
      %v3627 = vpop.f32.mrb[0].mxu0
      %v3628 = vadd.f32 %v3435, %v3627
      %v3629 = vpop.f32.mrb[0].mxu0
      %v3630 = vadd.f32 %v3437, %v3629
      %3631 = vmatprep.mubr.bf16.mxu0 %v1732
      %3632 = vmatmul.mubr.bf16.gmra.mrb[0].mxu0 %v1731
      %v3633 = vpop.f32.mrb[0].mxu0
      %v3634 = vadd.f32 %v3441, %v3633
      %v3635 = vpop.f32.mrb[0].mxu0
      %v3636 = vadd.f32 %v3443, %v3635
      %v3637 = vpop.f32.mrb[0].mxu0
      %v3638 = vadd.f32 %v3445, %v3637
      %v3639 = vpop.f32.mrb[0].mxu0
      %v3640 = vadd.f32 %v3447, %v3639
      %3641 = vmatprep.mubr.bf16.mxu0 %v1736
      %3642 = vmatmul.mubr.bf16.gmra.mrb[0].mxu0 %v1735
      %v3643 = vpop.f32.mrb[0].mxu0
      %v3644 = vadd.f32 %v3451, %v3643
      %v3645 = vpop.f32.mrb[0].mxu0
      %v3646 = vadd.f32 %v3453, %v3645
      %v3647 = vpop.f32.mrb[0].mxu0
      %v3648 = vadd.f32 %v3455, %v3647
      %v3649 = vpop.f32.mrb[0].mxu0
      %v3650 = vadd.f32 %v3457, %v3649
      %3651 = vmatprep.mubr.bf16.mxu0 %v1740
      %3652 = vmatmul.mubr.bf16.gmra.mrb[0].mxu0 %v1739
      %v3653 = vpop.f32.mrb[0].mxu0
      %v3654 = vadd.f32 %v3461, %v3653
      %v3655 = vpop.f32.mrb[0].mxu0
      %v3656 = vadd.f32 %v3463, %v3655
      %v3657 = vpop.f32.mrb[0].mxu0
      %v3658 = vadd.f32 %v3465, %v3657
      %v3659 = vpop.f32.mrb[0].mxu0
      %v3660 = vadd.f32 %v3467, %v3659
      %3661 = vmatprep.mubr.bf16.mxu0 %v1744
      %3662 = vmatmul.mubr.bf16.gmra.mrb[0].mxu0 %v1743
      %v3663 = vpop.f32.mrb[0].mxu0
      %v3664 = vadd.f32 %v3471, %v3663
      %v3665 = vpop.f32.mrb[0].mxu0
      %v3666 = vadd.f32 %v3473, %v3665
      %v3667 = vpop.f32.mrb[0].mxu0
      %v3668 = vadd.f32 %v3475, %v3667
      %v3669 = vpop.f32.mrb[0].mxu0
      %v3670 = vadd.f32 %v3477, %v3669
      %3671 = vmatprep.mubr.bf16.mxu0 %v1748
      %3672 = vmatmul.mubr.bf16.gmra.mrb[0].mxu0 %v1747
      %v3673 = vpop.f32.mrb[0].mxu0
      %v3674 = vadd.f32 %v3481, %v3673
      %v3675 = vpop.f32.mrb[0].mxu0
      %v3676 = vadd.f32 %v3483, %v3675
      %v3677 = vpop.f32.mrb[0].mxu0
      %v3678 = vadd.f32 %v3485, %v3677
      %v3679 = vpop.f32.mrb[0].mxu0
      %v3680 = vadd.f32 %v3487, %v3679
      %3681 = vmatprep.mubr.bf16.mxu0 %v1752
      %3682 = vmatmul.mubr.bf16.gmra.mrb[0].mxu0 %v1751
      %v3683 = vpop.f32.mrb[0].mxu0
      %v3684 = vadd.f32 %v3491, %v3683
      %v3685 = vpop.f32.mrb[0].mxu0
      %v3686 = vadd.f32 %v3493, %v3685
      %v3687 = vpop.f32.mrb[0].mxu0
      %v3688 = vadd.f32 %v3495, %v3687
      %v3689 = vpop.f32.mrb[0].mxu0
      %v3690 = vadd.f32 %v3497, %v3689
      %3691 = vmatprep.mubr.bf16.mxu0 %v1756
      %3692 = vmatmul.mubr.bf16.gmra.mrb[0].mxu0 %v1755
      %v3693 = vpop.f32.mrb[0].mxu0
      %v3694 = vadd.f32 %v3501, %v3693
      %v3695 = vpop.f32.mrb[0].mxu0
      %v3696 = vadd.f32 %v3503, %v3695
      %v3697 = vpop.f32.mrb[0].mxu0
      %v3698 = vadd.f32 %v3505, %v3697
      %v3699 = vpop.f32.mrb[0].mxu0
      %v3700 = vadd.f32 %v3507, %v3699
      %3701 = vmatprep.mubr.bf16.mxu0 %v1760
      %3702 = vmatmul.mubr.bf16.gmra.mrb[0].mxu0 %v1759
      %v3703 = vpop.f32.mrb[0].mxu0
      %v3704 = vadd.f32 %v3511, %v3703
      %v3705 = vpop.f32.mrb[0].mxu0
      %v3706 = vadd.f32 %v3513, %v3705
      %v3707 = vpop.f32.mrb[0].mxu0
      %v3708 = vadd.f32 %v3515, %v3707
      %v3709 = vpop.f32.mrb[0].mxu0
      %v3710 = vadd.f32 %v3517, %v3709
      %3711 = vmatprep.mubr.bf16.mxu0 %v1764
      %3712 = vmatmul.mubr.bf16.gmra.mrb[0].mxu0 %v1763
      %v3713 = vpop.f32.mrb[0].mxu0
      %v3714 = vadd.f32 %v3521, %v3713
      %v3715 = vpop.f32.mrb[0].mxu0
      %v3716 = vadd.f32 %v3523, %v3715
      %v3717 = vpop.f32.mrb[0].mxu0
      %v3718 = vadd.f32 %v3525, %v3717
      %v3719 = vpop.f32.mrb[0].mxu0
      %v3720 = vadd.f32 %v3527, %v3719
      %3721 = vmatprep.mubr.bf16.mxu0 %v1768
      %3722 = vmatmul.mubr.bf16.gmra.mrb[0].mxu0 %v1767
      %v3723 = vpop.f32.mrb[0].mxu0
      %v3724 = vadd.f32 %v3531, %v3723
      %v3725 = vpop.f32.mrb[0].mxu0
      %v3726 = vadd.f32 %v3533, %v3725
      %v3727 = vpop.f32.mrb[0].mxu0
      %v3728 = vadd.f32 %v3535, %v3727
      %v3729 = vpop.f32.mrb[0].mxu0
      %v3730 = vadd.f32 %v3537, %v3729
      %3731 = vdwg.mxu0
      %3732 = vmatprep.subr.bf16.mxu0 %v2837
      %3733 = vmatpush1.bf16.msra.mxu0 %v2836
      %3734 = vmatprep.subr.bf16.mxu0 %v2845
      %3735 = vmatpush1.bf16.msra.mxu0 %v2844
      %3736 = vmatprep.subr.bf16.mxu0 %v2853
      %3737 = vmatpush1.bf16.msra.mxu0 %v2852
      %3738 = vmatprep.subr.bf16.mxu0 %v2861
      %3739 = vmatpush1.bf16.msra.mxu0 %v2860
      %3740 = vmatprep.subr.bf16.mxu0 %v2869
      %3741 = vmatpush1.bf16.msra.mxu0 %v2868
      %3742 = vmatprep.subr.bf16.mxu0 %v2877
      %3743 = vmatpush1.bf16.msra.mxu0 %v2876
      %3744 = vmatprep.subr.bf16.mxu0 %v2885
      %3745 = vmatpush1.bf16.msra.mxu0 %v2884
      %3746 = vmatprep.subr.bf16.mxu0 %v2893
      %3747 = vmatpush1.bf16.msra.mxu0 %v2892
      %3748 = vmatprep.subr.bf16.mxu0 %v2901
      %3749 = vmatpush1.bf16.msra.mxu0 %v2900
      %3750 = vmatprep.subr.bf16.mxu0 %v2909
      %3751 = vmatpush1.bf16.msra.mxu0 %v2908
      %3752 = vmatprep.subr.bf16.mxu0 %v2917
      %3753 = vmatpush1.bf16.msra.mxu0 %v2916
      %3754 = vmatprep.subr.bf16.mxu0 %v2925
      %3755 = vmatpush1.bf16.msra.mxu0 %v2924
      %3756 = vmatprep.subr.bf16.mxu0 %v2933
      %3757 = vmatpush1.bf16.msra.mxu0 %v2932
      %3758 = vmatprep.subr.bf16.mxu0 %v2941
      %3759 = vmatpush1.bf16.msra.mxu0 %v2940
      %3760 = vmatprep.subr.bf16.mxu0 %v2949
      %3761 = vmatpush1.bf16.msra.mxu0 %v2948
      %3762 = vmatprep.subr.bf16.mxu0 %v2957
      %3763 = vmatpush1.bf16.msra.mxu0 %v2956
      %3764 = vmatprep.mubr.bf16.mxu0 %v1706
      %3765 = vmatmul.mubr.bf16.gmra.mrb[0].mxu0 %v1705
      %v3766 = vpop.f32.mrb[0].mxu0
      %v3767 = vadd.f32 %v2037, %v3766
      %v3768 = vpop.f32.mrb[0].mxu0
      %v3769 = vadd.f32 %v2041, %v3768
      %v3770 = vpop.f32.mrb[0].mxu0
      %v3771 = vadd.f32 %v2037, %v3770
      %v3772 = vpop.f32.mrb[0].mxu0
      %v3773 = vadd.f32 %v2041, %v3772
      %3774 = vmatprep.mubr.bf16.mxu0 %v1710
      %3775 = vmatmul.mubr.bf16.gmra.mrb[0].mxu0 %v1709
      %v3776 = vpop.f32.mrb[0].mxu0
      %v3777 = vadd.f32 %v2037, %v3776
      %v3778 = vpop.f32.mrb[0].mxu0
      %v3779 = vadd.f32 %v2041, %v3778
      %v3780 = vpop.f32.mrb[0].mxu0
      %v3781 = vadd.f32 %v2037, %v3780
      %v3782 = vpop.f32.mrb[0].mxu0
      %v3783 = vadd.f32 %v2041, %v3782
      %3784 = vmatprep.mubr.bf16.mxu0 %v1714
      %3785 = vmatmul.mubr.bf16.gmra.mrb[0].mxu0 %v1713
      %v3786 = vpop.f32.mrb[0].mxu0
      %v3787 = vadd.f32 %v2037, %v3786
      %v3788 = vpop.f32.mrb[0].mxu0
      %v3789 = vadd.f32 %v2041, %v3788
      %v3790 = vpop.f32.mrb[0].mxu0
      %v3791 = vadd.f32 %v2037, %v3790
      %v3792 = vpop.f32.mrb[0].mxu0
      %v3793 = vadd.f32 %v2041, %v3792
      %3794 = vmatprep.mubr.bf16.mxu0 %v1718
      %3795 = vmatmul.mubr.bf16.gmra.mrb[0].mxu0 %v1717
      %v3796 = vpop.f32.mrb[0].mxu0
      %v3797 = vadd.f32 %v2037, %v3796
      %v3798 = vpop.f32.mrb[0].mxu0
      %v3799 = vadd.f32 %v2041, %v3798
      %v3800 = vpop.f32.mrb[0].mxu0
      %v3801 = vadd.f32 %v2037, %v3800
      %v3802 = vpop.f32.mrb[0].mxu0
      %v3803 = vadd.f32 %v2041, %v3802
      %3804 = vmatprep.mubr.bf16.mxu0 %v1722
      %3805 = vmatmul.mubr.bf16.gmra.mrb[0].mxu0 %v1721
      %v3806 = vpop.f32.mrb[0].mxu0
      %v3807 = vadd.f32 %v2037, %v3806
      %v3808 = vpop.f32.mrb[0].mxu0
      %v3809 = vadd.f32 %v2041, %v3808
      %v3810 = vpop.f32.mrb[0].mxu0
      %v3811 = vadd.f32 %v2037, %v3810
      %v3812 = vpop.f32.mrb[0].mxu0
      %v3813 = vadd.f32 %v2041, %v3812
      %3814 = vmatprep.mubr.bf16.mxu0 %v1726
      %3815 = vmatmul.mubr.bf16.gmra.mrb[0].mxu0 %v1725
      %v3816 = vpop.f32.mrb[0].mxu0
      %v3817 = vadd.f32 %v2037, %v3816
      %v3818 = vpop.f32.mrb[0].mxu0
      %v3819 = vadd.f32 %v2041, %v3818
      %v3820 = vpop.f32.mrb[0].mxu0
      %v3821 = vadd.f32 %v2037, %v3820
      %v3822 = vpop.f32.mrb[0].mxu0
      %v3823 = vadd.f32 %v2041, %v3822
      %3824 = vmatprep.mubr.bf16.mxu0 %v1730
      %3825 = vmatmul.mubr.bf16.gmra.mrb[0].mxu0 %v1729
      %v3826 = vpop.f32.mrb[0].mxu0
      %v3827 = vadd.f32 %v2037, %v3826
      %v3828 = vpop.f32.mrb[0].mxu0
      %v3829 = vadd.f32 %v2041, %v3828
      %v3830 = vpop.f32.mrb[0].mxu0
      %v3831 = vadd.f32 %v2037, %v3830
      %v3832 = vpop.f32.mrb[0].mxu0
      %v3833 = vadd.f32 %v2041, %v3832
      %3834 = vmatprep.mubr.bf16.mxu0 %v1734
      %3835 = vmatmul.mubr.bf16.gmra.mrb[0].mxu0 %v1733
      %v3836 = vpop.f32.mrb[0].mxu0
      %v3837 = vadd.f32 %v2037, %v3836
      %v3838 = vpop.f32.mrb[0].mxu0
      %v3839 = vadd.f32 %v2041, %v3838
      %v3840 = vpop.f32.mrb[0].mxu0
      %v3841 = vadd.f32 %v2037, %v3840
      %v3842 = vpop.f32.mrb[0].mxu0
      %v3843 = vadd.f32 %v2041, %v3842
      %3844 = vmatprep.mubr.bf16.mxu0 %v1738
      %3845 = vmatmul.mubr.bf16.gmra.mrb[0].mxu0 %v1737
      %v3846 = vpop.f32.mrb[0].mxu0
      %v3847 = vadd.f32 %v2037, %v3846
      %v3848 = vpop.f32.mrb[0].mxu0
      %v3849 = vadd.f32 %v2041, %v3848
      %v3850 = vpop.f32.mrb[0].mxu0
      %v3851 = vadd.f32 %v2037, %v3850
      %v3852 = vpop.f32.mrb[0].mxu0
      %v3853 = vadd.f32 %v2041, %v3852
      %3854 = vmatprep.mubr.bf16.mxu0 %v1742
      %3855 = vmatmul.mubr.bf16.gmra.mrb[0].mxu0 %v1741
      %v3856 = vpop.f32.mrb[0].mxu0
      %v3857 = vadd.f32 %v2037, %v3856
      %v3858 = vpop.f32.mrb[0].mxu0
      %v3859 = vadd.f32 %v2041, %v3858
      %v3860 = vpop.f32.mrb[0].mxu0
      %v3861 = vadd.f32 %v2037, %v3860
      %v3862 = vpop.f32.mrb[0].mxu0
      %v3863 = vadd.f32 %v2041, %v3862
      %3864 = vmatprep.mubr.bf16.mxu0 %v1746
      %3865 = vmatmul.mubr.bf16.gmra.mrb[0].mxu0 %v1745
      %v3866 = vpop.f32.mrb[0].mxu0
      %v3867 = vadd.f32 %v2037, %v3866
      %v3868 = vpop.f32.mrb[0].mxu0
      %v3869 = vadd.f32 %v2041, %v3868
      %v3870 = vpop.f32.mrb[0].mxu0
      %v3871 = vadd.f32 %v2037, %v3870
      %v3872 = vpop.f32.mrb[0].mxu0
      %v3873 = vadd.f32 %v2041, %v3872
      %3874 = vmatprep.mubr.bf16.mxu0 %v1750
      %3875 = vmatmul.mubr.bf16.gmra.mrb[0].mxu0 %v1749
      %v3876 = vpop.f32.mrb[0].mxu0
      %v3877 = vadd.f32 %v2037, %v3876
      %v3878 = vpop.f32.mrb[0].mxu0
      %v3879 = vadd.f32 %v2041, %v3878
      %v3880 = vpop.f32.mrb[0].mxu0
      %v3881 = vadd.f32 %v2037, %v3880
      %v3882 = vpop.f32.mrb[0].mxu0
      %v3883 = vadd.f32 %v2041, %v3882
      %3884 = vmatprep.mubr.bf16.mxu0 %v1754
      %3885 = vmatmul.mubr.bf16.gmra.mrb[0].mxu0 %v1753
      %v3886 = vpop.f32.mrb[0].mxu0
      %v3887 = vadd.f32 %v2037, %v3886
      %v3888 = vpop.f32.mrb[0].mxu0
      %v3889 = vadd.f32 %v2041, %v3888
      %v3890 = vpop.f32.mrb[0].mxu0
      %v3891 = vadd.f32 %v2037, %v3890
      %v3892 = vpop.f32.mrb[0].mxu0
      %v3893 = vadd.f32 %v2041, %v3892
      %3894 = vmatprep.mubr.bf16.mxu0 %v1758
      %3895 = vmatmul.mubr.bf16.gmra.mrb[0].mxu0 %v1757
      %v3896 = vpop.f32.mrb[0].mxu0
      %v3897 = vadd.f32 %v2037, %v3896
      %v3898 = vpop.f32.mrb[0].mxu0
      %v3899 = vadd.f32 %v2041, %v3898
      %v3900 = vpop.f32.mrb[0].mxu0
      %v3901 = vadd.f32 %v2037, %v3900
      %v3902 = vpop.f32.mrb[0].mxu0
      %v3903 = vadd.f32 %v2041, %v3902
      %3904 = vmatprep.mubr.bf16.mxu0 %v1762
      %3905 = vmatmul.mubr.bf16.gmra.mrb[0].mxu0 %v1761
      %v3906 = vpop.f32.mrb[0].mxu0
      %v3907 = vadd.f32 %v2037, %v3906
      %v3908 = vpop.f32.mrb[0].mxu0
      %v3909 = vadd.f32 %v2041, %v3908
      %v3910 = vpop.f32.mrb[0].mxu0
      %v3911 = vadd.f32 %v2037, %v3910
      %v3912 = vpop.f32.mrb[0].mxu0
      %v3913 = vadd.f32 %v2041, %v3912
      %3914 = vmatprep.mubr.bf16.mxu0 %v1766
      %3915 = vmatmul.mubr.bf16.gmra.mrb[0].mxu0 %v1765
      %v3916 = vpop.f32.mrb[0].mxu0
      %v3917 = vadd.f32 %v2037, %v3916
      %v3918 = vpop.f32.mrb[0].mxu0
      %v3919 = vadd.f32 %v2041, %v3918
      %v3920 = vpop.f32.mrb[0].mxu0
      %v3921 = vadd.f32 %v2037, %v3920
      %v3922 = vpop.f32.mrb[0].mxu0
      %v3923 = vadd.f32 %v2041, %v3922
      %3924 = vdwg.mxu0
      %3925 = vmatprep.subr.bf16.mxu0 %v2965
      %3926 = vmatpush1.bf16.msra.mxu0 %v2964
      %3927 = vmatprep.subr.bf16.mxu0 %v2973
      %3928 = vmatpush1.bf16.msra.mxu0 %v2972
      %3929 = vmatprep.subr.bf16.mxu0 %v2981
      %3930 = vmatpush1.bf16.msra.mxu0 %v2980
      %3931 = vmatprep.subr.bf16.mxu0 %v2989
      %3932 = vmatpush1.bf16.msra.mxu0 %v2988
      %3933 = vmatprep.subr.bf16.mxu0 %v2997
      %3934 = vmatpush1.bf16.msra.mxu0 %v2996
      %3935 = vmatprep.subr.bf16.mxu0 %v3005
      %3936 = vmatpush1.bf16.msra.mxu0 %v3004
      %3937 = vmatprep.subr.bf16.mxu0 %v3013
      %3938 = vmatpush1.bf16.msra.mxu0 %v3012
      %3939 = vmatprep.subr.bf16.mxu0 %v3021
      %3940 = vmatpush1.bf16.msra.mxu0 %v3020
      %3941 = vmatprep.subr.bf16.mxu0 %v3029
      %3942 = vmatpush1.bf16.msra.mxu0 %v3028
      %3943 = vmatprep.subr.bf16.mxu0 %v3037
      %3944 = vmatpush1.bf16.msra.mxu0 %v3036
      %3945 = vmatprep.subr.bf16.mxu0 %v3045
      %3946 = vmatpush1.bf16.msra.mxu0 %v3044
      %3947 = vmatprep.subr.bf16.mxu0 %v3053
      %3948 = vmatpush1.bf16.msra.mxu0 %v3052
      %3949 = vmatprep.subr.bf16.mxu0 %v3061
      %3950 = vmatpush1.bf16.msra.mxu0 %v3060
      %3951 = vmatprep.subr.bf16.mxu0 %v3069
      %3952 = vmatpush1.bf16.msra.mxu0 %v3068
      %3953 = vmatprep.subr.bf16.mxu0 %v3077
      %3954 = vmatpush1.bf16.msra.mxu0 %v3076
      %3955 = vmatprep.subr.bf16.mxu0 %v3085
      %3956 = vmatpush1.bf16.msra.mxu0 %v3084
      %3957 = vmatprep.mubr.bf16.mxu0 %v1708
      %3958 = vmatmul.mubr.bf16.gmra.mrb[0].mxu0 %v1707
      %v3959 = vpop.f32.mrb[0].mxu0
      %v3960 = vadd.f32 %v3767, %v3959
      %v3961 = vpop.f32.mrb[0].mxu0
      %v3962 = vadd.f32 %v3769, %v3961
      %v3963 = vpop.f32.mrb[0].mxu0
      %v3964 = vadd.f32 %v3771, %v3963
      %v3965 = vpop.f32.mrb[0].mxu0
      %v3966 = vadd.f32 %v3773, %v3965
      %3967 = vmatprep.mubr.bf16.mxu0 %v1712
      %3968 = vmatmul.mubr.bf16.gmra.mrb[0].mxu0 %v1711
      %v3969 = vpop.f32.mrb[0].mxu0
      %v3970 = vadd.f32 %v3777, %v3969
      %v3971 = vpop.f32.mrb[0].mxu0
      %v3972 = vadd.f32 %v3779, %v3971
      %v3973 = vpop.f32.mrb[0].mxu0
      %v3974 = vadd.f32 %v3781, %v3973
      %v3975 = vpop.f32.mrb[0].mxu0
      %v3976 = vadd.f32 %v3783, %v3975
      %3977 = vmatprep.mubr.bf16.mxu0 %v1716
      %3978 = vmatmul.mubr.bf16.gmra.mrb[0].mxu0 %v1715
      %v3979 = vpop.f32.mrb[0].mxu0
      %v3980 = vadd.f32 %v3787, %v3979
      %v3981 = vpop.f32.mrb[0].mxu0
      %v3982 = vadd.f32 %v3789, %v3981
      %v3983 = vpop.f32.mrb[0].mxu0
      %v3984 = vadd.f32 %v3791, %v3983
      %v3985 = vpop.f32.mrb[0].mxu0
      %v3986 = vadd.f32 %v3793, %v3985
      %3987 = vmatprep.mubr.bf16.mxu0 %v1720
      %3988 = vmatmul.mubr.bf16.gmra.mrb[0].mxu0 %v1719
      %v3989 = vpop.f32.mrb[0].mxu0
      %v3990 = vadd.f32 %v3797, %v3989
      %v3991 = vpop.f32.mrb[0].mxu0
      %v3992 = vadd.f32 %v3799, %v3991
      %v3993 = vpop.f32.mrb[0].mxu0
      %v3994 = vadd.f32 %v3801, %v3993
      %v3995 = vpop.f32.mrb[0].mxu0
      %v3996 = vadd.f32 %v3803, %v3995
      %3997 = vmatprep.mubr.bf16.mxu0 %v1724
      %3998 = vmatmul.mubr.bf16.gmra.mrb[0].mxu0 %v1723
      %v3999 = vpop.f32.mrb[0].mxu0
      %v4000 = vadd.f32 %v3807, %v3999
      %v4001 = vpop.f32.mrb[0].mxu0
      %v4002 = vadd.f32 %v3809, %v4001
      %v4003 = vpop.f32.mrb[0].mxu0
      %v4004 = vadd.f32 %v3811, %v4003
      %v4005 = vpop.f32.mrb[0].mxu0
      %v4006 = vadd.f32 %v3813, %v4005
      %4007 = vmatprep.mubr.bf16.mxu0 %v1728
      %4008 = vmatmul.mubr.bf16.gmra.mrb[0].mxu0 %v1727
      %v4009 = vpop.f32.mrb[0].mxu0
      %v4010 = vadd.f32 %v3817, %v4009
      %v4011 = vpop.f32.mrb[0].mxu0
      %v4012 = vadd.f32 %v3819, %v4011
      %v4013 = vpop.f32.mrb[0].mxu0
      %v4014 = vadd.f32 %v3821, %v4013
      %v4015 = vpop.f32.mrb[0].mxu0
      %v4016 = vadd.f32 %v3823, %v4015
      %4017 = vmatprep.mubr.bf16.mxu0 %v1732
      %4018 = vmatmul.mubr.bf16.gmra.mrb[0].mxu0 %v1731
      %v4019 = vpop.f32.mrb[0].mxu0
      %v4020 = vadd.f32 %v3827, %v4019
      %v4021 = vpop.f32.mrb[0].mxu0
      %v4022 = vadd.f32 %v3829, %v4021
      %v4023 = vpop.f32.mrb[0].mxu0
      %v4024 = vadd.f32 %v3831, %v4023
      %v4025 = vpop.f32.mrb[0].mxu0
      %v4026 = vadd.f32 %v3833, %v4025
      %4027 = vmatprep.mubr.bf16.mxu0 %v1736
      %4028 = vmatmul.mubr.bf16.gmra.mrb[0].mxu0 %v1735
      %v4029 = vpop.f32.mrb[0].mxu0
      %v4030 = vadd.f32 %v3837, %v4029
      %v4031 = vpop.f32.mrb[0].mxu0
      %v4032 = vadd.f32 %v3839, %v4031
      %v4033 = vpop.f32.mrb[0].mxu0
      %v4034 = vadd.f32 %v3841, %v4033
      %v4035 = vpop.f32.mrb[0].mxu0
      %v4036 = vadd.f32 %v3843, %v4035
      %4037 = vmatprep.mubr.bf16.mxu0 %v1740
      %4038 = vmatmul.mubr.bf16.gmra.mrb[0].mxu0 %v1739
      %v4039 = vpop.f32.mrb[0].mxu0
      %v4040 = vadd.f32 %v3847, %v4039
      %v4041 = vpop.f32.mrb[0].mxu0
      %v4042 = vadd.f32 %v3849, %v4041
      %v4043 = vpop.f32.mrb[0].mxu0
      %v4044 = vadd.f32 %v3851, %v4043
      %v4045 = vpop.f32.mrb[0].mxu0
      %v4046 = vadd.f32 %v3853, %v4045
      %4047 = vmatprep.mubr.bf16.mxu0 %v1744
      %4048 = vmatmul.mubr.bf16.gmra.mrb[0].mxu0 %v1743
      %v4049 = vpop.f32.mrb[0].mxu0
      %v4050 = vadd.f32 %v3857, %v4049
      %v4051 = vpop.f32.mrb[0].mxu0
      %v4052 = vadd.f32 %v3859, %v4051
      %v4053 = vpop.f32.mrb[0].mxu0
      %v4054 = vadd.f32 %v3861, %v4053
      %v4055 = vpop.f32.mrb[0].mxu0
      %v4056 = vadd.f32 %v3863, %v4055
      %4057 = vmatprep.mubr.bf16.mxu0 %v1748
      %4058 = vmatmul.mubr.bf16.gmra.mrb[0].mxu0 %v1747
      %v4059 = vpop.f32.mrb[0].mxu0
      %v4060 = vadd.f32 %v3867, %v4059
      %v4061 = vpop.f32.mrb[0].mxu0
      %v4062 = vadd.f32 %v3869, %v4061
      %v4063 = vpop.f32.mrb[0].mxu0
      %v4064 = vadd.f32 %v3871, %v4063
      %v4065 = vpop.f32.mrb[0].mxu0
      %v4066 = vadd.f32 %v3873, %v4065
      %4067 = vmatprep.mubr.bf16.mxu0 %v1752
      %4068 = vmatmul.mubr.bf16.gmra.mrb[0].mxu0 %v1751
      %v4069 = vpop.f32.mrb[0].mxu0
      %v4070 = vadd.f32 %v3877, %v4069
      %v4071 = vpop.f32.mrb[0].mxu0
      %v4072 = vadd.f32 %v3879, %v4071
      %v4073 = vpop.f32.mrb[0].mxu0
      %v4074 = vadd.f32 %v3881, %v4073
      %v4075 = vpop.f32.mrb[0].mxu0
      %v4076 = vadd.f32 %v3883, %v4075
      %4077 = vmatprep.mubr.bf16.mxu0 %v1756
      %4078 = vmatmul.mubr.bf16.gmra.mrb[0].mxu0 %v1755
      %v4079 = vpop.f32.mrb[0].mxu0
      %v4080 = vadd.f32 %v3887, %v4079
      %v4081 = vpop.f32.mrb[0].mxu0
      %v4082 = vadd.f32 %v3889, %v4081
      %v4083 = vpop.f32.mrb[0].mxu0
      %v4084 = vadd.f32 %v3891, %v4083
      %v4085 = vpop.f32.mrb[0].mxu0
      %v4086 = vadd.f32 %v3893, %v4085
      %4087 = vmatprep.mubr.bf16.mxu0 %v1760
      %4088 = vmatmul.mubr.bf16.gmra.mrb[0].mxu0 %v1759
      %v4089 = vpop.f32.mrb[0].mxu0
      %v4090 = vadd.f32 %v3897, %v4089
      %v4091 = vpop.f32.mrb[0].mxu0
      %v4092 = vadd.f32 %v3899, %v4091
      %v4093 = vpop.f32.mrb[0].mxu0
      %v4094 = vadd.f32 %v3901, %v4093
      %v4095 = vpop.f32.mrb[0].mxu0
      %v4096 = vadd.f32 %v3903, %v4095
      %4097 = vmatprep.mubr.bf16.mxu0 %v1764
      %4098 = vmatmul.mubr.bf16.gmra.mrb[0].mxu0 %v1763
      %v4099 = vpop.f32.mrb[0].mxu0
      %v4100 = vadd.f32 %v3907, %v4099
      %v4101 = vpop.f32.mrb[0].mxu0
      %v4102 = vadd.f32 %v3909, %v4101
      %v4103 = vpop.f32.mrb[0].mxu0
      %v4104 = vadd.f32 %v3911, %v4103
      %v4105 = vpop.f32.mrb[0].mxu0
      %v4106 = vadd.f32 %v3913, %v4105
      %4107 = vmatprep.mubr.bf16.mxu0 %v1768
      %4108 = vmatmul.mubr.bf16.gmra.mrb[0].mxu0 %v1767
      %v4109 = vpop.f32.mrb[0].mxu0
      %v4110 = vadd.f32 %v3917, %v4109
      %v4111 = vpop.f32.mrb[0].mxu0
      %v4112 = vadd.f32 %v3919, %v4111
      %v4113 = vpop.f32.mrb[0].mxu0
      %v4114 = vadd.f32 %v3921, %v4113
      %v4115 = vpop.f32.mrb[0].mxu0
      %v4116 = vadd.f32 %v3923, %v4115
      %4117 = vdwg.mxu0
      %4118 = vmatprep.subr.bf16.mxu0 %v2839
      %4119 = vmatpush1.bf16.msra.mxu0 %v2838
      %4120 = vmatprep.subr.bf16.mxu0 %v2847
      %4121 = vmatpush1.bf16.msra.mxu0 %v2846
      %4122 = vmatprep.subr.bf16.mxu0 %v2855
      %4123 = vmatpush1.bf16.msra.mxu0 %v2854
      %4124 = vmatprep.subr.bf16.mxu0 %v2863
      %4125 = vmatpush1.bf16.msra.mxu0 %v2862
      %4126 = vmatprep.subr.bf16.mxu0 %v2871
      %4127 = vmatpush1.bf16.msra.mxu0 %v2870
      %4128 = vmatprep.subr.bf16.mxu0 %v2879
      %4129 = vmatpush1.bf16.msra.mxu0 %v2878
      %4130 = vmatprep.subr.bf16.mxu0 %v2887
      %4131 = vmatpush1.bf16.msra.mxu0 %v2886
      %4132 = vmatprep.subr.bf16.mxu0 %v2895
      %4133 = vmatpush1.bf16.msra.mxu0 %v2894
      %4134 = vmatprep.subr.bf16.mxu0 %v2903
      %4135 = vmatpush1.bf16.msra.mxu0 %v2902
      %4136 = vmatprep.subr.bf16.mxu0 %v2911
      %4137 = vmatpush1.bf16.msra.mxu0 %v2910
      %4138 = vmatprep.subr.bf16.mxu0 %v2919
      %4139 = vmatpush1.bf16.msra.mxu0 %v2918
      %4140 = vmatprep.subr.bf16.mxu0 %v2927
      %4141 = vmatpush1.bf16.msra.mxu0 %v2926
      %4142 = vmatprep.subr.bf16.mxu0 %v2935
      %4143 = vmatpush1.bf16.msra.mxu0 %v2934
      %4144 = vmatprep.subr.bf16.mxu0 %v2943
      %4145 = vmatpush1.bf16.msra.mxu0 %v2942
      %4146 = vmatprep.subr.bf16.mxu0 %v2951
      %4147 = vmatpush1.bf16.msra.mxu0 %v2950
      %4148 = vmatprep.subr.bf16.mxu0 %v2959
      %4149 = vmatpush1.bf16.msra.mxu0 %v2958
      %4150 = vmatprep.mubr.bf16.mxu0 %v1706
      %4151 = vmatmul.mubr.bf16.gmra.mrb[0].mxu0 %v1705
      %v4152 = vpop.f32.mrb[0].mxu0
      %v4153 = vadd.f32 %v2045, %v4152
      %v4154 = vpop.f32.mrb[0].mxu0
      %v4155 = vadd.f32 %v2049, %v4154
      %v4156 = vpop.f32.mrb[0].mxu0
      %v4157 = vadd.f32 %v2045, %v4156
      %v4158 = vpop.f32.mrb[0].mxu0
      %v4159 = vadd.f32 %v2049, %v4158
      %4160 = vmatprep.mubr.bf16.mxu0 %v1710
      %4161 = vmatmul.mubr.bf16.gmra.mrb[0].mxu0 %v1709
      %v4162 = vpop.f32.mrb[0].mxu0
      %v4163 = vadd.f32 %v2045, %v4162
      %v4164 = vpop.f32.mrb[0].mxu0
      %v4165 = vadd.f32 %v2049, %v4164
      %v4166 = vpop.f32.mrb[0].mxu0
      %v4167 = vadd.f32 %v2045, %v4166
      %v4168 = vpop.f32.mrb[0].mxu0
      %v4169 = vadd.f32 %v2049, %v4168
      %4170 = vmatprep.mubr.bf16.mxu0 %v1714
      %4171 = vmatmul.mubr.bf16.gmra.mrb[0].mxu0 %v1713
      %v4172 = vpop.f32.mrb[0].mxu0
      %v4173 = vadd.f32 %v2045, %v4172
      %v4174 = vpop.f32.mrb[0].mxu0
      %v4175 = vadd.f32 %v2049, %v4174
      %v4176 = vpop.f32.mrb[0].mxu0
      %v4177 = vadd.f32 %v2045, %v4176
      %v4178 = vpop.f32.mrb[0].mxu0
      %v4179 = vadd.f32 %v2049, %v4178
      %4180 = vmatprep.mubr.bf16.mxu0 %v1718
      %4181 = vmatmul.mubr.bf16.gmra.mrb[0].mxu0 %v1717
      %v4182 = vpop.f32.mrb[0].mxu0
      %v4183 = vadd.f32 %v2045, %v4182
      %v4184 = vpop.f32.mrb[0].mxu0
      %v4185 = vadd.f32 %v2049, %v4184
      %v4186 = vpop.f32.mrb[0].mxu0
      %v4187 = vadd.f32 %v2045, %v4186
      %v4188 = vpop.f32.mrb[0].mxu0
      %v4189 = vadd.f32 %v2049, %v4188
      %4190 = vmatprep.mubr.bf16.mxu0 %v1722
      %4191 = vmatmul.mubr.bf16.gmra.mrb[0].mxu0 %v1721
      %v4192 = vpop.f32.mrb[0].mxu0
      %v4193 = vadd.f32 %v2045, %v4192
      %v4194 = vpop.f32.mrb[0].mxu0
      %v4195 = vadd.f32 %v2049, %v4194
      %v4196 = vpop.f32.mrb[0].mxu0
      %v4197 = vadd.f32 %v2045, %v4196
      %v4198 = vpop.f32.mrb[0].mxu0
      %v4199 = vadd.f32 %v2049, %v4198
      %4200 = vmatprep.mubr.bf16.mxu0 %v1726
      %4201 = vmatmul.mubr.bf16.gmra.mrb[0].mxu0 %v1725
      %v4202 = vpop.f32.mrb[0].mxu0
      %v4203 = vadd.f32 %v2045, %v4202
      %v4204 = vpop.f32.mrb[0].mxu0
      %v4205 = vadd.f32 %v2049, %v4204
      %v4206 = vpop.f32.mrb[0].mxu0
      %v4207 = vadd.f32 %v2045, %v4206
      %v4208 = vpop.f32.mrb[0].mxu0
      %v4209 = vadd.f32 %v2049, %v4208
      %4210 = vmatprep.mubr.bf16.mxu0 %v1730
      %4211 = vmatmul.mubr.bf16.gmra.mrb[0].mxu0 %v1729
      %v4212 = vpop.f32.mrb[0].mxu0
      %v4213 = vadd.f32 %v2045, %v4212
      %v4214 = vpop.f32.mrb[0].mxu0
      %v4215 = vadd.f32 %v2049, %v4214
      %v4216 = vpop.f32.mrb[0].mxu0
      %v4217 = vadd.f32 %v2045, %v4216
      %v4218 = vpop.f32.mrb[0].mxu0
      %v4219 = vadd.f32 %v2049, %v4218
      %4220 = vmatprep.mubr.bf16.mxu0 %v1734
      %4221 = vmatmul.mubr.bf16.gmra.mrb[0].mxu0 %v1733
      %v4222 = vpop.f32.mrb[0].mxu0
      %v4223 = vadd.f32 %v2045, %v4222
      %v4224 = vpop.f32.mrb[0].mxu0
      %v4225 = vadd.f32 %v2049, %v4224
      %v4226 = vpop.f32.mrb[0].mxu0
      %v4227 = vadd.f32 %v2045, %v4226
      %v4228 = vpop.f32.mrb[0].mxu0
      %v4229 = vadd.f32 %v2049, %v4228
      %4230 = vmatprep.mubr.bf16.mxu0 %v1738
      %4231 = vmatmul.mubr.bf16.gmra.mrb[0].mxu0 %v1737
      %v4232 = vpop.f32.mrb[0].mxu0
      %v4233 = vadd.f32 %v2045, %v4232
      %v4234 = vpop.f32.mrb[0].mxu0
      %v4235 = vadd.f32 %v2049, %v4234
      %v4236 = vpop.f32.mrb[0].mxu0
      %v4237 = vadd.f32 %v2045, %v4236
      %v4238 = vpop.f32.mrb[0].mxu0
      %v4239 = vadd.f32 %v2049, %v4238
      %4240 = vmatprep.mubr.bf16.mxu0 %v1742
      %4241 = vmatmul.mubr.bf16.gmra.mrb[0].mxu0 %v1741
      %v4242 = vpop.f32.mrb[0].mxu0
      %v4243 = vadd.f32 %v2045, %v4242
      %v4244 = vpop.f32.mrb[0].mxu0
      %v4245 = vadd.f32 %v2049, %v4244
      %v4246 = vpop.f32.mrb[0].mxu0
      %v4247 = vadd.f32 %v2045, %v4246
      %v4248 = vpop.f32.mrb[0].mxu0
      %v4249 = vadd.f32 %v2049, %v4248
      %4250 = vmatprep.mubr.bf16.mxu0 %v1746
      %4251 = vmatmul.mubr.bf16.gmra.mrb[0].mxu0 %v1745
      %v4252 = vpop.f32.mrb[0].mxu0
      %v4253 = vadd.f32 %v2045, %v4252
      %v4254 = vpop.f32.mrb[0].mxu0
      %v4255 = vadd.f32 %v2049, %v4254
      %v4256 = vpop.f32.mrb[0].mxu0
      %v4257 = vadd.f32 %v2045, %v4256
      %v4258 = vpop.f32.mrb[0].mxu0
      %v4259 = vadd.f32 %v2049, %v4258
      %4260 = vmatprep.mubr.bf16.mxu0 %v1750
      %4261 = vmatmul.mubr.bf16.gmra.mrb[0].mxu0 %v1749
      %v4262 = vpop.f32.mrb[0].mxu0
      %v4263 = vadd.f32 %v2045, %v4262
      %v4264 = vpop.f32.mrb[0].mxu0
      %v4265 = vadd.f32 %v2049, %v4264
      %v4266 = vpop.f32.mrb[0].mxu0
      %v4267 = vadd.f32 %v2045, %v4266
      %v4268 = vpop.f32.mrb[0].mxu0
      %v4269 = vadd.f32 %v2049, %v4268
      %4270 = vmatprep.mubr.bf16.mxu0 %v1754
      %4271 = vmatmul.mubr.bf16.gmra.mrb[0].mxu0 %v1753
      %v4272 = vpop.f32.mrb[0].mxu0
      %v4273 = vadd.f32 %v2045, %v4272
      %v4274 = vpop.f32.mrb[0].mxu0
      %v4275 = vadd.f32 %v2049, %v4274
      %v4276 = vpop.f32.mrb[0].mxu0
      %v4277 = vadd.f32 %v2045, %v4276
      %v4278 = vpop.f32.mrb[0].mxu0
      %v4279 = vadd.f32 %v2049, %v4278
      %4280 = vmatprep.mubr.bf16.mxu0 %v1758
      %4281 = vmatmul.mubr.bf16.gmra.mrb[0].mxu0 %v1757
      %v4282 = vpop.f32.mrb[0].mxu0
      %v4283 = vadd.f32 %v2045, %v4282
      %v4284 = vpop.f32.mrb[0].mxu0
      %v4285 = vadd.f32 %v2049, %v4284
      %v4286 = vpop.f32.mrb[0].mxu0
      %v4287 = vadd.f32 %v2045, %v4286
      %v4288 = vpop.f32.mrb[0].mxu0
      %v4289 = vadd.f32 %v2049, %v4288
      %4290 = vmatprep.mubr.bf16.mxu0 %v1762
      %4291 = vmatmul.mubr.bf16.gmra.mrb[0].mxu0 %v1761
      %v4292 = vpop.f32.mrb[0].mxu0
      %v4293 = vadd.f32 %v2045, %v4292
      %v4294 = vpop.f32.mrb[0].mxu0
      %v4295 = vadd.f32 %v2049, %v4294
      %v4296 = vpop.f32.mrb[0].mxu0
      %v4297 = vadd.f32 %v2045, %v4296
      %v4298 = vpop.f32.mrb[0].mxu0
      %v4299 = vadd.f32 %v2049, %v4298
      %4300 = vmatprep.mubr.bf16.mxu0 %v1766
      %4301 = vmatmul.mubr.bf16.gmra.mrb[0].mxu0 %v1765
      %v4302 = vpop.f32.mrb[0].mxu0
      %v4303 = vadd.f32 %v2045, %v4302
      %v4304 = vpop.f32.mrb[0].mxu0
      %v4305 = vadd.f32 %v2049, %v4304
      %v4306 = vpop.f32.mrb[0].mxu0
      %v4307 = vadd.f32 %v2045, %v4306
      %v4308 = vpop.f32.mrb[0].mxu0
      %v4309 = vadd.f32 %v2049, %v4308
      %4310 = vdwg.mxu0
      %4311 = vmatprep.subr.bf16.mxu0 %v2967
      %4312 = vmatpush1.bf16.msra.mxu0 %v2966
      %4313 = vmatprep.subr.bf16.mxu0 %v2975
      %4314 = vmatpush1.bf16.msra.mxu0 %v2974
      %4315 = vmatprep.subr.bf16.mxu0 %v2983
      %4316 = vmatpush1.bf16.msra.mxu0 %v2982
      %4317 = vmatprep.subr.bf16.mxu0 %v2991
      %4318 = vmatpush1.bf16.msra.mxu0 %v2990
      %4319 = vmatprep.subr.bf16.mxu0 %v2999
      %4320 = vmatpush1.bf16.msra.mxu0 %v2998
      %4321 = vmatprep.subr.bf16.mxu0 %v3007
      %4322 = vmatpush1.bf16.msra.mxu0 %v3006
      %4323 = vmatprep.subr.bf16.mxu0 %v3015
      %4324 = vmatpush1.bf16.msra.mxu0 %v3014
      %4325 = vmatprep.subr.bf16.mxu0 %v3023
      %4326 = vmatpush1.bf16.msra.mxu0 %v3022
      %4327 = vmatprep.subr.bf16.mxu0 %v3031
      %4328 = vmatpush1.bf16.msra.mxu0 %v3030
      %4329 = vmatprep.subr.bf16.mxu0 %v3039
      %4330 = vmatpush1.bf16.msra.mxu0 %v3038
      %4331 = vmatprep.subr.bf16.mxu0 %v3047
      %4332 = vmatpush1.bf16.msra.mxu0 %v3046
      %4333 = vmatprep.subr.bf16.mxu0 %v3055
      %4334 = vmatpush1.bf16.msra.mxu0 %v3054
      %4335 = vmatprep.subr.bf16.mxu0 %v3063
      %4336 = vmatpush1.bf16.msra.mxu0 %v3062
      %4337 = vmatprep.subr.bf16.mxu0 %v3071
      %4338 = vmatpush1.bf16.msra.mxu0 %v3070
      %4339 = vmatprep.subr.bf16.mxu0 %v3079
      %4340 = vmatpush1.bf16.msra.mxu0 %v3078
      %4341 = vmatprep.subr.bf16.mxu0 %v3087
      %4342 = vmatpush1.bf16.msra.mxu0 %v3086
      %4343 = vmatprep.mubr.bf16.mxu0 %v1708
      %4344 = vmatmul.mubr.bf16.gmra.mrb[0].mxu0 %v1707
      %v4345 = vpop.f32.mrb[0].mxu0
      %v4346 = vadd.f32 %v4153, %v4345
      %v4347 = vpop.f32.mrb[0].mxu0
      %v4348 = vadd.f32 %v4155, %v4347
      %v4349 = vpop.f32.mrb[0].mxu0
      %v4350 = vadd.f32 %v4157, %v4349
      %v4351 = vpop.f32.mrb[0].mxu0
      %v4352 = vadd.f32 %v4159, %v4351
      %4353 = vmatprep.mubr.bf16.mxu0 %v1712
      %4354 = vmatmul.mubr.bf16.gmra.mrb[0].mxu0 %v1711
      %v4355 = vpop.f32.mrb[0].mxu0
      %v4356 = vadd.f32 %v4163, %v4355
      %v4357 = vpop.f32.mrb[0].mxu0
      %v4358 = vadd.f32 %v4165, %v4357
      %v4359 = vpop.f32.mrb[0].mxu0
      %v4360 = vadd.f32 %v4167, %v4359
      %v4361 = vpop.f32.mrb[0].mxu0
      %v4362 = vadd.f32 %v4169, %v4361
      %4363 = vmatprep.mubr.bf16.mxu0 %v1716
      %4364 = vmatmul.mubr.bf16.gmra.mrb[0].mxu0 %v1715
      %v4365 = vpop.f32.mrb[0].mxu0
      %v4366 = vadd.f32 %v4173, %v4365
      %v4367 = vpop.f32.mrb[0].mxu0
      %v4368 = vadd.f32 %v4175, %v4367
      %v4369 = vpop.f32.mrb[0].mxu0
      %v4370 = vadd.f32 %v4177, %v4369
      %v4371 = vpop.f32.mrb[0].mxu0
      %v4372 = vadd.f32 %v4179, %v4371
      %4373 = vmatprep.mubr.bf16.mxu0 %v1720
      %4374 = vmatmul.mubr.bf16.gmra.mrb[0].mxu0 %v1719
      %v4375 = vpop.f32.mrb[0].mxu0
      %v4376 = vadd.f32 %v4183, %v4375
      %v4377 = vpop.f32.mrb[0].mxu0
      %v4378 = vadd.f32 %v4185, %v4377
      %v4379 = vpop.f32.mrb[0].mxu0
      %v4380 = vadd.f32 %v4187, %v4379
      %v4381 = vpop.f32.mrb[0].mxu0
      %v4382 = vadd.f32 %v4189, %v4381
      %4383 = vmatprep.mubr.bf16.mxu0 %v1724
      %4384 = vmatmul.mubr.bf16.gmra.mrb[0].mxu0 %v1723
      %v4385 = vpop.f32.mrb[0].mxu0
      %v4386 = vadd.f32 %v4193, %v4385
      %v4387 = vpop.f32.mrb[0].mxu0
      %v4388 = vadd.f32 %v4195, %v4387
      %v4389 = vpop.f32.mrb[0].mxu0
      %v4390 = vadd.f32 %v4197, %v4389
      %v4391 = vpop.f32.mrb[0].mxu0
      %v4392 = vadd.f32 %v4199, %v4391
      %4393 = vmatprep.mubr.bf16.mxu0 %v1728
      %4394 = vmatmul.mubr.bf16.gmra.mrb[0].mxu0 %v1727
      %v4395 = vpop.f32.mrb[0].mxu0
      %v4396 = vadd.f32 %v4203, %v4395
      %v4397 = vpop.f32.mrb[0].mxu0
      %v4398 = vadd.f32 %v4205, %v4397
      %v4399 = vpop.f32.mrb[0].mxu0
      %v4400 = vadd.f32 %v4207, %v4399
      %v4401 = vpop.f32.mrb[0].mxu0
      %v4402 = vadd.f32 %v4209, %v4401
      %4403 = vmatprep.mubr.bf16.mxu0 %v1732
      %4404 = vmatmul.mubr.bf16.gmra.mrb[0].mxu0 %v1731
      %v4405 = vpop.f32.mrb[0].mxu0
      %v4406 = vadd.f32 %v4213, %v4405
      %v4407 = vpop.f32.mrb[0].mxu0
      %v4408 = vadd.f32 %v4215, %v4407
      %v4409 = vpop.f32.mrb[0].mxu0
      %v4410 = vadd.f32 %v4217, %v4409
      %v4411 = vpop.f32.mrb[0].mxu0
      %v4412 = vadd.f32 %v4219, %v4411
      %4413 = vmatprep.mubr.bf16.mxu0 %v1736
      %4414 = vmatmul.mubr.bf16.gmra.mrb[0].mxu0 %v1735
      %v4415 = vpop.f32.mrb[0].mxu0
      %v4416 = vadd.f32 %v4223, %v4415
      %v4417 = vpop.f32.mrb[0].mxu0
      %v4418 = vadd.f32 %v4225, %v4417
      %v4419 = vpop.f32.mrb[0].mxu0
      %v4420 = vadd.f32 %v4227, %v4419
      %v4421 = vpop.f32.mrb[0].mxu0
      %v4422 = vadd.f32 %v4229, %v4421
      %4423 = vmatprep.mubr.bf16.mxu0 %v1740
      %4424 = vmatmul.mubr.bf16.gmra.mrb[0].mxu0 %v1739
      %v4425 = vpop.f32.mrb[0].mxu0
      %v4426 = vadd.f32 %v4233, %v4425
      %v4427 = vpop.f32.mrb[0].mxu0
      %v4428 = vadd.f32 %v4235, %v4427
      %v4429 = vpop.f32.mrb[0].mxu0
      %v4430 = vadd.f32 %v4237, %v4429
      %v4431 = vpop.f32.mrb[0].mxu0
      %v4432 = vadd.f32 %v4239, %v4431
      %4433 = vmatprep.mubr.bf16.mxu0 %v1744
      %4434 = vmatmul.mubr.bf16.gmra.mrb[0].mxu0 %v1743
      %v4435 = vpop.f32.mrb[0].mxu0
      %v4436 = vadd.f32 %v4243, %v4435
      %v4437 = vpop.f32.mrb[0].mxu0
      %v4438 = vadd.f32 %v4245, %v4437
      %v4439 = vpop.f32.mrb[0].mxu0
      %v4440 = vadd.f32 %v4247, %v4439
      %v4441 = vpop.f32.mrb[0].mxu0
      %v4442 = vadd.f32 %v4249, %v4441
      %4443 = vmatprep.mubr.bf16.mxu0 %v1748
      %4444 = vmatmul.mubr.bf16.gmra.mrb[0].mxu0 %v1747
      %v4445 = vpop.f32.mrb[0].mxu0
      %v4446 = vadd.f32 %v4253, %v4445
      %v4447 = vpop.f32.mrb[0].mxu0
      %v4448 = vadd.f32 %v4255, %v4447
      %v4449 = vpop.f32.mrb[0].mxu0
      %v4450 = vadd.f32 %v4257, %v4449
      %v4451 = vpop.f32.mrb[0].mxu0
      %v4452 = vadd.f32 %v4259, %v4451
      %4453 = vmatprep.mubr.bf16.mxu0 %v1752
      %4454 = vmatmul.mubr.bf16.gmra.mrb[0].mxu0 %v1751
      %v4455 = vpop.f32.mrb[0].mxu0
      %v4456 = vadd.f32 %v4263, %v4455
      %v4457 = vpop.f32.mrb[0].mxu0
      %v4458 = vadd.f32 %v4265, %v4457
      %v4459 = vpop.f32.mrb[0].mxu0
      %v4460 = vadd.f32 %v4267, %v4459
      %v4461 = vpop.f32.mrb[0].mxu0
      %v4462 = vadd.f32 %v4269, %v4461
      %4463 = vmatprep.mubr.bf16.mxu0 %v1756
      %4464 = vmatmul.mubr.bf16.gmra.mrb[0].mxu0 %v1755
      %v4465 = vpop.f32.mrb[0].mxu0
      %v4466 = vadd.f32 %v4273, %v4465
      %v4467 = vpop.f32.mrb[0].mxu0
      %v4468 = vadd.f32 %v4275, %v4467
      %v4469 = vpop.f32.mrb[0].mxu0
      %v4470 = vadd.f32 %v4277, %v4469
      %v4471 = vpop.f32.mrb[0].mxu0
      %v4472 = vadd.f32 %v4279, %v4471
      %4473 = vmatprep.mubr.bf16.mxu0 %v1760
      %4474 = vmatmul.mubr.bf16.gmra.mrb[0].mxu0 %v1759
      %v4475 = vpop.f32.mrb[0].mxu0
      %v4476 = vadd.f32 %v4283, %v4475
      %v4477 = vpop.f32.mrb[0].mxu0
      %v4478 = vadd.f32 %v4285, %v4477
      %v4479 = vpop.f32.mrb[0].mxu0
      %v4480 = vadd.f32 %v4287, %v4479
      %v4481 = vpop.f32.mrb[0].mxu0
      %v4482 = vadd.f32 %v4289, %v4481
      %4483 = vmatprep.mubr.bf16.mxu0 %v1764
      %4484 = vmatmul.mubr.bf16.gmra.mrb[0].mxu0 %v1763
      %v4485 = vpop.f32.mrb[0].mxu0
      %v4486 = vadd.f32 %v4293, %v4485
      %v4487 = vpop.f32.mrb[0].mxu0
      %v4488 = vadd.f32 %v4295, %v4487
      %v4489 = vpop.f32.mrb[0].mxu0
      %v4490 = vadd.f32 %v4297, %v4489
      %v4491 = vpop.f32.mrb[0].mxu0
      %v4492 = vadd.f32 %v4299, %v4491
      %4493 = vmatprep.mubr.bf16.mxu0 %v1768
      %4494 = vmatmul.mubr.bf16.gmra.mrb[0].mxu0 %v1767
      %v4495 = vpop.f32.mrb[0].mxu0
      %v4496 = vadd.f32 %v4303, %v4495
      %v4497 = vpop.f32.mrb[0].mxu0
      %v4498 = vadd.f32 %v4305, %v4497
      %v4499 = vpop.f32.mrb[0].mxu0
      %v4500 = vadd.f32 %v4307, %v4499
      %v4501 = vpop.f32.mrb[0].mxu0
      %v4502 = vadd.f32 %v4309, %v4501
      %4503 = vdwg.mxu0
      %4504 = vmatprep.subr.bf16.mxu0 %v2841
      %4505 = vmatpush1.bf16.msra.mxu0 %v2840
      %4506 = vmatprep.subr.bf16.mxu0 %v2849
      %4507 = vmatpush1.bf16.msra.mxu0 %v2848
      %4508 = vmatprep.subr.bf16.mxu0 %v2857
      %4509 = vmatpush1.bf16.msra.mxu0 %v2856
      %4510 = vmatprep.subr.bf16.mxu0 %v2865
      %4511 = vmatpush1.bf16.msra.mxu0 %v2864
      %4512 = vmatprep.subr.bf16.mxu0 %v2873
      %4513 = vmatpush1.bf16.msra.mxu0 %v2872
      %4514 = vmatprep.subr.bf16.mxu0 %v2881
      %4515 = vmatpush1.bf16.msra.mxu0 %v2880
      %4516 = vmatprep.subr.bf16.mxu0 %v2889
      %4517 = vmatpush1.bf16.msra.mxu0 %v2888
      %4518 = vmatprep.subr.bf16.mxu0 %v2897
      %4519 = vmatpush1.bf16.msra.mxu0 %v2896
      %4520 = vmatprep.subr.bf16.mxu0 %v2905
      %4521 = vmatpush1.bf16.msra.mxu0 %v2904
      %4522 = vmatprep.subr.bf16.mxu0 %v2913
      %4523 = vmatpush1.bf16.msra.mxu0 %v2912
      %4524 = vmatprep.subr.bf16.mxu0 %v2921
      %4525 = vmatpush1.bf16.msra.mxu0 %v2920
      %4526 = vmatprep.subr.bf16.mxu0 %v2929
      %4527 = vmatpush1.bf16.msra.mxu0 %v2928
      %4528 = vmatprep.subr.bf16.mxu0 %v2937
      %4529 = vmatpush1.bf16.msra.mxu0 %v2936
      %4530 = vmatprep.subr.bf16.mxu0 %v2945
      %4531 = vmatpush1.bf16.msra.mxu0 %v2944
      %4532 = vmatprep.subr.bf16.mxu0 %v2953
      %4533 = vmatpush1.bf16.msra.mxu0 %v2952
      %4534 = vmatprep.subr.bf16.mxu0 %v2961
      %4535 = vmatpush1.bf16.msra.mxu0 %v2960
      %4536 = vmatprep.mubr.bf16.mxu0 %v1706
      %4537 = vmatmul.mubr.bf16.gmra.mrb[0].mxu0 %v1705
      %v4538 = vpop.f32.mrb[0].mxu0
      %v4539 = vadd.f32 %v2053, %v4538
      %v4540 = vpop.f32.mrb[0].mxu0
      %v4541 = vadd.f32 %v2057, %v4540
      %v4542 = vpop.f32.mrb[0].mxu0
      %v4543 = vadd.f32 %v2053, %v4542
      %v4544 = vpop.f32.mrb[0].mxu0
      %v4545 = vadd.f32 %v2057, %v4544
      %4546 = vmatprep.mubr.bf16.mxu0 %v1710
      %4547 = vmatmul.mubr.bf16.gmra.mrb[0].mxu0 %v1709
      %v4548 = vpop.f32.mrb[0].mxu0
      %v4549 = vadd.f32 %v2053, %v4548
      %v4550 = vpop.f32.mrb[0].mxu0
      %v4551 = vadd.f32 %v2057, %v4550
      %v4552 = vpop.f32.mrb[0].mxu0
      %v4553 = vadd.f32 %v2053, %v4552
      %v4554 = vpop.f32.mrb[0].mxu0
      %v4555 = vadd.f32 %v2057, %v4554
      %4556 = vmatprep.mubr.bf16.mxu0 %v1714
      %4557 = vmatmul.mubr.bf16.gmra.mrb[0].mxu0 %v1713
      %v4558 = vpop.f32.mrb[0].mxu0
      %v4559 = vadd.f32 %v2053, %v4558
      %v4560 = vpop.f32.mrb[0].mxu0
      %v4561 = vadd.f32 %v2057, %v4560
      %v4562 = vpop.f32.mrb[0].mxu0
      %v4563 = vadd.f32 %v2053, %v4562
      %v4564 = vpop.f32.mrb[0].mxu0
      %v4565 = vadd.f32 %v2057, %v4564
      %4566 = vmatprep.mubr.bf16.mxu0 %v1718
      %4567 = vmatmul.mubr.bf16.gmra.mrb[0].mxu0 %v1717
      %v4568 = vpop.f32.mrb[0].mxu0
      %v4569 = vadd.f32 %v2053, %v4568
      %v4570 = vpop.f32.mrb[0].mxu0
      %v4571 = vadd.f32 %v2057, %v4570
      %v4572 = vpop.f32.mrb[0].mxu0
      %v4573 = vadd.f32 %v2053, %v4572
      %v4574 = vpop.f32.mrb[0].mxu0
      %v4575 = vadd.f32 %v2057, %v4574
      %4576 = vmatprep.mubr.bf16.mxu0 %v1722
      %4577 = vmatmul.mubr.bf16.gmra.mrb[0].mxu0 %v1721
      %v4578 = vpop.f32.mrb[0].mxu0
      %v4579 = vadd.f32 %v2053, %v4578
      %v4580 = vpop.f32.mrb[0].mxu0
      %v4581 = vadd.f32 %v2057, %v4580
      %v4582 = vpop.f32.mrb[0].mxu0
      %v4583 = vadd.f32 %v2053, %v4582
      %v4584 = vpop.f32.mrb[0].mxu0
      %v4585 = vadd.f32 %v2057, %v4584
      %4586 = vmatprep.mubr.bf16.mxu0 %v1726
      %4587 = vmatmul.mubr.bf16.gmra.mrb[0].mxu0 %v1725
      %v4588 = vpop.f32.mrb[0].mxu0
      %v4589 = vadd.f32 %v2053, %v4588
      %v4590 = vpop.f32.mrb[0].mxu0
      %v4591 = vadd.f32 %v2057, %v4590
      %v4592 = vpop.f32.mrb[0].mxu0
      %v4593 = vadd.f32 %v2053, %v4592
      %v4594 = vpop.f32.mrb[0].mxu0
      %v4595 = vadd.f32 %v2057, %v4594
      %4596 = vmatprep.mubr.bf16.mxu0 %v1730
      %4597 = vmatmul.mubr.bf16.gmra.mrb[0].mxu0 %v1729
      %v4598 = vpop.f32.mrb[0].mxu0
      %v4599 = vadd.f32 %v2053, %v4598
      %v4600 = vpop.f32.mrb[0].mxu0
      %v4601 = vadd.f32 %v2057, %v4600
      %v4602 = vpop.f32.mrb[0].mxu0
      %v4603 = vadd.f32 %v2053, %v4602
      %v4604 = vpop.f32.mrb[0].mxu0
      %v4605 = vadd.f32 %v2057, %v4604
      %4606 = vmatprep.mubr.bf16.mxu0 %v1734
      %4607 = vmatmul.mubr.bf16.gmra.mrb[0].mxu0 %v1733
      %v4608 = vpop.f32.mrb[0].mxu0
      %v4609 = vadd.f32 %v2053, %v4608
      %v4610 = vpop.f32.mrb[0].mxu0
      %v4611 = vadd.f32 %v2057, %v4610
      %v4612 = vpop.f32.mrb[0].mxu0
      %v4613 = vadd.f32 %v2053, %v4612
      %v4614 = vpop.f32.mrb[0].mxu0
      %v4615 = vadd.f32 %v2057, %v4614
      %4616 = vmatprep.mubr.bf16.mxu0 %v1738
      %4617 = vmatmul.mubr.bf16.gmra.mrb[0].mxu0 %v1737
      %v4618 = vpop.f32.mrb[0].mxu0
      %v4619 = vadd.f32 %v2053, %v4618
      %v4620 = vpop.f32.mrb[0].mxu0
      %v4621 = vadd.f32 %v2057, %v4620
      %v4622 = vpop.f32.mrb[0].mxu0
      %v4623 = vadd.f32 %v2053, %v4622
      %v4624 = vpop.f32.mrb[0].mxu0
      %v4625 = vadd.f32 %v2057, %v4624
      %4626 = vmatprep.mubr.bf16.mxu0 %v1742
      %4627 = vmatmul.mubr.bf16.gmra.mrb[0].mxu0 %v1741
      %v4628 = vpop.f32.mrb[0].mxu0
      %v4629 = vadd.f32 %v2053, %v4628
      %v4630 = vpop.f32.mrb[0].mxu0
      %v4631 = vadd.f32 %v2057, %v4630
      %v4632 = vpop.f32.mrb[0].mxu0
      %v4633 = vadd.f32 %v2053, %v4632
      %v4634 = vpop.f32.mrb[0].mxu0
      %v4635 = vadd.f32 %v2057, %v4634
      %4636 = vmatprep.mubr.bf16.mxu0 %v1746
      %4637 = vmatmul.mubr.bf16.gmra.mrb[0].mxu0 %v1745
      %v4638 = vpop.f32.mrb[0].mxu0
      %v4639 = vadd.f32 %v2053, %v4638
      %v4640 = vpop.f32.mrb[0].mxu0
      %v4641 = vadd.f32 %v2057, %v4640
      %v4642 = vpop.f32.mrb[0].mxu0
      %v4643 = vadd.f32 %v2053, %v4642
      %v4644 = vpop.f32.mrb[0].mxu0
      %v4645 = vadd.f32 %v2057, %v4644
      %4646 = vmatprep.mubr.bf16.mxu0 %v1750
      %4647 = vmatmul.mubr.bf16.gmra.mrb[0].mxu0 %v1749
      %v4648 = vpop.f32.mrb[0].mxu0
      %v4649 = vadd.f32 %v2053, %v4648
      %v4650 = vpop.f32.mrb[0].mxu0
      %v4651 = vadd.f32 %v2057, %v4650
      %v4652 = vpop.f32.mrb[0].mxu0
      %v4653 = vadd.f32 %v2053, %v4652
      %v4654 = vpop.f32.mrb[0].mxu0
      %v4655 = vadd.f32 %v2057, %v4654
      %4656 = vmatprep.mubr.bf16.mxu0 %v1754
      %4657 = vmatmul.mubr.bf16.gmra.mrb[0].mxu0 %v1753
      %v4658 = vpop.f32.mrb[0].mxu0
      %v4659 = vadd.f32 %v2053, %v4658
      %v4660 = vpop.f32.mrb[0].mxu0
      %v4661 = vadd.f32 %v2057, %v4660
      %v4662 = vpop.f32.mrb[0].mxu0
      %v4663 = vadd.f32 %v2053, %v4662
      %v4664 = vpop.f32.mrb[0].mxu0
      %v4665 = vadd.f32 %v2057, %v4664
      %4666 = vmatprep.mubr.bf16.mxu0 %v1758
      %4667 = vmatmul.mubr.bf16.gmra.mrb[0].mxu0 %v1757
      %v4668 = vpop.f32.mrb[0].mxu0
      %v4669 = vadd.f32 %v2053, %v4668
      %v4670 = vpop.f32.mrb[0].mxu0
      %v4671 = vadd.f32 %v2057, %v4670
      %v4672 = vpop.f32.mrb[0].mxu0
      %v4673 = vadd.f32 %v2053, %v4672
      %v4674 = vpop.f32.mrb[0].mxu0
      %v4675 = vadd.f32 %v2057, %v4674
      %4676 = vmatprep.mubr.bf16.mxu0 %v1762
      %4677 = vmatmul.mubr.bf16.gmra.mrb[0].mxu0 %v1761
      %v4678 = vpop.f32.mrb[0].mxu0
      %v4679 = vadd.f32 %v2053, %v4678
      %v4680 = vpop.f32.mrb[0].mxu0
      %v4681 = vadd.f32 %v2057, %v4680
      %v4682 = vpop.f32.mrb[0].mxu0
      %v4683 = vadd.f32 %v2053, %v4682
      %v4684 = vpop.f32.mrb[0].mxu0
      %v4685 = vadd.f32 %v2057, %v4684
      %4686 = vmatprep.mubr.bf16.mxu0 %v1766
      %4687 = vmatmul.mubr.bf16.gmra.mrb[0].mxu0 %v1765
      %v4688 = vpop.f32.mrb[0].mxu0
      %v4689 = vadd.f32 %v2053, %v4688
      %v4690 = vpop.f32.mrb[0].mxu0
      %v4691 = vadd.f32 %v2057, %v4690
      %v4692 = vpop.f32.mrb[0].mxu0
      %v4693 = vadd.f32 %v2053, %v4692
      %v4694 = vpop.f32.mrb[0].mxu0
      %v4695 = vadd.f32 %v2057, %v4694
      %4696 = vdwg.mxu0
      %4697 = vmatprep.subr.bf16.mxu0 %v2969
      %4698 = vmatpush1.bf16.msra.mxu0 %v2968
      %4699 = vmatprep.subr.bf16.mxu0 %v2977
      %4700 = vmatpush1.bf16.msra.mxu0 %v2976
      %4701 = vmatprep.subr.bf16.mxu0 %v2985
      %4702 = vmatpush1.bf16.msra.mxu0 %v2984
      %4703 = vmatprep.subr.bf16.mxu0 %v2993
      %4704 = vmatpush1.bf16.msra.mxu0 %v2992
      %4705 = vmatprep.subr.bf16.mxu0 %v3001
      %4706 = vmatpush1.bf16.msra.mxu0 %v3000
      %4707 = vmatprep.subr.bf16.mxu0 %v3009
      %4708 = vmatpush1.bf16.msra.mxu0 %v3008
      %4709 = vmatprep.subr.bf16.mxu0 %v3017
      %4710 = vmatpush1.bf16.msra.mxu0 %v3016
      %4711 = vmatprep.subr.bf16.mxu0 %v3025
      %4712 = vmatpush1.bf16.msra.mxu0 %v3024
      %4713 = vmatprep.subr.bf16.mxu0 %v3033
      %4714 = vmatpush1.bf16.msra.mxu0 %v3032
      %4715 = vmatprep.subr.bf16.mxu0 %v3041
      %4716 = vmatpush1.bf16.msra.mxu0 %v3040
      %4717 = vmatprep.subr.bf16.mxu0 %v3049
      %4718 = vmatpush1.bf16.msra.mxu0 %v3048
      %4719 = vmatprep.subr.bf16.mxu0 %v3057
      %4720 = vmatpush1.bf16.msra.mxu0 %v3056
      %4721 = vmatprep.subr.bf16.mxu0 %v3065
      %4722 = vmatpush1.bf16.msra.mxu0 %v3064
      %4723 = vmatprep.subr.bf16.mxu0 %v3073
      %4724 = vmatpush1.bf16.msra.mxu0 %v3072
      %4725 = vmatprep.subr.bf16.mxu0 %v3081
      %4726 = vmatpush1.bf16.msra.mxu0 %v3080
      %4727 = vmatprep.subr.bf16.mxu0 %v3089
      %4728 = vmatpush1.bf16.msra.mxu0 %v3088
      %4729 = vmatprep.mubr.bf16.mxu0 %v1708
      %4730 = vmatmul.mubr.bf16.gmra.mrb[0].mxu0 %v1707
      %v4731 = vpop.f32.mrb[0].mxu0
      %v4732 = vadd.f32 %v4539, %v4731
      %v4733 = vpop.f32.mrb[0].mxu0
      %v4734 = vadd.f32 %v4541, %v4733
      %v4735 = vpop.f32.mrb[0].mxu0
      %v4736 = vadd.f32 %v4543, %v4735
      %v4737 = vpop.f32.mrb[0].mxu0
      %v4738 = vadd.f32 %v4545, %v4737
      %4739 = vmatprep.mubr.bf16.mxu0 %v1712
      %4740 = vmatmul.mubr.bf16.gmra.mrb[0].mxu0 %v1711
      %v4741 = vpop.f32.mrb[0].mxu0
      %v4742 = vadd.f32 %v4549, %v4741
      %v4743 = vpop.f32.mrb[0].mxu0
      %v4744 = vadd.f32 %v4551, %v4743
      %v4745 = vpop.f32.mrb[0].mxu0
      %v4746 = vadd.f32 %v4553, %v4745
      %v4747 = vpop.f32.mrb[0].mxu0
      %v4748 = vadd.f32 %v4555, %v4747
      %4749 = vmatprep.mubr.bf16.mxu0 %v1716
      %4750 = vmatmul.mubr.bf16.gmra.mrb[0].mxu0 %v1715
      %v4751 = vpop.f32.mrb[0].mxu0
      %v4752 = vadd.f32 %v4559, %v4751
      %v4753 = vpop.f32.mrb[0].mxu0
      %v4754 = vadd.f32 %v4561, %v4753
      %v4755 = vpop.f32.mrb[0].mxu0
      %v4756 = vadd.f32 %v4563, %v4755
      %v4757 = vpop.f32.mrb[0].mxu0
      %v4758 = vadd.f32 %v4565, %v4757
      %4759 = vmatprep.mubr.bf16.mxu0 %v1720
      %4760 = vmatmul.mubr.bf16.gmra.mrb[0].mxu0 %v1719
      %v4761 = vpop.f32.mrb[0].mxu0
      %v4762 = vadd.f32 %v4569, %v4761
      %v4763 = vpop.f32.mrb[0].mxu0
      %v4764 = vadd.f32 %v4571, %v4763
      %v4765 = vpop.f32.mrb[0].mxu0
      %v4766 = vadd.f32 %v4573, %v4765
      %v4767 = vpop.f32.mrb[0].mxu0
      %v4768 = vadd.f32 %v4575, %v4767
      %4769 = vmatprep.mubr.bf16.mxu0 %v1724
      %4770 = vmatmul.mubr.bf16.gmra.mrb[0].mxu0 %v1723
      %v4771 = vpop.f32.mrb[0].mxu0
      %v4772 = vadd.f32 %v4579, %v4771
      %v4773 = vpop.f32.mrb[0].mxu0
      %v4774 = vadd.f32 %v4581, %v4773
      %v4775 = vpop.f32.mrb[0].mxu0
      %v4776 = vadd.f32 %v4583, %v4775
      %v4777 = vpop.f32.mrb[0].mxu0
      %v4778 = vadd.f32 %v4585, %v4777
      %4779 = vmatprep.mubr.bf16.mxu0 %v1728
      %4780 = vmatmul.mubr.bf16.gmra.mrb[0].mxu0 %v1727
      %v4781 = vpop.f32.mrb[0].mxu0
      %v4782 = vadd.f32 %v4589, %v4781
      %v4783 = vpop.f32.mrb[0].mxu0
      %v4784 = vadd.f32 %v4591, %v4783
      %v4785 = vpop.f32.mrb[0].mxu0
      %v4786 = vadd.f32 %v4593, %v4785
      %v4787 = vpop.f32.mrb[0].mxu0
      %v4788 = vadd.f32 %v4595, %v4787
      %4789 = vmatprep.mubr.bf16.mxu0 %v1732
      %4790 = vmatmul.mubr.bf16.gmra.mrb[0].mxu0 %v1731
      %v4791 = vpop.f32.mrb[0].mxu0
      %v4792 = vadd.f32 %v4599, %v4791
      %v4793 = vpop.f32.mrb[0].mxu0
      %v4794 = vadd.f32 %v4601, %v4793
      %v4795 = vpop.f32.mrb[0].mxu0
      %v4796 = vadd.f32 %v4603, %v4795
      %v4797 = vpop.f32.mrb[0].mxu0
      %v4798 = vadd.f32 %v4605, %v4797
      %4799 = vmatprep.mubr.bf16.mxu0 %v1736
      %4800 = vmatmul.mubr.bf16.gmra.mrb[0].mxu0 %v1735
      %v4801 = vpop.f32.mrb[0].mxu0
      %v4802 = vadd.f32 %v4609, %v4801
      %v4803 = vpop.f32.mrb[0].mxu0
      %v4804 = vadd.f32 %v4611, %v4803
      %v4805 = vpop.f32.mrb[0].mxu0
      %v4806 = vadd.f32 %v4613, %v4805
      %v4807 = vpop.f32.mrb[0].mxu0
      %v4808 = vadd.f32 %v4615, %v4807
      %4809 = vmatprep.mubr.bf16.mxu0 %v1740
      %4810 = vmatmul.mubr.bf16.gmra.mrb[0].mxu0 %v1739
      %v4811 = vpop.f32.mrb[0].mxu0
      %v4812 = vadd.f32 %v4619, %v4811
      %v4813 = vpop.f32.mrb[0].mxu0
      %v4814 = vadd.f32 %v4621, %v4813
      %v4815 = vpop.f32.mrb[0].mxu0
      %v4816 = vadd.f32 %v4623, %v4815
      %v4817 = vpop.f32.mrb[0].mxu0
      %v4818 = vadd.f32 %v4625, %v4817
      %4819 = vmatprep.mubr.bf16.mxu0 %v1744
      %4820 = vmatmul.mubr.bf16.gmra.mrb[0].mxu0 %v1743
      %v4821 = vpop.f32.mrb[0].mxu0
      %v4822 = vadd.f32 %v4629, %v4821
      %v4823 = vpop.f32.mrb[0].mxu0
      %v4824 = vadd.f32 %v4631, %v4823
      %v4825 = vpop.f32.mrb[0].mxu0
      %v4826 = vadd.f32 %v4633, %v4825
      %v4827 = vpop.f32.mrb[0].mxu0
      %v4828 = vadd.f32 %v4635, %v4827
      %4829 = vmatprep.mubr.bf16.mxu0 %v1748
      %4830 = vmatmul.mubr.bf16.gmra.mrb[0].mxu0 %v1747
      %v4831 = vpop.f32.mrb[0].mxu0
      %v4832 = vadd.f32 %v4639, %v4831
      %v4833 = vpop.f32.mrb[0].mxu0
      %v4834 = vadd.f32 %v4641, %v4833
      %v4835 = vpop.f32.mrb[0].mxu0
      %v4836 = vadd.f32 %v4643, %v4835
      %v4837 = vpop.f32.mrb[0].mxu0
      %v4838 = vadd.f32 %v4645, %v4837
      %4839 = vmatprep.mubr.bf16.mxu0 %v1752
      %4840 = vmatmul.mubr.bf16.gmra.mrb[0].mxu0 %v1751
      %v4841 = vpop.f32.mrb[0].mxu0
      %v4842 = vadd.f32 %v4649, %v4841
      %v4843 = vpop.f32.mrb[0].mxu0
      %v4844 = vadd.f32 %v4651, %v4843
      %v4845 = vpop.f32.mrb[0].mxu0
      %v4846 = vadd.f32 %v4653, %v4845
      %v4847 = vpop.f32.mrb[0].mxu0
      %v4848 = vadd.f32 %v4655, %v4847
      %4849 = vmatprep.mubr.bf16.mxu0 %v1756
      %4850 = vmatmul.mubr.bf16.gmra.mrb[0].mxu0 %v1755
      %v4851 = vpop.f32.mrb[0].mxu0
      %v4852 = vadd.f32 %v4659, %v4851
      %v4853 = vpop.f32.mrb[0].mxu0
      %v4854 = vadd.f32 %v4661, %v4853
      %v4855 = vpop.f32.mrb[0].mxu0
      %v4856 = vadd.f32 %v4663, %v4855
      %v4857 = vpop.f32.mrb[0].mxu0
      %v4858 = vadd.f32 %v4665, %v4857
      %4859 = vmatprep.mubr.bf16.mxu0 %v1760
      %4860 = vmatmul.mubr.bf16.gmra.mrb[0].mxu0 %v1759
      %v4861 = vpop.f32.mrb[0].mxu0
      %v4862 = vadd.f32 %v4669, %v4861
      %v4863 = vpop.f32.mrb[0].mxu0
      %v4864 = vadd.f32 %v4671, %v4863
      %v4865 = vpop.f32.mrb[0].mxu0
      %v4866 = vadd.f32 %v4673, %v4865
      %v4867 = vpop.f32.mrb[0].mxu0
      %v4868 = vadd.f32 %v4675, %v4867
      %4869 = vmatprep.mubr.bf16.mxu0 %v1764
      %4870 = vmatmul.mubr.bf16.gmra.mrb[0].mxu0 %v1763
      %v4871 = vpop.f32.mrb[0].mxu0
      %v4872 = vadd.f32 %v4679, %v4871
      %v4873 = vpop.f32.mrb[0].mxu0
      %v4874 = vadd.f32 %v4681, %v4873
      %v4875 = vpop.f32.mrb[0].mxu0
      %v4876 = vadd.f32 %v4683, %v4875
      %v4877 = vpop.f32.mrb[0].mxu0
      %v4878 = vadd.f32 %v4685, %v4877
      %4879 = vmatprep.mubr.bf16.mxu0 %v1768
      %4880 = vmatmul.mubr.bf16.gmra.mrb[0].mxu0 %v1767
      %v4881 = vpop.f32.mrb[0].mxu0
      %v4882 = vadd.f32 %v4689, %v4881
      %v4883 = vpop.f32.mrb[0].mxu0
      %v4884 = vadd.f32 %v4691, %v4883
      %v4885 = vpop.f32.mrb[0].mxu0
      %v4886 = vadd.f32 %v4693, %v4885
      %v4887 = vpop.f32.mrb[0].mxu0
      %v4888 = vadd.f32 %v4695, %v4887
      %4889 = vdwg.mxu0
      %v4890 = vmax.f32 %v3574, 0.0
      %v4891 = vmax.f32 %v3576, 0.0
      %v4892 = vmax.f32 %v3960, 0.0
      %v4893 = vmax.f32 %v3962, 0.0
      %v4894 = vmax.f32 %v4346, 0.0
      %v4895 = vmax.f32 %v4348, 0.0
      %v4896 = vmax.f32 %v4732, 0.0
      %v4897 = vmax.f32 %v4734, 0.0
      %v4898 = vmax.f32 %v3578, 0.0
      %v4899 = vmax.f32 %v3580, 0.0
      %v4900 = vmax.f32 %v3964, 0.0
      %v4901 = vmax.f32 %v3966, 0.0
      %v4902 = vmax.f32 %v4350, 0.0
      %v4903 = vmax.f32 %v4352, 0.0
      %v4904 = vmax.f32 %v4736, 0.0
      %v4905 = vmax.f32 %v4738, 0.0
      %v4906 = vmax.f32 %v3584, 0.0
      %v4907 = vmax.f32 %v3586, 0.0
      %v4908 = vmax.f32 %v3970, 0.0
      %v4909 = vmax.f32 %v3972, 0.0
      %v4910 = vmax.f32 %v4356, 0.0
      %v4911 = vmax.f32 %v4358, 0.0
      %v4912 = vmax.f32 %v4742, 0.0
      %v4913 = vmax.f32 %v4744, 0.0
      %v4914 = vmax.f32 %v3588, 0.0
      %v4915 = vmax.f32 %v3590, 0.0
      %v4916 = vmax.f32 %v3974, 0.0
      %v4917 = vmax.f32 %v3976, 0.0
      %v4918 = vmax.f32 %v4360, 0.0
      %v4919 = vmax.f32 %v4362, 0.0
      %v4920 = vmax.f32 %v4746, 0.0
      %v4921 = vmax.f32 %v4748, 0.0
      %v4922 = vmax.f32 %v3594, 0.0
      %v4923 = vmax.f32 %v3596, 0.0
      %v4924 = vmax.f32 %v3980, 0.0
      %v4925 = vmax.f32 %v3982, 0.0
      %v4926 = vmax.f32 %v4366, 0.0
      %v4927 = vmax.f32 %v4368, 0.0
      %v4928 = vmax.f32 %v4752, 0.0
      %v4929 = vmax.f32 %v4754, 0.0
      %v4930 = vmax.f32 %v3598, 0.0
      %v4931 = vmax.f32 %v3600, 0.0
      %v4932 = vmax.f32 %v3984, 0.0
      %v4933 = vmax.f32 %v3986, 0.0
      %v4934 = vmax.f32 %v4370, 0.0
      %v4935 = vmax.f32 %v4372, 0.0
      %v4936 = vmax.f32 %v4756, 0.0
      %v4937 = vmax.f32 %v4758, 0.0
      %v4938 = vmax.f32 %v3604, 0.0
      %v4939 = vmax.f32 %v3606, 0.0
      %v4940 = vmax.f32 %v3990, 0.0
      %v4941 = vmax.f32 %v3992, 0.0
      %v4942 = vmax.f32 %v4376, 0.0
      %v4943 = vmax.f32 %v4378, 0.0
      %v4944 = vmax.f32 %v4762, 0.0
      %v4945 = vmax.f32 %v4764, 0.0
      %v4946 = vmax.f32 %v3608, 0.0
      %v4947 = vmax.f32 %v3610, 0.0
      %v4948 = vmax.f32 %v3994, 0.0
      %v4949 = vmax.f32 %v3996, 0.0
      %v4950 = vmax.f32 %v4380, 0.0
      %v4951 = vmax.f32 %v4382, 0.0
      %v4952 = vmax.f32 %v4766, 0.0
      %v4953 = vmax.f32 %v4768, 0.0
      %v4954 = vmax.f32 %v3614, 0.0
      %v4955 = vmax.f32 %v3616, 0.0
      %v4956 = vmax.f32 %v4000, 0.0
      %v4957 = vmax.f32 %v4002, 0.0
      %v4958 = vmax.f32 %v4386, 0.0
      %v4959 = vmax.f32 %v4388, 0.0
      %v4960 = vmax.f32 %v4772, 0.0
      %v4961 = vmax.f32 %v4774, 0.0
      %v4962 = vmax.f32 %v3618, 0.0
      %v4963 = vmax.f32 %v3620, 0.0
      %v4964 = vmax.f32 %v4004, 0.0
      %v4965 = vmax.f32 %v4006, 0.0
      %v4966 = vmax.f32 %v4390, 0.0
      %v4967 = vmax.f32 %v4392, 0.0
      %v4968 = vmax.f32 %v4776, 0.0
      %v4969 = vmax.f32 %v4778, 0.0
      %v4970 = vmax.f32 %v3624, 0.0
      %v4971 = vmax.f32 %v3626, 0.0
      %v4972 = vmax.f32 %v4010, 0.0
      %v4973 = vmax.f32 %v4012, 0.0
      %v4974 = vmax.f32 %v4396, 0.0
      %v4975 = vmax.f32 %v4398, 0.0
      %v4976 = vmax.f32 %v4782, 0.0
      %v4977 = vmax.f32 %v4784, 0.0
      %v4978 = vmax.f32 %v3628, 0.0
      %v4979 = vmax.f32 %v3630, 0.0
      %v4980 = vmax.f32 %v4014, 0.0
      %v4981 = vmax.f32 %v4016, 0.0
      %v4982 = vmax.f32 %v4400, 0.0
      %v4983 = vmax.f32 %v4402, 0.0
      %v4984 = vmax.f32 %v4786, 0.0
      %v4985 = vmax.f32 %v4788, 0.0
      %v4986 = vmax.f32 %v3634, 0.0
      %v4987 = vmax.f32 %v3636, 0.0
      %v4988 = vmax.f32 %v4020, 0.0
      %v4989 = vmax.f32 %v4022, 0.0
      %v4990 = vmax.f32 %v4406, 0.0
      %v4991 = vmax.f32 %v4408, 0.0
      %v4992 = vmax.f32 %v4792, 0.0
      %v4993 = vmax.f32 %v4794, 0.0
      %v4994 = vmax.f32 %v3638, 0.0
      %v4995 = vmax.f32 %v3640, 0.0
      %v4996 = vmax.f32 %v4024, 0.0
      %v4997 = vmax.f32 %v4026, 0.0
      %v4998 = vmax.f32 %v4410, 0.0
      %v4999 = vmax.f32 %v4412, 0.0
      %v5000 = vmax.f32 %v4796, 0.0
      %v5001 = vmax.f32 %v4798, 0.0
      %v5002 = vmax.f32 %v3644, 0.0
      %v5003 = vmax.f32 %v3646, 0.0
      %v5004 = vmax.f32 %v4030, 0.0
      %v5005 = vmax.f32 %v4032, 0.0
      %v5006 = vmax.f32 %v4416, 0.0
      %v5007 = vmax.f32 %v4418, 0.0
      %v5008 = vmax.f32 %v4802, 0.0
      %v5009 = vmax.f32 %v4804, 0.0
      %v5010 = vmax.f32 %v3648, 0.0
      %v5011 = vmax.f32 %v3650, 0.0
      %v5012 = vmax.f32 %v4034, 0.0
      %v5013 = vmax.f32 %v4036, 0.0
      %v5014 = vmax.f32 %v4420, 0.0
      %v5015 = vmax.f32 %v4422, 0.0
      %v5016 = vmax.f32 %v4806, 0.0
      %v5017 = vmax.f32 %v4808, 0.0
      %v5018 = vmax.f32 %v3654, 0.0
      %v5019 = vmax.f32 %v3656, 0.0
      %v5020 = vmax.f32 %v4040, 0.0
      %v5021 = vmax.f32 %v4042, 0.0
      %v5022 = vmax.f32 %v4426, 0.0
      %v5023 = vmax.f32 %v4428, 0.0
      %v5024 = vmax.f32 %v4812, 0.0
      %v5025 = vmax.f32 %v4814, 0.0
      %v5026 = vmax.f32 %v3658, 0.0
      %v5027 = vmax.f32 %v3660, 0.0
      %v5028 = vmax.f32 %v4044, 0.0
      %v5029 = vmax.f32 %v4046, 0.0
      %v5030 = vmax.f32 %v4430, 0.0
      %v5031 = vmax.f32 %v4432, 0.0
      %v5032 = vmax.f32 %v4816, 0.0
      %v5033 = vmax.f32 %v4818, 0.0
      %v5034 = vmax.f32 %v3664, 0.0
      %v5035 = vmax.f32 %v3666, 0.0
      %v5036 = vmax.f32 %v4050, 0.0
      %v5037 = vmax.f32 %v4052, 0.0
      %v5038 = vmax.f32 %v4436, 0.0
      %v5039 = vmax.f32 %v4438, 0.0
      %v5040 = vmax.f32 %v4822, 0.0
      %v5041 = vmax.f32 %v4824, 0.0
      %v5042 = vmax.f32 %v3668, 0.0
      %v5043 = vmax.f32 %v3670, 0.0
      %v5044 = vmax.f32 %v4054, 0.0
      %v5045 = vmax.f32 %v4056, 0.0
      %v5046 = vmax.f32 %v4440, 0.0
      %v5047 = vmax.f32 %v4442, 0.0
      %v5048 = vmax.f32 %v4826, 0.0
      %v5049 = vmax.f32 %v4828, 0.0
      %v5050 = vmax.f32 %v3674, 0.0
      %v5051 = vmax.f32 %v3676, 0.0
      %v5052 = vmax.f32 %v4060, 0.0
      %v5053 = vmax.f32 %v4062, 0.0
      %v5054 = vmax.f32 %v4446, 0.0
      %v5055 = vmax.f32 %v4448, 0.0
      %v5056 = vmax.f32 %v4832, 0.0
      %v5057 = vmax.f32 %v4834, 0.0
      %v5058 = vmax.f32 %v3678, 0.0
      %v5059 = vmax.f32 %v3680, 0.0
      %v5060 = vmax.f32 %v4064, 0.0
      %v5061 = vmax.f32 %v4066, 0.0
      %v5062 = vmax.f32 %v4450, 0.0
      %v5063 = vmax.f32 %v4452, 0.0
      %v5064 = vmax.f32 %v4836, 0.0
      %v5065 = vmax.f32 %v4838, 0.0
      %v5066 = vmax.f32 %v3684, 0.0
      %v5067 = vmax.f32 %v3686, 0.0
      %v5068 = vmax.f32 %v4070, 0.0
      %v5069 = vmax.f32 %v4072, 0.0
      %v5070 = vmax.f32 %v4456, 0.0
      %v5071 = vmax.f32 %v4458, 0.0
      %v5072 = vmax.f32 %v4842, 0.0
      %v5073 = vmax.f32 %v4844, 0.0
      %v5074 = vmax.f32 %v3688, 0.0
      %v5075 = vmax.f32 %v3690, 0.0
      %v5076 = vmax.f32 %v4074, 0.0
      %v5077 = vmax.f32 %v4076, 0.0
      %v5078 = vmax.f32 %v4460, 0.0
      %v5079 = vmax.f32 %v4462, 0.0
      %v5080 = vmax.f32 %v4846, 0.0
      %v5081 = vmax.f32 %v4848, 0.0
      %v5082 = vmax.f32 %v3694, 0.0
      %v5083 = vmax.f32 %v3696, 0.0
      %v5084 = vmax.f32 %v4080, 0.0
      %v5085 = vmax.f32 %v4082, 0.0
      %v5086 = vmax.f32 %v4466, 0.0
      %v5087 = vmax.f32 %v4468, 0.0
      %v5088 = vmax.f32 %v4852, 0.0
      %v5089 = vmax.f32 %v4854, 0.0
      %v5090 = vmax.f32 %v3698, 0.0
      %v5091 = vmax.f32 %v3700, 0.0
      %v5092 = vmax.f32 %v4084, 0.0
      %v5093 = vmax.f32 %v4086, 0.0
      %v5094 = vmax.f32 %v4470, 0.0
      %v5095 = vmax.f32 %v4472, 0.0
      %v5096 = vmax.f32 %v4856, 0.0
      %v5097 = vmax.f32 %v4858, 0.0
      %v5098 = vmax.f32 %v3704, 0.0
      %v5099 = vmax.f32 %v3706, 0.0
      %v5100 = vmax.f32 %v4090, 0.0
      %v5101 = vmax.f32 %v4092, 0.0
      %v5102 = vmax.f32 %v4476, 0.0
      %v5103 = vmax.f32 %v4478, 0.0
      %v5104 = vmax.f32 %v4862, 0.0
      %v5105 = vmax.f32 %v4864, 0.0
      %v5106 = vmax.f32 %v3708, 0.0
      %v5107 = vmax.f32 %v3710, 0.0
      %v5108 = vmax.f32 %v4094, 0.0
      %v5109 = vmax.f32 %v4096, 0.0
      %v5110 = vmax.f32 %v4480, 0.0
      %v5111 = vmax.f32 %v4482, 0.0
      %v5112 = vmax.f32 %v4866, 0.0
      %v5113 = vmax.f32 %v4868, 0.0
      %v5114 = vmax.f32 %v3714, 0.0
      %v5115 = vmax.f32 %v3716, 0.0
      %v5116 = vmax.f32 %v4100, 0.0
      %v5117 = vmax.f32 %v4102, 0.0
      %v5118 = vmax.f32 %v4486, 0.0
      %v5119 = vmax.f32 %v4488, 0.0
      %v5120 = vmax.f32 %v4872, 0.0
      %v5121 = vmax.f32 %v4874, 0.0
      %v5122 = vmax.f32 %v3718, 0.0
      %v5123 = vmax.f32 %v3720, 0.0
      %v5124 = vmax.f32 %v4104, 0.0
      %v5125 = vmax.f32 %v4106, 0.0
      %v5126 = vmax.f32 %v4490, 0.0
      %v5127 = vmax.f32 %v4492, 0.0
      %v5128 = vmax.f32 %v4876, 0.0
      %v5129 = vmax.f32 %v4878, 0.0
      %v5130 = vmax.f32 %v3724, 0.0
      %v5131 = vmax.f32 %v3726, 0.0
      %v5132 = vmax.f32 %v4110, 0.0
      %v5133 = vmax.f32 %v4112, 0.0
      %v5134 = vmax.f32 %v4496, 0.0
      %v5135 = vmax.f32 %v4498, 0.0
      %v5136 = vmax.f32 %v4882, 0.0
      %v5137 = vmax.f32 %v4884, 0.0
      %v5138 = vmax.f32 %v3728, 0.0
      %v5139 = vmax.f32 %v3730, 0.0
      %v5140 = vmax.f32 %v4114, 0.0
      %v5141 = vmax.f32 %v4116, 0.0
      %v5142 = vmax.f32 %v4500, 0.0
      %v5143 = vmax.f32 %v4502, 0.0
      %v5144 = vmax.f32 %v4886, 0.0
      %v5145 = vmax.f32 %v4888, 0.0
      %v5146 = vpack.c.bf16 %v4898, %v4890
      %v5147 = vpack.c.bf16 %v4899, %v4891
      %v5148 = vpack.c.bf16 %v4900, %v4892
      %v5149 = vpack.c.bf16 %v4901, %v4893
      %v5150 = vpack.c.bf16 %v4902, %v4894
      %v5151 = vpack.c.bf16 %v4903, %v4895
      %v5152 = vpack.c.bf16 %v4904, %v4896
      %v5153 = vpack.c.bf16 %v4905, %v4897
      %v5154 = vpack.c.bf16 %v4914, %v4906
      %v5155 = vpack.c.bf16 %v4915, %v4907
      %v5156 = vpack.c.bf16 %v4916, %v4908
      %v5157 = vpack.c.bf16 %v4917, %v4909
      %v5158 = vpack.c.bf16 %v4918, %v4910
      %v5159 = vpack.c.bf16 %v4919, %v4911
      %v5160 = vpack.c.bf16 %v4920, %v4912
      %v5161 = vpack.c.bf16 %v4921, %v4913
      %v5162 = vpack.c.bf16 %v4930, %v4922
      %v5163 = vpack.c.bf16 %v4931, %v4923
      %v5164 = vpack.c.bf16 %v4932, %v4924
      %v5165 = vpack.c.bf16 %v4933, %v4925
      %v5166 = vpack.c.bf16 %v4934, %v4926
      %v5167 = vpack.c.bf16 %v4935, %v4927
      %v5168 = vpack.c.bf16 %v4936, %v4928
      %v5169 = vpack.c.bf16 %v4937, %v4929
      %v5170 = vpack.c.bf16 %v4946, %v4938
      %v5171 = vpack.c.bf16 %v4947, %v4939
      %v5172 = vpack.c.bf16 %v4948, %v4940
      %v5173 = vpack.c.bf16 %v4949, %v4941
      %v5174 = vpack.c.bf16 %v4950, %v4942
      %v5175 = vpack.c.bf16 %v4951, %v4943
      %v5176 = vpack.c.bf16 %v4952, %v4944
      %v5177 = vpack.c.bf16 %v4953, %v4945
      %v5178 = vpack.c.bf16 %v4962, %v4954
      %v5179 = vpack.c.bf16 %v4963, %v4955
      %v5180 = vpack.c.bf16 %v4964, %v4956
      %v5181 = vpack.c.bf16 %v4965, %v4957
      %v5182 = vpack.c.bf16 %v4966, %v4958
      %v5183 = vpack.c.bf16 %v4967, %v4959
      %v5184 = vpack.c.bf16 %v4968, %v4960
      %v5185 = vpack.c.bf16 %v4969, %v4961
      %v5186 = vpack.c.bf16 %v4978, %v4970
      %v5187 = vpack.c.bf16 %v4979, %v4971
      %v5188 = vpack.c.bf16 %v4980, %v4972
      %v5189 = vpack.c.bf16 %v4981, %v4973
      %v5190 = vpack.c.bf16 %v4982, %v4974
      %v5191 = vpack.c.bf16 %v4983, %v4975
      %v5192 = vpack.c.bf16 %v4984, %v4976
      %v5193 = vpack.c.bf16 %v4985, %v4977
      %v5194 = vpack.c.bf16 %v4994, %v4986
      %v5195 = vpack.c.bf16 %v4995, %v4987
      %v5196 = vpack.c.bf16 %v4996, %v4988
      %v5197 = vpack.c.bf16 %v4997, %v4989
      %v5198 = vpack.c.bf16 %v4998, %v4990
      %v5199 = vpack.c.bf16 %v4999, %v4991
      %v5200 = vpack.c.bf16 %v5000, %v4992
      %v5201 = vpack.c.bf16 %v5001, %v4993
      %v5202 = vpack.c.bf16 %v5010, %v5002
      %v5203 = vpack.c.bf16 %v5011, %v5003
      %v5204 = vpack.c.bf16 %v5012, %v5004
      %v5205 = vpack.c.bf16 %v5013, %v5005
      %v5206 = vpack.c.bf16 %v5014, %v5006
      %v5207 = vpack.c.bf16 %v5015, %v5007
      %v5208 = vpack.c.bf16 %v5016, %v5008
      %v5209 = vpack.c.bf16 %v5017, %v5009
      %v5210 = vpack.c.bf16 %v5026, %v5018
      %v5211 = vpack.c.bf16 %v5027, %v5019
      %v5212 = vpack.c.bf16 %v5028, %v5020
      %v5213 = vpack.c.bf16 %v5029, %v5021
      %v5214 = vpack.c.bf16 %v5030, %v5022
      %v5215 = vpack.c.bf16 %v5031, %v5023
      %v5216 = vpack.c.bf16 %v5032, %v5024
      %v5217 = vpack.c.bf16 %v5033, %v5025
      %v5218 = vpack.c.bf16 %v5042, %v5034
      %v5219 = vpack.c.bf16 %v5043, %v5035
      %v5220 = vpack.c.bf16 %v5044, %v5036
      %v5221 = vpack.c.bf16 %v5045, %v5037
      %v5222 = vpack.c.bf16 %v5046, %v5038
      %v5223 = vpack.c.bf16 %v5047, %v5039
      %v5224 = vpack.c.bf16 %v5048, %v5040
      %v5225 = vpack.c.bf16 %v5049, %v5041
      %v5226 = vpack.c.bf16 %v5058, %v5050
      %v5227 = vpack.c.bf16 %v5059, %v5051
      %v5228 = vpack.c.bf16 %v5060, %v5052
      %v5229 = vpack.c.bf16 %v5061, %v5053
      %v5230 = vpack.c.bf16 %v5062, %v5054
      %v5231 = vpack.c.bf16 %v5063, %v5055
      %v5232 = vpack.c.bf16 %v5064, %v5056
      %v5233 = vpack.c.bf16 %v5065, %v5057
      %v5234 = vpack.c.bf16 %v5074, %v5066
      %v5235 = vpack.c.bf16 %v5075, %v5067
      %v5236 = vpack.c.bf16 %v5076, %v5068
      %v5237 = vpack.c.bf16 %v5077, %v5069
      %v5238 = vpack.c.bf16 %v5078, %v5070
      %v5239 = vpack.c.bf16 %v5079, %v5071
      %v5240 = vpack.c.bf16 %v5080, %v5072
      %v5241 = vpack.c.bf16 %v5081, %v5073
      %v5242 = vpack.c.bf16 %v5090, %v5082
      %v5243 = vpack.c.bf16 %v5091, %v5083
      %v5244 = vpack.c.bf16 %v5092, %v5084
      %v5245 = vpack.c.bf16 %v5093, %v5085
      %v5246 = vpack.c.bf16 %v5094, %v5086
      %v5247 = vpack.c.bf16 %v5095, %v5087
      %v5248 = vpack.c.bf16 %v5096, %v5088
      %v5249 = vpack.c.bf16 %v5097, %v5089
      %v5250 = vpack.c.bf16 %v5106, %v5098
      %v5251 = vpack.c.bf16 %v5107, %v5099
      %v5252 = vpack.c.bf16 %v5108, %v5100
      %v5253 = vpack.c.bf16 %v5109, %v5101
      %v5254 = vpack.c.bf16 %v5110, %v5102
      %v5255 = vpack.c.bf16 %v5111, %v5103
      %v5256 = vpack.c.bf16 %v5112, %v5104
      %v5257 = vpack.c.bf16 %v5113, %v5105
      %v5258 = vpack.c.bf16 %v5122, %v5114
      %v5259 = vpack.c.bf16 %v5123, %v5115
      %v5260 = vpack.c.bf16 %v5124, %v5116
      %v5261 = vpack.c.bf16 %v5125, %v5117
      %v5262 = vpack.c.bf16 %v5126, %v5118
      %v5263 = vpack.c.bf16 %v5127, %v5119
      %v5264 = vpack.c.bf16 %v5128, %v5120
      %v5265 = vpack.c.bf16 %v5129, %v5121
      %v5266 = vpack.c.bf16 %v5138, %v5130
      %v5267 = vpack.c.bf16 %v5139, %v5131
      %v5268 = vpack.c.bf16 %v5140, %v5132
      %v5269 = vpack.c.bf16 %v5141, %v5133
      %v5270 = vpack.c.bf16 %v5142, %v5134
      %v5271 = vpack.c.bf16 %v5143, %v5135
      %v5272 = vpack.c.bf16 %v5144, %v5136
      %v5273 = vpack.c.bf16 %v5145, %v5137
      %v5274 = vld [vmem:[%s4] sm:$0xff]
      %v5275 = vld [vmem:[%s4 + $0x8] sm:$0xff]
      %v5276 = vld [vmem:[%s4 + $0x10] sm:$0xff]
      %v5277 = vld [vmem:[%s4 + $0x18] sm:$0xf]
      %v5278 = vld [vmem:[%s4 + $0x1c] sm:$0xff]
      %v5279 = vld [vmem:[%s4 + $0x24] sm:$0xff]
      %v5280 = vld [vmem:[%s4 + $0x2c] sm:$0xff]
      %v5281 = vld [vmem:[%s4 + $0x34] sm:$0xf]
      %v5282 = vld [vmem:[%s4 + $0x38] sm:$0xff]
      %v5283 = vld [vmem:[%s4 + $0x40] sm:$0xff]
      %v5284 = vld [vmem:[%s4 + $0x48] sm:$0xff]
      %v5285 = vld [vmem:[%s4 + $0x50] sm:$0xf]
      %v5286 = vld [vmem:[%s4 + $0x54] sm:$0xff]
      %v5287 = vld [vmem:[%s4 + $0x5c] sm:$0xff]
      %v5288 = vld [vmem:[%s4 + $0x64] sm:$0xff]
      %v5289 = vld [vmem:[%s4 + $0x6c] sm:$0xf]
      %v5290 = vld [vmem:[%s4 + $0x70] sm:$0xff]
      %v5291 = vld [vmem:[%s4 + $0x78] sm:$0xff]
      %v5292 = vld [vmem:[%s4 + $0x80] sm:$0xff]
      %v5293 = vld [vmem:[%s4 + $0x88] sm:$0xf]
      %v5294 = vld [vmem:[%s4 + $0x8c] sm:$0xff]
      %v5295 = vld [vmem:[%s4 + $0x94] sm:$0xff]
      %v5296 = vld [vmem:[%s4 + $0x9c] sm:$0xff]
      %v5297 = vld [vmem:[%s4 + $0xa4] sm:$0xf]
      %v5298 = vld [vmem:[%s4 + $0xa8] sm:$0xff]
      %v5299 = vld [vmem:[%s4 + $0xb0] sm:$0xff]
      %v5300 = vld [vmem:[%s4 + $0xb8] sm:$0xff]
      %v5301 = vld [vmem:[%s4 + $0xc0] sm:$0xf]
      %v5302 = vld [vmem:[%s4 + $0xc4] sm:$0xff]
      %v5303 = vld [vmem:[%s4 + $0xcc] sm:$0xff]
      %v5304 = vld [vmem:[%s4 + $0xd4] sm:$0xff]
      %v5305 = vld [vmem:[%s4 + $0xdc] sm:$0xf]
      %v5306 = vld [vmem:[%s4 + $0xe0] sm:$0xff]
      %v5307 = vld [vmem:[%s4 + $0xe8] sm:$0xff]
      %v5308 = vld [vmem:[%s4 + $0xf0] sm:$0xff]
      %v5309 = vld [vmem:[%s4 + $0xf8] sm:$0xf]
      %v5310 = vld [vmem:[%s4 + $0xfc] sm:$0xff]
      %v5311 = vld [vmem:[%s4 + $0x104] sm:$0xff]
      %v5312 = vld [vmem:[%s4 + $0x10c] sm:$0xff]
      %v5313 = vld [vmem:[%s4 + $0x114] sm:$0xf]
      %v5314 = vld [vmem:[%s4 + $0x118] sm:$0xff]
      %v5315 = vld [vmem:[%s4 + $0x120] sm:$0xff]
      %v5316 = vld [vmem:[%s4 + $0x128] sm:$0xff]
      %v5317 = vld [vmem:[%s4 + $0x130] sm:$0xf]
      %v5318 = vld [vmem:[%s4 + $0x134] sm:$0xff]
      %v5319 = vld [vmem:[%s4 + $0x13c] sm:$0xff]
      %v5320 = vld [vmem:[%s4 + $0x144] sm:$0xff]
      %v5321 = vld [vmem:[%s4 + $0x14c] sm:$0xf]
      %v5322 = vld [vmem:[%s4 + $0x150] sm:$0xff]
      %v5323 = vld [vmem:[%s4 + $0x158] sm:$0xff]
      %v5324 = vld [vmem:[%s4 + $0x160] sm:$0xff]
      %v5325 = vld [vmem:[%s4 + $0x168] sm:$0xf]
      %v5326 = vld [vmem:[%s4 + $0x16c] sm:$0xff]
      %v5327 = vld [vmem:[%s4 + $0x174] sm:$0xff]
      %v5328 = vld [vmem:[%s4 + $0x17c] sm:$0xff]
      %v5329 = vld [vmem:[%s4 + $0x184] sm:$0xf]
      %v5330 = vld [vmem:[%s4 + $0x188] sm:$0xff]
      %v5331 = vld [vmem:[%s4 + $0x190] sm:$0xff]
      %v5332 = vld [vmem:[%s4 + $0x198] sm:$0xff]
      %v5333 = vld [vmem:[%s4 + $0x1a0] sm:$0xf]
      %v5334 = vld [vmem:[%s4 + $0x1a4] sm:$0xff]
      %v5335 = vld [vmem:[%s4 + $0x1ac] sm:$0xff]
      %v5336 = vld [vmem:[%s4 + $0x1b4] sm:$0xff]
      %v5337 = vld [vmem:[%s4 + $0x1bc] sm:$0xf]
      %v5338 = vld [vmem:[%s4 + $0x1c0] sm:$0xff]
      %v5339 = vld [vmem:[%s4 + $0x1c8] sm:$0xff]
      %v5340 = vld [vmem:[%s4 + $0x1d0] sm:$0xff]
      %v5341 = vld [vmem:[%s4 + $0x1d8] sm:$0xf]
      %v5342 = vld [vmem:[%s4 + $0x1dc] sm:$0xff]
      %v5343 = vld [vmem:[%s4 + $0x1e4] sm:$0xff]
      %v5344 = vld [vmem:[%s4 + $0x1ec] sm:$0xff]
      %v5345 = vld [vmem:[%s4 + $0x1f4] sm:$0xf]
      %v5346 = vld [vmem:[%s4 + $0x1f8] sm:$0xff]
      %v5347 = vld [vmem:[%s4 + $0x200] sm:$0xff]
      %v5348 = vld [vmem:[%s4 + $0x208] sm:$0xff]
      %v5349 = vld [vmem:[%s4 + $0x210] sm:$0xf]
      %v5350 = vld [vmem:[%s4 + $0x214] sm:$0xff]
      %v5351 = vld [vmem:[%s4 + $0x21c] sm:$0xff]
      %v5352 = vld [vmem:[%s4 + $0x224] sm:$0xff]
      %v5353 = vld [vmem:[%s4 + $0x22c] sm:$0xf]
      %v5354 = vld [vmem:[%s4 + $0x230] sm:$0xff]
      %v5355 = vld [vmem:[%s4 + $0x238] sm:$0xff]
      %v5356 = vld [vmem:[%s4 + $0x240] sm:$0xff]
      %v5357 = vld [vmem:[%s4 + $0x248] sm:$0xf]
      %v5358 = vld [vmem:[%s4 + $0x24c] sm:$0xff]
      %v5359 = vld [vmem:[%s4 + $0x254] sm:$0xff]
      %v5360 = vld [vmem:[%s4 + $0x25c] sm:$0xff]
      %v5361 = vld [vmem:[%s4 + $0x264] sm:$0xf]
      %v5362 = vld [vmem:[%s4 + $0x268] sm:$0xff]
      %v5363 = vld [vmem:[%s4 + $0x270] sm:$0xff]
      %v5364 = vld [vmem:[%s4 + $0x278] sm:$0xff]
      %v5365 = vld [vmem:[%s4 + $0x280] sm:$0xf]
      %v5366 = vld [vmem:[%s4 + $0x284] sm:$0xff]
      %v5367 = vld [vmem:[%s4 + $0x28c] sm:$0xff]
      %v5368 = vld [vmem:[%s4 + $0x294] sm:$0xff]
      %v5369 = vld [vmem:[%s4 + $0x29c] sm:$0xf]
      %v5370 = vld [vmem:[%s4 + $0x2a0] sm:$0xff]
      %v5371 = vld [vmem:[%s4 + $0x2a8] sm:$0xff]
      %v5372 = vld [vmem:[%s4 + $0x2b0] sm:$0xff]
      %v5373 = vld [vmem:[%s4 + $0x2b8] sm:$0xf]
      %v5374 = vld [vmem:[%s4 + $0x2bc] sm:$0xff]
      %v5375 = vld [vmem:[%s4 + $0x2c4] sm:$0xff]
      %v5376 = vld [vmem:[%s4 + $0x2cc] sm:$0xff]
      %v5377 = vld [vmem:[%s4 + $0x2d4] sm:$0xf]
      %v5378 = vld [vmem:[%s4 + $0x2d8] sm:$0xff]
      %v5379 = vld [vmem:[%s4 + $0x2e0] sm:$0xff]
      %v5380 = vld [vmem:[%s4 + $0x2e8] sm:$0xff]
      %v5381 = vld [vmem:[%s4 + $0x2f0] sm:$0xf]
      %v5382 = vld [vmem:[%s4 + $0x2f4] sm:$0xff]
      %v5383 = vld [vmem:[%s4 + $0x2fc] sm:$0xff]
      %v5384 = vld [vmem:[%s4 + $0x304] sm:$0xff]
      %v5385 = vld [vmem:[%s4 + $0x30c] sm:$0xf]
      %v5386 = vld [vmem:[%s4 + $0x310] sm:$0xff]
      %v5387 = vld [vmem:[%s4 + $0x318] sm:$0xff]
      %v5388 = vld [vmem:[%s4 + $0x320] sm:$0xff]
      %v5389 = vld [vmem:[%s4 + $0x328] sm:$0xf]
      %v5390 = vld [vmem:[%s4 + $0x32c] sm:$0xff]
      %v5391 = vld [vmem:[%s4 + $0x334] sm:$0xff]
      %v5392 = vld [vmem:[%s4 + $0x33c] sm:$0xff]
      %v5393 = vld [vmem:[%s4 + $0x344] sm:$0xf]
      %v5394 = vld [vmem:[%s4 + $0x348] sm:$0xff]
      %v5395 = vld [vmem:[%s4 + $0x350] sm:$0xff]
      %v5396 = vld [vmem:[%s4 + $0x358] sm:$0xff]
      %v5397 = vld [vmem:[%s4 + $0x360] sm:$0xf]
      %v5398 = vld [vmem:[%s4 + $0x364] sm:$0xff]
      %v5399 = vld [vmem:[%s4 + $0x36c] sm:$0xff]
      %v5400 = vld [vmem:[%s4 + $0x374] sm:$0xff]
      %v5401 = vld [vmem:[%s4 + $0x37c] sm:$0xf]
      %v5402 = vld [vmem:[%s4 + $0x380] sm:$0xff]
      %v5403 = vld [vmem:[%s4 + $0x388] sm:$0xff]
      %v5404 = vld [vmem:[%s4 + $0x390] sm:$0xff]
      %v5405 = vld [vmem:[%s4 + $0x398] sm:$0xf]
      %v5406 = vld [vmem:[%s4 + $0x39c] sm:$0xff]
      %v5407 = vld [vmem:[%s4 + $0x3a4] sm:$0xff]
      %v5408 = vld [vmem:[%s4 + $0x3ac] sm:$0xff]
      %v5409 = vld [vmem:[%s4 + $0x3b4] sm:$0xf]
      %v5410 = vld [vmem:[%s4 + $0x3b8] sm:$0xff]
      %v5411 = vld [vmem:[%s4 + $0x3c0] sm:$0xff]
      %v5412 = vld [vmem:[%s4 + $0x3c8] sm:$0xff]
      %v5413 = vld [vmem:[%s4 + $0x3d0] sm:$0xf]
      %v5414 = vld [vmem:[%s4 + $0x3d4] sm:$0xff]
      %v5415 = vld [vmem:[%s4 + $0x3dc] sm:$0xff]
      %v5416 = vld [vmem:[%s4 + $0x3e4] sm:$0xff]
      %v5417 = vld [vmem:[%s4 + $0x3ec] sm:$0xf]
      %v5418 = vld [vmem:[%s4 + $0x3f0] sm:$0xff]
      %v5419 = vld [vmem:[%s4 + $0x3f8] sm:$0xff]
      %v5420 = vld [vmem:[%s4 + $0x400] sm:$0xff]
      %v5421 = vld [vmem:[%s4 + $0x408] sm:$0xf]
      %v5422 = vld [vmem:[%s4 + $0x40c] sm:$0xff]
      %v5423 = vld [vmem:[%s4 + $0x414] sm:$0xff]
      %v5424 = vld [vmem:[%s4 + $0x41c] sm:$0xff]
      %v5425 = vld [vmem:[%s4 + $0x424] sm:$0xf]
      %v5426 = vld [vmem:[%s4 + $0x428] sm:$0xff]
      %v5427 = vld [vmem:[%s4 + $0x430] sm:$0xff]
      %v5428 = vld [vmem:[%s4 + $0x438] sm:$0xff]
      %v5429 = vld [vmem:[%s4 + $0x440] sm:$0xf]
      %v5430 = vld [vmem:[%s4 + $0x444] sm:$0xff]
      %v5431 = vld [vmem:[%s4 + $0x44c] sm:$0xff]
      %v5432 = vld [vmem:[%s4 + $0x454] sm:$0xff]
      %v5433 = vld [vmem:[%s4 + $0x45c] sm:$0xf]
      %v5434 = vld [vmem:[%s4 + $0x460] sm:$0xff]
      %v5435 = vld [vmem:[%s4 + $0x468] sm:$0xff]
      %v5436 = vld [vmem:[%s4 + $0x470] sm:$0xff]
      %v5437 = vld [vmem:[%s4 + $0x478] sm:$0xf]
      %v5438 = vld [vmem:[%s4 + $0x47c] sm:$0xff]
      %v5439 = vld [vmem:[%s4 + $0x484] sm:$0xff]
      %v5440 = vld [vmem:[%s4 + $0x48c] sm:$0xff]
      %v5441 = vld [vmem:[%s4 + $0x494] sm:$0xf]
      %v5442 = vld [vmem:[%s4 + $0x498] sm:$0xff]
      %v5443 = vld [vmem:[%s4 + $0x4a0] sm:$0xff]
      %v5444 = vld [vmem:[%s4 + $0x4a8] sm:$0xff]
      %v5445 = vld [vmem:[%s4 + $0x4b0] sm:$0xf]
      %v5446 = vld [vmem:[%s4 + $0x4b4] sm:$0xff]
      %v5447 = vld [vmem:[%s4 + $0x4bc] sm:$0xff]
      %v5448 = vld [vmem:[%s4 + $0x4c4] sm:$0xff]
      %v5449 = vld [vmem:[%s4 + $0x4cc] sm:$0xf]
      %v5450 = vld [vmem:[%s4 + $0x4d0] sm:$0xff]
      %v5451 = vld [vmem:[%s4 + $0x4d8] sm:$0xff]
      %v5452 = vld [vmem:[%s4 + $0x4e0] sm:$0xff]
      %v5453 = vld [vmem:[%s4 + $0x4e8] sm:$0xf]
      %v5454 = vld [vmem:[%s4 + $0x4ec] sm:$0xff]
      %v5455 = vld [vmem:[%s4 + $0x4f4] sm:$0xff]
      %v5456 = vld [vmem:[%s4 + $0x4fc] sm:$0xff]
      %v5457 = vld [vmem:[%s4 + $0x504] sm:$0xf]
      %v5458 = vld [vmem:[%s4 + $0x508] sm:$0xff]
      %v5459 = vld [vmem:[%s4 + $0x510] sm:$0xff]
      %v5460 = vld [vmem:[%s4 + $0x518] sm:$0xff]
      %v5461 = vld [vmem:[%s4 + $0x520] sm:$0xf]
      %v5462 = vld [vmem:[%s4 + $0x524] sm:$0xff]
      %v5463 = vld [vmem:[%s4 + $0x52c] sm:$0xff]
      %v5464 = vld [vmem:[%s4 + $0x534] sm:$0xff]
      %v5465 = vld [vmem:[%s4 + $0x53c] sm:$0xf]
      %v5466 = vld [vmem:[%s4 + $0x540] sm:$0xff]
      %v5467 = vld [vmem:[%s4 + $0x548] sm:$0xff]
      %v5468 = vld [vmem:[%s4 + $0x550] sm:$0xff]
      %v5469 = vld [vmem:[%s4 + $0x558] sm:$0xf]
      %v5470 = vld [vmem:[%s4 + $0x55c] sm:$0xff]
      %v5471 = vld [vmem:[%s4 + $0x564] sm:$0xff]
      %v5472 = vld [vmem:[%s4 + $0x56c] sm:$0xff]
      %v5473 = vld [vmem:[%s4 + $0x574] sm:$0xf]
      %v5474 = vld [vmem:[%s4 + $0x578] sm:$0xff]
      %v5475 = vld [vmem:[%s4 + $0x580] sm:$0xff]
      %v5476 = vld [vmem:[%s4 + $0x588] sm:$0xff]
      %v5477 = vld [vmem:[%s4 + $0x590] sm:$0xf]
      %v5478 = vld [vmem:[%s4 + $0x594] sm:$0xff]
      %v5479 = vld [vmem:[%s4 + $0x59c] sm:$0xff]
      %v5480 = vld [vmem:[%s4 + $0x5a4] sm:$0xff]
      %v5481 = vld [vmem:[%s4 + $0x5ac] sm:$0xf]
      %v5482 = vld [vmem:[%s4 + $0x5b0] sm:$0xff]
      %v5483 = vld [vmem:[%s4 + $0x5b8] sm:$0xff]
      %v5484 = vld [vmem:[%s4 + $0x5c0] sm:$0xff]
      %v5485 = vld [vmem:[%s4 + $0x5c8] sm:$0xf]
      %v5486 = vld [vmem:[%s4 + $0x5cc] sm:$0xff]
      %v5487 = vld [vmem:[%s4 + $0x5d4] sm:$0xff]
      %v5488 = vld [vmem:[%s4 + $0x5dc] sm:$0xff]
      %v5489 = vld [vmem:[%s4 + $0x5e4] sm:$0xf]
      %v5490 = vld [vmem:[%s4 + $0x5e8] sm:$0xff]
      %v5491 = vld [vmem:[%s4 + $0x5f0] sm:$0xff]
      %v5492 = vld [vmem:[%s4 + $0x5f8] sm:$0xff]
      %v5493 = vld [vmem:[%s4 + $0x600] sm:$0xf]
      %v5494 = vld [vmem:[%s4 + $0x604] sm:$0xff]
      %v5495 = vld [vmem:[%s4 + $0x60c] sm:$0xff]
      %v5496 = vld [vmem:[%s4 + $0x614] sm:$0xff]
      %v5497 = vld [vmem:[%s4 + $0x61c] sm:$0xf]
      %v5498 = vld [vmem:[%s4 + $0x620] sm:$0xff]
      %v5499 = vld [vmem:[%s4 + $0x628] sm:$0xff]
      %v5500 = vld [vmem:[%s4 + $0x630] sm:$0xff]
      %v5501 = vld [vmem:[%s4 + $0x638] sm:$0xf]
      %v5502 = vld [vmem:[%s4 + $0x63c] sm:$0xff]
      %v5503 = vld [vmem:[%s4 + $0x644] sm:$0xff]
      %v5504 = vld [vmem:[%s4 + $0x64c] sm:$0xff]
      %v5505 = vld [vmem:[%s4 + $0x654] sm:$0xf]
      %v5506 = vld [vmem:[%s4 + $0x658] sm:$0xff]
      %v5507 = vld [vmem:[%s4 + $0x660] sm:$0xff]
      %v5508 = vld [vmem:[%s4 + $0x668] sm:$0xff]
      %v5509 = vld [vmem:[%s4 + $0x670] sm:$0xf]
      %v5510 = vld [vmem:[%s4 + $0x674] sm:$0xff]
      %v5511 = vld [vmem:[%s4 + $0x67c] sm:$0xff]
      %v5512 = vld [vmem:[%s4 + $0x684] sm:$0xff]
      %v5513 = vld [vmem:[%s4 + $0x68c] sm:$0xf]
      %v5514 = vld [vmem:[%s4 + $0x690] sm:$0xff]
      %v5515 = vld [vmem:[%s4 + $0x698] sm:$0xff]
      %v5516 = vld [vmem:[%s4 + $0x6a0] sm:$0xff]
      %v5517 = vld [vmem:[%s4 + $0x6a8] sm:$0xf]
      %v5518 = vld [vmem:[%s4 + $0x6ac] sm:$0xff]
      %v5519 = vld [vmem:[%s4 + $0x6b4] sm:$0xff]
      %v5520 = vld [vmem:[%s4 + $0x6bc] sm:$0xff]
      %v5521 = vld [vmem:[%s4 + $0x6c4] sm:$0xf]
      %v5522 = vld [vmem:[%s4 + $0x6c8] sm:$0xff]
      %v5523 = vld [vmem:[%s4 + $0x6d0] sm:$0xff]
      %v5524 = vld [vmem:[%s4 + $0x6d8] sm:$0xff]
      %v5525 = vld [vmem:[%s4 + $0x6e0] sm:$0xf]
      %v5526 = vld [vmem:[%s4 + $0x6e4] sm:$0xff]
      %v5527 = vld [vmem:[%s4 + $0x6ec] sm:$0xff]
      %v5528 = vld [vmem:[%s4 + $0x6f4] sm:$0xff]
      %v5529 = vld [vmem:[%s4 + $0x6fc] sm:$0xf]
      %v5530 = vld [vmem:[%s4 + $0x700] sm:$0xff]
      %v5531 = vld [vmem:[%s4 + $0x708] sm:$0xff]
      %v5532 = vld [vmem:[%s4 + $0x710] sm:$0xff]
      %v5533 = vld [vmem:[%s4 + $0x718] sm:$0xf]
      %v5534 = vld [vmem:[%s4 + $0x71c] sm:$0xff]
      %v5535 = vld [vmem:[%s4 + $0x724] sm:$0xff]
      %v5536 = vld [vmem:[%s4 + $0x72c] sm:$0xff]
      %v5537 = vld [vmem:[%s4 + $0x734] sm:$0xf]
      %v5538 = vld [vmem:[%s4 + $0x738] sm:$0xff]
      %v5539 = vld [vmem:[%s4 + $0x740] sm:$0xff]
      %v5540 = vld [vmem:[%s4 + $0x748] sm:$0xff]
      %v5541 = vld [vmem:[%s4 + $0x750] sm:$0xf]
      %v5542 = vld [vmem:[%s4 + $0x754] sm:$0xff]
      %v5543 = vld [vmem:[%s4 + $0x75c] sm:$0xff]
      %v5544 = vld [vmem:[%s4 + $0x764] sm:$0xff]
      %v5545 = vld [vmem:[%s4 + $0x76c] sm:$0xf]
      %v5546 = vld [vmem:[%s4 + $0x770] sm:$0xff]
      %v5547 = vld [vmem:[%s4 + $0x778] sm:$0xff]
      %v5548 = vld [vmem:[%s4 + $0x780] sm:$0xff]
      %v5549 = vld [vmem:[%s4 + $0x788] sm:$0xf]
      %v5550 = vld [vmem:[%s4 + $0x78c] sm:$0xff]
      %v5551 = vld [vmem:[%s4 + $0x794] sm:$0xff]
      %v5552 = vld [vmem:[%s4 + $0x79c] sm:$0xff]
      %v5553 = vld [vmem:[%s4 + $0x7a4] sm:$0xf]
      %v5554 = vld [vmem:[%s4 + $0x7a8] sm:$0xff]
      %v5555 = vld [vmem:[%s4 + $0x7b0] sm:$0xff]
      %v5556 = vld [vmem:[%s4 + $0x7b8] sm:$0xff]
      %v5557 = vld [vmem:[%s4 + $0x7c0] sm:$0xf]
      %v5558 = vld [vmem:[%s4 + $0x7c4] sm:$0xff]
      %v5559 = vld [vmem:[%s4 + $0x7cc] sm:$0xff]
      %v5560 = vld [vmem:[%s4 + $0x7d4] sm:$0xff]
      %v5561 = vld [vmem:[%s4 + $0x7dc] sm:$0xf]
      %v5562 = vld [vmem:[%s4 + $0x7e0] sm:$0xff]
      %v5563 = vld [vmem:[%s4 + $0x7e8] sm:$0xff]
      %v5564 = vld [vmem:[%s4 + $0x7f0] sm:$0xff]
      %v5565 = vld [vmem:[%s4 + $0x7f8] sm:$0xf]
      %v5566 = vld [vmem:[%s4 + $0x7fc] sm:$0xff]
      %v5567 = vld [vmem:[%s4 + $0x804] sm:$0xff]
      %v5568 = vld [vmem:[%s4 + $0x80c] sm:$0xff]
      %v5569 = vld [vmem:[%s4 + $0x814] sm:$0xf]
      %v5570 = vld [vmem:[%s4 + $0x818] sm:$0xff]
      %v5571 = vld [vmem:[%s4 + $0x820] sm:$0xff]
      %v5572 = vld [vmem:[%s4 + $0x828] sm:$0xff]
      %v5573 = vld [vmem:[%s4 + $0x830] sm:$0xf]
      %v5574 = vld [vmem:[%s4 + $0x834] sm:$0xff]
      %v5575 = vld [vmem:[%s4 + $0x83c] sm:$0xff]
      %v5576 = vld [vmem:[%s4 + $0x844] sm:$0xff]
      %v5577 = vld [vmem:[%s4 + $0x84c] sm:$0xf]
      %v5578 = vld [vmem:[%s4 + $0x850] sm:$0xff]
      %v5579 = vld [vmem:[%s4 + $0x858] sm:$0xff]
      %v5580 = vld [vmem:[%s4 + $0x860] sm:$0xff]
      %v5581 = vld [vmem:[%s4 + $0x868] sm:$0xf]
      %v5582 = vld [vmem:[%s4 + $0x86c] sm:$0xff]
      %v5583 = vld [vmem:[%s4 + $0x874] sm:$0xff]
      %v5584 = vld [vmem:[%s4 + $0x87c] sm:$0xff]
      %v5585 = vld [vmem:[%s4 + $0x884] sm:$0xf]
      %v5586 = vld [vmem:[%s4 + $0x888] sm:$0xff]
      %v5587 = vld [vmem:[%s4 + $0x890] sm:$0xff]
      %v5588 = vld [vmem:[%s4 + $0x898] sm:$0xff]
      %v5589 = vld [vmem:[%s4 + $0x8a0] sm:$0xf]
      %v5590 = vld [vmem:[%s4 + $0x8a4] sm:$0xff]
      %v5591 = vld [vmem:[%s4 + $0x8ac] sm:$0xff]
      %v5592 = vld [vmem:[%s4 + $0x8b4] sm:$0xff]
      %v5593 = vld [vmem:[%s4 + $0x8bc] sm:$0xf]
      %v5594 = vld [vmem:[%s4 + $0x8c0] sm:$0xff]
      %v5595 = vld [vmem:[%s4 + $0x8c8] sm:$0xff]
      %v5596 = vld [vmem:[%s4 + $0x8d0] sm:$0xff]
      %v5597 = vld [vmem:[%s4 + $0x8d8] sm:$0xf]
      %v5598 = vld [vmem:[%s4 + $0x8dc] sm:$0xff]
      %v5599 = vld [vmem:[%s4 + $0x8e4] sm:$0xff]
      %v5600 = vld [vmem:[%s4 + $0x8ec] sm:$0xff]
      %v5601 = vld [vmem:[%s4 + $0x8f4] sm:$0xf]
      %v5602 = vld [vmem:[%s4 + $0x8f8] sm:$0xff]
      %v5603 = vld [vmem:[%s4 + $0x900] sm:$0xff]
      %v5604 = vld [vmem:[%s4 + $0x908] sm:$0xff]
      %v5605 = vld [vmem:[%s4 + $0x910] sm:$0xf]
      %v5606 = vld [vmem:[%s4 + $0x914] sm:$0xff]
      %v5607 = vld [vmem:[%s4 + $0x91c] sm:$0xff]
      %v5608 = vld [vmem:[%s4 + $0x924] sm:$0xff]
      %v5609 = vld [vmem:[%s4 + $0x92c] sm:$0xf]
      %v5610 = vld [vmem:[%s4 + $0x930] sm:$0xff]
      %v5611 = vld [vmem:[%s4 + $0x938] sm:$0xff]
      %v5612 = vld [vmem:[%s4 + $0x940] sm:$0xff]
      %v5613 = vld [vmem:[%s4 + $0x948] sm:$0xf]
      %v5614 = vld [vmem:[%s4 + $0x94c] sm:$0xff]
      %v5615 = vld [vmem:[%s4 + $0x954] sm:$0xff]
      %v5616 = vld [vmem:[%s4 + $0x95c] sm:$0xff]
      %v5617 = vld [vmem:[%s4 + $0x964] sm:$0xf]
      %v5618 = vld [vmem:[%s4 + $0x968] sm:$0xff]
      %v5619 = vld [vmem:[%s4 + $0x970] sm:$0xff]
      %v5620 = vld [vmem:[%s4 + $0x978] sm:$0xff]
      %v5621 = vld [vmem:[%s4 + $0x980] sm:$0xf]
      %v5622 = vld [vmem:[%s4 + $0x984] sm:$0xff]
      %v5623 = vld [vmem:[%s4 + $0x98c] sm:$0xff]
      %v5624 = vld [vmem:[%s4 + $0x994] sm:$0xff]
      %v5625 = vld [vmem:[%s4 + $0x99c] sm:$0xf]
      %v5626 = vld [vmem:[%s4 + $0x9a0] sm:$0xff]
      %v5627 = vld [vmem:[%s4 + $0x9a8] sm:$0xff]
      %v5628 = vld [vmem:[%s4 + $0x9b0] sm:$0xff]
      %v5629 = vld [vmem:[%s4 + $0x9b8] sm:$0xf]
      %v5630 = vld [vmem:[%s4 + $0x9bc] sm:$0xff]
      %v5631 = vld [vmem:[%s4 + $0x9c4] sm:$0xff]
      %v5632 = vld [vmem:[%s4 + $0x9cc] sm:$0xff]
      %v5633 = vld [vmem:[%s4 + $0x9d4] sm:$0xf]
      %v5634 = vld [vmem:[%s4 + $0x9d8] sm:$0xff]
      %v5635 = vld [vmem:[%s4 + $0x9e0] sm:$0xff]
      %v5636 = vld [vmem:[%s4 + $0x9e8] sm:$0xff]
      %v5637 = vld [vmem:[%s4 + $0x9f0] sm:$0xf]
      %v5638 = vld [vmem:[%s4 + $0x9f4] sm:$0xff]
      %v5639 = vld [vmem:[%s4 + $0x9fc] sm:$0xff]
      %v5640 = vld [vmem:[%s4 + $0xa04] sm:$0xff]
      %v5641 = vld [vmem:[%s4 + $0xa0c] sm:$0xf]
      %v5642 = vld [vmem:[%s4 + $0xa10] sm:$0xff]
      %v5643 = vld [vmem:[%s4 + $0xa18] sm:$0xff]
      %v5644 = vld [vmem:[%s4 + $0xa20] sm:$0xff]
      %v5645 = vld [vmem:[%s4 + $0xa28] sm:$0xf]
      %v5646 = vld [vmem:[%s4 + $0xa2c] sm:$0xff]
      %v5647 = vld [vmem:[%s4 + $0xa34] sm:$0xff]
      %v5648 = vld [vmem:[%s4 + $0xa3c] sm:$0xff]
      %v5649 = vld [vmem:[%s4 + $0xa44] sm:$0xf]
      %v5650 = vld [vmem:[%s4 + $0xa48] sm:$0xff]
      %v5651 = vld [vmem:[%s4 + $0xa50] sm:$0xff]
      %v5652 = vld [vmem:[%s4 + $0xa58] sm:$0xff]
      %v5653 = vld [vmem:[%s4 + $0xa60] sm:$0xf]
      %v5654 = vld [vmem:[%s4 + $0xa64] sm:$0xff]
      %v5655 = vld [vmem:[%s4 + $0xa6c] sm:$0xff]
      %v5656 = vld [vmem:[%s4 + $0xa74] sm:$0xff]
      %v5657 = vld [vmem:[%s4 + $0xa7c] sm:$0xf]
      %v5658 = vld [vmem:[%s4 + $0xa80] sm:$0xff]
      %v5659 = vld [vmem:[%s4 + $0xa88] sm:$0xff]
      %v5660 = vld [vmem:[%s4 + $0xa90] sm:$0xff]
      %v5661 = vld [vmem:[%s4 + $0xa98] sm:$0xf]
      %v5662 = vld [vmem:[%s4 + $0xa9c] sm:$0xff]
      %v5663 = vld [vmem:[%s4 + $0xaa4] sm:$0xff]
      %v5664 = vld [vmem:[%s4 + $0xaac] sm:$0xff]
      %v5665 = vld [vmem:[%s4 + $0xab4] sm:$0xf]
      %v5666 = vld [vmem:[%s4 + $0xab8] sm:$0xff]
      %v5667 = vld [vmem:[%s4 + $0xac0] sm:$0xff]
      %v5668 = vld [vmem:[%s4 + $0xac8] sm:$0xff]
      %v5669 = vld [vmem:[%s4 + $0xad0] sm:$0xf]
      %v5670 = vld [vmem:[%s4 + $0xad4] sm:$0xff]
      %v5671 = vld [vmem:[%s4 + $0xadc] sm:$0xff]
      %v5672 = vld [vmem:[%s4 + $0xae4] sm:$0xff]
      %v5673 = vld [vmem:[%s4 + $0xaec] sm:$0xf]
      %v5674 = vld [vmem:[%s4 + $0xaf0] sm:$0xff]
      %v5675 = vld [vmem:[%s4 + $0xaf8] sm:$0xff]
      %v5676 = vld [vmem:[%s4 + $0xb00] sm:$0xff]
      %v5677 = vld [vmem:[%s4 + $0xb08] sm:$0xf]
      %v5678 = vld [vmem:[%s4 + $0xb0c] sm:$0xff]
      %v5679 = vld [vmem:[%s4 + $0xb14] sm:$0xff]
      %v5680 = vld [vmem:[%s4 + $0xb1c] sm:$0xff]
      %v5681 = vld [vmem:[%s4 + $0xb24] sm:$0xf]
      %v5682 = vld [vmem:[%s4 + $0xb28] sm:$0xff]
      %v5683 = vld [vmem:[%s4 + $0xb30] sm:$0xff]
      %v5684 = vld [vmem:[%s4 + $0xb38] sm:$0xff]
      %v5685 = vld [vmem:[%s4 + $0xb40] sm:$0xf]
      %v5686 = vld [vmem:[%s4 + $0xb44] sm:$0xff]
      %v5687 = vld [vmem:[%s4 + $0xb4c] sm:$0xff]
      %v5688 = vld [vmem:[%s4 + $0xb54] sm:$0xff]
      %v5689 = vld [vmem:[%s4 + $0xb5c] sm:$0xf]
      %v5690 = vld [vmem:[%s4 + $0xb60] sm:$0xff]
      %v5691 = vld [vmem:[%s4 + $0xb68] sm:$0xff]
      %v5692 = vld [vmem:[%s4 + $0xb70] sm:$0xff]
      %v5693 = vld [vmem:[%s4 + $0xb78] sm:$0xf]
      %v5694 = vld [vmem:[%s4 + $0xb7c] sm:$0xff]
      %v5695 = vld [vmem:[%s4 + $0xb84] sm:$0xff]
      %v5696 = vld [vmem:[%s4 + $0xb8c] sm:$0xff]
      %v5697 = vld [vmem:[%s4 + $0xb94] sm:$0xf]
      %v5698 = vld [vmem:[%s4 + $0xb98] sm:$0xff]
      %v5699 = vld [vmem:[%s4 + $0xba0] sm:$0xff]
      %v5700 = vld [vmem:[%s4 + $0xba8] sm:$0xff]
      %v5701 = vld [vmem:[%s4 + $0xbb0] sm:$0xf]
      %v5702 = vld [vmem:[%s4 + $0xbb4] sm:$0xff]
      %v5703 = vld [vmem:[%s4 + $0xbbc] sm:$0xff]
      %v5704 = vld [vmem:[%s4 + $0xbc4] sm:$0xff]
      %v5705 = vld [vmem:[%s4 + $0xbcc] sm:$0xf]
      %v5706 = vld [vmem:[%s4 + $0xbd0] sm:$0xff]
      %v5707 = vld [vmem:[%s4 + $0xbd8] sm:$0xff]
      %v5708 = vld [vmem:[%s4 + $0xbe0] sm:$0xff]
      %v5709 = vld [vmem:[%s4 + $0xbe8] sm:$0xf]
      %v5710 = vld [vmem:[%s4 + $0xbec] sm:$0xff]
      %v5711 = vld [vmem:[%s4 + $0xbf4] sm:$0xff]
      %v5712 = vld [vmem:[%s4 + $0xbfc] sm:$0xff]
      %v5713 = vld [vmem:[%s4 + $0xc04] sm:$0xf]
      %v5714 = vld [vmem:[%s4 + $0xc08] sm:$0xff]
      %v5715 = vld [vmem:[%s4 + $0xc10] sm:$0xff]
      %v5716 = vld [vmem:[%s4 + $0xc18] sm:$0xff]
      %v5717 = vld [vmem:[%s4 + $0xc20] sm:$0xf]
      %v5718 = vld [vmem:[%s4 + $0xc24] sm:$0xff]
      %v5719 = vld [vmem:[%s4 + $0xc2c] sm:$0xff]
      %v5720 = vld [vmem:[%s4 + $0xc34] sm:$0xff]
      %v5721 = vld [vmem:[%s4 + $0xc3c] sm:$0xf]
      %v5722 = vld [vmem:[%s4 + $0xc40] sm:$0xff]
      %v5723 = vld [vmem:[%s4 + $0xc48] sm:$0xff]
      %v5724 = vld [vmem:[%s4 + $0xc50] sm:$0xff]
      %v5725 = vld [vmem:[%s4 + $0xc58] sm:$0xf]
      %v5726 = vld [vmem:[%s4 + $0xc5c] sm:$0xff]
      %v5727 = vld [vmem:[%s4 + $0xc64] sm:$0xff]
      %v5728 = vld [vmem:[%s4 + $0xc6c] sm:$0xff]
      %v5729 = vld [vmem:[%s4 + $0xc74] sm:$0xf]
      %v5730 = vld [vmem:[%s4 + $0xc78] sm:$0xff]
      %v5731 = vld [vmem:[%s4 + $0xc80] sm:$0xff]
      %v5732 = vld [vmem:[%s4 + $0xc88] sm:$0xff]
      %v5733 = vld [vmem:[%s4 + $0xc90] sm:$0xf]
      %v5734 = vld [vmem:[%s4 + $0xc94] sm:$0xff]
      %v5735 = vld [vmem:[%s4 + $0xc9c] sm:$0xff]
      %v5736 = vld [vmem:[%s4 + $0xca4] sm:$0xff]
      %v5737 = vld [vmem:[%s4 + $0xcac] sm:$0xf]
      %v5738 = vld [vmem:[%s4 + $0xcb0] sm:$0xff]
      %v5739 = vld [vmem:[%s4 + $0xcb8] sm:$0xff]
      %v5740 = vld [vmem:[%s4 + $0xcc0] sm:$0xff]
      %v5741 = vld [vmem:[%s4 + $0xcc8] sm:$0xf]
      %v5742 = vld [vmem:[%s4 + $0xccc] sm:$0xff]
      %v5743 = vld [vmem:[%s4 + $0xcd4] sm:$0xff]
      %v5744 = vld [vmem:[%s4 + $0xcdc] sm:$0xff]
      %v5745 = vld [vmem:[%s4 + $0xce4] sm:$0xf]
      %v5746 = vld [vmem:[%s4 + $0xce8] sm:$0xff]
      %v5747 = vld [vmem:[%s4 + $0xcf0] sm:$0xff]
      %v5748 = vld [vmem:[%s4 + $0xcf8] sm:$0xff]
      %v5749 = vld [vmem:[%s4 + $0xd00] sm:$0xf]
      %v5750 = vld [vmem:[%s4 + $0xd04] sm:$0xff]
      %v5751 = vld [vmem:[%s4 + $0xd0c] sm:$0xff]
      %v5752 = vld [vmem:[%s4 + $0xd14] sm:$0xff]
      %v5753 = vld [vmem:[%s4 + $0xd1c] sm:$0xf]
      %v5754 = vld [vmem:[%s4 + $0xd20] sm:$0xff]
      %v5755 = vld [vmem:[%s4 + $0xd28] sm:$0xff]
      %v5756 = vld [vmem:[%s4 + $0xd30] sm:$0xff]
      %v5757 = vld [vmem:[%s4 + $0xd38] sm:$0xf]
      %v5758 = vld [vmem:[%s4 + $0xd3c] sm:$0xff]
      %v5759 = vld [vmem:[%s4 + $0xd44] sm:$0xff]
      %v5760 = vld [vmem:[%s4 + $0xd4c] sm:$0xff]
      %v5761 = vld [vmem:[%s4 + $0xd54] sm:$0xf]
      %v5762 = vld [vmem:[%s4 + $0xd58] sm:$0xff]
      %v5763 = vld [vmem:[%s4 + $0xd60] sm:$0xff]
      %v5764 = vld [vmem:[%s4 + $0xd68] sm:$0xff]
      %v5765 = vld [vmem:[%s4 + $0xd70] sm:$0xf]
      %v5766 = vld [vmem:[%s4 + $0xd74] sm:$0xff]
      %v5767 = vld [vmem:[%s4 + $0xd7c] sm:$0xff]
      %v5768 = vld [vmem:[%s4 + $0xd84] sm:$0xff]
      %v5769 = vld [vmem:[%s4 + $0xd8c] sm:$0xf]
      %v5770 = vld [vmem:[%s4 + $0xd90] sm:$0xff]
      %v5771 = vld [vmem:[%s4 + $0xd98] sm:$0xff]
      %v5772 = vld [vmem:[%s4 + $0xda0] sm:$0xff]
      %v5773 = vld [vmem:[%s4 + $0xda8] sm:$0xf]
      %v5774 = vld [vmem:[%s4 + $0xdac] sm:$0xff]
      %v5775 = vld [vmem:[%s4 + $0xdb4] sm:$0xff]
      %v5776 = vld [vmem:[%s4 + $0xdbc] sm:$0xff]
      %v5777 = vld [vmem:[%s4 + $0xdc4] sm:$0xf]
      %v5778 = vld [vmem:[%s4 + $0xdc8] sm:$0xff]
      %v5779 = vld [vmem:[%s4 + $0xdd0] sm:$0xff]
      %v5780 = vld [vmem:[%s4 + $0xdd8] sm:$0xff]
      %v5781 = vld [vmem:[%s4 + $0xde0] sm:$0xf]
      %v5782 = vld [vmem:[%s4 + $0xde4] sm:$0xff]
      %v5783 = vld [vmem:[%s4 + $0xdec] sm:$0xff]
      %v5784 = vld [vmem:[%s4 + $0xdf4] sm:$0xff]
      %v5785 = vld [vmem:[%s4 + $0xdfc] sm:$0xf]
      %v5787 = vlaneseq
      %v5788 = vshrl.u32 %v5787, 7
      %v5789 = vsub.s32 0, %v5788
      %v5790 = vrot.slane %v293, %v5789
      %v5791 = vlaneseq
      %v5792 = vshrl.u32 %v5791, 7
      %v5793 = vsub.s32 1, %v5792
      %v5794 = vrot.slane %v293, %v5793
      %v5795 = vlaneseq
      %v5796 = vshrl.u32 %v5795, 7
      %v5797 = vsub.s32 2, %v5796
      %v5798 = vrot.slane %v293, %v5797
      %v5799 = vlaneseq
      %v5800 = vshrl.u32 %v5799, 7
      %v5801 = vsub.s32 3, %v5800
      %v5802 = vrot.slane %v293, %v5801
      %v5803 = vlaneseq
      %v5804 = vshrl.u32 %v5803, 7
      %v5805 = vsub.s32 4, %v5804
      %v5806 = vrot.slane %v293, %v5805
      %v5807 = vlaneseq
      %v5808 = vshrl.u32 %v5807, 7
      %v5809 = vsub.s32 5, %v5808
      %v5810 = vrot.slane %v293, %v5809
      %v5811 = vlaneseq
      %v5812 = vshrl.u32 %v5811, 7
      %v5813 = vsub.s32 6, %v5812
      %v5814 = vrot.slane %v293, %v5813
      %v6334 = vunpack.c.l.b16 %v5274
      %v6335 = vunpack.c.h.b16 %v5274
      %v6336 = vunpack.c.l.b16 %v5275
      %v6337 = vunpack.c.h.b16 %v5275
      %v6338 = vunpack.c.l.b16 %v5276
      %v6339 = vunpack.c.h.b16 %v5276
      %v6340 = vunpack.c.l.b16 %v5277
      %v6341 = vunpack.c.l.b16 %v5278
      %v6342 = vunpack.c.h.b16 %v5278
      %v6343 = vunpack.c.l.b16 %v5279
      %v6344 = vunpack.c.h.b16 %v5279
      %v6345 = vunpack.c.l.b16 %v5280
      %v6346 = vunpack.c.h.b16 %v5280
      %v6347 = vunpack.c.l.b16 %v5281
      %v6348 = vunpack.c.l.b16 %v5282
      %v6349 = vunpack.c.h.b16 %v5282
      %v6350 = vunpack.c.l.b16 %v5283
      %v6351 = vunpack.c.h.b16 %v5283
      %v6352 = vunpack.c.l.b16 %v5284
      %v6353 = vunpack.c.h.b16 %v5284
      %v6354 = vunpack.c.l.b16 %v5285
      %v6355 = vunpack.c.l.b16 %v5286
      %v6356 = vunpack.c.h.b16 %v5286
      %v6357 = vunpack.c.l.b16 %v5287
      %v6358 = vunpack.c.h.b16 %v5287
      %v6359 = vunpack.c.l.b16 %v5288
      %v6360 = vunpack.c.h.b16 %v5288
      %v6361 = vunpack.c.l.b16 %v5289
      %v6362 = vunpack.c.l.b16 %v5290
      %v6363 = vunpack.c.h.b16 %v5290
      %v6364 = vunpack.c.l.b16 %v5291
      %v6365 = vunpack.c.h.b16 %v5291
      %v6366 = vunpack.c.l.b16 %v5292
      %v6367 = vunpack.c.h.b16 %v5292
      %v6368 = vunpack.c.l.b16 %v5293
      %v6369 = vunpack.c.l.b16 %v5294
      %v6370 = vunpack.c.h.b16 %v5294
      %v6371 = vunpack.c.l.b16 %v5295
      %v6372 = vunpack.c.h.b16 %v5295
      %v6373 = vunpack.c.l.b16 %v5296
      %v6374 = vunpack.c.h.b16 %v5296
      %v6375 = vunpack.c.l.b16 %v5297
      %v6376 = vunpack.c.l.b16 %v5298
      %v6377 = vunpack.c.h.b16 %v5298
      %v6378 = vunpack.c.l.b16 %v5299
      %v6379 = vunpack.c.h.b16 %v5299
      %v6380 = vunpack.c.l.b16 %v5300
      %v6381 = vunpack.c.h.b16 %v5300
      %v6382 = vunpack.c.l.b16 %v5301
      %v6383 = vunpack.c.l.b16 %v5302
      %v6384 = vunpack.c.h.b16 %v5302
      %v6385 = vunpack.c.l.b16 %v5303
      %v6386 = vunpack.c.h.b16 %v5303
      %v6387 = vunpack.c.l.b16 %v5304
      %v6388 = vunpack.c.h.b16 %v5304
      %v6389 = vunpack.c.l.b16 %v5305
      %v6390 = vunpack.c.l.b16 %v5306
      %v6391 = vunpack.c.h.b16 %v5306
      %v6392 = vunpack.c.l.b16 %v5307
      %v6393 = vunpack.c.h.b16 %v5307
      %v6394 = vunpack.c.l.b16 %v5308
      %v6395 = vunpack.c.h.b16 %v5308
      %v6396 = vunpack.c.l.b16 %v5309
      %v6397 = vunpack.c.l.b16 %v5310
      %v6398 = vunpack.c.h.b16 %v5310
      %v6399 = vunpack.c.l.b16 %v5311
      %v6400 = vunpack.c.h.b16 %v5311
      %v6401 = vunpack.c.l.b16 %v5312
      %v6402 = vunpack.c.h.b16 %v5312
      %v6403 = vunpack.c.l.b16 %v5313
      %v6404 = vunpack.c.l.b16 %v5314
      %v6405 = vunpack.c.h.b16 %v5314
      %v6406 = vunpack.c.l.b16 %v5315
      %v6407 = vunpack.c.h.b16 %v5315
      %v6408 = vunpack.c.l.b16 %v5316
      %v6409 = vunpack.c.h.b16 %v5316
      %v6410 = vunpack.c.l.b16 %v5317
      %v6411 = vunpack.c.l.b16 %v5318
      %v6412 = vunpack.c.h.b16 %v5318
      %v6413 = vunpack.c.l.b16 %v5319
      %v6414 = vunpack.c.h.b16 %v5319
      %v6415 = vunpack.c.l.b16 %v5320
      %v6416 = vunpack.c.h.b16 %v5320
      %v6417 = vunpack.c.l.b16 %v5321
      %v6418 = vunpack.c.l.b16 %v5322
      %v6419 = vunpack.c.h.b16 %v5322
      %v6420 = vunpack.c.l.b16 %v5323
      %v6421 = vunpack.c.h.b16 %v5323
      %v6422 = vunpack.c.l.b16 %v5324
      %v6423 = vunpack.c.h.b16 %v5324
      %v6424 = vunpack.c.l.b16 %v5325
      %v6425 = vunpack.c.l.b16 %v5326
      %v6426 = vunpack.c.h.b16 %v5326
      %v6427 = vunpack.c.l.b16 %v5327
      %v6428 = vunpack.c.h.b16 %v5327
      %v6429 = vunpack.c.l.b16 %v5328
      %v6430 = vunpack.c.h.b16 %v5328
      %v6431 = vunpack.c.l.b16 %v5329
      %v6432 = vunpack.c.l.b16 %v5330
      %v6433 = vunpack.c.h.b16 %v5330
      %v6434 = vunpack.c.l.b16 %v5331
      %v6435 = vunpack.c.h.b16 %v5331
      %v6436 = vunpack.c.l.b16 %v5332
      %v6437 = vunpack.c.h.b16 %v5332
      %v6438 = vunpack.c.l.b16 %v5333
      %v6439 = vunpack.c.l.b16 %v5334
      %v6440 = vunpack.c.h.b16 %v5334
      %v6441 = vunpack.c.l.b16 %v5335
      %v6442 = vunpack.c.h.b16 %v5335
      %v6443 = vunpack.c.l.b16 %v5336
      %v6444 = vunpack.c.h.b16 %v5336
      %v6445 = vunpack.c.l.b16 %v5337
      %v6446 = vunpack.c.l.b16 %v5338
      %v6447 = vunpack.c.h.b16 %v5338
      %v6448 = vunpack.c.l.b16 %v5339
      %v6449 = vunpack.c.h.b16 %v5339
      %v6450 = vunpack.c.l.b16 %v5340
      %v6451 = vunpack.c.h.b16 %v5340
      %v6452 = vunpack.c.l.b16 %v5341
      %v6453 = vunpack.c.l.b16 %v5342
      %v6454 = vunpack.c.h.b16 %v5342
      %v6455 = vunpack.c.l.b16 %v5343
      %v6456 = vunpack.c.h.b16 %v5343
      %v6457 = vunpack.c.l.b16 %v5344
      %v6458 = vunpack.c.h.b16 %v5344
      %v6459 = vunpack.c.l.b16 %v5345
      %v6460 = vunpack.c.l.b16 %v5346
      %v6461 = vunpack.c.h.b16 %v5346
      %v6462 = vunpack.c.l.b16 %v5347
      %v6463 = vunpack.c.h.b16 %v5347
      %v6464 = vunpack.c.l.b16 %v5348
      %v6465 = vunpack.c.h.b16 %v5348
      %v6466 = vunpack.c.l.b16 %v5349
      %v6467 = vunpack.c.l.b16 %v5350
      %v6468 = vunpack.c.h.b16 %v5350
      %v6469 = vunpack.c.l.b16 %v5351
      %v6470 = vunpack.c.h.b16 %v5351
      %v6471 = vunpack.c.l.b16 %v5352
      %v6472 = vunpack.c.h.b16 %v5352
      %v6473 = vunpack.c.l.b16 %v5353
      %v6474 = vunpack.c.l.b16 %v5354
      %v6475 = vunpack.c.h.b16 %v5354
      %v6476 = vunpack.c.l.b16 %v5355
      %v6477 = vunpack.c.h.b16 %v5355
      %v6478 = vunpack.c.l.b16 %v5356
      %v6479 = vunpack.c.h.b16 %v5356
      %v6480 = vunpack.c.l.b16 %v5357
      %v6481 = vunpack.c.l.b16 %v5358
      %v6482 = vunpack.c.h.b16 %v5358
      %v6483 = vunpack.c.l.b16 %v5359
      %v6484 = vunpack.c.h.b16 %v5359
      %v6485 = vunpack.c.l.b16 %v5360
      %v6486 = vunpack.c.h.b16 %v5360
      %v6487 = vunpack.c.l.b16 %v5361
      %v6488 = vunpack.c.l.b16 %v5362
      %v6489 = vunpack.c.h.b16 %v5362
      %v6490 = vunpack.c.l.b16 %v5363
      %v6491 = vunpack.c.h.b16 %v5363
      %v6492 = vunpack.c.l.b16 %v5364
      %v6493 = vunpack.c.h.b16 %v5364
      %v6494 = vunpack.c.l.b16 %v5365
      %v6495 = vunpack.c.l.b16 %v5366
      %v6496 = vunpack.c.h.b16 %v5366
      %v6497 = vunpack.c.l.b16 %v5367
      %v6498 = vunpack.c.h.b16 %v5367
      %v6499 = vunpack.c.l.b16 %v5368
      %v6500 = vunpack.c.h.b16 %v5368
      %v6501 = vunpack.c.l.b16 %v5369
      %v6502 = vunpack.c.l.b16 %v5370
      %v6503 = vunpack.c.h.b16 %v5370
      %v6504 = vunpack.c.l.b16 %v5371
      %v6505 = vunpack.c.h.b16 %v5371
      %v6506 = vunpack.c.l.b16 %v5372
      %v6507 = vunpack.c.h.b16 %v5372
      %v6508 = vunpack.c.l.b16 %v5373
      %v6509 = vunpack.c.l.b16 %v5374
      %v6510 = vunpack.c.h.b16 %v5374
      %v6511 = vunpack.c.l.b16 %v5375
      %v6512 = vunpack.c.h.b16 %v5375
      %v6513 = vunpack.c.l.b16 %v5376
      %v6514 = vunpack.c.h.b16 %v5376
      %v6515 = vunpack.c.l.b16 %v5377
      %v6516 = vunpack.c.l.b16 %v5378
      %v6517 = vunpack.c.h.b16 %v5378
      %v6518 = vunpack.c.l.b16 %v5379
      %v6519 = vunpack.c.h.b16 %v5379
      %v6520 = vunpack.c.l.b16 %v5380
      %v6521 = vunpack.c.h.b16 %v5380
      %v6522 = vunpack.c.l.b16 %v5381
      %v6523 = vunpack.c.l.b16 %v5382
      %v6524 = vunpack.c.h.b16 %v5382
      %v6525 = vunpack.c.l.b16 %v5383
      %v6526 = vunpack.c.h.b16 %v5383
      %v6527 = vunpack.c.l.b16 %v5384
      %v6528 = vunpack.c.h.b16 %v5384
      %v6529 = vunpack.c.l.b16 %v5385
      %v6530 = vunpack.c.l.b16 %v5386
      %v6531 = vunpack.c.h.b16 %v5386
      %v6532 = vunpack.c.l.b16 %v5387
      %v6533 = vunpack.c.h.b16 %v5387
      %v6534 = vunpack.c.l.b16 %v5388
      %v6535 = vunpack.c.h.b16 %v5388
      %v6536 = vunpack.c.l.b16 %v5389
      %v6537 = vunpack.c.l.b16 %v5390
      %v6538 = vunpack.c.h.b16 %v5390
      %v6539 = vunpack.c.l.b16 %v5391
      %v6540 = vunpack.c.h.b16 %v5391
      %v6541 = vunpack.c.l.b16 %v5392
      %v6542 = vunpack.c.h.b16 %v5392
      %v6543 = vunpack.c.l.b16 %v5393
      %v6544 = vunpack.c.l.b16 %v5394
      %v6545 = vunpack.c.h.b16 %v5394
      %v6546 = vunpack.c.l.b16 %v5395
      %v6547 = vunpack.c.h.b16 %v5395
      %v6548 = vunpack.c.l.b16 %v5396
      %v6549 = vunpack.c.h.b16 %v5396
      %v6550 = vunpack.c.l.b16 %v5397
      %v6551 = vunpack.c.l.b16 %v5398
      %v6552 = vunpack.c.h.b16 %v5398
      %v6553 = vunpack.c.l.b16 %v5399
      %v6554 = vunpack.c.h.b16 %v5399
      %v6555 = vunpack.c.l.b16 %v5400
      %v6556 = vunpack.c.h.b16 %v5400
      %v6557 = vunpack.c.l.b16 %v5401
      %v6558 = vunpack.c.l.b16 %v5402
      %v6559 = vunpack.c.h.b16 %v5402
      %v6560 = vunpack.c.l.b16 %v5403
      %v6561 = vunpack.c.h.b16 %v5403
      %v6562 = vunpack.c.l.b16 %v5404
      %v6563 = vunpack.c.h.b16 %v5404
      %v6564 = vunpack.c.l.b16 %v5405
      %v6565 = vunpack.c.l.b16 %v5406
      %v6566 = vunpack.c.h.b16 %v5406
      %v6567 = vunpack.c.l.b16 %v5407
      %v6568 = vunpack.c.h.b16 %v5407
      %v6569 = vunpack.c.l.b16 %v5408
      %v6570 = vunpack.c.h.b16 %v5408
      %v6571 = vunpack.c.l.b16 %v5409
      %v6572 = vunpack.c.l.b16 %v5410
      %v6573 = vunpack.c.h.b16 %v5410
      %v6574 = vunpack.c.l.b16 %v5411
      %v6575 = vunpack.c.h.b16 %v5411
      %v6576 = vunpack.c.l.b16 %v5412
      %v6577 = vunpack.c.h.b16 %v5412
      %v6578 = vunpack.c.l.b16 %v5413
      %v6579 = vunpack.c.l.b16 %v5414
      %v6580 = vunpack.c.h.b16 %v5414
      %v6581 = vunpack.c.l.b16 %v5415
      %v6582 = vunpack.c.h.b16 %v5415
      %v6583 = vunpack.c.l.b16 %v5416
      %v6584 = vunpack.c.h.b16 %v5416
      %v6585 = vunpack.c.l.b16 %v5417
      %v6586 = vunpack.c.l.b16 %v5418
      %v6587 = vunpack.c.h.b16 %v5418
      %v6588 = vunpack.c.l.b16 %v5419
      %v6589 = vunpack.c.h.b16 %v5419
      %v6590 = vunpack.c.l.b16 %v5420
      %v6591 = vunpack.c.h.b16 %v5420
      %v6592 = vunpack.c.l.b16 %v5421
      %v6593 = vunpack.c.l.b16 %v5422
      %v6594 = vunpack.c.h.b16 %v5422
      %v6595 = vunpack.c.l.b16 %v5423
      %v6596 = vunpack.c.h.b16 %v5423
      %v6597 = vunpack.c.l.b16 %v5424
      %v6598 = vunpack.c.h.b16 %v5424
      %v6599 = vunpack.c.l.b16 %v5425
      %v6600 = vunpack.c.l.b16 %v5426
      %v6601 = vunpack.c.h.b16 %v5426
      %v6602 = vunpack.c.l.b16 %v5427
      %v6603 = vunpack.c.h.b16 %v5427
      %v6604 = vunpack.c.l.b16 %v5428
      %v6605 = vunpack.c.h.b16 %v5428
      %v6606 = vunpack.c.l.b16 %v5429
      %v6607 = vunpack.c.l.b16 %v5430
      %v6608 = vunpack.c.h.b16 %v5430
      %v6609 = vunpack.c.l.b16 %v5431
      %v6610 = vunpack.c.h.b16 %v5431
      %v6611 = vunpack.c.l.b16 %v5432
      %v6612 = vunpack.c.h.b16 %v5432
      %v6613 = vunpack.c.l.b16 %v5433
      %v6614 = vunpack.c.l.b16 %v5434
      %v6615 = vunpack.c.h.b16 %v5434
      %v6616 = vunpack.c.l.b16 %v5435
      %v6617 = vunpack.c.h.b16 %v5435
      %v6618 = vunpack.c.l.b16 %v5436
      %v6619 = vunpack.c.h.b16 %v5436
      %v6620 = vunpack.c.l.b16 %v5437
      %v6621 = vunpack.c.l.b16 %v5438
      %v6622 = vunpack.c.h.b16 %v5438
      %v6623 = vunpack.c.l.b16 %v5439
      %v6624 = vunpack.c.h.b16 %v5439
      %v6625 = vunpack.c.l.b16 %v5440
      %v6626 = vunpack.c.h.b16 %v5440
      %v6627 = vunpack.c.l.b16 %v5441
      %v6628 = vunpack.c.l.b16 %v5442
      %v6629 = vunpack.c.h.b16 %v5442
      %v6630 = vunpack.c.l.b16 %v5443
      %v6631 = vunpack.c.h.b16 %v5443
      %v6632 = vunpack.c.l.b16 %v5444
      %v6633 = vunpack.c.h.b16 %v5444
      %v6634 = vunpack.c.l.b16 %v5445
      %v6635 = vunpack.c.l.b16 %v5446
      %v6636 = vunpack.c.h.b16 %v5446
      %v6637 = vunpack.c.l.b16 %v5447
      %v6638 = vunpack.c.h.b16 %v5447
      %v6639 = vunpack.c.l.b16 %v5448
      %v6640 = vunpack.c.h.b16 %v5448
      %v6641 = vunpack.c.l.b16 %v5449
      %v6642 = vunpack.c.l.b16 %v5450
      %v6643 = vunpack.c.h.b16 %v5450
      %v6644 = vunpack.c.l.b16 %v5451
      %v6645 = vunpack.c.h.b16 %v5451
      %v6646 = vunpack.c.l.b16 %v5452
      %v6647 = vunpack.c.h.b16 %v5452
      %v6648 = vunpack.c.l.b16 %v5453
      %v6649 = vunpack.c.l.b16 %v5454
      %v6650 = vunpack.c.h.b16 %v5454
      %v6651 = vunpack.c.l.b16 %v5455
      %v6652 = vunpack.c.h.b16 %v5455
      %v6653 = vunpack.c.l.b16 %v5456
      %v6654 = vunpack.c.h.b16 %v5456
      %v6655 = vunpack.c.l.b16 %v5457
      %v6656 = vunpack.c.l.b16 %v5458
      %v6657 = vunpack.c.h.b16 %v5458
      %v6658 = vunpack.c.l.b16 %v5459
      %v6659 = vunpack.c.h.b16 %v5459
      %v6660 = vunpack.c.l.b16 %v5460
      %v6661 = vunpack.c.h.b16 %v5460
      %v6662 = vunpack.c.l.b16 %v5461
      %v6663 = vunpack.c.l.b16 %v5462
      %v6664 = vunpack.c.h.b16 %v5462
      %v6665 = vunpack.c.l.b16 %v5463
      %v6666 = vunpack.c.h.b16 %v5463
      %v6667 = vunpack.c.l.b16 %v5464
      %v6668 = vunpack.c.h.b16 %v5464
      %v6669 = vunpack.c.l.b16 %v5465
      %v6670 = vunpack.c.l.b16 %v5466
      %v6671 = vunpack.c.h.b16 %v5466
      %v6672 = vunpack.c.l.b16 %v5467
      %v6673 = vunpack.c.h.b16 %v5467
      %v6674 = vunpack.c.l.b16 %v5468
      %v6675 = vunpack.c.h.b16 %v5468
      %v6676 = vunpack.c.l.b16 %v5469
      %v6677 = vunpack.c.l.b16 %v5470
      %v6678 = vunpack.c.h.b16 %v5470
      %v6679 = vunpack.c.l.b16 %v5471
      %v6680 = vunpack.c.h.b16 %v5471
      %v6681 = vunpack.c.l.b16 %v5472
      %v6682 = vunpack.c.h.b16 %v5472
      %v6683 = vunpack.c.l.b16 %v5473
      %v6684 = vunpack.c.l.b16 %v5474
      %v6685 = vunpack.c.h.b16 %v5474
      %v6686 = vunpack.c.l.b16 %v5475
      %v6687 = vunpack.c.h.b16 %v5475
      %v6688 = vunpack.c.l.b16 %v5476
      %v6689 = vunpack.c.h.b16 %v5476
      %v6690 = vunpack.c.l.b16 %v5477
      %v6691 = vunpack.c.l.b16 %v5478
      %v6692 = vunpack.c.h.b16 %v5478
      %v6693 = vunpack.c.l.b16 %v5479
      %v6694 = vunpack.c.h.b16 %v5479
      %v6695 = vunpack.c.l.b16 %v5480
      %v6696 = vunpack.c.h.b16 %v5480
      %v6697 = vunpack.c.l.b16 %v5481
      %v6698 = vunpack.c.l.b16 %v5482
      %v6699 = vunpack.c.h.b16 %v5482
      %v6700 = vunpack.c.l.b16 %v5483
      %v6701 = vunpack.c.h.b16 %v5483
      %v6702 = vunpack.c.l.b16 %v5484
      %v6703 = vunpack.c.h.b16 %v5484
      %v6704 = vunpack.c.l.b16 %v5485
      %v6705 = vunpack.c.l.b16 %v5486
      %v6706 = vunpack.c.h.b16 %v5486
      %v6707 = vunpack.c.l.b16 %v5487
      %v6708 = vunpack.c.h.b16 %v5487
      %v6709 = vunpack.c.l.b16 %v5488
      %v6710 = vunpack.c.h.b16 %v5488
      %v6711 = vunpack.c.l.b16 %v5489
      %v6712 = vunpack.c.l.b16 %v5490
      %v6713 = vunpack.c.h.b16 %v5490
      %v6714 = vunpack.c.l.b16 %v5491
      %v6715 = vunpack.c.h.b16 %v5491
      %v6716 = vunpack.c.l.b16 %v5492
      %v6717 = vunpack.c.h.b16 %v5492
      %v6718 = vunpack.c.l.b16 %v5493
      %v6719 = vunpack.c.l.b16 %v5494
      %v6720 = vunpack.c.h.b16 %v5494
      %v6721 = vunpack.c.l.b16 %v5495
      %v6722 = vunpack.c.h.b16 %v5495
      %v6723 = vunpack.c.l.b16 %v5496
      %v6724 = vunpack.c.h.b16 %v5496
      %v6725 = vunpack.c.l.b16 %v5497
      %v6726 = vunpack.c.l.b16 %v5498
      %v6727 = vunpack.c.h.b16 %v5498
      %v6728 = vunpack.c.l.b16 %v5499
      %v6729 = vunpack.c.h.b16 %v5499
      %v6730 = vunpack.c.l.b16 %v5500
      %v6731 = vunpack.c.h.b16 %v5500
      %v6732 = vunpack.c.l.b16 %v5501
      %v6733 = vunpack.c.l.b16 %v5502
      %v6734 = vunpack.c.h.b16 %v5502
      %v6735 = vunpack.c.l.b16 %v5503
      %v6736 = vunpack.c.h.b16 %v5503
      %v6737 = vunpack.c.l.b16 %v5504
      %v6738 = vunpack.c.h.b16 %v5504
      %v6739 = vunpack.c.l.b16 %v5505
      %v6740 = vunpack.c.l.b16 %v5506
      %v6741 = vunpack.c.h.b16 %v5506
      %v6742 = vunpack.c.l.b16 %v5507
      %v6743 = vunpack.c.h.b16 %v5507
      %v6744 = vunpack.c.l.b16 %v5508
      %v6745 = vunpack.c.h.b16 %v5508
      %v6746 = vunpack.c.l.b16 %v5509
      %v6747 = vunpack.c.l.b16 %v5510
      %v6748 = vunpack.c.h.b16 %v5510
      %v6749 = vunpack.c.l.b16 %v5511
      %v6750 = vunpack.c.h.b16 %v5511
      %v6751 = vunpack.c.l.b16 %v5512
      %v6752 = vunpack.c.h.b16 %v5512
      %v6753 = vunpack.c.l.b16 %v5513
      %v6754 = vunpack.c.l.b16 %v5514
      %v6755 = vunpack.c.h.b16 %v5514
      %v6756 = vunpack.c.l.b16 %v5515
      %v6757 = vunpack.c.h.b16 %v5515
      %v6758 = vunpack.c.l.b16 %v5516
      %v6759 = vunpack.c.h.b16 %v5516
      %v6760 = vunpack.c.l.b16 %v5517
      %v6761 = vunpack.c.l.b16 %v5518
      %v6762 = vunpack.c.h.b16 %v5518
      %v6763 = vunpack.c.l.b16 %v5519
      %v6764 = vunpack.c.h.b16 %v5519
      %v6765 = vunpack.c.l.b16 %v5520
      %v6766 = vunpack.c.h.b16 %v5520
      %v6767 = vunpack.c.l.b16 %v5521
      %v6768 = vunpack.c.l.b16 %v5522
      %v6769 = vunpack.c.h.b16 %v5522
      %v6770 = vunpack.c.l.b16 %v5523
      %v6771 = vunpack.c.h.b16 %v5523
      %v6772 = vunpack.c.l.b16 %v5524
      %v6773 = vunpack.c.h.b16 %v5524
      %v6774 = vunpack.c.l.b16 %v5525
      %v6775 = vunpack.c.l.b16 %v5526
      %v6776 = vunpack.c.h.b16 %v5526
      %v6777 = vunpack.c.l.b16 %v5527
      %v6778 = vunpack.c.h.b16 %v5527
      %v6779 = vunpack.c.l.b16 %v5528
      %v6780 = vunpack.c.h.b16 %v5528
      %v6781 = vunpack.c.l.b16 %v5529
      %v6782 = vunpack.c.l.b16 %v5530
      %v6783 = vunpack.c.h.b16 %v5530
      %v6784 = vunpack.c.l.b16 %v5531
      %v6785 = vunpack.c.h.b16 %v5531
      %v6786 = vunpack.c.l.b16 %v5532
      %v6787 = vunpack.c.h.b16 %v5532
      %v6788 = vunpack.c.l.b16 %v5533
      %v6789 = vunpack.c.l.b16 %v5534
      %v6790 = vunpack.c.h.b16 %v5534
      %v6791 = vunpack.c.l.b16 %v5535
      %v6792 = vunpack.c.h.b16 %v5535
      %v6793 = vunpack.c.l.b16 %v5536
      %v6794 = vunpack.c.h.b16 %v5536
      %v6795 = vunpack.c.l.b16 %v5537
      %v6796 = vunpack.c.l.b16 %v5538
      %v6797 = vunpack.c.h.b16 %v5538
      %v6798 = vunpack.c.l.b16 %v5539
      %v6799 = vunpack.c.h.b16 %v5539
      %v6800 = vunpack.c.l.b16 %v5540
      %v6801 = vunpack.c.h.b16 %v5540
      %v6802 = vunpack.c.l.b16 %v5541
      %v6803 = vunpack.c.l.b16 %v5542
      %v6804 = vunpack.c.h.b16 %v5542
      %v6805 = vunpack.c.l.b16 %v5543
      %v6806 = vunpack.c.h.b16 %v5543
      %v6807 = vunpack.c.l.b16 %v5544
      %v6808 = vunpack.c.h.b16 %v5544
      %v6809 = vunpack.c.l.b16 %v5545
      %v6810 = vunpack.c.l.b16 %v5546
      %v6811 = vunpack.c.h.b16 %v5546
      %v6812 = vunpack.c.l.b16 %v5547
      %v6813 = vunpack.c.h.b16 %v5547
      %v6814 = vunpack.c.l.b16 %v5548
      %v6815 = vunpack.c.h.b16 %v5548
      %v6816 = vunpack.c.l.b16 %v5549
      %v6817 = vunpack.c.l.b16 %v5550
      %v6818 = vunpack.c.h.b16 %v5550
      %v6819 = vunpack.c.l.b16 %v5551
      %v6820 = vunpack.c.h.b16 %v5551
      %v6821 = vunpack.c.l.b16 %v5552
      %v6822 = vunpack.c.h.b16 %v5552
      %v6823 = vunpack.c.l.b16 %v5553
      %v6824 = vunpack.c.l.b16 %v5554
      %v6825 = vunpack.c.h.b16 %v5554
      %v6826 = vunpack.c.l.b16 %v5555
      %v6827 = vunpack.c.h.b16 %v5555
      %v6828 = vunpack.c.l.b16 %v5556
      %v6829 = vunpack.c.h.b16 %v5556
      %v6830 = vunpack.c.l.b16 %v5557
      %v6831 = vunpack.c.l.b16 %v5558
      %v6832 = vunpack.c.h.b16 %v5558
      %v6833 = vunpack.c.l.b16 %v5559
      %v6834 = vunpack.c.h.b16 %v5559
      %v6835 = vunpack.c.l.b16 %v5560
      %v6836 = vunpack.c.h.b16 %v5560
      %v6837 = vunpack.c.l.b16 %v5561
      %v6838 = vunpack.c.l.b16 %v5562
      %v6839 = vunpack.c.h.b16 %v5562
      %v6840 = vunpack.c.l.b16 %v5563
      %v6841 = vunpack.c.h.b16 %v5563
      %v6842 = vunpack.c.l.b16 %v5564
      %v6843 = vunpack.c.h.b16 %v5564
      %v6844 = vunpack.c.l.b16 %v5565
      %v6845 = vunpack.c.l.b16 %v5566
      %v6846 = vunpack.c.h.b16 %v5566
      %v6847 = vunpack.c.l.b16 %v5567
      %v6848 = vunpack.c.h.b16 %v5567
      %v6849 = vunpack.c.l.b16 %v5568
      %v6850 = vunpack.c.h.b16 %v5568
      %v6851 = vunpack.c.l.b16 %v5569
      %v6852 = vunpack.c.l.b16 %v5570
      %v6853 = vunpack.c.h.b16 %v5570
      %v6854 = vunpack.c.l.b16 %v5571
      %v6855 = vunpack.c.h.b16 %v5571
      %v6856 = vunpack.c.l.b16 %v5572
      %v6857 = vunpack.c.h.b16 %v5572
      %v6858 = vunpack.c.l.b16 %v5573
      %v6859 = vunpack.c.l.b16 %v5574
      %v6860 = vunpack.c.h.b16 %v5574
      %v6861 = vunpack.c.l.b16 %v5575
      %v6862 = vunpack.c.h.b16 %v5575
      %v6863 = vunpack.c.l.b16 %v5576
      %v6864 = vunpack.c.h.b16 %v5576
      %v6865 = vunpack.c.l.b16 %v5577
      %v6866 = vunpack.c.l.b16 %v5578
      %v6867 = vunpack.c.h.b16 %v5578
      %v6868 = vunpack.c.l.b16 %v5579
      %v6869 = vunpack.c.h.b16 %v5579
      %v6870 = vunpack.c.l.b16 %v5580
      %v6871 = vunpack.c.h.b16 %v5580
      %v6872 = vunpack.c.l.b16 %v5581
      %v6873 = vunpack.c.l.b16 %v5582
      %v6874 = vunpack.c.h.b16 %v5582
      %v6875 = vunpack.c.l.b16 %v5583
      %v6876 = vunpack.c.h.b16 %v5583
      %v6877 = vunpack.c.l.b16 %v5584
      %v6878 = vunpack.c.h.b16 %v5584
      %v6879 = vunpack.c.l.b16 %v5585
      %v6880 = vunpack.c.l.b16 %v5586
      %v6881 = vunpack.c.h.b16 %v5586
      %v6882 = vunpack.c.l.b16 %v5587
      %v6883 = vunpack.c.h.b16 %v5587
      %v6884 = vunpack.c.l.b16 %v5588
      %v6885 = vunpack.c.h.b16 %v5588
      %v6886 = vunpack.c.l.b16 %v5589
      %v6887 = vunpack.c.l.b16 %v5590
      %v6888 = vunpack.c.h.b16 %v5590
      %v6889 = vunpack.c.l.b16 %v5591
      %v6890 = vunpack.c.h.b16 %v5591
      %v6891 = vunpack.c.l.b16 %v5592
      %v6892 = vunpack.c.h.b16 %v5592
      %v6893 = vunpack.c.l.b16 %v5593
      %v6894 = vunpack.c.l.b16 %v5594
      %v6895 = vunpack.c.h.b16 %v5594
      %v6896 = vunpack.c.l.b16 %v5595
      %v6897 = vunpack.c.h.b16 %v5595
      %v6898 = vunpack.c.l.b16 %v5596
      %v6899 = vunpack.c.h.b16 %v5596
      %v6900 = vunpack.c.l.b16 %v5597
      %v6901 = vunpack.c.l.b16 %v5598
      %v6902 = vunpack.c.h.b16 %v5598
      %v6903 = vunpack.c.l.b16 %v5599
      %v6904 = vunpack.c.h.b16 %v5599
      %v6905 = vunpack.c.l.b16 %v5600
      %v6906 = vunpack.c.h.b16 %v5600
      %v6907 = vunpack.c.l.b16 %v5601
      %v6908 = vunpack.c.l.b16 %v5602
      %v6909 = vunpack.c.h.b16 %v5602
      %v6910 = vunpack.c.l.b16 %v5603
      %v6911 = vunpack.c.h.b16 %v5603
      %v6912 = vunpack.c.l.b16 %v5604
      %v6913 = vunpack.c.h.b16 %v5604
      %v6914 = vunpack.c.l.b16 %v5605
      %v6915 = vunpack.c.l.b16 %v5606
      %v6916 = vunpack.c.h.b16 %v5606
      %v6917 = vunpack.c.l.b16 %v5607
      %v6918 = vunpack.c.h.b16 %v5607
      %v6919 = vunpack.c.l.b16 %v5608
      %v6920 = vunpack.c.h.b16 %v5608
      %v6921 = vunpack.c.l.b16 %v5609
      %v6922 = vunpack.c.l.b16 %v5610
      %v6923 = vunpack.c.h.b16 %v5610
      %v6924 = vunpack.c.l.b16 %v5611
      %v6925 = vunpack.c.h.b16 %v5611
      %v6926 = vunpack.c.l.b16 %v5612
      %v6927 = vunpack.c.h.b16 %v5612
      %v6928 = vunpack.c.l.b16 %v5613
      %v6929 = vunpack.c.l.b16 %v5614
      %v6930 = vunpack.c.h.b16 %v5614
      %v6931 = vunpack.c.l.b16 %v5615
      %v6932 = vunpack.c.h.b16 %v5615
      %v6933 = vunpack.c.l.b16 %v5616
      %v6934 = vunpack.c.h.b16 %v5616
      %v6935 = vunpack.c.l.b16 %v5617
      %v6936 = vunpack.c.l.b16 %v5618
      %v6937 = vunpack.c.h.b16 %v5618
      %v6938 = vunpack.c.l.b16 %v5619
      %v6939 = vunpack.c.h.b16 %v5619
      %v6940 = vunpack.c.l.b16 %v5620
      %v6941 = vunpack.c.h.b16 %v5620
      %v6942 = vunpack.c.l.b16 %v5621
      %v6943 = vunpack.c.l.b16 %v5622
      %v6944 = vunpack.c.h.b16 %v5622
      %v6945 = vunpack.c.l.b16 %v5623
      %v6946 = vunpack.c.h.b16 %v5623
      %v6947 = vunpack.c.l.b16 %v5624
      %v6948 = vunpack.c.h.b16 %v5624
      %v6949 = vunpack.c.l.b16 %v5625
      %v6950 = vunpack.c.l.b16 %v5626
      %v6951 = vunpack.c.h.b16 %v5626
      %v6952 = vunpack.c.l.b16 %v5627
      %v6953 = vunpack.c.h.b16 %v5627
      %v6954 = vunpack.c.l.b16 %v5628
      %v6955 = vunpack.c.h.b16 %v5628
      %v6956 = vunpack.c.l.b16 %v5629
      %v6957 = vunpack.c.l.b16 %v5630
      %v6958 = vunpack.c.h.b16 %v5630
      %v6959 = vunpack.c.l.b16 %v5631
      %v6960 = vunpack.c.h.b16 %v5631
      %v6961 = vunpack.c.l.b16 %v5632
      %v6962 = vunpack.c.h.b16 %v5632
      %v6963 = vunpack.c.l.b16 %v5633
      %v6964 = vunpack.c.l.b16 %v5634
      %v6965 = vunpack.c.h.b16 %v5634
      %v6966 = vunpack.c.l.b16 %v5635
      %v6967 = vunpack.c.h.b16 %v5635
      %v6968 = vunpack.c.l.b16 %v5636
      %v6969 = vunpack.c.h.b16 %v5636
      %v6970 = vunpack.c.l.b16 %v5637
      %v6971 = vunpack.c.l.b16 %v5638
      %v6972 = vunpack.c.h.b16 %v5638
      %v6973 = vunpack.c.l.b16 %v5639
      %v6974 = vunpack.c.h.b16 %v5639
      %v6975 = vunpack.c.l.b16 %v5640
      %v6976 = vunpack.c.h.b16 %v5640
      %v6977 = vunpack.c.l.b16 %v5641
      %v6978 = vunpack.c.l.b16 %v5642
      %v6979 = vunpack.c.h.b16 %v5642
      %v6980 = vunpack.c.l.b16 %v5643
      %v6981 = vunpack.c.h.b16 %v5643
      %v6982 = vunpack.c.l.b16 %v5644
      %v6983 = vunpack.c.h.b16 %v5644
      %v6984 = vunpack.c.l.b16 %v5645
      %v6985 = vunpack.c.l.b16 %v5646
      %v6986 = vunpack.c.h.b16 %v5646
      %v6987 = vunpack.c.l.b16 %v5647
      %v6988 = vunpack.c.h.b16 %v5647
      %v6989 = vunpack.c.l.b16 %v5648
      %v6990 = vunpack.c.h.b16 %v5648
      %v6991 = vunpack.c.l.b16 %v5649
      %v6992 = vunpack.c.l.b16 %v5650
      %v6993 = vunpack.c.h.b16 %v5650
      %v6994 = vunpack.c.l.b16 %v5651
      %v6995 = vunpack.c.h.b16 %v5651
      %v6996 = vunpack.c.l.b16 %v5652
      %v6997 = vunpack.c.h.b16 %v5652
      %v6998 = vunpack.c.l.b16 %v5653
      %v6999 = vunpack.c.l.b16 %v5654
      %v7000 = vunpack.c.h.b16 %v5654
      %v7001 = vunpack.c.l.b16 %v5655
      %v7002 = vunpack.c.h.b16 %v5655
      %v7003 = vunpack.c.l.b16 %v5656
      %v7004 = vunpack.c.h.b16 %v5656
      %v7005 = vunpack.c.l.b16 %v5657
      %v7006 = vunpack.c.l.b16 %v5658
      %v7007 = vunpack.c.h.b16 %v5658
      %v7008 = vunpack.c.l.b16 %v5659
      %v7009 = vunpack.c.h.b16 %v5659
      %v7010 = vunpack.c.l.b16 %v5660
      %v7011 = vunpack.c.h.b16 %v5660
      %v7012 = vunpack.c.l.b16 %v5661
      %v7013 = vunpack.c.l.b16 %v5662
      %v7014 = vunpack.c.h.b16 %v5662
      %v7015 = vunpack.c.l.b16 %v5663
      %v7016 = vunpack.c.h.b16 %v5663
      %v7017 = vunpack.c.l.b16 %v5664
      %v7018 = vunpack.c.h.b16 %v5664
      %v7019 = vunpack.c.l.b16 %v5665
      %v7020 = vunpack.c.l.b16 %v5666
      %v7021 = vunpack.c.h.b16 %v5666
      %v7022 = vunpack.c.l.b16 %v5667
      %v7023 = vunpack.c.h.b16 %v5667
      %v7024 = vunpack.c.l.b16 %v5668
      %v7025 = vunpack.c.h.b16 %v5668
      %v7026 = vunpack.c.l.b16 %v5669
      %v7027 = vunpack.c.l.b16 %v5670
      %v7028 = vunpack.c.h.b16 %v5670
      %v7029 = vunpack.c.l.b16 %v5671
      %v7030 = vunpack.c.h.b16 %v5671
      %v7031 = vunpack.c.l.b16 %v5672
      %v7032 = vunpack.c.h.b16 %v5672
      %v7033 = vunpack.c.l.b16 %v5673
      %v7034 = vunpack.c.l.b16 %v5674
      %v7035 = vunpack.c.h.b16 %v5674
      %v7036 = vunpack.c.l.b16 %v5675
      %v7037 = vunpack.c.h.b16 %v5675
      %v7038 = vunpack.c.l.b16 %v5676
      %v7039 = vunpack.c.h.b16 %v5676
      %v7040 = vunpack.c.l.b16 %v5677
      %v7041 = vunpack.c.l.b16 %v5678
      %v7042 = vunpack.c.h.b16 %v5678
      %v7043 = vunpack.c.l.b16 %v5679
      %v7044 = vunpack.c.h.b16 %v5679
      %v7045 = vunpack.c.l.b16 %v5680
      %v7046 = vunpack.c.h.b16 %v5680
      %v7047 = vunpack.c.l.b16 %v5681
      %v7048 = vunpack.c.l.b16 %v5682
      %v7049 = vunpack.c.h.b16 %v5682
      %v7050 = vunpack.c.l.b16 %v5683
      %v7051 = vunpack.c.h.b16 %v5683
      %v7052 = vunpack.c.l.b16 %v5684
      %v7053 = vunpack.c.h.b16 %v5684
      %v7054 = vunpack.c.l.b16 %v5685
      %v7055 = vunpack.c.l.b16 %v5686
      %v7056 = vunpack.c.h.b16 %v5686
      %v7057 = vunpack.c.l.b16 %v5687
      %v7058 = vunpack.c.h.b16 %v5687
      %v7059 = vunpack.c.l.b16 %v5688
      %v7060 = vunpack.c.h.b16 %v5688
      %v7061 = vunpack.c.l.b16 %v5689
      %v7062 = vunpack.c.l.b16 %v5690
      %v7063 = vunpack.c.h.b16 %v5690
      %v7064 = vunpack.c.l.b16 %v5691
      %v7065 = vunpack.c.h.b16 %v5691
      %v7066 = vunpack.c.l.b16 %v5692
      %v7067 = vunpack.c.h.b16 %v5692
      %v7068 = vunpack.c.l.b16 %v5693
      %v7069 = vunpack.c.l.b16 %v5694
      %v7070 = vunpack.c.h.b16 %v5694
      %v7071 = vunpack.c.l.b16 %v5695
      %v7072 = vunpack.c.h.b16 %v5695
      %v7073 = vunpack.c.l.b16 %v5696
      %v7074 = vunpack.c.h.b16 %v5696
      %v7075 = vunpack.c.l.b16 %v5697
      %v7076 = vunpack.c.l.b16 %v5698
      %v7077 = vunpack.c.h.b16 %v5698
      %v7078 = vunpack.c.l.b16 %v5699
      %v7079 = vunpack.c.h.b16 %v5699
      %v7080 = vunpack.c.l.b16 %v5700
      %v7081 = vunpack.c.h.b16 %v5700
      %v7082 = vunpack.c.l.b16 %v5701
      %v7083 = vunpack.c.l.b16 %v5702
      %v7084 = vunpack.c.h.b16 %v5702
      %v7085 = vunpack.c.l.b16 %v5703
      %v7086 = vunpack.c.h.b16 %v5703
      %v7087 = vunpack.c.l.b16 %v5704
      %v7088 = vunpack.c.h.b16 %v5704
      %v7089 = vunpack.c.l.b16 %v5705
      %v7090 = vunpack.c.l.b16 %v5706
      %v7091 = vunpack.c.h.b16 %v5706
      %v7092 = vunpack.c.l.b16 %v5707
      %v7093 = vunpack.c.h.b16 %v5707
      %v7094 = vunpack.c.l.b16 %v5708
      %v7095 = vunpack.c.h.b16 %v5708
      %v7096 = vunpack.c.l.b16 %v5709
      %v7097 = vunpack.c.l.b16 %v5710
      %v7098 = vunpack.c.h.b16 %v5710
      %v7099 = vunpack.c.l.b16 %v5711
      %v7100 = vunpack.c.h.b16 %v5711
      %v7101 = vunpack.c.l.b16 %v5712
      %v7102 = vunpack.c.h.b16 %v5712
      %v7103 = vunpack.c.l.b16 %v5713
      %v7104 = vunpack.c.l.b16 %v5714
      %v7105 = vunpack.c.h.b16 %v5714
      %v7106 = vunpack.c.l.b16 %v5715
      %v7107 = vunpack.c.h.b16 %v5715
      %v7108 = vunpack.c.l.b16 %v5716
      %v7109 = vunpack.c.h.b16 %v5716
      %v7110 = vunpack.c.l.b16 %v5717
      %v7111 = vunpack.c.l.b16 %v5718
      %v7112 = vunpack.c.h.b16 %v5718
      %v7113 = vunpack.c.l.b16 %v5719
      %v7114 = vunpack.c.h.b16 %v5719
      %v7115 = vunpack.c.l.b16 %v5720
      %v7116 = vunpack.c.h.b16 %v5720
      %v7117 = vunpack.c.l.b16 %v5721
      %v7118 = vunpack.c.l.b16 %v5722
      %v7119 = vunpack.c.h.b16 %v5722
      %v7120 = vunpack.c.l.b16 %v5723
      %v7121 = vunpack.c.h.b16 %v5723
      %v7122 = vunpack.c.l.b16 %v5724
      %v7123 = vunpack.c.h.b16 %v5724
      %v7124 = vunpack.c.l.b16 %v5725
      %v7125 = vunpack.c.l.b16 %v5726
      %v7126 = vunpack.c.h.b16 %v5726
      %v7127 = vunpack.c.l.b16 %v5727
      %v7128 = vunpack.c.h.b16 %v5727
      %v7129 = vunpack.c.l.b16 %v5728
      %v7130 = vunpack.c.h.b16 %v5728
      %v7131 = vunpack.c.l.b16 %v5729
      %v7132 = vunpack.c.l.b16 %v5730
      %v7133 = vunpack.c.h.b16 %v5730
      %v7134 = vunpack.c.l.b16 %v5731
      %v7135 = vunpack.c.h.b16 %v5731
      %v7136 = vunpack.c.l.b16 %v5732
      %v7137 = vunpack.c.h.b16 %v5732
      %v7138 = vunpack.c.l.b16 %v5733
      %v7139 = vunpack.c.l.b16 %v5734
      %v7140 = vunpack.c.h.b16 %v5734
      %v7141 = vunpack.c.l.b16 %v5735
      %v7142 = vunpack.c.h.b16 %v5735
      %v7143 = vunpack.c.l.b16 %v5736
      %v7144 = vunpack.c.h.b16 %v5736
      %v7145 = vunpack.c.l.b16 %v5737
      %v7146 = vunpack.c.l.b16 %v5738
      %v7147 = vunpack.c.h.b16 %v5738
      %v7148 = vunpack.c.l.b16 %v5739
      %v7149 = vunpack.c.h.b16 %v5739
      %v7150 = vunpack.c.l.b16 %v5740
      %v7151 = vunpack.c.h.b16 %v5740
      %v7152 = vunpack.c.l.b16 %v5741
      %v7153 = vunpack.c.l.b16 %v5742
      %v7154 = vunpack.c.h.b16 %v5742
      %v7155 = vunpack.c.l.b16 %v5743
      %v7156 = vunpack.c.h.b16 %v5743
      %v7157 = vunpack.c.l.b16 %v5744
      %v7158 = vunpack.c.h.b16 %v5744
      %v7159 = vunpack.c.l.b16 %v5745
      %v7160 = vunpack.c.l.b16 %v5746
      %v7161 = vunpack.c.h.b16 %v5746
      %v7162 = vunpack.c.l.b16 %v5747
      %v7163 = vunpack.c.h.b16 %v5747
      %v7164 = vunpack.c.l.b16 %v5748
      %v7165 = vunpack.c.h.b16 %v5748
      %v7166 = vunpack.c.l.b16 %v5749
      %v7167 = vunpack.c.l.b16 %v5750
      %v7168 = vunpack.c.h.b16 %v5750
      %v7169 = vunpack.c.l.b16 %v5751
      %v7170 = vunpack.c.h.b16 %v5751
      %v7171 = vunpack.c.l.b16 %v5752
      %v7172 = vunpack.c.h.b16 %v5752
      %v7173 = vunpack.c.l.b16 %v5753
      %v7174 = vunpack.c.l.b16 %v5754
      %v7175 = vunpack.c.h.b16 %v5754
      %v7176 = vunpack.c.l.b16 %v5755
      %v7177 = vunpack.c.h.b16 %v5755
      %v7178 = vunpack.c.l.b16 %v5756
      %v7179 = vunpack.c.h.b16 %v5756
      %v7180 = vunpack.c.l.b16 %v5757
      %v7181 = vunpack.c.l.b16 %v5758
      %v7182 = vunpack.c.h.b16 %v5758
      %v7183 = vunpack.c.l.b16 %v5759
      %v7184 = vunpack.c.h.b16 %v5759
      %v7185 = vunpack.c.l.b16 %v5760
      %v7186 = vunpack.c.h.b16 %v5760
      %v7187 = vunpack.c.l.b16 %v5761
      %v7188 = vunpack.c.l.b16 %v5762
      %v7189 = vunpack.c.h.b16 %v5762
      %v7190 = vunpack.c.l.b16 %v5763
      %v7191 = vunpack.c.h.b16 %v5763
      %v7192 = vunpack.c.l.b16 %v5764
      %v7193 = vunpack.c.h.b16 %v5764
      %v7194 = vunpack.c.l.b16 %v5765
      %v7195 = vunpack.c.l.b16 %v5766
      %v7196 = vunpack.c.h.b16 %v5766
      %v7197 = vunpack.c.l.b16 %v5767
      %v7198 = vunpack.c.h.b16 %v5767
      %v7199 = vunpack.c.l.b16 %v5768
      %v7200 = vunpack.c.h.b16 %v5768
      %v7201 = vunpack.c.l.b16 %v5769
      %v7202 = vunpack.c.l.b16 %v5770
      %v7203 = vunpack.c.h.b16 %v5770
      %v7204 = vunpack.c.l.b16 %v5771
      %v7205 = vunpack.c.h.b16 %v5771
      %v7206 = vunpack.c.l.b16 %v5772
      %v7207 = vunpack.c.h.b16 %v5772
      %v7208 = vunpack.c.l.b16 %v5773
      %v7209 = vunpack.c.l.b16 %v5774
      %v7210 = vunpack.c.h.b16 %v5774
      %v7211 = vunpack.c.l.b16 %v5775
      %v7212 = vunpack.c.h.b16 %v5775
      %v7213 = vunpack.c.l.b16 %v5776
      %v7214 = vunpack.c.h.b16 %v5776
      %v7215 = vunpack.c.l.b16 %v5777
      %v7216 = vunpack.c.l.b16 %v5778
      %v7217 = vunpack.c.h.b16 %v5778
      %v7218 = vunpack.c.l.b16 %v5779
      %v7219 = vunpack.c.h.b16 %v5779
      %v7220 = vunpack.c.l.b16 %v5780
      %v7221 = vunpack.c.h.b16 %v5780
      %v7222 = vunpack.c.l.b16 %v5781
      %v7223 = vunpack.c.l.b16 %v5782
      %v7224 = vunpack.c.h.b16 %v5782
      %v7225 = vunpack.c.l.b16 %v5783
      %v7226 = vunpack.c.h.b16 %v5783
      %v7227 = vunpack.c.l.b16 %v5784
      %v7228 = vunpack.c.h.b16 %v5784
      %v7229 = vunpack.c.l.b16 %v5785
      %v7230 = vpack.c.b16 %v6341, %v6334
      %v7231 = vpack.c.b16 %v6342, %v6335
      %v7232 = vpack.c.b16 %v6343, %v6336
      %v7233 = vpack.c.b16 %v6344, %v6337
      %v7234 = vpack.c.b16 %v6345, %v6338
      %v7235 = vpack.c.b16 %v6346, %v6339
      %v7236 = vpack.c.b16 %v6347, %v6340
      %v7237 = vpack.c.b16 %v6355, %v6348
      %v7238 = vpack.c.b16 %v6356, %v6349
      %v7239 = vpack.c.b16 %v6357, %v6350
      %v7240 = vpack.c.b16 %v6358, %v6351
      %v7241 = vpack.c.b16 %v6359, %v6352
      %v7242 = vpack.c.b16 %v6360, %v6353
      %v7243 = vpack.c.b16 %v6361, %v6354
      %v7244 = vpack.c.b16 %v6369, %v6362
      %v7245 = vpack.c.b16 %v6370, %v6363
      %v7246 = vpack.c.b16 %v6371, %v6364
      %v7247 = vpack.c.b16 %v6372, %v6365
      %v7248 = vpack.c.b16 %v6373, %v6366
      %v7249 = vpack.c.b16 %v6374, %v6367
      %v7250 = vpack.c.b16 %v6375, %v6368
      %v7251 = vpack.c.b16 %v6383, %v6376
      %v7252 = vpack.c.b16 %v6384, %v6377
      %v7253 = vpack.c.b16 %v6385, %v6378
      %v7254 = vpack.c.b16 %v6386, %v6379
      %v7255 = vpack.c.b16 %v6387, %v6380
      %v7256 = vpack.c.b16 %v6388, %v6381
      %v7257 = vpack.c.b16 %v6389, %v6382
      %v7258 = vpack.c.b16 %v6397, %v6390
      %v7259 = vpack.c.b16 %v6398, %v6391
      %v7260 = vpack.c.b16 %v6399, %v6392
      %v7261 = vpack.c.b16 %v6400, %v6393
      %v7262 = vpack.c.b16 %v6401, %v6394
      %v7263 = vpack.c.b16 %v6402, %v6395
      %v7264 = vpack.c.b16 %v6403, %v6396
      %v7265 = vpack.c.b16 %v6411, %v6404
      %v7266 = vpack.c.b16 %v6412, %v6405
      %v7267 = vpack.c.b16 %v6413, %v6406
      %v7268 = vpack.c.b16 %v6414, %v6407
      %v7269 = vpack.c.b16 %v6415, %v6408
      %v7270 = vpack.c.b16 %v6416, %v6409
      %v7271 = vpack.c.b16 %v6417, %v6410
      %v7272 = vpack.c.b16 %v6425, %v6418
      %v7273 = vpack.c.b16 %v6426, %v6419
      %v7274 = vpack.c.b16 %v6427, %v6420
      %v7275 = vpack.c.b16 %v6428, %v6421
      %v7276 = vpack.c.b16 %v6429, %v6422
      %v7277 = vpack.c.b16 %v6430, %v6423
      %v7278 = vpack.c.b16 %v6431, %v6424
      %v7279 = vpack.c.b16 %v6439, %v6432
      %v7280 = vpack.c.b16 %v6440, %v6433
      %v7281 = vpack.c.b16 %v6441, %v6434
      %v7282 = vpack.c.b16 %v6442, %v6435
      %v7283 = vpack.c.b16 %v6443, %v6436
      %v7284 = vpack.c.b16 %v6444, %v6437
      %v7285 = vpack.c.b16 %v6445, %v6438
      %v7286 = vpack.c.b16 %v6453, %v6446
      %v7287 = vpack.c.b16 %v6454, %v6447
      %v7288 = vpack.c.b16 %v6455, %v6448
      %v7289 = vpack.c.b16 %v6456, %v6449
      %v7290 = vpack.c.b16 %v6457, %v6450
      %v7291 = vpack.c.b16 %v6458, %v6451
      %v7292 = vpack.c.b16 %v6459, %v6452
      %v7293 = vpack.c.b16 %v6467, %v6460
      %v7294 = vpack.c.b16 %v6468, %v6461
      %v7295 = vpack.c.b16 %v6469, %v6462
      %v7296 = vpack.c.b16 %v6470, %v6463
      %v7297 = vpack.c.b16 %v6471, %v6464
      %v7298 = vpack.c.b16 %v6472, %v6465
      %v7299 = vpack.c.b16 %v6473, %v6466
      %v7300 = vpack.c.b16 %v6481, %v6474
      %v7301 = vpack.c.b16 %v6482, %v6475
      %v7302 = vpack.c.b16 %v6483, %v6476
      %v7303 = vpack.c.b16 %v6484, %v6477
      %v7304 = vpack.c.b16 %v6485, %v6478
      %v7305 = vpack.c.b16 %v6486, %v6479
      %v7306 = vpack.c.b16 %v6487, %v6480
      %v7307 = vpack.c.b16 %v6495, %v6488
      %v7308 = vpack.c.b16 %v6496, %v6489
      %v7309 = vpack.c.b16 %v6497, %v6490
      %v7310 = vpack.c.b16 %v6498, %v6491
      %v7311 = vpack.c.b16 %v6499, %v6492
      %v7312 = vpack.c.b16 %v6500, %v6493
      %v7313 = vpack.c.b16 %v6501, %v6494
      %v7314 = vpack.c.b16 %v6509, %v6502
      %v7315 = vpack.c.b16 %v6510, %v6503
      %v7316 = vpack.c.b16 %v6511, %v6504
      %v7317 = vpack.c.b16 %v6512, %v6505
      %v7318 = vpack.c.b16 %v6513, %v6506
      %v7319 = vpack.c.b16 %v6514, %v6507
      %v7320 = vpack.c.b16 %v6515, %v6508
      %v7321 = vpack.c.b16 %v6523, %v6516
      %v7322 = vpack.c.b16 %v6524, %v6517
      %v7323 = vpack.c.b16 %v6525, %v6518
      %v7324 = vpack.c.b16 %v6526, %v6519
      %v7325 = vpack.c.b16 %v6527, %v6520
      %v7326 = vpack.c.b16 %v6528, %v6521
      %v7327 = vpack.c.b16 %v6529, %v6522
      %v7328 = vpack.c.b16 %v6537, %v6530
      %v7329 = vpack.c.b16 %v6538, %v6531
      %v7330 = vpack.c.b16 %v6539, %v6532
      %v7331 = vpack.c.b16 %v6540, %v6533
      %v7332 = vpack.c.b16 %v6541, %v6534
      %v7333 = vpack.c.b16 %v6542, %v6535
      %v7334 = vpack.c.b16 %v6543, %v6536
      %v7335 = vpack.c.b16 %v6551, %v6544
      %v7336 = vpack.c.b16 %v6552, %v6545
      %v7337 = vpack.c.b16 %v6553, %v6546
      %v7338 = vpack.c.b16 %v6554, %v6547
      %v7339 = vpack.c.b16 %v6555, %v6548
      %v7340 = vpack.c.b16 %v6556, %v6549
      %v7341 = vpack.c.b16 %v6557, %v6550
      %v7342 = vpack.c.b16 %v6565, %v6558
      %v7343 = vpack.c.b16 %v6566, %v6559
      %v7344 = vpack.c.b16 %v6567, %v6560
      %v7345 = vpack.c.b16 %v6568, %v6561
      %v7346 = vpack.c.b16 %v6569, %v6562
      %v7347 = vpack.c.b16 %v6570, %v6563
      %v7348 = vpack.c.b16 %v6571, %v6564
      %v7349 = vpack.c.b16 %v6579, %v6572
      %v7350 = vpack.c.b16 %v6580, %v6573
      %v7351 = vpack.c.b16 %v6581, %v6574
      %v7352 = vpack.c.b16 %v6582, %v6575
      %v7353 = vpack.c.b16 %v6583, %v6576
      %v7354 = vpack.c.b16 %v6584, %v6577
      %v7355 = vpack.c.b16 %v6585, %v6578
      %v7356 = vpack.c.b16 %v6593, %v6586
      %v7357 = vpack.c.b16 %v6594, %v6587
      %v7358 = vpack.c.b16 %v6595, %v6588
      %v7359 = vpack.c.b16 %v6596, %v6589
      %v7360 = vpack.c.b16 %v6597, %v6590
      %v7361 = vpack.c.b16 %v6598, %v6591
      %v7362 = vpack.c.b16 %v6599, %v6592
      %v7363 = vpack.c.b16 %v6607, %v6600
      %v7364 = vpack.c.b16 %v6608, %v6601
      %v7365 = vpack.c.b16 %v6609, %v6602
      %v7366 = vpack.c.b16 %v6610, %v6603
      %v7367 = vpack.c.b16 %v6611, %v6604
      %v7368 = vpack.c.b16 %v6612, %v6605
      %v7369 = vpack.c.b16 %v6613, %v6606
      %v7370 = vpack.c.b16 %v6621, %v6614
      %v7371 = vpack.c.b16 %v6622, %v6615
      %v7372 = vpack.c.b16 %v6623, %v6616
      %v7373 = vpack.c.b16 %v6624, %v6617
      %v7374 = vpack.c.b16 %v6625, %v6618
      %v7375 = vpack.c.b16 %v6626, %v6619
      %v7376 = vpack.c.b16 %v6627, %v6620
      %v7377 = vpack.c.b16 %v6635, %v6628
      %v7378 = vpack.c.b16 %v6636, %v6629
      %v7379 = vpack.c.b16 %v6637, %v6630
      %v7380 = vpack.c.b16 %v6638, %v6631
      %v7381 = vpack.c.b16 %v6639, %v6632
      %v7382 = vpack.c.b16 %v6640, %v6633
      %v7383 = vpack.c.b16 %v6641, %v6634
      %v7384 = vpack.c.b16 %v6649, %v6642
      %v7385 = vpack.c.b16 %v6650, %v6643
      %v7386 = vpack.c.b16 %v6651, %v6644
      %v7387 = vpack.c.b16 %v6652, %v6645
      %v7388 = vpack.c.b16 %v6653, %v6646
      %v7389 = vpack.c.b16 %v6654, %v6647
      %v7390 = vpack.c.b16 %v6655, %v6648
      %v7391 = vpack.c.b16 %v6663, %v6656
      %v7392 = vpack.c.b16 %v6664, %v6657
      %v7393 = vpack.c.b16 %v6665, %v6658
      %v7394 = vpack.c.b16 %v6666, %v6659
      %v7395 = vpack.c.b16 %v6667, %v6660
      %v7396 = vpack.c.b16 %v6668, %v6661
      %v7397 = vpack.c.b16 %v6669, %v6662
      %v7398 = vpack.c.b16 %v6677, %v6670
      %v7399 = vpack.c.b16 %v6678, %v6671
      %v7400 = vpack.c.b16 %v6679, %v6672
      %v7401 = vpack.c.b16 %v6680, %v6673
      %v7402 = vpack.c.b16 %v6681, %v6674
      %v7403 = vpack.c.b16 %v6682, %v6675
      %v7404 = vpack.c.b16 %v6683, %v6676
      %v7405 = vpack.c.b16 %v6691, %v6684
      %v7406 = vpack.c.b16 %v6692, %v6685
      %v7407 = vpack.c.b16 %v6693, %v6686
      %v7408 = vpack.c.b16 %v6694, %v6687
      %v7409 = vpack.c.b16 %v6695, %v6688
      %v7410 = vpack.c.b16 %v6696, %v6689
      %v7411 = vpack.c.b16 %v6697, %v6690
      %v7412 = vpack.c.b16 %v6705, %v6698
      %v7413 = vpack.c.b16 %v6706, %v6699
      %v7414 = vpack.c.b16 %v6707, %v6700
      %v7415 = vpack.c.b16 %v6708, %v6701
      %v7416 = vpack.c.b16 %v6709, %v6702
      %v7417 = vpack.c.b16 %v6710, %v6703
      %v7418 = vpack.c.b16 %v6711, %v6704
      %v7419 = vpack.c.b16 %v6719, %v6712
      %v7420 = vpack.c.b16 %v6720, %v6713
      %v7421 = vpack.c.b16 %v6721, %v6714
      %v7422 = vpack.c.b16 %v6722, %v6715
      %v7423 = vpack.c.b16 %v6723, %v6716
      %v7424 = vpack.c.b16 %v6724, %v6717
      %v7425 = vpack.c.b16 %v6725, %v6718
      %v7426 = vpack.c.b16 %v6733, %v6726
      %v7427 = vpack.c.b16 %v6734, %v6727
      %v7428 = vpack.c.b16 %v6735, %v6728
      %v7429 = vpack.c.b16 %v6736, %v6729
      %v7430 = vpack.c.b16 %v6737, %v6730
      %v7431 = vpack.c.b16 %v6738, %v6731
      %v7432 = vpack.c.b16 %v6739, %v6732
      %v7433 = vpack.c.b16 %v6747, %v6740
      %v7434 = vpack.c.b16 %v6748, %v6741
      %v7435 = vpack.c.b16 %v6749, %v6742
      %v7436 = vpack.c.b16 %v6750, %v6743
      %v7437 = vpack.c.b16 %v6751, %v6744
      %v7438 = vpack.c.b16 %v6752, %v6745
      %v7439 = vpack.c.b16 %v6753, %v6746
      %v7440 = vpack.c.b16 %v6761, %v6754
      %v7441 = vpack.c.b16 %v6762, %v6755
      %v7442 = vpack.c.b16 %v6763, %v6756
      %v7443 = vpack.c.b16 %v6764, %v6757
      %v7444 = vpack.c.b16 %v6765, %v6758
      %v7445 = vpack.c.b16 %v6766, %v6759
      %v7446 = vpack.c.b16 %v6767, %v6760
      %v7447 = vpack.c.b16 %v6775, %v6768
      %v7448 = vpack.c.b16 %v6776, %v6769
      %v7449 = vpack.c.b16 %v6777, %v6770
      %v7450 = vpack.c.b16 %v6778, %v6771
      %v7451 = vpack.c.b16 %v6779, %v6772
      %v7452 = vpack.c.b16 %v6780, %v6773
      %v7453 = vpack.c.b16 %v6781, %v6774
      %v7454 = vpack.c.b16 %v6789, %v6782
      %v7455 = vpack.c.b16 %v6790, %v6783
      %v7456 = vpack.c.b16 %v6791, %v6784
      %v7457 = vpack.c.b16 %v6792, %v6785
      %v7458 = vpack.c.b16 %v6793, %v6786
      %v7459 = vpack.c.b16 %v6794, %v6787
      %v7460 = vpack.c.b16 %v6795, %v6788
      %v7461 = vpack.c.b16 %v6803, %v6796
      %v7462 = vpack.c.b16 %v6804, %v6797
      %v7463 = vpack.c.b16 %v6805, %v6798
      %v7464 = vpack.c.b16 %v6806, %v6799
      %v7465 = vpack.c.b16 %v6807, %v6800
      %v7466 = vpack.c.b16 %v6808, %v6801
      %v7467 = vpack.c.b16 %v6809, %v6802
      %v7468 = vpack.c.b16 %v6817, %v6810
      %v7469 = vpack.c.b16 %v6818, %v6811
      %v7470 = vpack.c.b16 %v6819, %v6812
      %v7471 = vpack.c.b16 %v6820, %v6813
      %v7472 = vpack.c.b16 %v6821, %v6814
      %v7473 = vpack.c.b16 %v6822, %v6815
      %v7474 = vpack.c.b16 %v6823, %v6816
      %v7475 = vpack.c.b16 %v6831, %v6824
      %v7476 = vpack.c.b16 %v6832, %v6825
      %v7477 = vpack.c.b16 %v6833, %v6826
      %v7478 = vpack.c.b16 %v6834, %v6827
      %v7479 = vpack.c.b16 %v6835, %v6828
      %v7480 = vpack.c.b16 %v6836, %v6829
      %v7481 = vpack.c.b16 %v6837, %v6830
      %v7482 = vpack.c.b16 %v6845, %v6838
      %v7483 = vpack.c.b16 %v6846, %v6839
      %v7484 = vpack.c.b16 %v6847, %v6840
      %v7485 = vpack.c.b16 %v6848, %v6841
      %v7486 = vpack.c.b16 %v6849, %v6842
      %v7487 = vpack.c.b16 %v6850, %v6843
      %v7488 = vpack.c.b16 %v6851, %v6844
      %v7489 = vpack.c.b16 %v6859, %v6852
      %v7490 = vpack.c.b16 %v6860, %v6853
      %v7491 = vpack.c.b16 %v6861, %v6854
      %v7492 = vpack.c.b16 %v6862, %v6855
      %v7493 = vpack.c.b16 %v6863, %v6856
      %v7494 = vpack.c.b16 %v6864, %v6857
      %v7495 = vpack.c.b16 %v6865, %v6858
      %v7496 = vpack.c.b16 %v6873, %v6866
      %v7497 = vpack.c.b16 %v6874, %v6867
      %v7498 = vpack.c.b16 %v6875, %v6868
      %v7499 = vpack.c.b16 %v6876, %v6869
      %v7500 = vpack.c.b16 %v6877, %v6870
      %v7501 = vpack.c.b16 %v6878, %v6871
      %v7502 = vpack.c.b16 %v6879, %v6872
      %v7503 = vpack.c.b16 %v6887, %v6880
      %v7504 = vpack.c.b16 %v6888, %v6881
      %v7505 = vpack.c.b16 %v6889, %v6882
      %v7506 = vpack.c.b16 %v6890, %v6883
      %v7507 = vpack.c.b16 %v6891, %v6884
      %v7508 = vpack.c.b16 %v6892, %v6885
      %v7509 = vpack.c.b16 %v6893, %v6886
      %v7510 = vpack.c.b16 %v6901, %v6894
      %v7511 = vpack.c.b16 %v6902, %v6895
      %v7512 = vpack.c.b16 %v6903, %v6896
      %v7513 = vpack.c.b16 %v6904, %v6897
      %v7514 = vpack.c.b16 %v6905, %v6898
      %v7515 = vpack.c.b16 %v6906, %v6899
      %v7516 = vpack.c.b16 %v6907, %v6900
      %v7517 = vpack.c.b16 %v6915, %v6908
      %v7518 = vpack.c.b16 %v6916, %v6909
      %v7519 = vpack.c.b16 %v6917, %v6910
      %v7520 = vpack.c.b16 %v6918, %v6911
      %v7521 = vpack.c.b16 %v6919, %v6912
      %v7522 = vpack.c.b16 %v6920, %v6913
      %v7523 = vpack.c.b16 %v6921, %v6914
      %v7524 = vpack.c.b16 %v6929, %v6922
      %v7525 = vpack.c.b16 %v6930, %v6923
      %v7526 = vpack.c.b16 %v6931, %v6924
      %v7527 = vpack.c.b16 %v6932, %v6925
      %v7528 = vpack.c.b16 %v6933, %v6926
      %v7529 = vpack.c.b16 %v6934, %v6927
      %v7530 = vpack.c.b16 %v6935, %v6928
      %v7531 = vpack.c.b16 %v6943, %v6936
      %v7532 = vpack.c.b16 %v6944, %v6937
      %v7533 = vpack.c.b16 %v6945, %v6938
      %v7534 = vpack.c.b16 %v6946, %v6939
      %v7535 = vpack.c.b16 %v6947, %v6940
      %v7536 = vpack.c.b16 %v6948, %v6941
      %v7537 = vpack.c.b16 %v6949, %v6942
      %v7538 = vpack.c.b16 %v6957, %v6950
      %v7539 = vpack.c.b16 %v6958, %v6951
      %v7540 = vpack.c.b16 %v6959, %v6952
      %v7541 = vpack.c.b16 %v6960, %v6953
      %v7542 = vpack.c.b16 %v6961, %v6954
      %v7543 = vpack.c.b16 %v6962, %v6955
      %v7544 = vpack.c.b16 %v6963, %v6956
      %v7545 = vpack.c.b16 %v6971, %v6964
      %v7546 = vpack.c.b16 %v6972, %v6965
      %v7547 = vpack.c.b16 %v6973, %v6966
      %v7548 = vpack.c.b16 %v6974, %v6967
      %v7549 = vpack.c.b16 %v6975, %v6968
      %v7550 = vpack.c.b16 %v6976, %v6969
      %v7551 = vpack.c.b16 %v6977, %v6970
      %v7552 = vpack.c.b16 %v6985, %v6978
      %v7553 = vpack.c.b16 %v6986, %v6979
      %v7554 = vpack.c.b16 %v6987, %v6980
      %v7555 = vpack.c.b16 %v6988, %v6981
      %v7556 = vpack.c.b16 %v6989, %v6982
      %v7557 = vpack.c.b16 %v6990, %v6983
      %v7558 = vpack.c.b16 %v6991, %v6984
      %v7559 = vpack.c.b16 %v6999, %v6992
      %v7560 = vpack.c.b16 %v7000, %v6993
      %v7561 = vpack.c.b16 %v7001, %v6994
      %v7562 = vpack.c.b16 %v7002, %v6995
      %v7563 = vpack.c.b16 %v7003, %v6996
      %v7564 = vpack.c.b16 %v7004, %v6997
      %v7565 = vpack.c.b16 %v7005, %v6998
      %v7566 = vpack.c.b16 %v7013, %v7006
      %v7567 = vpack.c.b16 %v7014, %v7007
      %v7568 = vpack.c.b16 %v7015, %v7008
      %v7569 = vpack.c.b16 %v7016, %v7009
      %v7570 = vpack.c.b16 %v7017, %v7010
      %v7571 = vpack.c.b16 %v7018, %v7011
      %v7572 = vpack.c.b16 %v7019, %v7012
      %v7573 = vpack.c.b16 %v7027, %v7020
      %v7574 = vpack.c.b16 %v7028, %v7021
      %v7575 = vpack.c.b16 %v7029, %v7022
      %v7576 = vpack.c.b16 %v7030, %v7023
      %v7577 = vpack.c.b16 %v7031, %v7024
      %v7578 = vpack.c.b16 %v7032, %v7025
      %v7579 = vpack.c.b16 %v7033, %v7026
      %v7580 = vpack.c.b16 %v7041, %v7034
      %v7581 = vpack.c.b16 %v7042, %v7035
      %v7582 = vpack.c.b16 %v7043, %v7036
      %v7583 = vpack.c.b16 %v7044, %v7037
      %v7584 = vpack.c.b16 %v7045, %v7038
      %v7585 = vpack.c.b16 %v7046, %v7039
      %v7586 = vpack.c.b16 %v7047, %v7040
      %v7587 = vpack.c.b16 %v7055, %v7048
      %v7588 = vpack.c.b16 %v7056, %v7049
      %v7589 = vpack.c.b16 %v7057, %v7050
      %v7590 = vpack.c.b16 %v7058, %v7051
      %v7591 = vpack.c.b16 %v7059, %v7052
      %v7592 = vpack.c.b16 %v7060, %v7053
      %v7593 = vpack.c.b16 %v7061, %v7054
      %v7594 = vpack.c.b16 %v7069, %v7062
      %v7595 = vpack.c.b16 %v7070, %v7063
      %v7596 = vpack.c.b16 %v7071, %v7064
      %v7597 = vpack.c.b16 %v7072, %v7065
      %v7598 = vpack.c.b16 %v7073, %v7066
      %v7599 = vpack.c.b16 %v7074, %v7067
      %v7600 = vpack.c.b16 %v7075, %v7068
      %v7601 = vpack.c.b16 %v7083, %v7076
      %v7602 = vpack.c.b16 %v7084, %v7077
      %v7603 = vpack.c.b16 %v7085, %v7078
      %v7604 = vpack.c.b16 %v7086, %v7079
      %v7605 = vpack.c.b16 %v7087, %v7080
      %v7606 = vpack.c.b16 %v7088, %v7081
      %v7607 = vpack.c.b16 %v7089, %v7082
      %v7608 = vpack.c.b16 %v7097, %v7090
      %v7609 = vpack.c.b16 %v7098, %v7091
      %v7610 = vpack.c.b16 %v7099, %v7092
      %v7611 = vpack.c.b16 %v7100, %v7093
      %v7612 = vpack.c.b16 %v7101, %v7094
      %v7613 = vpack.c.b16 %v7102, %v7095
      %v7614 = vpack.c.b16 %v7103, %v7096
      %v7615 = vpack.c.b16 %v7111, %v7104
      %v7616 = vpack.c.b16 %v7112, %v7105
      %v7617 = vpack.c.b16 %v7113, %v7106
      %v7618 = vpack.c.b16 %v7114, %v7107
      %v7619 = vpack.c.b16 %v7115, %v7108
      %v7620 = vpack.c.b16 %v7116, %v7109
      %v7621 = vpack.c.b16 %v7117, %v7110
      %v7622 = vpack.c.b16 %v7125, %v7118
      %v7623 = vpack.c.b16 %v7126, %v7119
      %v7624 = vpack.c.b16 %v7127, %v7120
      %v7625 = vpack.c.b16 %v7128, %v7121
      %v7626 = vpack.c.b16 %v7129, %v7122
      %v7627 = vpack.c.b16 %v7130, %v7123
      %v7628 = vpack.c.b16 %v7131, %v7124
      %v7629 = vpack.c.b16 %v7139, %v7132
      %v7630 = vpack.c.b16 %v7140, %v7133
      %v7631 = vpack.c.b16 %v7141, %v7134
      %v7632 = vpack.c.b16 %v7142, %v7135
      %v7633 = vpack.c.b16 %v7143, %v7136
      %v7634 = vpack.c.b16 %v7144, %v7137
      %v7635 = vpack.c.b16 %v7145, %v7138
      %v7636 = vpack.c.b16 %v7153, %v7146
      %v7637 = vpack.c.b16 %v7154, %v7147
      %v7638 = vpack.c.b16 %v7155, %v7148
      %v7639 = vpack.c.b16 %v7156, %v7149
      %v7640 = vpack.c.b16 %v7157, %v7150
      %v7641 = vpack.c.b16 %v7158, %v7151
      %v7642 = vpack.c.b16 %v7159, %v7152
      %v7643 = vpack.c.b16 %v7167, %v7160
      %v7644 = vpack.c.b16 %v7168, %v7161
      %v7645 = vpack.c.b16 %v7169, %v7162
      %v7646 = vpack.c.b16 %v7170, %v7163
      %v7647 = vpack.c.b16 %v7171, %v7164
      %v7648 = vpack.c.b16 %v7172, %v7165
      %v7649 = vpack.c.b16 %v7173, %v7166
      %v7650 = vpack.c.b16 %v7181, %v7174
      %v7651 = vpack.c.b16 %v7182, %v7175
      %v7652 = vpack.c.b16 %v7183, %v7176
      %v7653 = vpack.c.b16 %v7184, %v7177
      %v7654 = vpack.c.b16 %v7185, %v7178
      %v7655 = vpack.c.b16 %v7186, %v7179
      %v7656 = vpack.c.b16 %v7187, %v7180
      %v7657 = vpack.c.b16 %v7195, %v7188
      %v7658 = vpack.c.b16 %v7196, %v7189
      %v7659 = vpack.c.b16 %v7197, %v7190
      %v7660 = vpack.c.b16 %v7198, %v7191
      %v7661 = vpack.c.b16 %v7199, %v7192
      %v7662 = vpack.c.b16 %v7200, %v7193
      %v7663 = vpack.c.b16 %v7201, %v7194
      %v7664 = vpack.c.b16 %v7209, %v7202
      %v7665 = vpack.c.b16 %v7210, %v7203
      %v7666 = vpack.c.b16 %v7211, %v7204
      %v7667 = vpack.c.b16 %v7212, %v7205
      %v7668 = vpack.c.b16 %v7213, %v7206
      %v7669 = vpack.c.b16 %v7214, %v7207
      %v7670 = vpack.c.b16 %v7215, %v7208
      %v7671 = vpack.c.b16 %v7223, %v7216
      %v7672 = vpack.c.b16 %v7224, %v7217
      %v7673 = vpack.c.b16 %v7225, %v7218
      %v7674 = vpack.c.b16 %v7226, %v7219
      %v7675 = vpack.c.b16 %v7227, %v7220
      %v7676 = vpack.c.b16 %v7228, %v7221
      %v7677 = vpack.c.b16 %v7229, %v7222
      %8126 = vmatprep.subr.bf16.mxu0 %v7231
      %8127 = vmatpush1.bf16.msra.mxu0 %v7230
      %8128 = vmatprep.subr.bf16.mxu0 %v7238
      %8129 = vmatpush1.bf16.msra.mxu0 %v7237
      %8130 = vmatprep.subr.bf16.mxu0 %v7245
      %8131 = vmatpush1.bf16.msra.mxu0 %v7244
      %8132 = vmatprep.subr.bf16.mxu0 %v7252
      %8133 = vmatpush1.bf16.msra.mxu0 %v7251
      %8134 = vmatprep.subr.bf16.mxu0 %v7259
      %8135 = vmatpush1.bf16.msra.mxu0 %v7258
      %8136 = vmatprep.subr.bf16.mxu0 %v7266
      %8137 = vmatpush1.bf16.msra.mxu0 %v7265
      %8138 = vmatprep.subr.bf16.mxu0 %v7273
      %8139 = vmatpush1.bf16.msra.mxu0 %v7272
      %8140 = vmatprep.subr.bf16.mxu0 %v7280
      %8141 = vmatpush1.bf16.msra.mxu0 %v7279
      %8142 = vmatprep.subr.bf16.mxu0 %v7287
      %8143 = vmatpush1.bf16.msra.mxu0 %v7286
      %8144 = vmatprep.subr.bf16.mxu0 %v7294
      %8145 = vmatpush1.bf16.msra.mxu0 %v7293
      %8146 = vmatprep.subr.bf16.mxu0 %v7301
      %8147 = vmatpush1.bf16.msra.mxu0 %v7300
      %8148 = vmatprep.subr.bf16.mxu0 %v7308
      %8149 = vmatpush1.bf16.msra.mxu0 %v7307
      %8150 = vmatprep.subr.bf16.mxu0 %v7315
      %8151 = vmatpush1.bf16.msra.mxu0 %v7314
      %8152 = vmatprep.subr.bf16.mxu0 %v7322
      %8153 = vmatpush1.bf16.msra.mxu0 %v7321
      %8154 = vmatprep.subr.bf16.mxu0 %v7329
      %8155 = vmatpush1.bf16.msra.mxu0 %v7328
      %8156 = vmatprep.subr.bf16.mxu0 %v7336
      %8157 = vmatpush1.bf16.msra.mxu0 %v7335
      %8158 = vmatprep.mubr.bf16.mxu0 %v5147
      %8159 = vmatmul.mubr.bf16.gmra.mrb[0].mxu0 %v5146
      %v8160 = vpop.f32.mrb[0].mxu0
      %v8161 = vadd.f32 %v5790, %v8160
      %v8162 = vpop.f32.mrb[0].mxu0
      %v8163 = vadd.f32 %v5794, %v8162
      %v8164 = vpop.f32.mrb[0].mxu0
      %v8165 = vadd.f32 %v5790, %v8164
      %v8166 = vpop.f32.mrb[0].mxu0
      %v8167 = vadd.f32 %v5794, %v8166
      %8168 = vmatprep.mubr.bf16.mxu0 %v5155
      %8169 = vmatmul.mubr.bf16.gmra.mrb[0].mxu0 %v5154
      %v8170 = vpop.f32.mrb[0].mxu0
      %v8171 = vadd.f32 %v5790, %v8170
      %v8172 = vpop.f32.mrb[0].mxu0
      %v8173 = vadd.f32 %v5794, %v8172
      %v8174 = vpop.f32.mrb[0].mxu0
      %v8175 = vadd.f32 %v5790, %v8174
      %v8176 = vpop.f32.mrb[0].mxu0
      %v8177 = vadd.f32 %v5794, %v8176
      %8178 = vmatprep.mubr.bf16.mxu0 %v5163
      %8179 = vmatmul.mubr.bf16.gmra.mrb[0].mxu0 %v5162
      %v8180 = vpop.f32.mrb[0].mxu0
      %v8181 = vadd.f32 %v5790, %v8180
      %v8182 = vpop.f32.mrb[0].mxu0
      %v8183 = vadd.f32 %v5794, %v8182
      %v8184 = vpop.f32.mrb[0].mxu0
      %v8185 = vadd.f32 %v5790, %v8184
      %v8186 = vpop.f32.mrb[0].mxu0
      %v8187 = vadd.f32 %v5794, %v8186
      %8188 = vmatprep.mubr.bf16.mxu0 %v5171
      %8189 = vmatmul.mubr.bf16.gmra.mrb[0].mxu0 %v5170
      %v8190 = vpop.f32.mrb[0].mxu0
      %v8191 = vadd.f32 %v5790, %v8190
      %v8192 = vpop.f32.mrb[0].mxu0
      %v8193 = vadd.f32 %v5794, %v8192
      %v8194 = vpop.f32.mrb[0].mxu0
      %v8195 = vadd.f32 %v5790, %v8194
      %v8196 = vpop.f32.mrb[0].mxu0
      %v8197 = vadd.f32 %v5794, %v8196
      %8198 = vmatprep.mubr.bf16.mxu0 %v5179
      %8199 = vmatmul.mubr.bf16.gmra.mrb[0].mxu0 %v5178
      %v8200 = vpop.f32.mrb[0].mxu0
      %v8201 = vadd.f32 %v5790, %v8200
      %v8202 = vpop.f32.mrb[0].mxu0
      %v8203 = vadd.f32 %v5794, %v8202
      %v8204 = vpop.f32.mrb[0].mxu0
      %v8205 = vadd.f32 %v5790, %v8204
      %v8206 = vpop.f32.mrb[0].mxu0
      %v8207 = vadd.f32 %v5794, %v8206
      %8208 = vmatprep.mubr.bf16.mxu0 %v5187
      %8209 = vmatmul.mubr.bf16.gmra.mrb[0].mxu0 %v5186
      %v8210 = vpop.f32.mrb[0].mxu0
      %v8211 = vadd.f32 %v5790, %v8210
      %v8212 = vpop.f32.mrb[0].mxu0
      %v8213 = vadd.f32 %v5794, %v8212
      %v8214 = vpop.f32.mrb[0].mxu0
      %v8215 = vadd.f32 %v5790, %v8214
      %v8216 = vpop.f32.mrb[0].mxu0
      %v8217 = vadd.f32 %v5794, %v8216
      %8218 = vmatprep.mubr.bf16.mxu0 %v5195
      %8219 = vmatmul.mubr.bf16.gmra.mrb[0].mxu0 %v5194
      %v8220 = vpop.f32.mrb[0].mxu0
      %v8221 = vadd.f32 %v5790, %v8220
      %v8222 = vpop.f32.mrb[0].mxu0
      %v8223 = vadd.f32 %v5794, %v8222
      %v8224 = vpop.f32.mrb[0].mxu0
      %v8225 = vadd.f32 %v5790, %v8224
      %v8226 = vpop.f32.mrb[0].mxu0
      %v8227 = vadd.f32 %v5794, %v8226
      %8228 = vmatprep.mubr.bf16.mxu0 %v5203
      %8229 = vmatmul.mubr.bf16.gmra.mrb[0].mxu0 %v5202
      %v8230 = vpop.f32.mrb[0].mxu0
      %v8231 = vadd.f32 %v5790, %v8230
      %v8232 = vpop.f32.mrb[0].mxu0
      %v8233 = vadd.f32 %v5794, %v8232
      %v8234 = vpop.f32.mrb[0].mxu0
      %v8235 = vadd.f32 %v5790, %v8234
      %v8236 = vpop.f32.mrb[0].mxu0
      %v8237 = vadd.f32 %v5794, %v8236
      %8238 = vmatprep.mubr.bf16.mxu0 %v5211
      %8239 = vmatmul.mubr.bf16.gmra.mrb[0].mxu0 %v5210
      %v8240 = vpop.f32.mrb[0].mxu0
      %v8241 = vadd.f32 %v5790, %v8240
      %v8242 = vpop.f32.mrb[0].mxu0
      %v8243 = vadd.f32 %v5794, %v8242
      %v8244 = vpop.f32.mrb[0].mxu0
      %v8245 = vadd.f32 %v5790, %v8244
      %v8246 = vpop.f32.mrb[0].mxu0
      %v8247 = vadd.f32 %v5794, %v8246
      %8248 = vmatprep.mubr.bf16.mxu0 %v5219
      %8249 = vmatmul.mubr.bf16.gmra.mrb[0].mxu0 %v5218
      %v8250 = vpop.f32.mrb[0].mxu0
      %v8251 = vadd.f32 %v5790, %v8250
      %v8252 = vpop.f32.mrb[0].mxu0
      %v8253 = vadd.f32 %v5794, %v8252
      %v8254 = vpop.f32.mrb[0].mxu0
      %v8255 = vadd.f32 %v5790, %v8254
      %v8256 = vpop.f32.mrb[0].mxu0
      %v8257 = vadd.f32 %v5794, %v8256
      %8258 = vmatprep.mubr.bf16.mxu0 %v5227
      %8259 = vmatmul.mubr.bf16.gmra.mrb[0].mxu0 %v5226
      %v8260 = vpop.f32.mrb[0].mxu0
      %v8261 = vadd.f32 %v5790, %v8260
      %v8262 = vpop.f32.mrb[0].mxu0
      %v8263 = vadd.f32 %v5794, %v8262
      %v8264 = vpop.f32.mrb[0].mxu0
      %v8265 = vadd.f32 %v5790, %v8264
      %v8266 = vpop.f32.mrb[0].mxu0
      %v8267 = vadd.f32 %v5794, %v8266
      %8268 = vmatprep.mubr.bf16.mxu0 %v5235
      %8269 = vmatmul.mubr.bf16.gmra.mrb[0].mxu0 %v5234
      %v8270 = vpop.f32.mrb[0].mxu0
      %v8271 = vadd.f32 %v5790, %v8270
      %v8272 = vpop.f32.mrb[0].mxu0
      %v8273 = vadd.f32 %v5794, %v8272
      %v8274 = vpop.f32.mrb[0].mxu0
      %v8275 = vadd.f32 %v5790, %v8274
      %v8276 = vpop.f32.mrb[0].mxu0
      %v8277 = vadd.f32 %v5794, %v8276
      %8278 = vmatprep.mubr.bf16.mxu0 %v5243
      %8279 = vmatmul.mubr.bf16.gmra.mrb[0].mxu0 %v5242
      %v8280 = vpop.f32.mrb[0].mxu0
      %v8281 = vadd.f32 %v5790, %v8280
      %v8282 = vpop.f32.mrb[0].mxu0
      %v8283 = vadd.f32 %v5794, %v8282
      %v8284 = vpop.f32.mrb[0].mxu0
      %v8285 = vadd.f32 %v5790, %v8284
      %v8286 = vpop.f32.mrb[0].mxu0
      %v8287 = vadd.f32 %v5794, %v8286
      %8288 = vmatprep.mubr.bf16.mxu0 %v5251
      %8289 = vmatmul.mubr.bf16.gmra.mrb[0].mxu0 %v5250
      %v8290 = vpop.f32.mrb[0].mxu0
      %v8291 = vadd.f32 %v5790, %v8290
      %v8292 = vpop.f32.mrb[0].mxu0
      %v8293 = vadd.f32 %v5794, %v8292
      %v8294 = vpop.f32.mrb[0].mxu0
      %v8295 = vadd.f32 %v5790, %v8294
      %v8296 = vpop.f32.mrb[0].mxu0
      %v8297 = vadd.f32 %v5794, %v8296
      %8298 = vmatprep.mubr.bf16.mxu0 %v5259
      %8299 = vmatmul.mubr.bf16.gmra.mrb[0].mxu0 %v5258
      %v8300 = vpop.f32.mrb[0].mxu0
      %v8301 = vadd.f32 %v5790, %v8300
      %v8302 = vpop.f32.mrb[0].mxu0
      %v8303 = vadd.f32 %v5794, %v8302
      %v8304 = vpop.f32.mrb[0].mxu0
      %v8305 = vadd.f32 %v5790, %v8304
      %v8306 = vpop.f32.mrb[0].mxu0
      %v8307 = vadd.f32 %v5794, %v8306
      %8308 = vmatprep.mubr.bf16.mxu0 %v5267
      %8309 = vmatmul.mubr.bf16.gmra.mrb[0].mxu0 %v5266
      %v8310 = vpop.f32.mrb[0].mxu0
      %v8311 = vadd.f32 %v5790, %v8310
      %v8312 = vpop.f32.mrb[0].mxu0
      %v8313 = vadd.f32 %v5794, %v8312
      %v8314 = vpop.f32.mrb[0].mxu0
      %v8315 = vadd.f32 %v5790, %v8314
      %v8316 = vpop.f32.mrb[0].mxu0
      %v8317 = vadd.f32 %v5794, %v8316
      %8318 = vdwg.mxu0
      %8319 = vmatprep.subr.bf16.mxu0 %v7343
      %8320 = vmatpush1.bf16.msra.mxu0 %v7342
      %8321 = vmatprep.subr.bf16.mxu0 %v7350
      %8322 = vmatpush1.bf16.msra.mxu0 %v7349
      %8323 = vmatprep.subr.bf16.mxu0 %v7357
      %8324 = vmatpush1.bf16.msra.mxu0 %v7356
      %8325 = vmatprep.subr.bf16.mxu0 %v7364
      %8326 = vmatpush1.bf16.msra.mxu0 %v7363
      %8327 = vmatprep.subr.bf16.mxu0 %v7371
      %8328 = vmatpush1.bf16.msra.mxu0 %v7370
      %8329 = vmatprep.subr.bf16.mxu0 %v7378
      %8330 = vmatpush1.bf16.msra.mxu0 %v7377
      %8331 = vmatprep.subr.bf16.mxu0 %v7385
      %8332 = vmatpush1.bf16.msra.mxu0 %v7384
      %8333 = vmatprep.subr.bf16.mxu0 %v7392
      %8334 = vmatpush1.bf16.msra.mxu0 %v7391
      %8335 = vmatprep.subr.bf16.mxu0 %v7399
      %8336 = vmatpush1.bf16.msra.mxu0 %v7398
      %8337 = vmatprep.subr.bf16.mxu0 %v7406
      %8338 = vmatpush1.bf16.msra.mxu0 %v7405
      %8339 = vmatprep.subr.bf16.mxu0 %v7413
      %8340 = vmatpush1.bf16.msra.mxu0 %v7412
      %8341 = vmatprep.subr.bf16.mxu0 %v7420
      %8342 = vmatpush1.bf16.msra.mxu0 %v7419
      %8343 = vmatprep.subr.bf16.mxu0 %v7427
      %8344 = vmatpush1.bf16.msra.mxu0 %v7426
      %8345 = vmatprep.subr.bf16.mxu0 %v7434
      %8346 = vmatpush1.bf16.msra.mxu0 %v7433
      %8347 = vmatprep.subr.bf16.mxu0 %v7441
      %8348 = vmatpush1.bf16.msra.mxu0 %v7440
      %8349 = vmatprep.subr.bf16.mxu0 %v7448
      %8350 = vmatpush1.bf16.msra.mxu0 %v7447
      %8351 = vmatprep.mubr.bf16.mxu0 %v5149
      %8352 = vmatmul.mubr.bf16.gmra.mrb[0].mxu0 %v5148
      %v8353 = vpop.f32.mrb[0].mxu0
      %v8354 = vadd.f32 %v8161, %v8353
      %v8355 = vpop.f32.mrb[0].mxu0
      %v8356 = vadd.f32 %v8163, %v8355
      %v8357 = vpop.f32.mrb[0].mxu0
      %v8358 = vadd.f32 %v8165, %v8357
      %v8359 = vpop.f32.mrb[0].mxu0
      %v8360 = vadd.f32 %v8167, %v8359
      %8361 = vmatprep.mubr.bf16.mxu0 %v5157
      %8362 = vmatmul.mubr.bf16.gmra.mrb[0].mxu0 %v5156
      %v8363 = vpop.f32.mrb[0].mxu0
      %v8364 = vadd.f32 %v8171, %v8363
      %v8365 = vpop.f32.mrb[0].mxu0
      %v8366 = vadd.f32 %v8173, %v8365
      %v8367 = vpop.f32.mrb[0].mxu0
      %v8368 = vadd.f32 %v8175, %v8367
      %v8369 = vpop.f32.mrb[0].mxu0
      %v8370 = vadd.f32 %v8177, %v8369
      %8371 = vmatprep.mubr.bf16.mxu0 %v5165
      %8372 = vmatmul.mubr.bf16.gmra.mrb[0].mxu0 %v5164
      %v8373 = vpop.f32.mrb[0].mxu0
      %v8374 = vadd.f32 %v8181, %v8373
      %v8375 = vpop.f32.mrb[0].mxu0
      %v8376 = vadd.f32 %v8183, %v8375
      %v8377 = vpop.f32.mrb[0].mxu0
      %v8378 = vadd.f32 %v8185, %v8377
      %v8379 = vpop.f32.mrb[0].mxu0
      %v8380 = vadd.f32 %v8187, %v8379
      %8381 = vmatprep.mubr.bf16.mxu0 %v5173
      %8382 = vmatmul.mubr.bf16.gmra.mrb[0].mxu0 %v5172
      %v8383 = vpop.f32.mrb[0].mxu0
      %v8384 = vadd.f32 %v8191, %v8383
      %v8385 = vpop.f32.mrb[0].mxu0
      %v8386 = vadd.f32 %v8193, %v8385
      %v8387 = vpop.f32.mrb[0].mxu0
      %v8388 = vadd.f32 %v8195, %v8387
      %v8389 = vpop.f32.mrb[0].mxu0
      %v8390 = vadd.f32 %v8197, %v8389
      %8391 = vmatprep.mubr.bf16.mxu0 %v5181
      %8392 = vmatmul.mubr.bf16.gmra.mrb[0].mxu0 %v5180
      %v8393 = vpop.f32.mrb[0].mxu0
      %v8394 = vadd.f32 %v8201, %v8393
      %v8395 = vpop.f32.mrb[0].mxu0
      %v8396 = vadd.f32 %v8203, %v8395
      %v8397 = vpop.f32.mrb[0].mxu0
      %v8398 = vadd.f32 %v8205, %v8397
      %v8399 = vpop.f32.mrb[0].mxu0
      %v8400 = vadd.f32 %v8207, %v8399
      %8401 = vmatprep.mubr.bf16.mxu0 %v5189
      %8402 = vmatmul.mubr.bf16.gmra.mrb[0].mxu0 %v5188
      %v8403 = vpop.f32.mrb[0].mxu0
      %v8404 = vadd.f32 %v8211, %v8403
      %v8405 = vpop.f32.mrb[0].mxu0
      %v8406 = vadd.f32 %v8213, %v8405
      %v8407 = vpop.f32.mrb[0].mxu0
      %v8408 = vadd.f32 %v8215, %v8407
      %v8409 = vpop.f32.mrb[0].mxu0
      %v8410 = vadd.f32 %v8217, %v8409
      %8411 = vmatprep.mubr.bf16.mxu0 %v5197
      %8412 = vmatmul.mubr.bf16.gmra.mrb[0].mxu0 %v5196
      %v8413 = vpop.f32.mrb[0].mxu0
      %v8414 = vadd.f32 %v8221, %v8413
      %v8415 = vpop.f32.mrb[0].mxu0
      %v8416 = vadd.f32 %v8223, %v8415
      %v8417 = vpop.f32.mrb[0].mxu0
      %v8418 = vadd.f32 %v8225, %v8417
      %v8419 = vpop.f32.mrb[0].mxu0
      %v8420 = vadd.f32 %v8227, %v8419
      %8421 = vmatprep.mubr.bf16.mxu0 %v5205
      %8422 = vmatmul.mubr.bf16.gmra.mrb[0].mxu0 %v5204
      %v8423 = vpop.f32.mrb[0].mxu0
      %v8424 = vadd.f32 %v8231, %v8423
      %v8425 = vpop.f32.mrb[0].mxu0
      %v8426 = vadd.f32 %v8233, %v8425
      %v8427 = vpop.f32.mrb[0].mxu0
      %v8428 = vadd.f32 %v8235, %v8427
      %v8429 = vpop.f32.mrb[0].mxu0
      %v8430 = vadd.f32 %v8237, %v8429
      %8431 = vmatprep.mubr.bf16.mxu0 %v5213
      %8432 = vmatmul.mubr.bf16.gmra.mrb[0].mxu0 %v5212
      %v8433 = vpop.f32.mrb[0].mxu0
      %v8434 = vadd.f32 %v8241, %v8433
      %v8435 = vpop.f32.mrb[0].mxu0
      %v8436 = vadd.f32 %v8243, %v8435
      %v8437 = vpop.f32.mrb[0].mxu0
      %v8438 = vadd.f32 %v8245, %v8437
      %v8439 = vpop.f32.mrb[0].mxu0
      %v8440 = vadd.f32 %v8247, %v8439
      %8441 = vmatprep.mubr.bf16.mxu0 %v5221
      %8442 = vmatmul.mubr.bf16.gmra.mrb[0].mxu0 %v5220
      %v8443 = vpop.f32.mrb[0].mxu0
      %v8444 = vadd.f32 %v8251, %v8443
      %v8445 = vpop.f32.mrb[0].mxu0
      %v8446 = vadd.f32 %v8253, %v8445
      %v8447 = vpop.f32.mrb[0].mxu0
      %v8448 = vadd.f32 %v8255, %v8447
      %v8449 = vpop.f32.mrb[0].mxu0
      %v8450 = vadd.f32 %v8257, %v8449
      %8451 = vmatprep.mubr.bf16.mxu0 %v5229
      %8452 = vmatmul.mubr.bf16.gmra.mrb[0].mxu0 %v5228
      %v8453 = vpop.f32.mrb[0].mxu0
      %v8454 = vadd.f32 %v8261, %v8453
      %v8455 = vpop.f32.mrb[0].mxu0
      %v8456 = vadd.f32 %v8263, %v8455
      %v8457 = vpop.f32.mrb[0].mxu0
      %v8458 = vadd.f32 %v8265, %v8457
      %v8459 = vpop.f32.mrb[0].mxu0
      %v8460 = vadd.f32 %v8267, %v8459
      %8461 = vmatprep.mubr.bf16.mxu0 %v5237
      %8462 = vmatmul.mubr.bf16.gmra.mrb[0].mxu0 %v5236
      %v8463 = vpop.f32.mrb[0].mxu0
      %v8464 = vadd.f32 %v8271, %v8463
      %v8465 = vpop.f32.mrb[0].mxu0
      %v8466 = vadd.f32 %v8273, %v8465
      %v8467 = vpop.f32.mrb[0].mxu0
      %v8468 = vadd.f32 %v8275, %v8467
      %v8469 = vpop.f32.mrb[0].mxu0
      %v8470 = vadd.f32 %v8277, %v8469
      %8471 = vmatprep.mubr.bf16.mxu0 %v5245
      %8472 = vmatmul.mubr.bf16.gmra.mrb[0].mxu0 %v5244
      %v8473 = vpop.f32.mrb[0].mxu0
      %v8474 = vadd.f32 %v8281, %v8473
      %v8475 = vpop.f32.mrb[0].mxu0
      %v8476 = vadd.f32 %v8283, %v8475
      %v8477 = vpop.f32.mrb[0].mxu0
      %v8478 = vadd.f32 %v8285, %v8477
      %v8479 = vpop.f32.mrb[0].mxu0
      %v8480 = vadd.f32 %v8287, %v8479
      %8481 = vmatprep.mubr.bf16.mxu0 %v5253
      %8482 = vmatmul.mubr.bf16.gmra.mrb[0].mxu0 %v5252
      %v8483 = vpop.f32.mrb[0].mxu0
      %v8484 = vadd.f32 %v8291, %v8483
      %v8485 = vpop.f32.mrb[0].mxu0
      %v8486 = vadd.f32 %v8293, %v8485
      %v8487 = vpop.f32.mrb[0].mxu0
      %v8488 = vadd.f32 %v8295, %v8487
      %v8489 = vpop.f32.mrb[0].mxu0
      %v8490 = vadd.f32 %v8297, %v8489
      %8491 = vmatprep.mubr.bf16.mxu0 %v5261
      %8492 = vmatmul.mubr.bf16.gmra.mrb[0].mxu0 %v5260
      %v8493 = vpop.f32.mrb[0].mxu0
      %v8494 = vadd.f32 %v8301, %v8493
      %v8495 = vpop.f32.mrb[0].mxu0
      %v8496 = vadd.f32 %v8303, %v8495
      %v8497 = vpop.f32.mrb[0].mxu0
      %v8498 = vadd.f32 %v8305, %v8497
      %v8499 = vpop.f32.mrb[0].mxu0
      %v8500 = vadd.f32 %v8307, %v8499
      %8501 = vmatprep.mubr.bf16.mxu0 %v5269
      %8502 = vmatmul.mubr.bf16.gmra.mrb[0].mxu0 %v5268
      %v8503 = vpop.f32.mrb[0].mxu0
      %v8504 = vadd.f32 %v8311, %v8503
      %v8505 = vpop.f32.mrb[0].mxu0
      %v8506 = vadd.f32 %v8313, %v8505
      %v8507 = vpop.f32.mrb[0].mxu0
      %v8508 = vadd.f32 %v8315, %v8507
      %v8509 = vpop.f32.mrb[0].mxu0
      %v8510 = vadd.f32 %v8317, %v8509
      %8511 = vdwg.mxu0
      %8512 = vmatprep.subr.bf16.mxu0 %v7455
      %8513 = vmatpush1.bf16.msra.mxu0 %v7454
      %8514 = vmatprep.subr.bf16.mxu0 %v7462
      %8515 = vmatpush1.bf16.msra.mxu0 %v7461
      %8516 = vmatprep.subr.bf16.mxu0 %v7469
      %8517 = vmatpush1.bf16.msra.mxu0 %v7468
      %8518 = vmatprep.subr.bf16.mxu0 %v7476
      %8519 = vmatpush1.bf16.msra.mxu0 %v7475
      %8520 = vmatprep.subr.bf16.mxu0 %v7483
      %8521 = vmatpush1.bf16.msra.mxu0 %v7482
      %8522 = vmatprep.subr.bf16.mxu0 %v7490
      %8523 = vmatpush1.bf16.msra.mxu0 %v7489
      %8524 = vmatprep.subr.bf16.mxu0 %v7497
      %8525 = vmatpush1.bf16.msra.mxu0 %v7496
      %8526 = vmatprep.subr.bf16.mxu0 %v7504
      %8527 = vmatpush1.bf16.msra.mxu0 %v7503
      %8528 = vmatprep.subr.bf16.mxu0 %v7511
      %8529 = vmatpush1.bf16.msra.mxu0 %v7510
      %8530 = vmatprep.subr.bf16.mxu0 %v7518
      %8531 = vmatpush1.bf16.msra.mxu0 %v7517
      %8532 = vmatprep.subr.bf16.mxu0 %v7525
      %8533 = vmatpush1.bf16.msra.mxu0 %v7524
      %8534 = vmatprep.subr.bf16.mxu0 %v7532
      %8535 = vmatpush1.bf16.msra.mxu0 %v7531
      %8536 = vmatprep.subr.bf16.mxu0 %v7539
      %8537 = vmatpush1.bf16.msra.mxu0 %v7538
      %8538 = vmatprep.subr.bf16.mxu0 %v7546
      %8539 = vmatpush1.bf16.msra.mxu0 %v7545
      %8540 = vmatprep.subr.bf16.mxu0 %v7553
      %8541 = vmatpush1.bf16.msra.mxu0 %v7552
      %8542 = vmatprep.subr.bf16.mxu0 %v7560
      %8543 = vmatpush1.bf16.msra.mxu0 %v7559
      %8544 = vmatprep.mubr.bf16.mxu0 %v5151
      %8545 = vmatmul.mubr.bf16.gmra.mrb[0].mxu0 %v5150
      %v8546 = vpop.f32.mrb[0].mxu0
      %v8547 = vadd.f32 %v8354, %v8546
      %v8548 = vpop.f32.mrb[0].mxu0
      %v8549 = vadd.f32 %v8356, %v8548
      %v8550 = vpop.f32.mrb[0].mxu0
      %v8551 = vadd.f32 %v8358, %v8550
      %v8552 = vpop.f32.mrb[0].mxu0
      %v8553 = vadd.f32 %v8360, %v8552
      %8554 = vmatprep.mubr.bf16.mxu0 %v5159
      %8555 = vmatmul.mubr.bf16.gmra.mrb[0].mxu0 %v5158
      %v8556 = vpop.f32.mrb[0].mxu0
      %v8557 = vadd.f32 %v8364, %v8556
      %v8558 = vpop.f32.mrb[0].mxu0
      %v8559 = vadd.f32 %v8366, %v8558
      %v8560 = vpop.f32.mrb[0].mxu0
      %v8561 = vadd.f32 %v8368, %v8560
      %v8562 = vpop.f32.mrb[0].mxu0
      %v8563 = vadd.f32 %v8370, %v8562
      %8564 = vmatprep.mubr.bf16.mxu0 %v5167
      %8565 = vmatmul.mubr.bf16.gmra.mrb[0].mxu0 %v5166
      %v8566 = vpop.f32.mrb[0].mxu0
      %v8567 = vadd.f32 %v8374, %v8566
      %v8568 = vpop.f32.mrb[0].mxu0
      %v8569 = vadd.f32 %v8376, %v8568
      %v8570 = vpop.f32.mrb[0].mxu0
      %v8571 = vadd.f32 %v8378, %v8570
      %v8572 = vpop.f32.mrb[0].mxu0
      %v8573 = vadd.f32 %v8380, %v8572
      %8574 = vmatprep.mubr.bf16.mxu0 %v5175
      %8575 = vmatmul.mubr.bf16.gmra.mrb[0].mxu0 %v5174
      %v8576 = vpop.f32.mrb[0].mxu0
      %v8577 = vadd.f32 %v8384, %v8576
      %v8578 = vpop.f32.mrb[0].mxu0
      %v8579 = vadd.f32 %v8386, %v8578
      %v8580 = vpop.f32.mrb[0].mxu0
      %v8581 = vadd.f32 %v8388, %v8580
      %v8582 = vpop.f32.mrb[0].mxu0
      %v8583 = vadd.f32 %v8390, %v8582
      %8584 = vmatprep.mubr.bf16.mxu0 %v5183
      %8585 = vmatmul.mubr.bf16.gmra.mrb[0].mxu0 %v5182
      %v8586 = vpop.f32.mrb[0].mxu0
      %v8587 = vadd.f32 %v8394, %v8586
      %v8588 = vpop.f32.mrb[0].mxu0
      %v8589 = vadd.f32 %v8396, %v8588
      %v8590 = vpop.f32.mrb[0].mxu0
      %v8591 = vadd.f32 %v8398, %v8590
      %v8592 = vpop.f32.mrb[0].mxu0
      %v8593 = vadd.f32 %v8400, %v8592
      %8594 = vmatprep.mubr.bf16.mxu0 %v5191
      %8595 = vmatmul.mubr.bf16.gmra.mrb[0].mxu0 %v5190
      %v8596 = vpop.f32.mrb[0].mxu0
      %v8597 = vadd.f32 %v8404, %v8596
      %v8598 = vpop.f32.mrb[0].mxu0
      %v8599 = vadd.f32 %v8406, %v8598
      %v8600 = vpop.f32.mrb[0].mxu0
      %v8601 = vadd.f32 %v8408, %v8600
      %v8602 = vpop.f32.mrb[0].mxu0
      %v8603 = vadd.f32 %v8410, %v8602
      %8604 = vmatprep.mubr.bf16.mxu0 %v5199
      %8605 = vmatmul.mubr.bf16.gmra.mrb[0].mxu0 %v5198
      %v8606 = vpop.f32.mrb[0].mxu0
      %v8607 = vadd.f32 %v8414, %v8606
      %v8608 = vpop.f32.mrb[0].mxu0
      %v8609 = vadd.f32 %v8416, %v8608
      %v8610 = vpop.f32.mrb[0].mxu0
      %v8611 = vadd.f32 %v8418, %v8610
      %v8612 = vpop.f32.mrb[0].mxu0
      %v8613 = vadd.f32 %v8420, %v8612
      %8614 = vmatprep.mubr.bf16.mxu0 %v5207
      %8615 = vmatmul.mubr.bf16.gmra.mrb[0].mxu0 %v5206
      %v8616 = vpop.f32.mrb[0].mxu0
      %v8617 = vadd.f32 %v8424, %v8616
      %v8618 = vpop.f32.mrb[0].mxu0
      %v8619 = vadd.f32 %v8426, %v8618
      %v8620 = vpop.f32.mrb[0].mxu0
      %v8621 = vadd.f32 %v8428, %v8620
      %v8622 = vpop.f32.mrb[0].mxu0
      %v8623 = vadd.f32 %v8430, %v8622
      %8624 = vmatprep.mubr.bf16.mxu0 %v5215
      %8625 = vmatmul.mubr.bf16.gmra.mrb[0].mxu0 %v5214
      %v8626 = vpop.f32.mrb[0].mxu0
      %v8627 = vadd.f32 %v8434, %v8626
      %v8628 = vpop.f32.mrb[0].mxu0
      %v8629 = vadd.f32 %v8436, %v8628
      %v8630 = vpop.f32.mrb[0].mxu0
      %v8631 = vadd.f32 %v8438, %v8630
      %v8632 = vpop.f32.mrb[0].mxu0
      %v8633 = vadd.f32 %v8440, %v8632
      %8634 = vmatprep.mubr.bf16.mxu0 %v5223
      %8635 = vmatmul.mubr.bf16.gmra.mrb[0].mxu0 %v5222
      %v8636 = vpop.f32.mrb[0].mxu0
      %v8637 = vadd.f32 %v8444, %v8636
      %v8638 = vpop.f32.mrb[0].mxu0
      %v8639 = vadd.f32 %v8446, %v8638
      %v8640 = vpop.f32.mrb[0].mxu0
      %v8641 = vadd.f32 %v8448, %v8640
      %v8642 = vpop.f32.mrb[0].mxu0
      %v8643 = vadd.f32 %v8450, %v8642
      %8644 = vmatprep.mubr.bf16.mxu0 %v5231
      %8645 = vmatmul.mubr.bf16.gmra.mrb[0].mxu0 %v5230
      %v8646 = vpop.f32.mrb[0].mxu0
      %v8647 = vadd.f32 %v8454, %v8646
      %v8648 = vpop.f32.mrb[0].mxu0
      %v8649 = vadd.f32 %v8456, %v8648
      %v8650 = vpop.f32.mrb[0].mxu0
      %v8651 = vadd.f32 %v8458, %v8650
      %v8652 = vpop.f32.mrb[0].mxu0
      %v8653 = vadd.f32 %v8460, %v8652
      %8654 = vmatprep.mubr.bf16.mxu0 %v5239
      %8655 = vmatmul.mubr.bf16.gmra.mrb[0].mxu0 %v5238
      %v8656 = vpop.f32.mrb[0].mxu0
      %v8657 = vadd.f32 %v8464, %v8656
      %v8658 = vpop.f32.mrb[0].mxu0
      %v8659 = vadd.f32 %v8466, %v8658
      %v8660 = vpop.f32.mrb[0].mxu0
      %v8661 = vadd.f32 %v8468, %v8660
      %v8662 = vpop.f32.mrb[0].mxu0
      %v8663 = vadd.f32 %v8470, %v8662
      %8664 = vmatprep.mubr.bf16.mxu0 %v5247
      %8665 = vmatmul.mubr.bf16.gmra.mrb[0].mxu0 %v5246
      %v8666 = vpop.f32.mrb[0].mxu0
      %v8667 = vadd.f32 %v8474, %v8666
      %v8668 = vpop.f32.mrb[0].mxu0
      %v8669 = vadd.f32 %v8476, %v8668
      %v8670 = vpop.f32.mrb[0].mxu0
      %v8671 = vadd.f32 %v8478, %v8670
      %v8672 = vpop.f32.mrb[0].mxu0
      %v8673 = vadd.f32 %v8480, %v8672
      %8674 = vmatprep.mubr.bf16.mxu0 %v5255
      %8675 = vmatmul.mubr.bf16.gmra.mrb[0].mxu0 %v5254
      %v8676 = vpop.f32.mrb[0].mxu0
      %v8677 = vadd.f32 %v8484, %v8676
      %v8678 = vpop.f32.mrb[0].mxu0
      %v8679 = vadd.f32 %v8486, %v8678
      %v8680 = vpop.f32.mrb[0].mxu0
      %v8681 = vadd.f32 %v8488, %v8680
      %v8682 = vpop.f32.mrb[0].mxu0
      %v8683 = vadd.f32 %v8490, %v8682
      %8684 = vmatprep.mubr.bf16.mxu0 %v5263
      %8685 = vmatmul.mubr.bf16.gmra.mrb[0].mxu0 %v5262
      %v8686 = vpop.f32.mrb[0].mxu0
      %v8687 = vadd.f32 %v8494, %v8686
      %v8688 = vpop.f32.mrb[0].mxu0
      %v8689 = vadd.f32 %v8496, %v8688
      %v8690 = vpop.f32.mrb[0].mxu0
      %v8691 = vadd.f32 %v8498, %v8690
      %v8692 = vpop.f32.mrb[0].mxu0
      %v8693 = vadd.f32 %v8500, %v8692
      %8694 = vmatprep.mubr.bf16.mxu0 %v5271
      %8695 = vmatmul.mubr.bf16.gmra.mrb[0].mxu0 %v5270
      %v8696 = vpop.f32.mrb[0].mxu0
      %v8697 = vadd.f32 %v8504, %v8696
      %v8698 = vpop.f32.mrb[0].mxu0
      %v8699 = vadd.f32 %v8506, %v8698
      %v8700 = vpop.f32.mrb[0].mxu0
      %v8701 = vadd.f32 %v8508, %v8700
      %v8702 = vpop.f32.mrb[0].mxu0
      %v8703 = vadd.f32 %v8510, %v8702
      %8704 = vdwg.mxu0
      %8705 = vmatprep.subr.bf16.mxu0 %v7567
      %8706 = vmatpush1.bf16.msra.mxu0 %v7566
      %8707 = vmatprep.subr.bf16.mxu0 %v7574
      %8708 = vmatpush1.bf16.msra.mxu0 %v7573
      %8709 = vmatprep.subr.bf16.mxu0 %v7581
      %8710 = vmatpush1.bf16.msra.mxu0 %v7580
      %8711 = vmatprep.subr.bf16.mxu0 %v7588
      %8712 = vmatpush1.bf16.msra.mxu0 %v7587
      %8713 = vmatprep.subr.bf16.mxu0 %v7595
      %8714 = vmatpush1.bf16.msra.mxu0 %v7594
      %8715 = vmatprep.subr.bf16.mxu0 %v7602
      %8716 = vmatpush1.bf16.msra.mxu0 %v7601
      %8717 = vmatprep.subr.bf16.mxu0 %v7609
      %8718 = vmatpush1.bf16.msra.mxu0 %v7608
      %8719 = vmatprep.subr.bf16.mxu0 %v7616
      %8720 = vmatpush1.bf16.msra.mxu0 %v7615
      %8721 = vmatprep.subr.bf16.mxu0 %v7623
      %8722 = vmatpush1.bf16.msra.mxu0 %v7622
      %8723 = vmatprep.subr.bf16.mxu0 %v7630
      %8724 = vmatpush1.bf16.msra.mxu0 %v7629
      %8725 = vmatprep.subr.bf16.mxu0 %v7637
      %8726 = vmatpush1.bf16.msra.mxu0 %v7636
      %8727 = vmatprep.subr.bf16.mxu0 %v7644
      %8728 = vmatpush1.bf16.msra.mxu0 %v7643
      %8729 = vmatprep.subr.bf16.mxu0 %v7651
      %8730 = vmatpush1.bf16.msra.mxu0 %v7650
      %8731 = vmatprep.subr.bf16.mxu0 %v7658
      %8732 = vmatpush1.bf16.msra.mxu0 %v7657
      %8733 = vmatprep.subr.bf16.mxu0 %v7665
      %8734 = vmatpush1.bf16.msra.mxu0 %v7664
      %8735 = vmatprep.subr.bf16.mxu0 %v7672
      %8736 = vmatpush1.bf16.msra.mxu0 %v7671
      %8737 = vmatprep.mubr.bf16.mxu0 %v5153
      %8738 = vmatmul.mubr.bf16.gmra.mrb[0].mxu0 %v5152
      %v8739 = vpop.f32.mrb[0].mxu0
      %v8740 = vadd.f32 %v8547, %v8739
      %v8741 = vpop.f32.mrb[0].mxu0
      %v8742 = vadd.f32 %v8549, %v8741
      %v8743 = vpop.f32.mrb[0].mxu0
      %v8744 = vadd.f32 %v8551, %v8743
      %v8745 = vpop.f32.mrb[0].mxu0
      %v8746 = vadd.f32 %v8553, %v8745
      %8747 = vmatprep.mubr.bf16.mxu0 %v5161
      %8748 = vmatmul.mubr.bf16.gmra.mrb[0].mxu0 %v5160
      %v8749 = vpop.f32.mrb[0].mxu0
      %v8750 = vadd.f32 %v8557, %v8749
      %v8751 = vpop.f32.mrb[0].mxu0
      %v8752 = vadd.f32 %v8559, %v8751
      %v8753 = vpop.f32.mrb[0].mxu0
      %v8754 = vadd.f32 %v8561, %v8753
      %v8755 = vpop.f32.mrb[0].mxu0
      %v8756 = vadd.f32 %v8563, %v8755
      %8757 = vmatprep.mubr.bf16.mxu0 %v5169
      %8758 = vmatmul.mubr.bf16.gmra.mrb[0].mxu0 %v5168
      %v8759 = vpop.f32.mrb[0].mxu0
      %v8760 = vadd.f32 %v8567, %v8759
      %v8761 = vpop.f32.mrb[0].mxu0
      %v8762 = vadd.f32 %v8569, %v8761
      %v8763 = vpop.f32.mrb[0].mxu0
      %v8764 = vadd.f32 %v8571, %v8763
      %v8765 = vpop.f32.mrb[0].mxu0
      %v8766 = vadd.f32 %v8573, %v8765
      %8767 = vmatprep.mubr.bf16.mxu0 %v5177
      %8768 = vmatmul.mubr.bf16.gmra.mrb[0].mxu0 %v5176
      %v8769 = vpop.f32.mrb[0].mxu0
      %v8770 = vadd.f32 %v8577, %v8769
      %v8771 = vpop.f32.mrb[0].mxu0
      %v8772 = vadd.f32 %v8579, %v8771
      %v8773 = vpop.f32.mrb[0].mxu0
      %v8774 = vadd.f32 %v8581, %v8773
      %v8775 = vpop.f32.mrb[0].mxu0
      %v8776 = vadd.f32 %v8583, %v8775
      %8777 = vmatprep.mubr.bf16.mxu0 %v5185
      %8778 = vmatmul.mubr.bf16.gmra.mrb[0].mxu0 %v5184
      %v8779 = vpop.f32.mrb[0].mxu0
      %v8780 = vadd.f32 %v8587, %v8779
      %v8781 = vpop.f32.mrb[0].mxu0
      %v8782 = vadd.f32 %v8589, %v8781
      %v8783 = vpop.f32.mrb[0].mxu0
      %v8784 = vadd.f32 %v8591, %v8783
      %v8785 = vpop.f32.mrb[0].mxu0
      %v8786 = vadd.f32 %v8593, %v8785
      %8787 = vmatprep.mubr.bf16.mxu0 %v5193
      %8788 = vmatmul.mubr.bf16.gmra.mrb[0].mxu0 %v5192
      %v8789 = vpop.f32.mrb[0].mxu0
      %v8790 = vadd.f32 %v8597, %v8789
      %v8791 = vpop.f32.mrb[0].mxu0
      %v8792 = vadd.f32 %v8599, %v8791
      %v8793 = vpop.f32.mrb[0].mxu0
      %v8794 = vadd.f32 %v8601, %v8793
      %v8795 = vpop.f32.mrb[0].mxu0
      %v8796 = vadd.f32 %v8603, %v8795
      %8797 = vmatprep.mubr.bf16.mxu0 %v5201
      %8798 = vmatmul.mubr.bf16.gmra.mrb[0].mxu0 %v5200
      %v8799 = vpop.f32.mrb[0].mxu0
      %v8800 = vadd.f32 %v8607, %v8799
      %v8801 = vpop.f32.mrb[0].mxu0
      %v8802 = vadd.f32 %v8609, %v8801
      %v8803 = vpop.f32.mrb[0].mxu0
      %v8804 = vadd.f32 %v8611, %v8803
      %v8805 = vpop.f32.mrb[0].mxu0
      %v8806 = vadd.f32 %v8613, %v8805
      %8807 = vmatprep.mubr.bf16.mxu0 %v5209
      %8808 = vmatmul.mubr.bf16.gmra.mrb[0].mxu0 %v5208
      %v8809 = vpop.f32.mrb[0].mxu0
      %v8810 = vadd.f32 %v8617, %v8809
      %v8811 = vpop.f32.mrb[0].mxu0
      %v8812 = vadd.f32 %v8619, %v8811
      %v8813 = vpop.f32.mrb[0].mxu0
      %v8814 = vadd.f32 %v8621, %v8813
      %v8815 = vpop.f32.mrb[0].mxu0
      %v8816 = vadd.f32 %v8623, %v8815
      %8817 = vmatprep.mubr.bf16.mxu0 %v5217
      %8818 = vmatmul.mubr.bf16.gmra.mrb[0].mxu0 %v5216
      %v8819 = vpop.f32.mrb[0].mxu0
      %v8820 = vadd.f32 %v8627, %v8819
      %v8821 = vpop.f32.mrb[0].mxu0
      %v8822 = vadd.f32 %v8629, %v8821
      %v8823 = vpop.f32.mrb[0].mxu0
      %v8824 = vadd.f32 %v8631, %v8823
      %v8825 = vpop.f32.mrb[0].mxu0
      %v8826 = vadd.f32 %v8633, %v8825
      %8827 = vmatprep.mubr.bf16.mxu0 %v5225
      %8828 = vmatmul.mubr.bf16.gmra.mrb[0].mxu0 %v5224
      %v8829 = vpop.f32.mrb[0].mxu0
      %v8830 = vadd.f32 %v8637, %v8829
      %v8831 = vpop.f32.mrb[0].mxu0
      %v8832 = vadd.f32 %v8639, %v8831
      %v8833 = vpop.f32.mrb[0].mxu0
      %v8834 = vadd.f32 %v8641, %v8833
      %v8835 = vpop.f32.mrb[0].mxu0
      %v8836 = vadd.f32 %v8643, %v8835
      %8837 = vmatprep.mubr.bf16.mxu0 %v5233
      %8838 = vmatmul.mubr.bf16.gmra.mrb[0].mxu0 %v5232
      %v8839 = vpop.f32.mrb[0].mxu0
      %v8840 = vadd.f32 %v8647, %v8839
      %v8841 = vpop.f32.mrb[0].mxu0
      %v8842 = vadd.f32 %v8649, %v8841
      %v8843 = vpop.f32.mrb[0].mxu0
      %v8844 = vadd.f32 %v8651, %v8843
      %v8845 = vpop.f32.mrb[0].mxu0
      %v8846 = vadd.f32 %v8653, %v8845
      %8847 = vmatprep.mubr.bf16.mxu0 %v5241
      %8848 = vmatmul.mubr.bf16.gmra.mrb[0].mxu0 %v5240
      %v8849 = vpop.f32.mrb[0].mxu0
      %v8850 = vadd.f32 %v8657, %v8849
      %v8851 = vpop.f32.mrb[0].mxu0
      %v8852 = vadd.f32 %v8659, %v8851
      %v8853 = vpop.f32.mrb[0].mxu0
      %v8854 = vadd.f32 %v8661, %v8853
      %v8855 = vpop.f32.mrb[0].mxu0
      %v8856 = vadd.f32 %v8663, %v8855
      %8857 = vmatprep.mubr.bf16.mxu0 %v5249
      %8858 = vmatmul.mubr.bf16.gmra.mrb[0].mxu0 %v5248
      %v8859 = vpop.f32.mrb[0].mxu0
      %v8860 = vadd.f32 %v8667, %v8859
      %v8861 = vpop.f32.mrb[0].mxu0
      %v8862 = vadd.f32 %v8669, %v8861
      %v8863 = vpop.f32.mrb[0].mxu0
      %v8864 = vadd.f32 %v8671, %v8863
      %v8865 = vpop.f32.mrb[0].mxu0
      %v8866 = vadd.f32 %v8673, %v8865
      %8867 = vmatprep.mubr.bf16.mxu0 %v5257
      %8868 = vmatmul.mubr.bf16.gmra.mrb[0].mxu0 %v5256
      %v8869 = vpop.f32.mrb[0].mxu0
      %v8870 = vadd.f32 %v8677, %v8869
      %v8871 = vpop.f32.mrb[0].mxu0
      %v8872 = vadd.f32 %v8679, %v8871
      %v8873 = vpop.f32.mrb[0].mxu0
      %v8874 = vadd.f32 %v8681, %v8873
      %v8875 = vpop.f32.mrb[0].mxu0
      %v8876 = vadd.f32 %v8683, %v8875
      %8877 = vmatprep.mubr.bf16.mxu0 %v5265
      %8878 = vmatmul.mubr.bf16.gmra.mrb[0].mxu0 %v5264
      %v8879 = vpop.f32.mrb[0].mxu0
      %v8880 = vadd.f32 %v8687, %v8879
      %v8881 = vpop.f32.mrb[0].mxu0
      %v8882 = vadd.f32 %v8689, %v8881
      %v8883 = vpop.f32.mrb[0].mxu0
      %v8884 = vadd.f32 %v8691, %v8883
      %v8885 = vpop.f32.mrb[0].mxu0
      %v8886 = vadd.f32 %v8693, %v8885
      %8887 = vmatprep.mubr.bf16.mxu0 %v5273
      %8888 = vmatmul.mubr.bf16.gmra.mrb[0].mxu0 %v5272
      %v8889 = vpop.f32.mrb[0].mxu0
      %v8890 = vadd.f32 %v8697, %v8889
      %v8891 = vpop.f32.mrb[0].mxu0
      %v8892 = vadd.f32 %v8699, %v8891
      %v8893 = vpop.f32.mrb[0].mxu0
      %v8894 = vadd.f32 %v8701, %v8893
      %v8895 = vpop.f32.mrb[0].mxu0
      %v8896 = vadd.f32 %v8703, %v8895
      %8897 = vdwg.mxu0
      %8898 = vmatprep.subr.bf16.mxu0 %v7233
      %8899 = vmatpush1.bf16.msra.mxu0 %v7232
      %8900 = vmatprep.subr.bf16.mxu0 %v7240
      %8901 = vmatpush1.bf16.msra.mxu0 %v7239
      %8902 = vmatprep.subr.bf16.mxu0 %v7247
      %8903 = vmatpush1.bf16.msra.mxu0 %v7246
      %8904 = vmatprep.subr.bf16.mxu0 %v7254
      %8905 = vmatpush1.bf16.msra.mxu0 %v7253
      %8906 = vmatprep.subr.bf16.mxu0 %v7261
      %8907 = vmatpush1.bf16.msra.mxu0 %v7260
      %8908 = vmatprep.subr.bf16.mxu0 %v7268
      %8909 = vmatpush1.bf16.msra.mxu0 %v7267
      %8910 = vmatprep.subr.bf16.mxu0 %v7275
      %8911 = vmatpush1.bf16.msra.mxu0 %v7274
      %8912 = vmatprep.subr.bf16.mxu0 %v7282
      %8913 = vmatpush1.bf16.msra.mxu0 %v7281
      %8914 = vmatprep.subr.bf16.mxu0 %v7289
      %8915 = vmatpush1.bf16.msra.mxu0 %v7288
      %8916 = vmatprep.subr.bf16.mxu0 %v7296
      %8917 = vmatpush1.bf16.msra.mxu0 %v7295
      %8918 = vmatprep.subr.bf16.mxu0 %v7303
      %8919 = vmatpush1.bf16.msra.mxu0 %v7302
      %8920 = vmatprep.subr.bf16.mxu0 %v7310
      %8921 = vmatpush1.bf16.msra.mxu0 %v7309
      %8922 = vmatprep.subr.bf16.mxu0 %v7317
      %8923 = vmatpush1.bf16.msra.mxu0 %v7316
      %8924 = vmatprep.subr.bf16.mxu0 %v7324
      %8925 = vmatpush1.bf16.msra.mxu0 %v7323
      %8926 = vmatprep.subr.bf16.mxu0 %v7331
      %8927 = vmatpush1.bf16.msra.mxu0 %v7330
      %8928 = vmatprep.subr.bf16.mxu0 %v7338
      %8929 = vmatpush1.bf16.msra.mxu0 %v7337
      %8930 = vmatprep.mubr.bf16.mxu0 %v5147
      %8931 = vmatmul.mubr.bf16.gmra.mrb[0].mxu0 %v5146
      %v8932 = vpop.f32.mrb[0].mxu0
      %v8933 = vadd.f32 %v5798, %v8932
      %v8934 = vpop.f32.mrb[0].mxu0
      %v8935 = vadd.f32 %v5802, %v8934
      %v8936 = vpop.f32.mrb[0].mxu0
      %v8937 = vadd.f32 %v5798, %v8936
      %v8938 = vpop.f32.mrb[0].mxu0
      %v8939 = vadd.f32 %v5802, %v8938
      %8940 = vmatprep.mubr.bf16.mxu0 %v5155
      %8941 = vmatmul.mubr.bf16.gmra.mrb[0].mxu0 %v5154
      %v8942 = vpop.f32.mrb[0].mxu0
      %v8943 = vadd.f32 %v5798, %v8942
      %v8944 = vpop.f32.mrb[0].mxu0
      %v8945 = vadd.f32 %v5802, %v8944
      %v8946 = vpop.f32.mrb[0].mxu0
      %v8947 = vadd.f32 %v5798, %v8946
      %v8948 = vpop.f32.mrb[0].mxu0
      %v8949 = vadd.f32 %v5802, %v8948
      %8950 = vmatprep.mubr.bf16.mxu0 %v5163
      %8951 = vmatmul.mubr.bf16.gmra.mrb[0].mxu0 %v5162
      %v8952 = vpop.f32.mrb[0].mxu0
      %v8953 = vadd.f32 %v5798, %v8952
      %v8954 = vpop.f32.mrb[0].mxu0
      %v8955 = vadd.f32 %v5802, %v8954
      %v8956 = vpop.f32.mrb[0].mxu0
      %v8957 = vadd.f32 %v5798, %v8956
      %v8958 = vpop.f32.mrb[0].mxu0
      %v8959 = vadd.f32 %v5802, %v8958
      %8960 = vmatprep.mubr.bf16.mxu0 %v5171
      %8961 = vmatmul.mubr.bf16.gmra.mrb[0].mxu0 %v5170
      %v8962 = vpop.f32.mrb[0].mxu0
      %v8963 = vadd.f32 %v5798, %v8962
      %v8964 = vpop.f32.mrb[0].mxu0
      %v8965 = vadd.f32 %v5802, %v8964
      %v8966 = vpop.f32.mrb[0].mxu0
      %v8967 = vadd.f32 %v5798, %v8966
      %v8968 = vpop.f32.mrb[0].mxu0
      %v8969 = vadd.f32 %v5802, %v8968
      %8970 = vmatprep.mubr.bf16.mxu0 %v5179
      %8971 = vmatmul.mubr.bf16.gmra.mrb[0].mxu0 %v5178
      %v8972 = vpop.f32.mrb[0].mxu0
      %v8973 = vadd.f32 %v5798, %v8972
      %v8974 = vpop.f32.mrb[0].mxu0
      %v8975 = vadd.f32 %v5802, %v8974
      %v8976 = vpop.f32.mrb[0].mxu0
      %v8977 = vadd.f32 %v5798, %v8976
      %v8978 = vpop.f32.mrb[0].mxu0
      %v8979 = vadd.f32 %v5802, %v8978
      %8980 = vmatprep.mubr.bf16.mxu0 %v5187
      %8981 = vmatmul.mubr.bf16.gmra.mrb[0].mxu0 %v5186
      %v8982 = vpop.f32.mrb[0].mxu0
      %v8983 = vadd.f32 %v5798, %v8982
      %v8984 = vpop.f32.mrb[0].mxu0
      %v8985 = vadd.f32 %v5802, %v8984
      %v8986 = vpop.f32.mrb[0].mxu0
      %v8987 = vadd.f32 %v5798, %v8986
      %v8988 = vpop.f32.mrb[0].mxu0
      %v8989 = vadd.f32 %v5802, %v8988
      %8990 = vmatprep.mubr.bf16.mxu0 %v5195
      %8991 = vmatmul.mubr.bf16.gmra.mrb[0].mxu0 %v5194
      %v8992 = vpop.f32.mrb[0].mxu0
      %v8993 = vadd.f32 %v5798, %v8992
      %v8994 = vpop.f32.mrb[0].mxu0
      %v8995 = vadd.f32 %v5802, %v8994
      %v8996 = vpop.f32.mrb[0].mxu0
      %v8997 = vadd.f32 %v5798, %v8996
      %v8998 = vpop.f32.mrb[0].mxu0
      %v8999 = vadd.f32 %v5802, %v8998
      %9000 = vmatprep.mubr.bf16.mxu0 %v5203
      %9001 = vmatmul.mubr.bf16.gmra.mrb[0].mxu0 %v5202
      %v9002 = vpop.f32.mrb[0].mxu0
      %v9003 = vadd.f32 %v5798, %v9002
      %v9004 = vpop.f32.mrb[0].mxu0
      %v9005 = vadd.f32 %v5802, %v9004
      %v9006 = vpop.f32.mrb[0].mxu0
      %v9007 = vadd.f32 %v5798, %v9006
      %v9008 = vpop.f32.mrb[0].mxu0
      %v9009 = vadd.f32 %v5802, %v9008
      %9010 = vmatprep.mubr.bf16.mxu0 %v5211
      %9011 = vmatmul.mubr.bf16.gmra.mrb[0].mxu0 %v5210
      %v9012 = vpop.f32.mrb[0].mxu0
      %v9013 = vadd.f32 %v5798, %v9012
      %v9014 = vpop.f32.mrb[0].mxu0
      %v9015 = vadd.f32 %v5802, %v9014
      %v9016 = vpop.f32.mrb[0].mxu0
      %v9017 = vadd.f32 %v5798, %v9016
      %v9018 = vpop.f32.mrb[0].mxu0
      %v9019 = vadd.f32 %v5802, %v9018
      %9020 = vmatprep.mubr.bf16.mxu0 %v5219
      %9021 = vmatmul.mubr.bf16.gmra.mrb[0].mxu0 %v5218
      %v9022 = vpop.f32.mrb[0].mxu0
      %v9023 = vadd.f32 %v5798, %v9022
      %v9024 = vpop.f32.mrb[0].mxu0
      %v9025 = vadd.f32 %v5802, %v9024
      %v9026 = vpop.f32.mrb[0].mxu0
      %v9027 = vadd.f32 %v5798, %v9026
      %v9028 = vpop.f32.mrb[0].mxu0
      %v9029 = vadd.f32 %v5802, %v9028
      %9030 = vmatprep.mubr.bf16.mxu0 %v5227
      %9031 = vmatmul.mubr.bf16.gmra.mrb[0].mxu0 %v5226
      %v9032 = vpop.f32.mrb[0].mxu0
      %v9033 = vadd.f32 %v5798, %v9032
      %v9034 = vpop.f32.mrb[0].mxu0
      %v9035 = vadd.f32 %v5802, %v9034
      %v9036 = vpop.f32.mrb[0].mxu0
      %v9037 = vadd.f32 %v5798, %v9036
      %v9038 = vpop.f32.mrb[0].mxu0
      %v9039 = vadd.f32 %v5802, %v9038
      %9040 = vmatprep.mubr.bf16.mxu0 %v5235
      %9041 = vmatmul.mubr.bf16.gmra.mrb[0].mxu0 %v5234
      %v9042 = vpop.f32.mrb[0].mxu0
      %v9043 = vadd.f32 %v5798, %v9042
      %v9044 = vpop.f32.mrb[0].mxu0
      %v9045 = vadd.f32 %v5802, %v9044
      %v9046 = vpop.f32.mrb[0].mxu0
      %v9047 = vadd.f32 %v5798, %v9046
      %v9048 = vpop.f32.mrb[0].mxu0
      %v9049 = vadd.f32 %v5802, %v9048
      %9050 = vmatprep.mubr.bf16.mxu0 %v5243
      %9051 = vmatmul.mubr.bf16.gmra.mrb[0].mxu0 %v5242
      %v9052 = vpop.f32.mrb[0].mxu0
      %v9053 = vadd.f32 %v5798, %v9052
      %v9054 = vpop.f32.mrb[0].mxu0
      %v9055 = vadd.f32 %v5802, %v9054
      %v9056 = vpop.f32.mrb[0].mxu0
      %v9057 = vadd.f32 %v5798, %v9056
      %v9058 = vpop.f32.mrb[0].mxu0
      %v9059 = vadd.f32 %v5802, %v9058
      %9060 = vmatprep.mubr.bf16.mxu0 %v5251
      %9061 = vmatmul.mubr.bf16.gmra.mrb[0].mxu0 %v5250
      %v9062 = vpop.f32.mrb[0].mxu0
      %v9063 = vadd.f32 %v5798, %v9062
      %v9064 = vpop.f32.mrb[0].mxu0
      %v9065 = vadd.f32 %v5802, %v9064
      %v9066 = vpop.f32.mrb[0].mxu0
      %v9067 = vadd.f32 %v5798, %v9066
      %v9068 = vpop.f32.mrb[0].mxu0
      %v9069 = vadd.f32 %v5802, %v9068
      %9070 = vmatprep.mubr.bf16.mxu0 %v5259
      %9071 = vmatmul.mubr.bf16.gmra.mrb[0].mxu0 %v5258
      %v9072 = vpop.f32.mrb[0].mxu0
      %v9073 = vadd.f32 %v5798, %v9072
      %v9074 = vpop.f32.mrb[0].mxu0
      %v9075 = vadd.f32 %v5802, %v9074
      %v9076 = vpop.f32.mrb[0].mxu0
      %v9077 = vadd.f32 %v5798, %v9076
      %v9078 = vpop.f32.mrb[0].mxu0
      %v9079 = vadd.f32 %v5802, %v9078
      %9080 = vmatprep.mubr.bf16.mxu0 %v5267
      %9081 = vmatmul.mubr.bf16.gmra.mrb[0].mxu0 %v5266
      %v9082 = vpop.f32.mrb[0].mxu0
      %v9083 = vadd.f32 %v5798, %v9082
      %v9084 = vpop.f32.mrb[0].mxu0
      %v9085 = vadd.f32 %v5802, %v9084
      %v9086 = vpop.f32.mrb[0].mxu0
      %v9087 = vadd.f32 %v5798, %v9086
      %v9088 = vpop.f32.mrb[0].mxu0
      %v9089 = vadd.f32 %v5802, %v9088
      %9090 = vdwg.mxu0
      %9091 = vmatprep.subr.bf16.mxu0 %v7345
      %9092 = vmatpush1.bf16.msra.mxu0 %v7344
      %9093 = vmatprep.subr.bf16.mxu0 %v7352
      %9094 = vmatpush1.bf16.msra.mxu0 %v7351
      %9095 = vmatprep.subr.bf16.mxu0 %v7359
      %9096 = vmatpush1.bf16.msra.mxu0 %v7358
      %9097 = vmatprep.subr.bf16.mxu0 %v7366
      %9098 = vmatpush1.bf16.msra.mxu0 %v7365
      %9099 = vmatprep.subr.bf16.mxu0 %v7373
      %9100 = vmatpush1.bf16.msra.mxu0 %v7372
      %9101 = vmatprep.subr.bf16.mxu0 %v7380
      %9102 = vmatpush1.bf16.msra.mxu0 %v7379
      %9103 = vmatprep.subr.bf16.mxu0 %v7387
      %9104 = vmatpush1.bf16.msra.mxu0 %v7386
      %9105 = vmatprep.subr.bf16.mxu0 %v7394
      %9106 = vmatpush1.bf16.msra.mxu0 %v7393
      %9107 = vmatprep.subr.bf16.mxu0 %v7401
      %9108 = vmatpush1.bf16.msra.mxu0 %v7400
      %9109 = vmatprep.subr.bf16.mxu0 %v7408
      %9110 = vmatpush1.bf16.msra.mxu0 %v7407
      %9111 = vmatprep.subr.bf16.mxu0 %v7415
      %9112 = vmatpush1.bf16.msra.mxu0 %v7414
      %9113 = vmatprep.subr.bf16.mxu0 %v7422
      %9114 = vmatpush1.bf16.msra.mxu0 %v7421
      %9115 = vmatprep.subr.bf16.mxu0 %v7429
      %9116 = vmatpush1.bf16.msra.mxu0 %v7428
      %9117 = vmatprep.subr.bf16.mxu0 %v7436
      %9118 = vmatpush1.bf16.msra.mxu0 %v7435
      %9119 = vmatprep.subr.bf16.mxu0 %v7443
      %9120 = vmatpush1.bf16.msra.mxu0 %v7442
      %9121 = vmatprep.subr.bf16.mxu0 %v7450
      %9122 = vmatpush1.bf16.msra.mxu0 %v7449
      %9123 = vmatprep.mubr.bf16.mxu0 %v5149
      %9124 = vmatmul.mubr.bf16.gmra.mrb[0].mxu0 %v5148
      %v9125 = vpop.f32.mrb[0].mxu0
      %v9126 = vadd.f32 %v8933, %v9125
      %v9127 = vpop.f32.mrb[0].mxu0
      %v9128 = vadd.f32 %v8935, %v9127
      %v9129 = vpop.f32.mrb[0].mxu0
      %v9130 = vadd.f32 %v8937, %v9129
      %v9131 = vpop.f32.mrb[0].mxu0
      %v9132 = vadd.f32 %v8939, %v9131
      %9133 = vmatprep.mubr.bf16.mxu0 %v5157
      %9134 = vmatmul.mubr.bf16.gmra.mrb[0].mxu0 %v5156
      %v9135 = vpop.f32.mrb[0].mxu0
      %v9136 = vadd.f32 %v8943, %v9135
      %v9137 = vpop.f32.mrb[0].mxu0
      %v9138 = vadd.f32 %v8945, %v9137
      %v9139 = vpop.f32.mrb[0].mxu0
      %v9140 = vadd.f32 %v8947, %v9139
      %v9141 = vpop.f32.mrb[0].mxu0
      %v9142 = vadd.f32 %v8949, %v9141
      %9143 = vmatprep.mubr.bf16.mxu0 %v5165
      %9144 = vmatmul.mubr.bf16.gmra.mrb[0].mxu0 %v5164
      %v9145 = vpop.f32.mrb[0].mxu0
      %v9146 = vadd.f32 %v8953, %v9145
      %v9147 = vpop.f32.mrb[0].mxu0
      %v9148 = vadd.f32 %v8955, %v9147
      %v9149 = vpop.f32.mrb[0].mxu0
      %v9150 = vadd.f32 %v8957, %v9149
      %v9151 = vpop.f32.mrb[0].mxu0
      %v9152 = vadd.f32 %v8959, %v9151
      %9153 = vmatprep.mubr.bf16.mxu0 %v5173
      %9154 = vmatmul.mubr.bf16.gmra.mrb[0].mxu0 %v5172
      %v9155 = vpop.f32.mrb[0].mxu0
      %v9156 = vadd.f32 %v8963, %v9155
      %v9157 = vpop.f32.mrb[0].mxu0
      %v9158 = vadd.f32 %v8965, %v9157
      %v9159 = vpop.f32.mrb[0].mxu0
      %v9160 = vadd.f32 %v8967, %v9159
      %v9161 = vpop.f32.mrb[0].mxu0
      %v9162 = vadd.f32 %v8969, %v9161
      %9163 = vmatprep.mubr.bf16.mxu0 %v5181
      %9164 = vmatmul.mubr.bf16.gmra.mrb[0].mxu0 %v5180
      %v9165 = vpop.f32.mrb[0].mxu0
      %v9166 = vadd.f32 %v8973, %v9165
      %v9167 = vpop.f32.mrb[0].mxu0
      %v9168 = vadd.f32 %v8975, %v9167
      %v9169 = vpop.f32.mrb[0].mxu0
      %v9170 = vadd.f32 %v8977, %v9169
      %v9171 = vpop.f32.mrb[0].mxu0
      %v9172 = vadd.f32 %v8979, %v9171
      %9173 = vmatprep.mubr.bf16.mxu0 %v5189
      %9174 = vmatmul.mubr.bf16.gmra.mrb[0].mxu0 %v5188
      %v9175 = vpop.f32.mrb[0].mxu0
      %v9176 = vadd.f32 %v8983, %v9175
      %v9177 = vpop.f32.mrb[0].mxu0
      %v9178 = vadd.f32 %v8985, %v9177
      %v9179 = vpop.f32.mrb[0].mxu0
      %v9180 = vadd.f32 %v8987, %v9179
      %v9181 = vpop.f32.mrb[0].mxu0
      %v9182 = vadd.f32 %v8989, %v9181
      %9183 = vmatprep.mubr.bf16.mxu0 %v5197
      %9184 = vmatmul.mubr.bf16.gmra.mrb[0].mxu0 %v5196
      %v9185 = vpop.f32.mrb[0].mxu0
      %v9186 = vadd.f32 %v8993, %v9185
      %v9187 = vpop.f32.mrb[0].mxu0
      %v9188 = vadd.f32 %v8995, %v9187
      %v9189 = vpop.f32.mrb[0].mxu0
      %v9190 = vadd.f32 %v8997, %v9189
      %v9191 = vpop.f32.mrb[0].mxu0
      %v9192 = vadd.f32 %v8999, %v9191
      %9193 = vmatprep.mubr.bf16.mxu0 %v5205
      %9194 = vmatmul.mubr.bf16.gmra.mrb[0].mxu0 %v5204
      %v9195 = vpop.f32.mrb[0].mxu0
      %v9196 = vadd.f32 %v9003, %v9195
      %v9197 = vpop.f32.mrb[0].mxu0
      %v9198 = vadd.f32 %v9005, %v9197
      %v9199 = vpop.f32.mrb[0].mxu0
      %v9200 = vadd.f32 %v9007, %v9199
      %v9201 = vpop.f32.mrb[0].mxu0
      %v9202 = vadd.f32 %v9009, %v9201
      %9203 = vmatprep.mubr.bf16.mxu0 %v5213
      %9204 = vmatmul.mubr.bf16.gmra.mrb[0].mxu0 %v5212
      %v9205 = vpop.f32.mrb[0].mxu0
      %v9206 = vadd.f32 %v9013, %v9205
      %v9207 = vpop.f32.mrb[0].mxu0
      %v9208 = vadd.f32 %v9015, %v9207
      %v9209 = vpop.f32.mrb[0].mxu0
      %v9210 = vadd.f32 %v9017, %v9209
      %v9211 = vpop.f32.mrb[0].mxu0
      %v9212 = vadd.f32 %v9019, %v9211
      %9213 = vmatprep.mubr.bf16.mxu0 %v5221
      %9214 = vmatmul.mubr.bf16.gmra.mrb[0].mxu0 %v5220
      %v9215 = vpop.f32.mrb[0].mxu0
      %v9216 = vadd.f32 %v9023, %v9215
      %v9217 = vpop.f32.mrb[0].mxu0
      %v9218 = vadd.f32 %v9025, %v9217
      %v9219 = vpop.f32.mrb[0].mxu0
      %v9220 = vadd.f32 %v9027, %v9219
      %v9221 = vpop.f32.mrb[0].mxu0
      %v9222 = vadd.f32 %v9029, %v9221
      %9223 = vmatprep.mubr.bf16.mxu0 %v5229
      %9224 = vmatmul.mubr.bf16.gmra.mrb[0].mxu0 %v5228
      %v9225 = vpop.f32.mrb[0].mxu0
      %v9226 = vadd.f32 %v9033, %v9225
      %v9227 = vpop.f32.mrb[0].mxu0
      %v9228 = vadd.f32 %v9035, %v9227
      %v9229 = vpop.f32.mrb[0].mxu0
      %v9230 = vadd.f32 %v9037, %v9229
      %v9231 = vpop.f32.mrb[0].mxu0
      %v9232 = vadd.f32 %v9039, %v9231
      %9233 = vmatprep.mubr.bf16.mxu0 %v5237
      %9234 = vmatmul.mubr.bf16.gmra.mrb[0].mxu0 %v5236
      %v9235 = vpop.f32.mrb[0].mxu0
      %v9236 = vadd.f32 %v9043, %v9235
      %v9237 = vpop.f32.mrb[0].mxu0
      %v9238 = vadd.f32 %v9045, %v9237
      %v9239 = vpop.f32.mrb[0].mxu0
      %v9240 = vadd.f32 %v9047, %v9239
      %v9241 = vpop.f32.mrb[0].mxu0
      %v9242 = vadd.f32 %v9049, %v9241
      %9243 = vmatprep.mubr.bf16.mxu0 %v5245
      %9244 = vmatmul.mubr.bf16.gmra.mrb[0].mxu0 %v5244
      %v9245 = vpop.f32.mrb[0].mxu0
      %v9246 = vadd.f32 %v9053, %v9245
      %v9247 = vpop.f32.mrb[0].mxu0
      %v9248 = vadd.f32 %v9055, %v9247
      %v9249 = vpop.f32.mrb[0].mxu0
      %v9250 = vadd.f32 %v9057, %v9249
      %v9251 = vpop.f32.mrb[0].mxu0
      %v9252 = vadd.f32 %v9059, %v9251
      %9253 = vmatprep.mubr.bf16.mxu0 %v5253
      %9254 = vmatmul.mubr.bf16.gmra.mrb[0].mxu0 %v5252
      %v9255 = vpop.f32.mrb[0].mxu0
      %v9256 = vadd.f32 %v9063, %v9255
      %v9257 = vpop.f32.mrb[0].mxu0
      %v9258 = vadd.f32 %v9065, %v9257
      %v9259 = vpop.f32.mrb[0].mxu0
      %v9260 = vadd.f32 %v9067, %v9259
      %v9261 = vpop.f32.mrb[0].mxu0
      %v9262 = vadd.f32 %v9069, %v9261
      %9263 = vmatprep.mubr.bf16.mxu0 %v5261
      %9264 = vmatmul.mubr.bf16.gmra.mrb[0].mxu0 %v5260
      %v9265 = vpop.f32.mrb[0].mxu0
      %v9266 = vadd.f32 %v9073, %v9265
      %v9267 = vpop.f32.mrb[0].mxu0
      %v9268 = vadd.f32 %v9075, %v9267
      %v9269 = vpop.f32.mrb[0].mxu0
      %v9270 = vadd.f32 %v9077, %v9269
      %v9271 = vpop.f32.mrb[0].mxu0
      %v9272 = vadd.f32 %v9079, %v9271
      %9273 = vmatprep.mubr.bf16.mxu0 %v5269
      %9274 = vmatmul.mubr.bf16.gmra.mrb[0].mxu0 %v5268
      %v9275 = vpop.f32.mrb[0].mxu0
      %v9276 = vadd.f32 %v9083, %v9275
      %v9277 = vpop.f32.mrb[0].mxu0
      %v9278 = vadd.f32 %v9085, %v9277
      %v9279 = vpop.f32.mrb[0].mxu0
      %v9280 = vadd.f32 %v9087, %v9279
      %v9281 = vpop.f32.mrb[0].mxu0
      %v9282 = vadd.f32 %v9089, %v9281
      %9283 = vdwg.mxu0
      %9284 = vmatprep.subr.bf16.mxu0 %v7457
      %9285 = vmatpush1.bf16.msra.mxu0 %v7456
      %9286 = vmatprep.subr.bf16.mxu0 %v7464
      %9287 = vmatpush1.bf16.msra.mxu0 %v7463
      %9288 = vmatprep.subr.bf16.mxu0 %v7471
      %9289 = vmatpush1.bf16.msra.mxu0 %v7470
      %9290 = vmatprep.subr.bf16.mxu0 %v7478
      %9291 = vmatpush1.bf16.msra.mxu0 %v7477
      %9292 = vmatprep.subr.bf16.mxu0 %v7485
      %9293 = vmatpush1.bf16.msra.mxu0 %v7484
      %9294 = vmatprep.subr.bf16.mxu0 %v7492
      %9295 = vmatpush1.bf16.msra.mxu0 %v7491
      %9296 = vmatprep.subr.bf16.mxu0 %v7499
      %9297 = vmatpush1.bf16.msra.mxu0 %v7498
      %9298 = vmatprep.subr.bf16.mxu0 %v7506
      %9299 = vmatpush1.bf16.msra.mxu0 %v7505
      %9300 = vmatprep.subr.bf16.mxu0 %v7513
      %9301 = vmatpush1.bf16.msra.mxu0 %v7512
      %9302 = vmatprep.subr.bf16.mxu0 %v7520
      %9303 = vmatpush1.bf16.msra.mxu0 %v7519
      %9304 = vmatprep.subr.bf16.mxu0 %v7527
      %9305 = vmatpush1.bf16.msra.mxu0 %v7526
      %9306 = vmatprep.subr.bf16.mxu0 %v7534
      %9307 = vmatpush1.bf16.msra.mxu0 %v7533
      %9308 = vmatprep.subr.bf16.mxu0 %v7541
      %9309 = vmatpush1.bf16.msra.mxu0 %v7540
      %9310 = vmatprep.subr.bf16.mxu0 %v7548
      %9311 = vmatpush1.bf16.msra.mxu0 %v7547
      %9312 = vmatprep.subr.bf16.mxu0 %v7555
      %9313 = vmatpush1.bf16.msra.mxu0 %v7554
      %9314 = vmatprep.subr.bf16.mxu0 %v7562
      %9315 = vmatpush1.bf16.msra.mxu0 %v7561
      %9316 = vmatprep.mubr.bf16.mxu0 %v5151
      %9317 = vmatmul.mubr.bf16.gmra.mrb[0].mxu0 %v5150
      %v9318 = vpop.f32.mrb[0].mxu0
      %v9319 = vadd.f32 %v9126, %v9318
      %v9320 = vpop.f32.mrb[0].mxu0
      %v9321 = vadd.f32 %v9128, %v9320
      %v9322 = vpop.f32.mrb[0].mxu0
      %v9323 = vadd.f32 %v9130, %v9322
      %v9324 = vpop.f32.mrb[0].mxu0
      %v9325 = vadd.f32 %v9132, %v9324
      %9326 = vmatprep.mubr.bf16.mxu0 %v5159
      %9327 = vmatmul.mubr.bf16.gmra.mrb[0].mxu0 %v5158
      %v9328 = vpop.f32.mrb[0].mxu0
      %v9329 = vadd.f32 %v9136, %v9328
      %v9330 = vpop.f32.mrb[0].mxu0
      %v9331 = vadd.f32 %v9138, %v9330
      %v9332 = vpop.f32.mrb[0].mxu0
      %v9333 = vadd.f32 %v9140, %v9332
      %v9334 = vpop.f32.mrb[0].mxu0
      %v9335 = vadd.f32 %v9142, %v9334
      %9336 = vmatprep.mubr.bf16.mxu0 %v5167
      %9337 = vmatmul.mubr.bf16.gmra.mrb[0].mxu0 %v5166
      %v9338 = vpop.f32.mrb[0].mxu0
      %v9339 = vadd.f32 %v9146, %v9338
      %v9340 = vpop.f32.mrb[0].mxu0
      %v9341 = vadd.f32 %v9148, %v9340
      %v9342 = vpop.f32.mrb[0].mxu0
      %v9343 = vadd.f32 %v9150, %v9342
      %v9344 = vpop.f32.mrb[0].mxu0
      %v9345 = vadd.f32 %v9152, %v9344
      %9346 = vmatprep.mubr.bf16.mxu0 %v5175
      %9347 = vmatmul.mubr.bf16.gmra.mrb[0].mxu0 %v5174
      %v9348 = vpop.f32.mrb[0].mxu0
      %v9349 = vadd.f32 %v9156, %v9348
      %v9350 = vpop.f32.mrb[0].mxu0
      %v9351 = vadd.f32 %v9158, %v9350
      %v9352 = vpop.f32.mrb[0].mxu0
      %v9353 = vadd.f32 %v9160, %v9352
      %v9354 = vpop.f32.mrb[0].mxu0
      %v9355 = vadd.f32 %v9162, %v9354
      %9356 = vmatprep.mubr.bf16.mxu0 %v5183
      %9357 = vmatmul.mubr.bf16.gmra.mrb[0].mxu0 %v5182
      %v9358 = vpop.f32.mrb[0].mxu0
      %v9359 = vadd.f32 %v9166, %v9358
      %v9360 = vpop.f32.mrb[0].mxu0
      %v9361 = vadd.f32 %v9168, %v9360
      %v9362 = vpop.f32.mrb[0].mxu0
      %v9363 = vadd.f32 %v9170, %v9362
      %v9364 = vpop.f32.mrb[0].mxu0
      %v9365 = vadd.f32 %v9172, %v9364
      %9366 = vmatprep.mubr.bf16.mxu0 %v5191
      %9367 = vmatmul.mubr.bf16.gmra.mrb[0].mxu0 %v5190
      %v9368 = vpop.f32.mrb[0].mxu0
      %v9369 = vadd.f32 %v9176, %v9368
      %v9370 = vpop.f32.mrb[0].mxu0
      %v9371 = vadd.f32 %v9178, %v9370
      %v9372 = vpop.f32.mrb[0].mxu0
      %v9373 = vadd.f32 %v9180, %v9372
      %v9374 = vpop.f32.mrb[0].mxu0
      %v9375 = vadd.f32 %v9182, %v9374
      %9376 = vmatprep.mubr.bf16.mxu0 %v5199
      %9377 = vmatmul.mubr.bf16.gmra.mrb[0].mxu0 %v5198
      %v9378 = vpop.f32.mrb[0].mxu0
      %v9379 = vadd.f32 %v9186, %v9378
      %v9380 = vpop.f32.mrb[0].mxu0
      %v9381 = vadd.f32 %v9188, %v9380
      %v9382 = vpop.f32.mrb[0].mxu0
      %v9383 = vadd.f32 %v9190, %v9382
      %v9384 = vpop.f32.mrb[0].mxu0
      %v9385 = vadd.f32 %v9192, %v9384
      %9386 = vmatprep.mubr.bf16.mxu0 %v5207
      %9387 = vmatmul.mubr.bf16.gmra.mrb[0].mxu0 %v5206
      %v9388 = vpop.f32.mrb[0].mxu0
      %v9389 = vadd.f32 %v9196, %v9388
      %v9390 = vpop.f32.mrb[0].mxu0
      %v9391 = vadd.f32 %v9198, %v9390
      %v9392 = vpop.f32.mrb[0].mxu0
      %v9393 = vadd.f32 %v9200, %v9392
      %v9394 = vpop.f32.mrb[0].mxu0
      %v9395 = vadd.f32 %v9202, %v9394
      %9396 = vmatprep.mubr.bf16.mxu0 %v5215
      %9397 = vmatmul.mubr.bf16.gmra.mrb[0].mxu0 %v5214
      %v9398 = vpop.f32.mrb[0].mxu0
      %v9399 = vadd.f32 %v9206, %v9398
      %v9400 = vpop.f32.mrb[0].mxu0
      %v9401 = vadd.f32 %v9208, %v9400
      %v9402 = vpop.f32.mrb[0].mxu0
      %v9403 = vadd.f32 %v9210, %v9402
      %v9404 = vpop.f32.mrb[0].mxu0
      %v9405 = vadd.f32 %v9212, %v9404
      %9406 = vmatprep.mubr.bf16.mxu0 %v5223
      %9407 = vmatmul.mubr.bf16.gmra.mrb[0].mxu0 %v5222
      %v9408 = vpop.f32.mrb[0].mxu0
      %v9409 = vadd.f32 %v9216, %v9408
      %v9410 = vpop.f32.mrb[0].mxu0
      %v9411 = vadd.f32 %v9218, %v9410
      %v9412 = vpop.f32.mrb[0].mxu0
      %v9413 = vadd.f32 %v9220, %v9412
      %v9414 = vpop.f32.mrb[0].mxu0
      %v9415 = vadd.f32 %v9222, %v9414
      %9416 = vmatprep.mubr.bf16.mxu0 %v5231
      %9417 = vmatmul.mubr.bf16.gmra.mrb[0].mxu0 %v5230
      %v9418 = vpop.f32.mrb[0].mxu0
      %v9419 = vadd.f32 %v9226, %v9418
      %v9420 = vpop.f32.mrb[0].mxu0
      %v9421 = vadd.f32 %v9228, %v9420
      %v9422 = vpop.f32.mrb[0].mxu0
      %v9423 = vadd.f32 %v9230, %v9422
      %v9424 = vpop.f32.mrb[0].mxu0
      %v9425 = vadd.f32 %v9232, %v9424
      %9426 = vmatprep.mubr.bf16.mxu0 %v5239
      %9427 = vmatmul.mubr.bf16.gmra.mrb[0].mxu0 %v5238
      %v9428 = vpop.f32.mrb[0].mxu0
      %v9429 = vadd.f32 %v9236, %v9428
      %v9430 = vpop.f32.mrb[0].mxu0
      %v9431 = vadd.f32 %v9238, %v9430
      %v9432 = vpop.f32.mrb[0].mxu0
      %v9433 = vadd.f32 %v9240, %v9432
      %v9434 = vpop.f32.mrb[0].mxu0
      %v9435 = vadd.f32 %v9242, %v9434
      %9436 = vmatprep.mubr.bf16.mxu0 %v5247
      %9437 = vmatmul.mubr.bf16.gmra.mrb[0].mxu0 %v5246
      %v9438 = vpop.f32.mrb[0].mxu0
      %v9439 = vadd.f32 %v9246, %v9438
      %v9440 = vpop.f32.mrb[0].mxu0
      %v9441 = vadd.f32 %v9248, %v9440
      %v9442 = vpop.f32.mrb[0].mxu0
      %v9443 = vadd.f32 %v9250, %v9442
      %v9444 = vpop.f32.mrb[0].mxu0
      %v9445 = vadd.f32 %v9252, %v9444
      %9446 = vmatprep.mubr.bf16.mxu0 %v5255
      %9447 = vmatmul.mubr.bf16.gmra.mrb[0].mxu0 %v5254
      %v9448 = vpop.f32.mrb[0].mxu0
      %v9449 = vadd.f32 %v9256, %v9448
      %v9450 = vpop.f32.mrb[0].mxu0
      %v9451 = vadd.f32 %v9258, %v9450
      %v9452 = vpop.f32.mrb[0].mxu0
      %v9453 = vadd.f32 %v9260, %v9452
      %v9454 = vpop.f32.mrb[0].mxu0
      %v9455 = vadd.f32 %v9262, %v9454
      %9456 = vmatprep.mubr.bf16.mxu0 %v5263
      %9457 = vmatmul.mubr.bf16.gmra.mrb[0].mxu0 %v5262
      %v9458 = vpop.f32.mrb[0].mxu0
      %v9459 = vadd.f32 %v9266, %v9458
      %v9460 = vpop.f32.mrb[0].mxu0
      %v9461 = vadd.f32 %v9268, %v9460
      %v9462 = vpop.f32.mrb[0].mxu0
      %v9463 = vadd.f32 %v9270, %v9462
      %v9464 = vpop.f32.mrb[0].mxu0
      %v9465 = vadd.f32 %v9272, %v9464
      %9466 = vmatprep.mubr.bf16.mxu0 %v5271
      %9467 = vmatmul.mubr.bf16.gmra.mrb[0].mxu0 %v5270
      %v9468 = vpop.f32.mrb[0].mxu0
      %v9469 = vadd.f32 %v9276, %v9468
      %v9470 = vpop.f32.mrb[0].mxu0
      %v9471 = vadd.f32 %v9278, %v9470
      %v9472 = vpop.f32.mrb[0].mxu0
      %v9473 = vadd.f32 %v9280, %v9472
      %v9474 = vpop.f32.mrb[0].mxu0
      %v9475 = vadd.f32 %v9282, %v9474
      %9476 = vdwg.mxu0
      %9477 = vmatprep.subr.bf16.mxu0 %v7569
      %9478 = vmatpush1.bf16.msra.mxu0 %v7568
      %9479 = vmatprep.subr.bf16.mxu0 %v7576
      %9480 = vmatpush1.bf16.msra.mxu0 %v7575
      %9481 = vmatprep.subr.bf16.mxu0 %v7583
      %9482 = vmatpush1.bf16.msra.mxu0 %v7582
      %9483 = vmatprep.subr.bf16.mxu0 %v7590
      %9484 = vmatpush1.bf16.msra.mxu0 %v7589
      %9485 = vmatprep.subr.bf16.mxu0 %v7597
      %9486 = vmatpush1.bf16.msra.mxu0 %v7596
      %9487 = vmatprep.subr.bf16.mxu0 %v7604
      %9488 = vmatpush1.bf16.msra.mxu0 %v7603
      %9489 = vmatprep.subr.bf16.mxu0 %v7611
      %9490 = vmatpush1.bf16.msra.mxu0 %v7610
      %9491 = vmatprep.subr.bf16.mxu0 %v7618
      %9492 = vmatpush1.bf16.msra.mxu0 %v7617
      %9493 = vmatprep.subr.bf16.mxu0 %v7625
      %9494 = vmatpush1.bf16.msra.mxu0 %v7624
      %9495 = vmatprep.subr.bf16.mxu0 %v7632
      %9496 = vmatpush1.bf16.msra.mxu0 %v7631
      %9497 = vmatprep.subr.bf16.mxu0 %v7639
      %9498 = vmatpush1.bf16.msra.mxu0 %v7638
      %9499 = vmatprep.subr.bf16.mxu0 %v7646
      %9500 = vmatpush1.bf16.msra.mxu0 %v7645
      %9501 = vmatprep.subr.bf16.mxu0 %v7653
      %9502 = vmatpush1.bf16.msra.mxu0 %v7652
      %9503 = vmatprep.subr.bf16.mxu0 %v7660
      %9504 = vmatpush1.bf16.msra.mxu0 %v7659
      %9505 = vmatprep.subr.bf16.mxu0 %v7667
      %9506 = vmatpush1.bf16.msra.mxu0 %v7666
      %9507 = vmatprep.subr.bf16.mxu0 %v7674
      %9508 = vmatpush1.bf16.msra.mxu0 %v7673
      %9509 = vmatprep.mubr.bf16.mxu0 %v5153
      %9510 = vmatmul.mubr.bf16.gmra.mrb[0].mxu0 %v5152
      %v9511 = vpop.f32.mrb[0].mxu0
      %v9512 = vadd.f32 %v9319, %v9511
      %v9513 = vpop.f32.mrb[0].mxu0
      %v9514 = vadd.f32 %v9321, %v9513
      %v9515 = vpop.f32.mrb[0].mxu0
      %v9516 = vadd.f32 %v9323, %v9515
      %v9517 = vpop.f32.mrb[0].mxu0
      %v9518 = vadd.f32 %v9325, %v9517
      %9519 = vmatprep.mubr.bf16.mxu0 %v5161
      %9520 = vmatmul.mubr.bf16.gmra.mrb[0].mxu0 %v5160
      %v9521 = vpop.f32.mrb[0].mxu0
      %v9522 = vadd.f32 %v9329, %v9521
      %v9523 = vpop.f32.mrb[0].mxu0
      %v9524 = vadd.f32 %v9331, %v9523
      %v9525 = vpop.f32.mrb[0].mxu0
      %v9526 = vadd.f32 %v9333, %v9525
      %v9527 = vpop.f32.mrb[0].mxu0
      %v9528 = vadd.f32 %v9335, %v9527
      %9529 = vmatprep.mubr.bf16.mxu0 %v5169
      %9530 = vmatmul.mubr.bf16.gmra.mrb[0].mxu0 %v5168
      %v9531 = vpop.f32.mrb[0].mxu0
      %v9532 = vadd.f32 %v9339, %v9531
      %v9533 = vpop.f32.mrb[0].mxu0
      %v9534 = vadd.f32 %v9341, %v9533
      %v9535 = vpop.f32.mrb[0].mxu0
      %v9536 = vadd.f32 %v9343, %v9535
      %v9537 = vpop.f32.mrb[0].mxu0
      %v9538 = vadd.f32 %v9345, %v9537
      %9539 = vmatprep.mubr.bf16.mxu0 %v5177
      %9540 = vmatmul.mubr.bf16.gmra.mrb[0].mxu0 %v5176
      %v9541 = vpop.f32.mrb[0].mxu0
      %v9542 = vadd.f32 %v9349, %v9541
      %v9543 = vpop.f32.mrb[0].mxu0
      %v9544 = vadd.f32 %v9351, %v9543
      %v9545 = vpop.f32.mrb[0].mxu0
      %v9546 = vadd.f32 %v9353, %v9545
      %v9547 = vpop.f32.mrb[0].mxu0
      %v9548 = vadd.f32 %v9355, %v9547
      %9549 = vmatprep.mubr.bf16.mxu0 %v5185
      %9550 = vmatmul.mubr.bf16.gmra.mrb[0].mxu0 %v5184
      %v9551 = vpop.f32.mrb[0].mxu0
      %v9552 = vadd.f32 %v9359, %v9551
      %v9553 = vpop.f32.mrb[0].mxu0
      %v9554 = vadd.f32 %v9361, %v9553
      %v9555 = vpop.f32.mrb[0].mxu0
      %v9556 = vadd.f32 %v9363, %v9555
      %v9557 = vpop.f32.mrb[0].mxu0
      %v9558 = vadd.f32 %v9365, %v9557
      %9559 = vmatprep.mubr.bf16.mxu0 %v5193
      %9560 = vmatmul.mubr.bf16.gmra.mrb[0].mxu0 %v5192
      %v9561 = vpop.f32.mrb[0].mxu0
      %v9562 = vadd.f32 %v9369, %v9561
      %v9563 = vpop.f32.mrb[0].mxu0
      %v9564 = vadd.f32 %v9371, %v9563
      %v9565 = vpop.f32.mrb[0].mxu0
      %v9566 = vadd.f32 %v9373, %v9565
      %v9567 = vpop.f32.mrb[0].mxu0
      %v9568 = vadd.f32 %v9375, %v9567
      %9569 = vmatprep.mubr.bf16.mxu0 %v5201
      %9570 = vmatmul.mubr.bf16.gmra.mrb[0].mxu0 %v5200
      %v9571 = vpop.f32.mrb[0].mxu0
      %v9572 = vadd.f32 %v9379, %v9571
      %v9573 = vpop.f32.mrb[0].mxu0
      %v9574 = vadd.f32 %v9381, %v9573
      %v9575 = vpop.f32.mrb[0].mxu0
      %v9576 = vadd.f32 %v9383, %v9575
      %v9577 = vpop.f32.mrb[0].mxu0
      %v9578 = vadd.f32 %v9385, %v9577
      %9579 = vmatprep.mubr.bf16.mxu0 %v5209
      %9580 = vmatmul.mubr.bf16.gmra.mrb[0].mxu0 %v5208
      %v9581 = vpop.f32.mrb[0].mxu0
      %v9582 = vadd.f32 %v9389, %v9581
      %v9583 = vpop.f32.mrb[0].mxu0
      %v9584 = vadd.f32 %v9391, %v9583
      %v9585 = vpop.f32.mrb[0].mxu0
      %v9586 = vadd.f32 %v9393, %v9585
      %v9587 = vpop.f32.mrb[0].mxu0
      %v9588 = vadd.f32 %v9395, %v9587
      %9589 = vmatprep.mubr.bf16.mxu0 %v5217
      %9590 = vmatmul.mubr.bf16.gmra.mrb[0].mxu0 %v5216
      %v9591 = vpop.f32.mrb[0].mxu0
      %v9592 = vadd.f32 %v9399, %v9591
      %v9593 = vpop.f32.mrb[0].mxu0
      %v9594 = vadd.f32 %v9401, %v9593
      %v9595 = vpop.f32.mrb[0].mxu0
      %v9596 = vadd.f32 %v9403, %v9595
      %v9597 = vpop.f32.mrb[0].mxu0
      %v9598 = vadd.f32 %v9405, %v9597
      %9599 = vmatprep.mubr.bf16.mxu0 %v5225
      %9600 = vmatmul.mubr.bf16.gmra.mrb[0].mxu0 %v5224
      %v9601 = vpop.f32.mrb[0].mxu0
      %v9602 = vadd.f32 %v9409, %v9601
      %v9603 = vpop.f32.mrb[0].mxu0
      %v9604 = vadd.f32 %v9411, %v9603
      %v9605 = vpop.f32.mrb[0].mxu0
      %v9606 = vadd.f32 %v9413, %v9605
      %v9607 = vpop.f32.mrb[0].mxu0
      %v9608 = vadd.f32 %v9415, %v9607
      %9609 = vmatprep.mubr.bf16.mxu0 %v5233
      %9610 = vmatmul.mubr.bf16.gmra.mrb[0].mxu0 %v5232
      %v9611 = vpop.f32.mrb[0].mxu0
      %v9612 = vadd.f32 %v9419, %v9611
      %v9613 = vpop.f32.mrb[0].mxu0
      %v9614 = vadd.f32 %v9421, %v9613
      %v9615 = vpop.f32.mrb[0].mxu0
      %v9616 = vadd.f32 %v9423, %v9615
      %v9617 = vpop.f32.mrb[0].mxu0
      %v9618 = vadd.f32 %v9425, %v9617
      %9619 = vmatprep.mubr.bf16.mxu0 %v5241
      %9620 = vmatmul.mubr.bf16.gmra.mrb[0].mxu0 %v5240
      %v9621 = vpop.f32.mrb[0].mxu0
      %v9622 = vadd.f32 %v9429, %v9621
      %v9623 = vpop.f32.mrb[0].mxu0
      %v9624 = vadd.f32 %v9431, %v9623
      %v9625 = vpop.f32.mrb[0].mxu0
      %v9626 = vadd.f32 %v9433, %v9625
      %v9627 = vpop.f32.mrb[0].mxu0
      %v9628 = vadd.f32 %v9435, %v9627
      %9629 = vmatprep.mubr.bf16.mxu0 %v5249
      %9630 = vmatmul.mubr.bf16.gmra.mrb[0].mxu0 %v5248
      %v9631 = vpop.f32.mrb[0].mxu0
      %v9632 = vadd.f32 %v9439, %v9631
      %v9633 = vpop.f32.mrb[0].mxu0
      %v9634 = vadd.f32 %v9441, %v9633
      %v9635 = vpop.f32.mrb[0].mxu0
      %v9636 = vadd.f32 %v9443, %v9635
      %v9637 = vpop.f32.mrb[0].mxu0
      %v9638 = vadd.f32 %v9445, %v9637
      %9639 = vmatprep.mubr.bf16.mxu0 %v5257
      %9640 = vmatmul.mubr.bf16.gmra.mrb[0].mxu0 %v5256
      %v9641 = vpop.f32.mrb[0].mxu0
      %v9642 = vadd.f32 %v9449, %v9641
      %v9643 = vpop.f32.mrb[0].mxu0
      %v9644 = vadd.f32 %v9451, %v9643
      %v9645 = vpop.f32.mrb[0].mxu0
      %v9646 = vadd.f32 %v9453, %v9645
      %v9647 = vpop.f32.mrb[0].mxu0
      %v9648 = vadd.f32 %v9455, %v9647
      %9649 = vmatprep.mubr.bf16.mxu0 %v5265
      %9650 = vmatmul.mubr.bf16.gmra.mrb[0].mxu0 %v5264
      %v9651 = vpop.f32.mrb[0].mxu0
      %v9652 = vadd.f32 %v9459, %v9651
      %v9653 = vpop.f32.mrb[0].mxu0
      %v9654 = vadd.f32 %v9461, %v9653
      %v9655 = vpop.f32.mrb[0].mxu0
      %v9656 = vadd.f32 %v9463, %v9655
      %v9657 = vpop.f32.mrb[0].mxu0
      %v9658 = vadd.f32 %v9465, %v9657
      %9659 = vmatprep.mubr.bf16.mxu0 %v5273
      %9660 = vmatmul.mubr.bf16.gmra.mrb[0].mxu0 %v5272
      %v9661 = vpop.f32.mrb[0].mxu0
      %v9662 = vadd.f32 %v9469, %v9661
      %v9663 = vpop.f32.mrb[0].mxu0
      %v9664 = vadd.f32 %v9471, %v9663
      %v9665 = vpop.f32.mrb[0].mxu0
      %v9666 = vadd.f32 %v9473, %v9665
      %v9667 = vpop.f32.mrb[0].mxu0
      %v9668 = vadd.f32 %v9475, %v9667
      %9669 = vdwg.mxu0
      %9670 = vmatprep.subr.bf16.mxu0 %v7235
      %9671 = vmatpush1.bf16.msra.mxu0 %v7234
      %9672 = vmatprep.subr.bf16.mxu0 %v7242
      %9673 = vmatpush1.bf16.msra.mxu0 %v7241
      %9674 = vmatprep.subr.bf16.mxu0 %v7249
      %9675 = vmatpush1.bf16.msra.mxu0 %v7248
      %9676 = vmatprep.subr.bf16.mxu0 %v7256
      %9677 = vmatpush1.bf16.msra.mxu0 %v7255
      %9678 = vmatprep.subr.bf16.mxu0 %v7263
      %9679 = vmatpush1.bf16.msra.mxu0 %v7262
      %9680 = vmatprep.subr.bf16.mxu0 %v7270
      %9681 = vmatpush1.bf16.msra.mxu0 %v7269
      %9682 = vmatprep.subr.bf16.mxu0 %v7277
      %9683 = vmatpush1.bf16.msra.mxu0 %v7276
      %9684 = vmatprep.subr.bf16.mxu0 %v7284
      %9685 = vmatpush1.bf16.msra.mxu0 %v7283
      %9686 = vmatprep.subr.bf16.mxu0 %v7291
      %9687 = vmatpush1.bf16.msra.mxu0 %v7290
      %9688 = vmatprep.subr.bf16.mxu0 %v7298
      %9689 = vmatpush1.bf16.msra.mxu0 %v7297
      %9690 = vmatprep.subr.bf16.mxu0 %v7305
      %9691 = vmatpush1.bf16.msra.mxu0 %v7304
      %9692 = vmatprep.subr.bf16.mxu0 %v7312
      %9693 = vmatpush1.bf16.msra.mxu0 %v7311
      %9694 = vmatprep.subr.bf16.mxu0 %v7319
      %9695 = vmatpush1.bf16.msra.mxu0 %v7318
      %9696 = vmatprep.subr.bf16.mxu0 %v7326
      %9697 = vmatpush1.bf16.msra.mxu0 %v7325
      %9698 = vmatprep.subr.bf16.mxu0 %v7333
      %9699 = vmatpush1.bf16.msra.mxu0 %v7332
      %9700 = vmatprep.subr.bf16.mxu0 %v7340
      %9701 = vmatpush1.bf16.msra.mxu0 %v7339
      %9702 = vmatprep.mubr.bf16.mxu0 %v5147
      %9703 = vmatmul.mubr.bf16.gmra.mrb[0].mxu0 %v5146
      %v9704 = vpop.f32.mrb[0].mxu0
      %v9705 = vadd.f32 %v5806, %v9704
      %v9706 = vpop.f32.mrb[0].mxu0
      %v9707 = vadd.f32 %v5810, %v9706
      %v9708 = vpop.f32.mrb[0].mxu0
      %v9709 = vadd.f32 %v5806, %v9708
      %v9710 = vpop.f32.mrb[0].mxu0
      %v9711 = vadd.f32 %v5810, %v9710
      %9712 = vmatprep.mubr.bf16.mxu0 %v5155
      %9713 = vmatmul.mubr.bf16.gmra.mrb[0].mxu0 %v5154
      %v9714 = vpop.f32.mrb[0].mxu0
      %v9715 = vadd.f32 %v5806, %v9714
      %v9716 = vpop.f32.mrb[0].mxu0
      %v9717 = vadd.f32 %v5810, %v9716
      %v9718 = vpop.f32.mrb[0].mxu0
      %v9719 = vadd.f32 %v5806, %v9718
      %v9720 = vpop.f32.mrb[0].mxu0
      %v9721 = vadd.f32 %v5810, %v9720
      %9722 = vmatprep.mubr.bf16.mxu0 %v5163
      %9723 = vmatmul.mubr.bf16.gmra.mrb[0].mxu0 %v5162
      %v9724 = vpop.f32.mrb[0].mxu0
      %v9725 = vadd.f32 %v5806, %v9724
      %v9726 = vpop.f32.mrb[0].mxu0
      %v9727 = vadd.f32 %v5810, %v9726
      %v9728 = vpop.f32.mrb[0].mxu0
      %v9729 = vadd.f32 %v5806, %v9728
      %v9730 = vpop.f32.mrb[0].mxu0
      %v9731 = vadd.f32 %v5810, %v9730
      %9732 = vmatprep.mubr.bf16.mxu0 %v5171
      %9733 = vmatmul.mubr.bf16.gmra.mrb[0].mxu0 %v5170
      %v9734 = vpop.f32.mrb[0].mxu0
      %v9735 = vadd.f32 %v5806, %v9734
      %v9736 = vpop.f32.mrb[0].mxu0
      %v9737 = vadd.f32 %v5810, %v9736
      %v9738 = vpop.f32.mrb[0].mxu0
      %v9739 = vadd.f32 %v5806, %v9738
      %v9740 = vpop.f32.mrb[0].mxu0
      %v9741 = vadd.f32 %v5810, %v9740
      %9742 = vmatprep.mubr.bf16.mxu0 %v5179
      %9743 = vmatmul.mubr.bf16.gmra.mrb[0].mxu0 %v5178
      %v9744 = vpop.f32.mrb[0].mxu0
      %v9745 = vadd.f32 %v5806, %v9744
      %v9746 = vpop.f32.mrb[0].mxu0
      %v9747 = vadd.f32 %v5810, %v9746
      %v9748 = vpop.f32.mrb[0].mxu0
      %v9749 = vadd.f32 %v5806, %v9748
      %v9750 = vpop.f32.mrb[0].mxu0
      %v9751 = vadd.f32 %v5810, %v9750
      %9752 = vmatprep.mubr.bf16.mxu0 %v5187
      %9753 = vmatmul.mubr.bf16.gmra.mrb[0].mxu0 %v5186
      %v9754 = vpop.f32.mrb[0].mxu0
      %v9755 = vadd.f32 %v5806, %v9754
      %v9756 = vpop.f32.mrb[0].mxu0
      %v9757 = vadd.f32 %v5810, %v9756
      %v9758 = vpop.f32.mrb[0].mxu0
      %v9759 = vadd.f32 %v5806, %v9758
      %v9760 = vpop.f32.mrb[0].mxu0
      %v9761 = vadd.f32 %v5810, %v9760
      %9762 = vmatprep.mubr.bf16.mxu0 %v5195
      %9763 = vmatmul.mubr.bf16.gmra.mrb[0].mxu0 %v5194
      %v9764 = vpop.f32.mrb[0].mxu0
      %v9765 = vadd.f32 %v5806, %v9764
      %v9766 = vpop.f32.mrb[0].mxu0
      %v9767 = vadd.f32 %v5810, %v9766
      %v9768 = vpop.f32.mrb[0].mxu0
      %v9769 = vadd.f32 %v5806, %v9768
      %v9770 = vpop.f32.mrb[0].mxu0
      %v9771 = vadd.f32 %v5810, %v9770
      %9772 = vmatprep.mubr.bf16.mxu0 %v5203
      %9773 = vmatmul.mubr.bf16.gmra.mrb[0].mxu0 %v5202
      %v9774 = vpop.f32.mrb[0].mxu0
      %v9775 = vadd.f32 %v5806, %v9774
      %v9776 = vpop.f32.mrb[0].mxu0
      %v9777 = vadd.f32 %v5810, %v9776
      %v9778 = vpop.f32.mrb[0].mxu0
      %v9779 = vadd.f32 %v5806, %v9778
      %v9780 = vpop.f32.mrb[0].mxu0
      %v9781 = vadd.f32 %v5810, %v9780
      %9782 = vmatprep.mubr.bf16.mxu0 %v5211
      %9783 = vmatmul.mubr.bf16.gmra.mrb[0].mxu0 %v5210
      %v9784 = vpop.f32.mrb[0].mxu0
      %v9785 = vadd.f32 %v5806, %v9784
      %v9786 = vpop.f32.mrb[0].mxu0
      %v9787 = vadd.f32 %v5810, %v9786
      %v9788 = vpop.f32.mrb[0].mxu0
      %v9789 = vadd.f32 %v5806, %v9788
      %v9790 = vpop.f32.mrb[0].mxu0
      %v9791 = vadd.f32 %v5810, %v9790
      %9792 = vmatprep.mubr.bf16.mxu0 %v5219
      %9793 = vmatmul.mubr.bf16.gmra.mrb[0].mxu0 %v5218
      %v9794 = vpop.f32.mrb[0].mxu0
      %v9795 = vadd.f32 %v5806, %v9794
      %v9796 = vpop.f32.mrb[0].mxu0
      %v9797 = vadd.f32 %v5810, %v9796
      %v9798 = vpop.f32.mrb[0].mxu0
      %v9799 = vadd.f32 %v5806, %v9798
      %v9800 = vpop.f32.mrb[0].mxu0
      %v9801 = vadd.f32 %v5810, %v9800
      %9802 = vmatprep.mubr.bf16.mxu0 %v5227
      %9803 = vmatmul.mubr.bf16.gmra.mrb[0].mxu0 %v5226
      %v9804 = vpop.f32.mrb[0].mxu0
      %v9805 = vadd.f32 %v5806, %v9804
      %v9806 = vpop.f32.mrb[0].mxu0
      %v9807 = vadd.f32 %v5810, %v9806
      %v9808 = vpop.f32.mrb[0].mxu0
      %v9809 = vadd.f32 %v5806, %v9808
      %v9810 = vpop.f32.mrb[0].mxu0
      %v9811 = vadd.f32 %v5810, %v9810
      %9812 = vmatprep.mubr.bf16.mxu0 %v5235
      %9813 = vmatmul.mubr.bf16.gmra.mrb[0].mxu0 %v5234
      %v9814 = vpop.f32.mrb[0].mxu0
      %v9815 = vadd.f32 %v5806, %v9814
      %v9816 = vpop.f32.mrb[0].mxu0
      %v9817 = vadd.f32 %v5810, %v9816
      %v9818 = vpop.f32.mrb[0].mxu0
      %v9819 = vadd.f32 %v5806, %v9818
      %v9820 = vpop.f32.mrb[0].mxu0
      %v9821 = vadd.f32 %v5810, %v9820
      %9822 = vmatprep.mubr.bf16.mxu0 %v5243
      %9823 = vmatmul.mubr.bf16.gmra.mrb[0].mxu0 %v5242
      %v9824 = vpop.f32.mrb[0].mxu0
      %v9825 = vadd.f32 %v5806, %v9824
      %v9826 = vpop.f32.mrb[0].mxu0
      %v9827 = vadd.f32 %v5810, %v9826
      %v9828 = vpop.f32.mrb[0].mxu0
      %v9829 = vadd.f32 %v5806, %v9828
      %v9830 = vpop.f32.mrb[0].mxu0
      %v9831 = vadd.f32 %v5810, %v9830
      %9832 = vmatprep.mubr.bf16.mxu0 %v5251
      %9833 = vmatmul.mubr.bf16.gmra.mrb[0].mxu0 %v5250
      %v9834 = vpop.f32.mrb[0].mxu0
      %v9835 = vadd.f32 %v5806, %v9834
      %v9836 = vpop.f32.mrb[0].mxu0
      %v9837 = vadd.f32 %v5810, %v9836
      %v9838 = vpop.f32.mrb[0].mxu0
      %v9839 = vadd.f32 %v5806, %v9838
      %v9840 = vpop.f32.mrb[0].mxu0
      %v9841 = vadd.f32 %v5810, %v9840
      %9842 = vmatprep.mubr.bf16.mxu0 %v5259
      %9843 = vmatmul.mubr.bf16.gmra.mrb[0].mxu0 %v5258
      %v9844 = vpop.f32.mrb[0].mxu0
      %v9845 = vadd.f32 %v5806, %v9844
      %v9846 = vpop.f32.mrb[0].mxu0
      %v9847 = vadd.f32 %v5810, %v9846
      %v9848 = vpop.f32.mrb[0].mxu0
      %v9849 = vadd.f32 %v5806, %v9848
      %v9850 = vpop.f32.mrb[0].mxu0
      %v9851 = vadd.f32 %v5810, %v9850
      %9852 = vmatprep.mubr.bf16.mxu0 %v5267
      %9853 = vmatmul.mubr.bf16.gmra.mrb[0].mxu0 %v5266
      %v9854 = vpop.f32.mrb[0].mxu0
      %v9855 = vadd.f32 %v5806, %v9854
      %v9856 = vpop.f32.mrb[0].mxu0
      %v9857 = vadd.f32 %v5810, %v9856
      %v9858 = vpop.f32.mrb[0].mxu0
      %v9859 = vadd.f32 %v5806, %v9858
      %v9860 = vpop.f32.mrb[0].mxu0
      %v9861 = vadd.f32 %v5810, %v9860
      %9862 = vdwg.mxu0
      %9863 = vmatprep.subr.bf16.mxu0 %v7347
      %9864 = vmatpush1.bf16.msra.mxu0 %v7346
      %9865 = vmatprep.subr.bf16.mxu0 %v7354
      %9866 = vmatpush1.bf16.msra.mxu0 %v7353
      %9867 = vmatprep.subr.bf16.mxu0 %v7361
      %9868 = vmatpush1.bf16.msra.mxu0 %v7360
      %9869 = vmatprep.subr.bf16.mxu0 %v7368
      %9870 = vmatpush1.bf16.msra.mxu0 %v7367
      %9871 = vmatprep.subr.bf16.mxu0 %v7375
      %9872 = vmatpush1.bf16.msra.mxu0 %v7374
      %9873 = vmatprep.subr.bf16.mxu0 %v7382
      %9874 = vmatpush1.bf16.msra.mxu0 %v7381
      %9875 = vmatprep.subr.bf16.mxu0 %v7389
      %9876 = vmatpush1.bf16.msra.mxu0 %v7388
      %9877 = vmatprep.subr.bf16.mxu0 %v7396
      %9878 = vmatpush1.bf16.msra.mxu0 %v7395
      %9879 = vmatprep.subr.bf16.mxu0 %v7403
      %9880 = vmatpush1.bf16.msra.mxu0 %v7402
      %9881 = vmatprep.subr.bf16.mxu0 %v7410
      %9882 = vmatpush1.bf16.msra.mxu0 %v7409
      %9883 = vmatprep.subr.bf16.mxu0 %v7417
      %9884 = vmatpush1.bf16.msra.mxu0 %v7416
      %9885 = vmatprep.subr.bf16.mxu0 %v7424
      %9886 = vmatpush1.bf16.msra.mxu0 %v7423
      %9887 = vmatprep.subr.bf16.mxu0 %v7431
      %9888 = vmatpush1.bf16.msra.mxu0 %v7430
      %9889 = vmatprep.subr.bf16.mxu0 %v7438
      %9890 = vmatpush1.bf16.msra.mxu0 %v7437
      %9891 = vmatprep.subr.bf16.mxu0 %v7445
      %9892 = vmatpush1.bf16.msra.mxu0 %v7444
      %9893 = vmatprep.subr.bf16.mxu0 %v7452
      %9894 = vmatpush1.bf16.msra.mxu0 %v7451
      %9895 = vmatprep.mubr.bf16.mxu0 %v5149
      %9896 = vmatmul.mubr.bf16.gmra.mrb[0].mxu0 %v5148
      %v9897 = vpop.f32.mrb[0].mxu0
      %v9898 = vadd.f32 %v9705, %v9897
      %v9899 = vpop.f32.mrb[0].mxu0
      %v9900 = vadd.f32 %v9707, %v9899
      %v9901 = vpop.f32.mrb[0].mxu0
      %v9902 = vadd.f32 %v9709, %v9901
      %v9903 = vpop.f32.mrb[0].mxu0
      %v9904 = vadd.f32 %v9711, %v9903
      %9905 = vmatprep.mubr.bf16.mxu0 %v5157
      %9906 = vmatmul.mubr.bf16.gmra.mrb[0].mxu0 %v5156
      %v9907 = vpop.f32.mrb[0].mxu0
      %v9908 = vadd.f32 %v9715, %v9907
      %v9909 = vpop.f32.mrb[0].mxu0
      %v9910 = vadd.f32 %v9717, %v9909
      %v9911 = vpop.f32.mrb[0].mxu0
      %v9912 = vadd.f32 %v9719, %v9911
      %v9913 = vpop.f32.mrb[0].mxu0
      %v9914 = vadd.f32 %v9721, %v9913
      %9915 = vmatprep.mubr.bf16.mxu0 %v5165
      %9916 = vmatmul.mubr.bf16.gmra.mrb[0].mxu0 %v5164
      %v9917 = vpop.f32.mrb[0].mxu0
      %v9918 = vadd.f32 %v9725, %v9917
      %v9919 = vpop.f32.mrb[0].mxu0
      %v9920 = vadd.f32 %v9727, %v9919
      %v9921 = vpop.f32.mrb[0].mxu0
      %v9922 = vadd.f32 %v9729, %v9921
      %v9923 = vpop.f32.mrb[0].mxu0
      %v9924 = vadd.f32 %v9731, %v9923
      %9925 = vmatprep.mubr.bf16.mxu0 %v5173
      %9926 = vmatmul.mubr.bf16.gmra.mrb[0].mxu0 %v5172
      %v9927 = vpop.f32.mrb[0].mxu0
      %v9928 = vadd.f32 %v9735, %v9927
      %v9929 = vpop.f32.mrb[0].mxu0
      %v9930 = vadd.f32 %v9737, %v9929
      %v9931 = vpop.f32.mrb[0].mxu0
      %v9932 = vadd.f32 %v9739, %v9931
      %v9933 = vpop.f32.mrb[0].mxu0
      %v9934 = vadd.f32 %v9741, %v9933
      %9935 = vmatprep.mubr.bf16.mxu0 %v5181
      %9936 = vmatmul.mubr.bf16.gmra.mrb[0].mxu0 %v5180
      %v9937 = vpop.f32.mrb[0].mxu0
      %v9938 = vadd.f32 %v9745, %v9937
      %v9939 = vpop.f32.mrb[0].mxu0
      %v9940 = vadd.f32 %v9747, %v9939
      %v9941 = vpop.f32.mrb[0].mxu0
      %v9942 = vadd.f32 %v9749, %v9941
      %v9943 = vpop.f32.mrb[0].mxu0
      %v9944 = vadd.f32 %v9751, %v9943
      %9945 = vmatprep.mubr.bf16.mxu0 %v5189
      %9946 = vmatmul.mubr.bf16.gmra.mrb[0].mxu0 %v5188
      %v9947 = vpop.f32.mrb[0].mxu0
      %v9948 = vadd.f32 %v9755, %v9947
      %v9949 = vpop.f32.mrb[0].mxu0
      %v9950 = vadd.f32 %v9757, %v9949
      %v9951 = vpop.f32.mrb[0].mxu0
      %v9952 = vadd.f32 %v9759, %v9951
      %v9953 = vpop.f32.mrb[0].mxu0
      %v9954 = vadd.f32 %v9761, %v9953
      %9955 = vmatprep.mubr.bf16.mxu0 %v5197
      %9956 = vmatmul.mubr.bf16.gmra.mrb[0].mxu0 %v5196
      %v9957 = vpop.f32.mrb[0].mxu0
      %v9958 = vadd.f32 %v9765, %v9957
      %v9959 = vpop.f32.mrb[0].mxu0
      %v9960 = vadd.f32 %v9767, %v9959
      %v9961 = vpop.f32.mrb[0].mxu0
      %v9962 = vadd.f32 %v9769, %v9961
      %v9963 = vpop.f32.mrb[0].mxu0
      %v9964 = vadd.f32 %v9771, %v9963
      %9965 = vmatprep.mubr.bf16.mxu0 %v5205
      %9966 = vmatmul.mubr.bf16.gmra.mrb[0].mxu0 %v5204
      %v9967 = vpop.f32.mrb[0].mxu0
      %v9968 = vadd.f32 %v9775, %v9967
      %v9969 = vpop.f32.mrb[0].mxu0
      %v9970 = vadd.f32 %v9777, %v9969
      %v9971 = vpop.f32.mrb[0].mxu0
      %v9972 = vadd.f32 %v9779, %v9971
      %v9973 = vpop.f32.mrb[0].mxu0
      %v9974 = vadd.f32 %v9781, %v9973
      %9975 = vmatprep.mubr.bf16.mxu0 %v5213
      %9976 = vmatmul.mubr.bf16.gmra.mrb[0].mxu0 %v5212
      %v9977 = vpop.f32.mrb[0].mxu0
      %v9978 = vadd.f32 %v9785, %v9977
      %v9979 = vpop.f32.mrb[0].mxu0
      %v9980 = vadd.f32 %v9787, %v9979
      %v9981 = vpop.f32.mrb[0].mxu0
      %v9982 = vadd.f32 %v9789, %v9981
      %v9983 = vpop.f32.mrb[0].mxu0
      %v9984 = vadd.f32 %v9791, %v9983
      %9985 = vmatprep.mubr.bf16.mxu0 %v5221
      %9986 = vmatmul.mubr.bf16.gmra.mrb[0].mxu0 %v5220
      %v9987 = vpop.f32.mrb[0].mxu0
      %v9988 = vadd.f32 %v9795, %v9987
      %v9989 = vpop.f32.mrb[0].mxu0
      %v9990 = vadd.f32 %v9797, %v9989
      %v9991 = vpop.f32.mrb[0].mxu0
      %v9992 = vadd.f32 %v9799, %v9991
      %v9993 = vpop.f32.mrb[0].mxu0
      %v9994 = vadd.f32 %v9801, %v9993
      %9995 = vmatprep.mubr.bf16.mxu0 %v5229
      %9996 = vmatmul.mubr.bf16.gmra.mrb[0].mxu0 %v5228
      %v9997 = vpop.f32.mrb[0].mxu0
      %v9998 = vadd.f32 %v9805, %v9997
      %v9999 = vpop.f32.mrb[0].mxu0
      %v10000 = vadd.f32 %v9807, %v9999
      %v10001 = vpop.f32.mrb[0].mxu0
      %v10002 = vadd.f32 %v9809, %v10001
      %v10003 = vpop.f32.mrb[0].mxu0
      %v10004 = vadd.f32 %v9811, %v10003
      %10005 = vmatprep.mubr.bf16.mxu0 %v5237
      %10006 = vmatmul.mubr.bf16.gmra.mrb[0].mxu0 %v5236
      %v10007 = vpop.f32.mrb[0].mxu0
      %v10008 = vadd.f32 %v9815, %v10007
      %v10009 = vpop.f32.mrb[0].mxu0
      %v10010 = vadd.f32 %v9817, %v10009
      %v10011 = vpop.f32.mrb[0].mxu0
      %v10012 = vadd.f32 %v9819, %v10011
      %v10013 = vpop.f32.mrb[0].mxu0
      %v10014 = vadd.f32 %v9821, %v10013
      %10015 = vmatprep.mubr.bf16.mxu0 %v5245
      %10016 = vmatmul.mubr.bf16.gmra.mrb[0].mxu0 %v5244
      %v10017 = vpop.f32.mrb[0].mxu0
      %v10018 = vadd.f32 %v9825, %v10017
      %v10019 = vpop.f32.mrb[0].mxu0
      %v10020 = vadd.f32 %v9827, %v10019
      %v10021 = vpop.f32.mrb[0].mxu0
      %v10022 = vadd.f32 %v9829, %v10021
      %v10023 = vpop.f32.mrb[0].mxu0
      %v10024 = vadd.f32 %v9831, %v10023
      %10025 = vmatprep.mubr.bf16.mxu0 %v5253
      %10026 = vmatmul.mubr.bf16.gmra.mrb[0].mxu0 %v5252
      %v10027 = vpop.f32.mrb[0].mxu0
      %v10028 = vadd.f32 %v9835, %v10027
      %v10029 = vpop.f32.mrb[0].mxu0
      %v10030 = vadd.f32 %v9837, %v10029
      %v10031 = vpop.f32.mrb[0].mxu0
      %v10032 = vadd.f32 %v9839, %v10031
      %v10033 = vpop.f32.mrb[0].mxu0
      %v10034 = vadd.f32 %v9841, %v10033
      %10035 = vmatprep.mubr.bf16.mxu0 %v5261
      %10036 = vmatmul.mubr.bf16.gmra.mrb[0].mxu0 %v5260
      %v10037 = vpop.f32.mrb[0].mxu0
      %v10038 = vadd.f32 %v9845, %v10037
      %v10039 = vpop.f32.mrb[0].mxu0
      %v10040 = vadd.f32 %v9847, %v10039
      %v10041 = vpop.f32.mrb[0].mxu0
      %v10042 = vadd.f32 %v9849, %v10041
      %v10043 = vpop.f32.mrb[0].mxu0
      %v10044 = vadd.f32 %v9851, %v10043
      %10045 = vmatprep.mubr.bf16.mxu0 %v5269
      %10046 = vmatmul.mubr.bf16.gmra.mrb[0].mxu0 %v5268
      %v10047 = vpop.f32.mrb[0].mxu0
      %v10048 = vadd.f32 %v9855, %v10047
      %v10049 = vpop.f32.mrb[0].mxu0
      %v10050 = vadd.f32 %v9857, %v10049
      %v10051 = vpop.f32.mrb[0].mxu0
      %v10052 = vadd.f32 %v9859, %v10051
      %v10053 = vpop.f32.mrb[0].mxu0
      %v10054 = vadd.f32 %v9861, %v10053
      %10055 = vdwg.mxu0
      %10056 = vmatprep.subr.bf16.mxu0 %v7459
      %10057 = vmatpush1.bf16.msra.mxu0 %v7458
      %10058 = vmatprep.subr.bf16.mxu0 %v7466
      %10059 = vmatpush1.bf16.msra.mxu0 %v7465
      %10060 = vmatprep.subr.bf16.mxu0 %v7473
      %10061 = vmatpush1.bf16.msra.mxu0 %v7472
      %10062 = vmatprep.subr.bf16.mxu0 %v7480
      %10063 = vmatpush1.bf16.msra.mxu0 %v7479
      %10064 = vmatprep.subr.bf16.mxu0 %v7487
      %10065 = vmatpush1.bf16.msra.mxu0 %v7486
      %10066 = vmatprep.subr.bf16.mxu0 %v7494
      %10067 = vmatpush1.bf16.msra.mxu0 %v7493
      %10068 = vmatprep.subr.bf16.mxu0 %v7501
      %10069 = vmatpush1.bf16.msra.mxu0 %v7500
      %10070 = vmatprep.subr.bf16.mxu0 %v7508
      %10071 = vmatpush1.bf16.msra.mxu0 %v7507
      %10072 = vmatprep.subr.bf16.mxu0 %v7515
      %10073 = vmatpush1.bf16.msra.mxu0 %v7514
      %10074 = vmatprep.subr.bf16.mxu0 %v7522
      %10075 = vmatpush1.bf16.msra.mxu0 %v7521
      %10076 = vmatprep.subr.bf16.mxu0 %v7529
      %10077 = vmatpush1.bf16.msra.mxu0 %v7528
      %10078 = vmatprep.subr.bf16.mxu0 %v7536
      %10079 = vmatpush1.bf16.msra.mxu0 %v7535
      %10080 = vmatprep.subr.bf16.mxu0 %v7543
      %10081 = vmatpush1.bf16.msra.mxu0 %v7542
      %10082 = vmatprep.subr.bf16.mxu0 %v7550
      %10083 = vmatpush1.bf16.msra.mxu0 %v7549
      %10084 = vmatprep.subr.bf16.mxu0 %v7557
      %10085 = vmatpush1.bf16.msra.mxu0 %v7556
      %10086 = vmatprep.subr.bf16.mxu0 %v7564
      %10087 = vmatpush1.bf16.msra.mxu0 %v7563
      %10088 = vmatprep.mubr.bf16.mxu0 %v5151
      %10089 = vmatmul.mubr.bf16.gmra.mrb[0].mxu0 %v5150
      %v10090 = vpop.f32.mrb[0].mxu0
      %v10091 = vadd.f32 %v9898, %v10090
      %v10092 = vpop.f32.mrb[0].mxu0
      %v10093 = vadd.f32 %v9900, %v10092
      %v10094 = vpop.f32.mrb[0].mxu0
      %v10095 = vadd.f32 %v9902, %v10094
      %v10096 = vpop.f32.mrb[0].mxu0
      %v10097 = vadd.f32 %v9904, %v10096
      %10098 = vmatprep.mubr.bf16.mxu0 %v5159
      %10099 = vmatmul.mubr.bf16.gmra.mrb[0].mxu0 %v5158
      %v10100 = vpop.f32.mrb[0].mxu0
      %v10101 = vadd.f32 %v9908, %v10100
      %v10102 = vpop.f32.mrb[0].mxu0
      %v10103 = vadd.f32 %v9910, %v10102
      %v10104 = vpop.f32.mrb[0].mxu0
      %v10105 = vadd.f32 %v9912, %v10104
      %v10106 = vpop.f32.mrb[0].mxu0
      %v10107 = vadd.f32 %v9914, %v10106
      %10108 = vmatprep.mubr.bf16.mxu0 %v5167
      %10109 = vmatmul.mubr.bf16.gmra.mrb[0].mxu0 %v5166
      %v10110 = vpop.f32.mrb[0].mxu0
      %v10111 = vadd.f32 %v9918, %v10110
      %v10112 = vpop.f32.mrb[0].mxu0
      %v10113 = vadd.f32 %v9920, %v10112
      %v10114 = vpop.f32.mrb[0].mxu0
      %v10115 = vadd.f32 %v9922, %v10114
      %v10116 = vpop.f32.mrb[0].mxu0
      %v10117 = vadd.f32 %v9924, %v10116
      %10118 = vmatprep.mubr.bf16.mxu0 %v5175
      %10119 = vmatmul.mubr.bf16.gmra.mrb[0].mxu0 %v5174
      %v10120 = vpop.f32.mrb[0].mxu0
      %v10121 = vadd.f32 %v9928, %v10120
      %v10122 = vpop.f32.mrb[0].mxu0
      %v10123 = vadd.f32 %v9930, %v10122
      %v10124 = vpop.f32.mrb[0].mxu0
      %v10125 = vadd.f32 %v9932, %v10124
      %v10126 = vpop.f32.mrb[0].mxu0
      %v10127 = vadd.f32 %v9934, %v10126
      %10128 = vmatprep.mubr.bf16.mxu0 %v5183
      %10129 = vmatmul.mubr.bf16.gmra.mrb[0].mxu0 %v5182
      %v10130 = vpop.f32.mrb[0].mxu0
      %v10131 = vadd.f32 %v9938, %v10130
      %v10132 = vpop.f32.mrb[0].mxu0
      %v10133 = vadd.f32 %v9940, %v10132
      %v10134 = vpop.f32.mrb[0].mxu0
      %v10135 = vadd.f32 %v9942, %v10134
      %v10136 = vpop.f32.mrb[0].mxu0
      %v10137 = vadd.f32 %v9944, %v10136
      %10138 = vmatprep.mubr.bf16.mxu0 %v5191
      %10139 = vmatmul.mubr.bf16.gmra.mrb[0].mxu0 %v5190
      %v10140 = vpop.f32.mrb[0].mxu0
      %v10141 = vadd.f32 %v9948, %v10140
      %v10142 = vpop.f32.mrb[0].mxu0
      %v10143 = vadd.f32 %v9950, %v10142
      %v10144 = vpop.f32.mrb[0].mxu0
      %v10145 = vadd.f32 %v9952, %v10144
      %v10146 = vpop.f32.mrb[0].mxu0
      %v10147 = vadd.f32 %v9954, %v10146
      %10148 = vmatprep.mubr.bf16.mxu0 %v5199
      %10149 = vmatmul.mubr.bf16.gmra.mrb[0].mxu0 %v5198
      %v10150 = vpop.f32.mrb[0].mxu0
      %v10151 = vadd.f32 %v9958, %v10150
      %v10152 = vpop.f32.mrb[0].mxu0
      %v10153 = vadd.f32 %v9960, %v10152
      %v10154 = vpop.f32.mrb[0].mxu0
      %v10155 = vadd.f32 %v9962, %v10154
      %v10156 = vpop.f32.mrb[0].mxu0
      %v10157 = vadd.f32 %v9964, %v10156
      %10158 = vmatprep.mubr.bf16.mxu0 %v5207
      %10159 = vmatmul.mubr.bf16.gmra.mrb[0].mxu0 %v5206
      %v10160 = vpop.f32.mrb[0].mxu0
      %v10161 = vadd.f32 %v9968, %v10160
      %v10162 = vpop.f32.mrb[0].mxu0
      %v10163 = vadd.f32 %v9970, %v10162
      %v10164 = vpop.f32.mrb[0].mxu0
      %v10165 = vadd.f32 %v9972, %v10164
      %v10166 = vpop.f32.mrb[0].mxu0
      %v10167 = vadd.f32 %v9974, %v10166
      %10168 = vmatprep.mubr.bf16.mxu0 %v5215
      %10169 = vmatmul.mubr.bf16.gmra.mrb[0].mxu0 %v5214
      %v10170 = vpop.f32.mrb[0].mxu0
      %v10171 = vadd.f32 %v9978, %v10170
      %v10172 = vpop.f32.mrb[0].mxu0
      %v10173 = vadd.f32 %v9980, %v10172
      %v10174 = vpop.f32.mrb[0].mxu0
      %v10175 = vadd.f32 %v9982, %v10174
      %v10176 = vpop.f32.mrb[0].mxu0
      %v10177 = vadd.f32 %v9984, %v10176
      %10178 = vmatprep.mubr.bf16.mxu0 %v5223
      %10179 = vmatmul.mubr.bf16.gmra.mrb[0].mxu0 %v5222
      %v10180 = vpop.f32.mrb[0].mxu0
      %v10181 = vadd.f32 %v9988, %v10180
      %v10182 = vpop.f32.mrb[0].mxu0
      %v10183 = vadd.f32 %v9990, %v10182
      %v10184 = vpop.f32.mrb[0].mxu0
      %v10185 = vadd.f32 %v9992, %v10184
      %v10186 = vpop.f32.mrb[0].mxu0
      %v10187 = vadd.f32 %v9994, %v10186
      %10188 = vmatprep.mubr.bf16.mxu0 %v5231
      %10189 = vmatmul.mubr.bf16.gmra.mrb[0].mxu0 %v5230
      %v10190 = vpop.f32.mrb[0].mxu0
      %v10191 = vadd.f32 %v9998, %v10190
      %v10192 = vpop.f32.mrb[0].mxu0
      %v10193 = vadd.f32 %v10000, %v10192
      %v10194 = vpop.f32.mrb[0].mxu0
      %v10195 = vadd.f32 %v10002, %v10194
      %v10196 = vpop.f32.mrb[0].mxu0
      %v10197 = vadd.f32 %v10004, %v10196
      %10198 = vmatprep.mubr.bf16.mxu0 %v5239
      %10199 = vmatmul.mubr.bf16.gmra.mrb[0].mxu0 %v5238
      %v10200 = vpop.f32.mrb[0].mxu0
      %v10201 = vadd.f32 %v10008, %v10200
      %v10202 = vpop.f32.mrb[0].mxu0
      %v10203 = vadd.f32 %v10010, %v10202
      %v10204 = vpop.f32.mrb[0].mxu0
      %v10205 = vadd.f32 %v10012, %v10204
      %v10206 = vpop.f32.mrb[0].mxu0
      %v10207 = vadd.f32 %v10014, %v10206
      %10208 = vmatprep.mubr.bf16.mxu0 %v5247
      %10209 = vmatmul.mubr.bf16.gmra.mrb[0].mxu0 %v5246
      %v10210 = vpop.f32.mrb[0].mxu0
      %v10211 = vadd.f32 %v10018, %v10210
      %v10212 = vpop.f32.mrb[0].mxu0
      %v10213 = vadd.f32 %v10020, %v10212
      %v10214 = vpop.f32.mrb[0].mxu0
      %v10215 = vadd.f32 %v10022, %v10214
      %v10216 = vpop.f32.mrb[0].mxu0
      %v10217 = vadd.f32 %v10024, %v10216
      %10218 = vmatprep.mubr.bf16.mxu0 %v5255
      %10219 = vmatmul.mubr.bf16.gmra.mrb[0].mxu0 %v5254
      %v10220 = vpop.f32.mrb[0].mxu0
      %v10221 = vadd.f32 %v10028, %v10220
      %v10222 = vpop.f32.mrb[0].mxu0
      %v10223 = vadd.f32 %v10030, %v10222
      %v10224 = vpop.f32.mrb[0].mxu0
      %v10225 = vadd.f32 %v10032, %v10224
      %v10226 = vpop.f32.mrb[0].mxu0
      %v10227 = vadd.f32 %v10034, %v10226
      %10228 = vmatprep.mubr.bf16.mxu0 %v5263
      %10229 = vmatmul.mubr.bf16.gmra.mrb[0].mxu0 %v5262
      %v10230 = vpop.f32.mrb[0].mxu0
      %v10231 = vadd.f32 %v10038, %v10230
      %v10232 = vpop.f32.mrb[0].mxu0
      %v10233 = vadd.f32 %v10040, %v10232
      %v10234 = vpop.f32.mrb[0].mxu0
      %v10235 = vadd.f32 %v10042, %v10234
      %v10236 = vpop.f32.mrb[0].mxu0
      %v10237 = vadd.f32 %v10044, %v10236
      %10238 = vmatprep.mubr.bf16.mxu0 %v5271
      %10239 = vmatmul.mubr.bf16.gmra.mrb[0].mxu0 %v5270
      %v10240 = vpop.f32.mrb[0].mxu0
      %v10241 = vadd.f32 %v10048, %v10240
      %v10242 = vpop.f32.mrb[0].mxu0
      %v10243 = vadd.f32 %v10050, %v10242
      %v10244 = vpop.f32.mrb[0].mxu0
      %v10245 = vadd.f32 %v10052, %v10244
      %v10246 = vpop.f32.mrb[0].mxu0
      %v10247 = vadd.f32 %v10054, %v10246
      %10248 = vdwg.mxu0
      %10249 = vmatprep.subr.bf16.mxu0 %v7571
      %10250 = vmatpush1.bf16.msra.mxu0 %v7570
      %10251 = vmatprep.subr.bf16.mxu0 %v7578
      %10252 = vmatpush1.bf16.msra.mxu0 %v7577
      %10253 = vmatprep.subr.bf16.mxu0 %v7585
      %10254 = vmatpush1.bf16.msra.mxu0 %v7584
      %10255 = vmatprep.subr.bf16.mxu0 %v7592
      %10256 = vmatpush1.bf16.msra.mxu0 %v7591
      %10257 = vmatprep.subr.bf16.mxu0 %v7599
      %10258 = vmatpush1.bf16.msra.mxu0 %v7598
      %10259 = vmatprep.subr.bf16.mxu0 %v7606
      %10260 = vmatpush1.bf16.msra.mxu0 %v7605
      %10261 = vmatprep.subr.bf16.mxu0 %v7613
      %10262 = vmatpush1.bf16.msra.mxu0 %v7612
      %10263 = vmatprep.subr.bf16.mxu0 %v7620
      %10264 = vmatpush1.bf16.msra.mxu0 %v7619
      %10265 = vmatprep.subr.bf16.mxu0 %v7627
      %10266 = vmatpush1.bf16.msra.mxu0 %v7626
      %10267 = vmatprep.subr.bf16.mxu0 %v7634
      %10268 = vmatpush1.bf16.msra.mxu0 %v7633
      %10269 = vmatprep.subr.bf16.mxu0 %v7641
      %10270 = vmatpush1.bf16.msra.mxu0 %v7640
      %10271 = vmatprep.subr.bf16.mxu0 %v7648
      %10272 = vmatpush1.bf16.msra.mxu0 %v7647
      %10273 = vmatprep.subr.bf16.mxu0 %v7655
      %10274 = vmatpush1.bf16.msra.mxu0 %v7654
      %10275 = vmatprep.subr.bf16.mxu0 %v7662
      %10276 = vmatpush1.bf16.msra.mxu0 %v7661
      %10277 = vmatprep.subr.bf16.mxu0 %v7669
      %10278 = vmatpush1.bf16.msra.mxu0 %v7668
      %10279 = vmatprep.subr.bf16.mxu0 %v7676
      %10280 = vmatpush1.bf16.msra.mxu0 %v7675
      %10281 = vmatprep.mubr.bf16.mxu0 %v5153
      %10282 = vmatmul.mubr.bf16.gmra.mrb[0].mxu0 %v5152
      %v10283 = vpop.f32.mrb[0].mxu0
      %v10284 = vadd.f32 %v10091, %v10283
      %v10285 = vpop.f32.mrb[0].mxu0
      %v10286 = vadd.f32 %v10093, %v10285
      %v10287 = vpop.f32.mrb[0].mxu0
      %v10288 = vadd.f32 %v10095, %v10287
      %v10289 = vpop.f32.mrb[0].mxu0
      %v10290 = vadd.f32 %v10097, %v10289
      %10291 = vmatprep.mubr.bf16.mxu0 %v5161
      %10292 = vmatmul.mubr.bf16.gmra.mrb[0].mxu0 %v5160
      %v10293 = vpop.f32.mrb[0].mxu0
      %v10294 = vadd.f32 %v10101, %v10293
      %v10295 = vpop.f32.mrb[0].mxu0
      %v10296 = vadd.f32 %v10103, %v10295
      %v10297 = vpop.f32.mrb[0].mxu0
      %v10298 = vadd.f32 %v10105, %v10297
      %v10299 = vpop.f32.mrb[0].mxu0
      %v10300 = vadd.f32 %v10107, %v10299
      %10301 = vmatprep.mubr.bf16.mxu0 %v5169
      %10302 = vmatmul.mubr.bf16.gmra.mrb[0].mxu0 %v5168
      %v10303 = vpop.f32.mrb[0].mxu0
      %v10304 = vadd.f32 %v10111, %v10303
      %v10305 = vpop.f32.mrb[0].mxu0
      %v10306 = vadd.f32 %v10113, %v10305
      %v10307 = vpop.f32.mrb[0].mxu0
      %v10308 = vadd.f32 %v10115, %v10307
      %v10309 = vpop.f32.mrb[0].mxu0
      %v10310 = vadd.f32 %v10117, %v10309
      %10311 = vmatprep.mubr.bf16.mxu0 %v5177
      %10312 = vmatmul.mubr.bf16.gmra.mrb[0].mxu0 %v5176
      %v10313 = vpop.f32.mrb[0].mxu0
      %v10314 = vadd.f32 %v10121, %v10313
      %v10315 = vpop.f32.mrb[0].mxu0
      %v10316 = vadd.f32 %v10123, %v10315
      %v10317 = vpop.f32.mrb[0].mxu0
      %v10318 = vadd.f32 %v10125, %v10317
      %v10319 = vpop.f32.mrb[0].mxu0
      %v10320 = vadd.f32 %v10127, %v10319
      %10321 = vmatprep.mubr.bf16.mxu0 %v5185
      %10322 = vmatmul.mubr.bf16.gmra.mrb[0].mxu0 %v5184
      %v10323 = vpop.f32.mrb[0].mxu0
      %v10324 = vadd.f32 %v10131, %v10323
      %v10325 = vpop.f32.mrb[0].mxu0
      %v10326 = vadd.f32 %v10133, %v10325
      %v10327 = vpop.f32.mrb[0].mxu0
      %v10328 = vadd.f32 %v10135, %v10327
      %v10329 = vpop.f32.mrb[0].mxu0
      %v10330 = vadd.f32 %v10137, %v10329
      %10331 = vmatprep.mubr.bf16.mxu0 %v5193
      %10332 = vmatmul.mubr.bf16.gmra.mrb[0].mxu0 %v5192
      %v10333 = vpop.f32.mrb[0].mxu0
      %v10334 = vadd.f32 %v10141, %v10333
      %v10335 = vpop.f32.mrb[0].mxu0
      %v10336 = vadd.f32 %v10143, %v10335
      %v10337 = vpop.f32.mrb[0].mxu0
      %v10338 = vadd.f32 %v10145, %v10337
      %v10339 = vpop.f32.mrb[0].mxu0
      %v10340 = vadd.f32 %v10147, %v10339
      %10341 = vmatprep.mubr.bf16.mxu0 %v5201
      %10342 = vmatmul.mubr.bf16.gmra.mrb[0].mxu0 %v5200
      %v10343 = vpop.f32.mrb[0].mxu0
      %v10344 = vadd.f32 %v10151, %v10343
      %v10345 = vpop.f32.mrb[0].mxu0
      %v10346 = vadd.f32 %v10153, %v10345
      %v10347 = vpop.f32.mrb[0].mxu0
      %v10348 = vadd.f32 %v10155, %v10347
      %v10349 = vpop.f32.mrb[0].mxu0
      %v10350 = vadd.f32 %v10157, %v10349
      %10351 = vmatprep.mubr.bf16.mxu0 %v5209
      %10352 = vmatmul.mubr.bf16.gmra.mrb[0].mxu0 %v5208
      %v10353 = vpop.f32.mrb[0].mxu0
      %v10354 = vadd.f32 %v10161, %v10353
      %v10355 = vpop.f32.mrb[0].mxu0
      %v10356 = vadd.f32 %v10163, %v10355
      %v10357 = vpop.f32.mrb[0].mxu0
      %v10358 = vadd.f32 %v10165, %v10357
      %v10359 = vpop.f32.mrb[0].mxu0
      %v10360 = vadd.f32 %v10167, %v10359
      %10361 = vmatprep.mubr.bf16.mxu0 %v5217
      %10362 = vmatmul.mubr.bf16.gmra.mrb[0].mxu0 %v5216
      %v10363 = vpop.f32.mrb[0].mxu0
      %v10364 = vadd.f32 %v10171, %v10363
      %v10365 = vpop.f32.mrb[0].mxu0
      %v10366 = vadd.f32 %v10173, %v10365
      %v10367 = vpop.f32.mrb[0].mxu0
      %v10368 = vadd.f32 %v10175, %v10367
      %v10369 = vpop.f32.mrb[0].mxu0
      %v10370 = vadd.f32 %v10177, %v10369
      %10371 = vmatprep.mubr.bf16.mxu0 %v5225
      %10372 = vmatmul.mubr.bf16.gmra.mrb[0].mxu0 %v5224
      %v10373 = vpop.f32.mrb[0].mxu0
      %v10374 = vadd.f32 %v10181, %v10373
      %v10375 = vpop.f32.mrb[0].mxu0
      %v10376 = vadd.f32 %v10183, %v10375
      %v10377 = vpop.f32.mrb[0].mxu0
      %v10378 = vadd.f32 %v10185, %v10377
      %v10379 = vpop.f32.mrb[0].mxu0
      %v10380 = vadd.f32 %v10187, %v10379
      %10381 = vmatprep.mubr.bf16.mxu0 %v5233
      %10382 = vmatmul.mubr.bf16.gmra.mrb[0].mxu0 %v5232
      %v10383 = vpop.f32.mrb[0].mxu0
      %v10384 = vadd.f32 %v10191, %v10383
      %v10385 = vpop.f32.mrb[0].mxu0
      %v10386 = vadd.f32 %v10193, %v10385
      %v10387 = vpop.f32.mrb[0].mxu0
      %v10388 = vadd.f32 %v10195, %v10387
      %v10389 = vpop.f32.mrb[0].mxu0
      %v10390 = vadd.f32 %v10197, %v10389
      %10391 = vmatprep.mubr.bf16.mxu0 %v5241
      %10392 = vmatmul.mubr.bf16.gmra.mrb[0].mxu0 %v5240
      %v10393 = vpop.f32.mrb[0].mxu0
      %v10394 = vadd.f32 %v10201, %v10393
      %v10395 = vpop.f32.mrb[0].mxu0
      %v10396 = vadd.f32 %v10203, %v10395
      %v10397 = vpop.f32.mrb[0].mxu0
      %v10398 = vadd.f32 %v10205, %v10397
      %v10399 = vpop.f32.mrb[0].mxu0
      %v10400 = vadd.f32 %v10207, %v10399
      %10401 = vmatprep.mubr.bf16.mxu0 %v5249
      %10402 = vmatmul.mubr.bf16.gmra.mrb[0].mxu0 %v5248
      %v10403 = vpop.f32.mrb[0].mxu0
      %v10404 = vadd.f32 %v10211, %v10403
      %v10405 = vpop.f32.mrb[0].mxu0
      %v10406 = vadd.f32 %v10213, %v10405
      %v10407 = vpop.f32.mrb[0].mxu0
      %v10408 = vadd.f32 %v10215, %v10407
      %v10409 = vpop.f32.mrb[0].mxu0
      %v10410 = vadd.f32 %v10217, %v10409
      %10411 = vmatprep.mubr.bf16.mxu0 %v5257
      %10412 = vmatmul.mubr.bf16.gmra.mrb[0].mxu0 %v5256
      %v10413 = vpop.f32.mrb[0].mxu0
      %v10414 = vadd.f32 %v10221, %v10413
      %v10415 = vpop.f32.mrb[0].mxu0
      %v10416 = vadd.f32 %v10223, %v10415
      %v10417 = vpop.f32.mrb[0].mxu0
      %v10418 = vadd.f32 %v10225, %v10417
      %v10419 = vpop.f32.mrb[0].mxu0
      %v10420 = vadd.f32 %v10227, %v10419
      %10421 = vmatprep.mubr.bf16.mxu0 %v5265
      %10422 = vmatmul.mubr.bf16.gmra.mrb[0].mxu0 %v5264
      %v10423 = vpop.f32.mrb[0].mxu0
      %v10424 = vadd.f32 %v10231, %v10423
      %v10425 = vpop.f32.mrb[0].mxu0
      %v10426 = vadd.f32 %v10233, %v10425
      %v10427 = vpop.f32.mrb[0].mxu0
      %v10428 = vadd.f32 %v10235, %v10427
      %v10429 = vpop.f32.mrb[0].mxu0
      %v10430 = vadd.f32 %v10237, %v10429
      %10431 = vmatprep.mubr.bf16.mxu0 %v5273
      %10432 = vmatmul.mubr.bf16.gmra.mrb[0].mxu0 %v5272
      %v10433 = vpop.f32.mrb[0].mxu0
      %v10434 = vadd.f32 %v10241, %v10433
      %v10435 = vpop.f32.mrb[0].mxu0
      %v10436 = vadd.f32 %v10243, %v10435
      %v10437 = vpop.f32.mrb[0].mxu0
      %v10438 = vadd.f32 %v10245, %v10437
      %v10439 = vpop.f32.mrb[0].mxu0
      %v10440 = vadd.f32 %v10247, %v10439
      %10441 = vdwg.mxu0
      %10442 = vmatprep.subr.bf16.mxu0 0
      %10443 = vmatpush1.bf16.msra.mxu0 %v7236
      %10444 = vmatprep.subr.bf16.mxu0 0
      %10445 = vmatpush1.bf16.msra.mxu0 %v7243
      %10446 = vmatprep.subr.bf16.mxu0 0
      %10447 = vmatpush1.bf16.msra.mxu0 %v7250
      %10448 = vmatprep.subr.bf16.mxu0 0
      %10449 = vmatpush1.bf16.msra.mxu0 %v7257
      %10450 = vmatprep.subr.bf16.mxu0 0
      %10451 = vmatpush1.bf16.msra.mxu0 %v7264
      %10452 = vmatprep.subr.bf16.mxu0 0
      %10453 = vmatpush1.bf16.msra.mxu0 %v7271
      %10454 = vmatprep.subr.bf16.mxu0 0
      %10455 = vmatpush1.bf16.msra.mxu0 %v7278
      %10456 = vmatprep.subr.bf16.mxu0 0
      %10457 = vmatpush1.bf16.msra.mxu0 %v7285
      %10458 = vmatprep.subr.bf16.mxu0 0
      %10459 = vmatpush1.bf16.msra.mxu0 %v7292
      %10460 = vmatprep.subr.bf16.mxu0 0
      %10461 = vmatpush1.bf16.msra.mxu0 %v7299
      %10462 = vmatprep.subr.bf16.mxu0 0
      %10463 = vmatpush1.bf16.msra.mxu0 %v7306
      %10464 = vmatprep.subr.bf16.mxu0 0
      %10465 = vmatpush1.bf16.msra.mxu0 %v7313
      %10466 = vmatprep.subr.bf16.mxu0 0
      %10467 = vmatpush1.bf16.msra.mxu0 %v7320
      %10468 = vmatprep.subr.bf16.mxu0 0
      %10469 = vmatpush1.bf16.msra.mxu0 %v7327
      %10470 = vmatprep.subr.bf16.mxu0 0
      %10471 = vmatpush1.bf16.msra.mxu0 %v7334
      %10472 = vmatprep.subr.bf16.mxu0 0
      %10473 = vmatpush1.bf16.msra.mxu0 %v7341
      %10474 = vmatprep.mubr.bf16.mxu0 %v5147
      %10475 = vmatmul.mubr.bf16.gmra.mrb[0].mxu0 %v5146
      %v10476 = vpop.f32.mrb[0].mxu0
      %v10477 = vadd.f32 %v5814, %v10476
      %v10478 = vpop.f32.mrb[0].mxu0
      %v10479 = vpop.f32.mrb[0].mxu0
      %v10480 = vadd.f32 %v5814, %v10479
      %v10481 = vpop.f32.mrb[0].mxu0
      %10482 = vmatprep.mubr.bf16.mxu0 %v5155
      %10483 = vmatmul.mubr.bf16.gmra.mrb[0].mxu0 %v5154
      %v10484 = vpop.f32.mrb[0].mxu0
      %v10485 = vadd.f32 %v5814, %v10484
      %v10486 = vpop.f32.mrb[0].mxu0
      %v10487 = vpop.f32.mrb[0].mxu0
      %v10488 = vadd.f32 %v5814, %v10487
      %v10489 = vpop.f32.mrb[0].mxu0
      %10490 = vmatprep.mubr.bf16.mxu0 %v5163
      %10491 = vmatmul.mubr.bf16.gmra.mrb[0].mxu0 %v5162
      %v10492 = vpop.f32.mrb[0].mxu0
      %v10493 = vadd.f32 %v5814, %v10492
      %v10494 = vpop.f32.mrb[0].mxu0
      %v10495 = vpop.f32.mrb[0].mxu0
      %v10496 = vadd.f32 %v5814, %v10495
      %v10497 = vpop.f32.mrb[0].mxu0
      %10498 = vmatprep.mubr.bf16.mxu0 %v5171
      %10499 = vmatmul.mubr.bf16.gmra.mrb[0].mxu0 %v5170
      %v10500 = vpop.f32.mrb[0].mxu0
      %v10501 = vadd.f32 %v5814, %v10500
      %v10502 = vpop.f32.mrb[0].mxu0
      %v10503 = vpop.f32.mrb[0].mxu0
      %v10504 = vadd.f32 %v5814, %v10503
      %v10505 = vpop.f32.mrb[0].mxu0
      %10506 = vmatprep.mubr.bf16.mxu0 %v5179
      %10507 = vmatmul.mubr.bf16.gmra.mrb[0].mxu0 %v5178
      %v10508 = vpop.f32.mrb[0].mxu0
      %v10509 = vadd.f32 %v5814, %v10508
      %v10510 = vpop.f32.mrb[0].mxu0
      %v10511 = vpop.f32.mrb[0].mxu0
      %v10512 = vadd.f32 %v5814, %v10511
      %v10513 = vpop.f32.mrb[0].mxu0
      %10514 = vmatprep.mubr.bf16.mxu0 %v5187
      %10515 = vmatmul.mubr.bf16.gmra.mrb[0].mxu0 %v5186
      %v10516 = vpop.f32.mrb[0].mxu0
      %v10517 = vadd.f32 %v5814, %v10516
      %v10518 = vpop.f32.mrb[0].mxu0
      %v10519 = vpop.f32.mrb[0].mxu0
      %v10520 = vadd.f32 %v5814, %v10519
      %v10521 = vpop.f32.mrb[0].mxu0
      %10522 = vmatprep.mubr.bf16.mxu0 %v5195
      %10523 = vmatmul.mubr.bf16.gmra.mrb[0].mxu0 %v5194
      %v10524 = vpop.f32.mrb[0].mxu0
      %v10525 = vadd.f32 %v5814, %v10524
      %v10526 = vpop.f32.mrb[0].mxu0
      %v10527 = vpop.f32.mrb[0].mxu0
      %v10528 = vadd.f32 %v5814, %v10527
      %v10529 = vpop.f32.mrb[0].mxu0
      %10530 = vmatprep.mubr.bf16.mxu0 %v5203
      %10531 = vmatmul.mubr.bf16.gmra.mrb[0].mxu0 %v5202
      %v10532 = vpop.f32.mrb[0].mxu0
      %v10533 = vadd.f32 %v5814, %v10532
      %v10534 = vpop.f32.mrb[0].mxu0
      %v10535 = vpop.f32.mrb[0].mxu0
      %v10536 = vadd.f32 %v5814, %v10535
      %v10537 = vpop.f32.mrb[0].mxu0
      %10538 = vmatprep.mubr.bf16.mxu0 %v5211
      %10539 = vmatmul.mubr.bf16.gmra.mrb[0].mxu0 %v5210
      %v10540 = vpop.f32.mrb[0].mxu0
      %v10541 = vadd.f32 %v5814, %v10540
      %v10542 = vpop.f32.mrb[0].mxu0
      %v10543 = vpop.f32.mrb[0].mxu0
      %v10544 = vadd.f32 %v5814, %v10543
      %v10545 = vpop.f32.mrb[0].mxu0
      %10546 = vmatprep.mubr.bf16.mxu0 %v5219
      %10547 = vmatmul.mubr.bf16.gmra.mrb[0].mxu0 %v5218
      %v10548 = vpop.f32.mrb[0].mxu0
      %v10549 = vadd.f32 %v5814, %v10548
      %v10550 = vpop.f32.mrb[0].mxu0
      %v10551 = vpop.f32.mrb[0].mxu0
      %v10552 = vadd.f32 %v5814, %v10551
      %v10553 = vpop.f32.mrb[0].mxu0
      %10554 = vmatprep.mubr.bf16.mxu0 %v5227
      %10555 = vmatmul.mubr.bf16.gmra.mrb[0].mxu0 %v5226
      %v10556 = vpop.f32.mrb[0].mxu0
      %v10557 = vadd.f32 %v5814, %v10556
      %v10558 = vpop.f32.mrb[0].mxu0
      %v10559 = vpop.f32.mrb[0].mxu0
      %v10560 = vadd.f32 %v5814, %v10559
      %v10561 = vpop.f32.mrb[0].mxu0
      %10562 = vmatprep.mubr.bf16.mxu0 %v5235
      %10563 = vmatmul.mubr.bf16.gmra.mrb[0].mxu0 %v5234
      %v10564 = vpop.f32.mrb[0].mxu0
      %v10565 = vadd.f32 %v5814, %v10564
      %v10566 = vpop.f32.mrb[0].mxu0
      %v10567 = vpop.f32.mrb[0].mxu0
      %v10568 = vadd.f32 %v5814, %v10567
      %v10569 = vpop.f32.mrb[0].mxu0
      %10570 = vmatprep.mubr.bf16.mxu0 %v5243
      %10571 = vmatmul.mubr.bf16.gmra.mrb[0].mxu0 %v5242
      %v10572 = vpop.f32.mrb[0].mxu0
      %v10573 = vadd.f32 %v5814, %v10572
      %v10574 = vpop.f32.mrb[0].mxu0
      %v10575 = vpop.f32.mrb[0].mxu0
      %v10576 = vadd.f32 %v5814, %v10575
      %v10577 = vpop.f32.mrb[0].mxu0
      %10578 = vmatprep.mubr.bf16.mxu0 %v5251
      %10579 = vmatmul.mubr.bf16.gmra.mrb[0].mxu0 %v5250
      %v10580 = vpop.f32.mrb[0].mxu0
      %v10581 = vadd.f32 %v5814, %v10580
      %v10582 = vpop.f32.mrb[0].mxu0
      %v10583 = vpop.f32.mrb[0].mxu0
      %v10584 = vadd.f32 %v5814, %v10583
      %v10585 = vpop.f32.mrb[0].mxu0
      %10586 = vmatprep.mubr.bf16.mxu0 %v5259
      %10587 = vmatmul.mubr.bf16.gmra.mrb[0].mxu0 %v5258
      %v10588 = vpop.f32.mrb[0].mxu0
      %v10589 = vadd.f32 %v5814, %v10588
      %v10590 = vpop.f32.mrb[0].mxu0
      %v10591 = vpop.f32.mrb[0].mxu0
      %v10592 = vadd.f32 %v5814, %v10591
      %v10593 = vpop.f32.mrb[0].mxu0
      %10594 = vmatprep.mubr.bf16.mxu0 %v5267
      %10595 = vmatmul.mubr.bf16.gmra.mrb[0].mxu0 %v5266
      %v10596 = vpop.f32.mrb[0].mxu0
      %v10597 = vadd.f32 %v5814, %v10596
      %v10598 = vpop.f32.mrb[0].mxu0
      %v10599 = vpop.f32.mrb[0].mxu0
      %v10600 = vadd.f32 %v5814, %v10599
      %v10601 = vpop.f32.mrb[0].mxu0
      %10602 = vdwg.mxu0
      %10603 = vmatprep.subr.bf16.mxu0 0
      %10604 = vmatpush1.bf16.msra.mxu0 %v7348
      %10605 = vmatprep.subr.bf16.mxu0 0
      %10606 = vmatpush1.bf16.msra.mxu0 %v7355
      %10607 = vmatprep.subr.bf16.mxu0 0
      %10608 = vmatpush1.bf16.msra.mxu0 %v7362
      %10609 = vmatprep.subr.bf16.mxu0 0
      %10610 = vmatpush1.bf16.msra.mxu0 %v7369
      %10611 = vmatprep.subr.bf16.mxu0 0
      %10612 = vmatpush1.bf16.msra.mxu0 %v7376
      %10613 = vmatprep.subr.bf16.mxu0 0
      %10614 = vmatpush1.bf16.msra.mxu0 %v7383
      %10615 = vmatprep.subr.bf16.mxu0 0
      %10616 = vmatpush1.bf16.msra.mxu0 %v7390
      %10617 = vmatprep.subr.bf16.mxu0 0
      %10618 = vmatpush1.bf16.msra.mxu0 %v7397
      %10619 = vmatprep.subr.bf16.mxu0 0
      %10620 = vmatpush1.bf16.msra.mxu0 %v7404
      %10621 = vmatprep.subr.bf16.mxu0 0
      %10622 = vmatpush1.bf16.msra.mxu0 %v7411
      %10623 = vmatprep.subr.bf16.mxu0 0
      %10624 = vmatpush1.bf16.msra.mxu0 %v7418
      %10625 = vmatprep.subr.bf16.mxu0 0
      %10626 = vmatpush1.bf16.msra.mxu0 %v7425
      %10627 = vmatprep.subr.bf16.mxu0 0
      %10628 = vmatpush1.bf16.msra.mxu0 %v7432
      %10629 = vmatprep.subr.bf16.mxu0 0
      %10630 = vmatpush1.bf16.msra.mxu0 %v7439
      %10631 = vmatprep.subr.bf16.mxu0 0
      %10632 = vmatpush1.bf16.msra.mxu0 %v7446
      %10633 = vmatprep.subr.bf16.mxu0 0
      %10634 = vmatpush1.bf16.msra.mxu0 %v7453
      %10635 = vmatprep.mubr.bf16.mxu0 %v5149
      %10636 = vmatmul.mubr.bf16.gmra.mrb[0].mxu0 %v5148
      %v10637 = vpop.f32.mrb[0].mxu0
      %v10638 = vadd.f32 %v10477, %v10637
      %v10639 = vpop.f32.mrb[0].mxu0
      %v10640 = vpop.f32.mrb[0].mxu0
      %v10641 = vadd.f32 %v10480, %v10640
      %v10642 = vpop.f32.mrb[0].mxu0
      %10643 = vmatprep.mubr.bf16.mxu0 %v5157
      %10644 = vmatmul.mubr.bf16.gmra.mrb[0].mxu0 %v5156
      %v10645 = vpop.f32.mrb[0].mxu0
      %v10646 = vadd.f32 %v10485, %v10645
      %v10647 = vpop.f32.mrb[0].mxu0
      %v10648 = vpop.f32.mrb[0].mxu0
      %v10649 = vadd.f32 %v10488, %v10648
      %v10650 = vpop.f32.mrb[0].mxu0
      %10651 = vmatprep.mubr.bf16.mxu0 %v5165
      %10652 = vmatmul.mubr.bf16.gmra.mrb[0].mxu0 %v5164
      %v10653 = vpop.f32.mrb[0].mxu0
      %v10654 = vadd.f32 %v10493, %v10653
      %v10655 = vpop.f32.mrb[0].mxu0
      %v10656 = vpop.f32.mrb[0].mxu0
      %v10657 = vadd.f32 %v10496, %v10656
      %v10658 = vpop.f32.mrb[0].mxu0
      %10659 = vmatprep.mubr.bf16.mxu0 %v5173
      %10660 = vmatmul.mubr.bf16.gmra.mrb[0].mxu0 %v5172
      %v10661 = vpop.f32.mrb[0].mxu0
      %v10662 = vadd.f32 %v10501, %v10661
      %v10663 = vpop.f32.mrb[0].mxu0
      %v10664 = vpop.f32.mrb[0].mxu0
      %v10665 = vadd.f32 %v10504, %v10664
      %v10666 = vpop.f32.mrb[0].mxu0
      %10667 = vmatprep.mubr.bf16.mxu0 %v5181
      %10668 = vmatmul.mubr.bf16.gmra.mrb[0].mxu0 %v5180
      %v10669 = vpop.f32.mrb[0].mxu0
      %v10670 = vadd.f32 %v10509, %v10669
      %v10671 = vpop.f32.mrb[0].mxu0
      %v10672 = vpop.f32.mrb[0].mxu0
      %v10673 = vadd.f32 %v10512, %v10672
      %v10674 = vpop.f32.mrb[0].mxu0
      %10675 = vmatprep.mubr.bf16.mxu0 %v5189
      %10676 = vmatmul.mubr.bf16.gmra.mrb[0].mxu0 %v5188
      %v10677 = vpop.f32.mrb[0].mxu0
      %v10678 = vadd.f32 %v10517, %v10677
      %v10679 = vpop.f32.mrb[0].mxu0
      %v10680 = vpop.f32.mrb[0].mxu0
      %v10681 = vadd.f32 %v10520, %v10680
      %v10682 = vpop.f32.mrb[0].mxu0
      %10683 = vmatprep.mubr.bf16.mxu0 %v5197
      %10684 = vmatmul.mubr.bf16.gmra.mrb[0].mxu0 %v5196
      %v10685 = vpop.f32.mrb[0].mxu0
      %v10686 = vadd.f32 %v10525, %v10685
      %v10687 = vpop.f32.mrb[0].mxu0
      %v10688 = vpop.f32.mrb[0].mxu0
      %v10689 = vadd.f32 %v10528, %v10688
      %v10690 = vpop.f32.mrb[0].mxu0
      %10691 = vmatprep.mubr.bf16.mxu0 %v5205
      %10692 = vmatmul.mubr.bf16.gmra.mrb[0].mxu0 %v5204
      %v10693 = vpop.f32.mrb[0].mxu0
      %v10694 = vadd.f32 %v10533, %v10693
      %v10695 = vpop.f32.mrb[0].mxu0
      %v10696 = vpop.f32.mrb[0].mxu0
      %v10697 = vadd.f32 %v10536, %v10696
      %v10698 = vpop.f32.mrb[0].mxu0
      %10699 = vmatprep.mubr.bf16.mxu0 %v5213
      %10700 = vmatmul.mubr.bf16.gmra.mrb[0].mxu0 %v5212
      %v10701 = vpop.f32.mrb[0].mxu0
      %v10702 = vadd.f32 %v10541, %v10701
      %v10703 = vpop.f32.mrb[0].mxu0
      %v10704 = vpop.f32.mrb[0].mxu0
      %v10705 = vadd.f32 %v10544, %v10704
      %v10706 = vpop.f32.mrb[0].mxu0
      %10707 = vmatprep.mubr.bf16.mxu0 %v5221
      %10708 = vmatmul.mubr.bf16.gmra.mrb[0].mxu0 %v5220
      %v10709 = vpop.f32.mrb[0].mxu0
      %v10710 = vadd.f32 %v10549, %v10709
      %v10711 = vpop.f32.mrb[0].mxu0
      %v10712 = vpop.f32.mrb[0].mxu0
      %v10713 = vadd.f32 %v10552, %v10712
      %v10714 = vpop.f32.mrb[0].mxu0
      %10715 = vmatprep.mubr.bf16.mxu0 %v5229
      %10716 = vmatmul.mubr.bf16.gmra.mrb[0].mxu0 %v5228
      %v10717 = vpop.f32.mrb[0].mxu0
      %v10718 = vadd.f32 %v10557, %v10717
      %v10719 = vpop.f32.mrb[0].mxu0
      %v10720 = vpop.f32.mrb[0].mxu0
      %v10721 = vadd.f32 %v10560, %v10720
      %v10722 = vpop.f32.mrb[0].mxu0
      %10723 = vmatprep.mubr.bf16.mxu0 %v5237
      %10724 = vmatmul.mubr.bf16.gmra.mrb[0].mxu0 %v5236
      %v10725 = vpop.f32.mrb[0].mxu0
      %v10726 = vadd.f32 %v10565, %v10725
      %v10727 = vpop.f32.mrb[0].mxu0
      %v10728 = vpop.f32.mrb[0].mxu0
      %v10729 = vadd.f32 %v10568, %v10728
      %v10730 = vpop.f32.mrb[0].mxu0
      %10731 = vmatprep.mubr.bf16.mxu0 %v5245
      %10732 = vmatmul.mubr.bf16.gmra.mrb[0].mxu0 %v5244
      %v10733 = vpop.f32.mrb[0].mxu0
      %v10734 = vadd.f32 %v10573, %v10733
      %v10735 = vpop.f32.mrb[0].mxu0
      %v10736 = vpop.f32.mrb[0].mxu0
      %v10737 = vadd.f32 %v10576, %v10736
      %v10738 = vpop.f32.mrb[0].mxu0
      %10739 = vmatprep.mubr.bf16.mxu0 %v5253
      %10740 = vmatmul.mubr.bf16.gmra.mrb[0].mxu0 %v5252
      %v10741 = vpop.f32.mrb[0].mxu0
      %v10742 = vadd.f32 %v10581, %v10741
      %v10743 = vpop.f32.mrb[0].mxu0
      %v10744 = vpop.f32.mrb[0].mxu0
      %v10745 = vadd.f32 %v10584, %v10744
      %v10746 = vpop.f32.mrb[0].mxu0
      %10747 = vmatprep.mubr.bf16.mxu0 %v5261
      %10748 = vmatmul.mubr.bf16.gmra.mrb[0].mxu0 %v5260
      %v10749 = vpop.f32.mrb[0].mxu0
      %v10750 = vadd.f32 %v10589, %v10749
      %v10751 = vpop.f32.mrb[0].mxu0
      %v10752 = vpop.f32.mrb[0].mxu0
      %v10753 = vadd.f32 %v10592, %v10752
      %v10754 = vpop.f32.mrb[0].mxu0
      %10755 = vmatprep.mubr.bf16.mxu0 %v5269
      %10756 = vmatmul.mubr.bf16.gmra.mrb[0].mxu0 %v5268
      %v10757 = vpop.f32.mrb[0].mxu0
      %v10758 = vadd.f32 %v10597, %v10757
      %v10759 = vpop.f32.mrb[0].mxu0
      %v10760 = vpop.f32.mrb[0].mxu0
      %v10761 = vadd.f32 %v10600, %v10760
      %v10762 = vpop.f32.mrb[0].mxu0
      %10763 = vdwg.mxu0
      %10764 = vmatprep.subr.bf16.mxu0 0
      %10765 = vmatpush1.bf16.msra.mxu0 %v7460
      %10766 = vmatprep.subr.bf16.mxu0 0
      %10767 = vmatpush1.bf16.msra.mxu0 %v7467
      %10768 = vmatprep.subr.bf16.mxu0 0
      %10769 = vmatpush1.bf16.msra.mxu0 %v7474
      %10770 = vmatprep.subr.bf16.mxu0 0
      %10771 = vmatpush1.bf16.msra.mxu0 %v7481
      %10772 = vmatprep.subr.bf16.mxu0 0
      %10773 = vmatpush1.bf16.msra.mxu0 %v7488
      %10774 = vmatprep.subr.bf16.mxu0 0
      %10775 = vmatpush1.bf16.msra.mxu0 %v7495
      %10776 = vmatprep.subr.bf16.mxu0 0
      %10777 = vmatpush1.bf16.msra.mxu0 %v7502
      %10778 = vmatprep.subr.bf16.mxu0 0
      %10779 = vmatpush1.bf16.msra.mxu0 %v7509
      %10780 = vmatprep.subr.bf16.mxu0 0
      %10781 = vmatpush1.bf16.msra.mxu0 %v7516
      %10782 = vmatprep.subr.bf16.mxu0 0
      %10783 = vmatpush1.bf16.msra.mxu0 %v7523
      %10784 = vmatprep.subr.bf16.mxu0 0
      %10785 = vmatpush1.bf16.msra.mxu0 %v7530
      %10786 = vmatprep.subr.bf16.mxu0 0
      %10787 = vmatpush1.bf16.msra.mxu0 %v7537
      %10788 = vmatprep.subr.bf16.mxu0 0
      %10789 = vmatpush1.bf16.msra.mxu0 %v7544
      %10790 = vmatprep.subr.bf16.mxu0 0
      %10791 = vmatpush1.bf16.msra.mxu0 %v7551
      %10792 = vmatprep.subr.bf16.mxu0 0
      %10793 = vmatpush1.bf16.msra.mxu0 %v7558
      %10794 = vmatprep.subr.bf16.mxu0 0
      %10795 = vmatpush1.bf16.msra.mxu0 %v7565
      %10796 = vmatprep.mubr.bf16.mxu0 %v5151
      %10797 = vmatmul.mubr.bf16.gmra.mrb[0].mxu0 %v5150
      %v10798 = vpop.f32.mrb[0].mxu0
      %v10799 = vadd.f32 %v10638, %v10798
      %v10800 = vpop.f32.mrb[0].mxu0
      %v10801 = vpop.f32.mrb[0].mxu0
      %v10802 = vadd.f32 %v10641, %v10801
      %v10803 = vpop.f32.mrb[0].mxu0
      %10804 = vmatprep.mubr.bf16.mxu0 %v5159
      %10805 = vmatmul.mubr.bf16.gmra.mrb[0].mxu0 %v5158
      %v10806 = vpop.f32.mrb[0].mxu0
      %v10807 = vadd.f32 %v10646, %v10806
      %v10808 = vpop.f32.mrb[0].mxu0
      %v10809 = vpop.f32.mrb[0].mxu0
      %v10810 = vadd.f32 %v10649, %v10809
      %v10811 = vpop.f32.mrb[0].mxu0
      %10812 = vmatprep.mubr.bf16.mxu0 %v5167
      %10813 = vmatmul.mubr.bf16.gmra.mrb[0].mxu0 %v5166
      %v10814 = vpop.f32.mrb[0].mxu0
      %v10815 = vadd.f32 %v10654, %v10814
      %v10816 = vpop.f32.mrb[0].mxu0
      %v10817 = vpop.f32.mrb[0].mxu0
      %v10818 = vadd.f32 %v10657, %v10817
      %v10819 = vpop.f32.mrb[0].mxu0
      %10820 = vmatprep.mubr.bf16.mxu0 %v5175
      %10821 = vmatmul.mubr.bf16.gmra.mrb[0].mxu0 %v5174
      %v10822 = vpop.f32.mrb[0].mxu0
      %v10823 = vadd.f32 %v10662, %v10822
      %v10824 = vpop.f32.mrb[0].mxu0
      %v10825 = vpop.f32.mrb[0].mxu0
      %v10826 = vadd.f32 %v10665, %v10825
      %v10827 = vpop.f32.mrb[0].mxu0
      %10828 = vmatprep.mubr.bf16.mxu0 %v5183
      %10829 = vmatmul.mubr.bf16.gmra.mrb[0].mxu0 %v5182
      %v10830 = vpop.f32.mrb[0].mxu0
      %v10831 = vadd.f32 %v10670, %v10830
      %v10832 = vpop.f32.mrb[0].mxu0
      %v10833 = vpop.f32.mrb[0].mxu0
      %v10834 = vadd.f32 %v10673, %v10833
      %v10835 = vpop.f32.mrb[0].mxu0
      %10836 = vmatprep.mubr.bf16.mxu0 %v5191
      %10837 = vmatmul.mubr.bf16.gmra.mrb[0].mxu0 %v5190
      %v10838 = vpop.f32.mrb[0].mxu0
      %v10839 = vadd.f32 %v10678, %v10838
      %v10840 = vpop.f32.mrb[0].mxu0
      %v10841 = vpop.f32.mrb[0].mxu0
      %v10842 = vadd.f32 %v10681, %v10841
      %v10843 = vpop.f32.mrb[0].mxu0
      %10844 = vmatprep.mubr.bf16.mxu0 %v5199
      %10845 = vmatmul.mubr.bf16.gmra.mrb[0].mxu0 %v5198
      %v10846 = vpop.f32.mrb[0].mxu0
      %v10847 = vadd.f32 %v10686, %v10846
      %v10848 = vpop.f32.mrb[0].mxu0
      %v10849 = vpop.f32.mrb[0].mxu0
      %v10850 = vadd.f32 %v10689, %v10849
      %v10851 = vpop.f32.mrb[0].mxu0
      %10852 = vmatprep.mubr.bf16.mxu0 %v5207
      %10853 = vmatmul.mubr.bf16.gmra.mrb[0].mxu0 %v5206
      %v10854 = vpop.f32.mrb[0].mxu0
      %v10855 = vadd.f32 %v10694, %v10854
      %v10856 = vpop.f32.mrb[0].mxu0
      %v10857 = vpop.f32.mrb[0].mxu0
      %v10858 = vadd.f32 %v10697, %v10857
      %v10859 = vpop.f32.mrb[0].mxu0
      %10860 = vmatprep.mubr.bf16.mxu0 %v5215
      %10861 = vmatmul.mubr.bf16.gmra.mrb[0].mxu0 %v5214
      %v10862 = vpop.f32.mrb[0].mxu0
      %v10863 = vadd.f32 %v10702, %v10862
      %v10864 = vpop.f32.mrb[0].mxu0
      %v10865 = vpop.f32.mrb[0].mxu0
      %v10866 = vadd.f32 %v10705, %v10865
      %v10867 = vpop.f32.mrb[0].mxu0
      %10868 = vmatprep.mubr.bf16.mxu0 %v5223
      %10869 = vmatmul.mubr.bf16.gmra.mrb[0].mxu0 %v5222
      %v10870 = vpop.f32.mrb[0].mxu0
      %v10871 = vadd.f32 %v10710, %v10870
      %v10872 = vpop.f32.mrb[0].mxu0
      %v10873 = vpop.f32.mrb[0].mxu0
      %v10874 = vadd.f32 %v10713, %v10873
      %v10875 = vpop.f32.mrb[0].mxu0
      %10876 = vmatprep.mubr.bf16.mxu0 %v5231
      %10877 = vmatmul.mubr.bf16.gmra.mrb[0].mxu0 %v5230
      %v10878 = vpop.f32.mrb[0].mxu0
      %v10879 = vadd.f32 %v10718, %v10878
      %v10880 = vpop.f32.mrb[0].mxu0
      %v10881 = vpop.f32.mrb[0].mxu0
      %v10882 = vadd.f32 %v10721, %v10881
      %v10883 = vpop.f32.mrb[0].mxu0
      %10884 = vmatprep.mubr.bf16.mxu0 %v5239
      %10885 = vmatmul.mubr.bf16.gmra.mrb[0].mxu0 %v5238
      %v10886 = vpop.f32.mrb[0].mxu0
      %v10887 = vadd.f32 %v10726, %v10886
      %v10888 = vpop.f32.mrb[0].mxu0
      %v10889 = vpop.f32.mrb[0].mxu0
      %v10890 = vadd.f32 %v10729, %v10889
      %v10891 = vpop.f32.mrb[0].mxu0
      %10892 = vmatprep.mubr.bf16.mxu0 %v5247
      %10893 = vmatmul.mubr.bf16.gmra.mrb[0].mxu0 %v5246
      %v10894 = vpop.f32.mrb[0].mxu0
      %v10895 = vadd.f32 %v10734, %v10894
      %v10896 = vpop.f32.mrb[0].mxu0
      %v10897 = vpop.f32.mrb[0].mxu0
      %v10898 = vadd.f32 %v10737, %v10897
      %v10899 = vpop.f32.mrb[0].mxu0
      %10900 = vmatprep.mubr.bf16.mxu0 %v5255
      %10901 = vmatmul.mubr.bf16.gmra.mrb[0].mxu0 %v5254
      %v10902 = vpop.f32.mrb[0].mxu0
      %v10903 = vadd.f32 %v10742, %v10902
      %v10904 = vpop.f32.mrb[0].mxu0
      %v10905 = vpop.f32.mrb[0].mxu0
      %v10906 = vadd.f32 %v10745, %v10905
      %v10907 = vpop.f32.mrb[0].mxu0
      %10908 = vmatprep.mubr.bf16.mxu0 %v5263
      %10909 = vmatmul.mubr.bf16.gmra.mrb[0].mxu0 %v5262
      %v10910 = vpop.f32.mrb[0].mxu0
      %v10911 = vadd.f32 %v10750, %v10910
      %v10912 = vpop.f32.mrb[0].mxu0
      %v10913 = vpop.f32.mrb[0].mxu0
      %v10914 = vadd.f32 %v10753, %v10913
      %v10915 = vpop.f32.mrb[0].mxu0
      %10916 = vmatprep.mubr.bf16.mxu0 %v5271
      %10917 = vmatmul.mubr.bf16.gmra.mrb[0].mxu0 %v5270
      %v10918 = vpop.f32.mrb[0].mxu0
      %v10919 = vadd.f32 %v10758, %v10918
      %v10920 = vpop.f32.mrb[0].mxu0
      %v10921 = vpop.f32.mrb[0].mxu0
      %v10922 = vadd.f32 %v10761, %v10921
      %v10923 = vpop.f32.mrb[0].mxu0
      %10924 = vdwg.mxu0
      %10925 = vmatprep.subr.bf16.mxu0 0
      %10926 = vmatpush1.bf16.msra.mxu0 %v7572
      %10927 = vmatprep.subr.bf16.mxu0 0
      %10928 = vmatpush1.bf16.msra.mxu0 %v7579
      %10929 = vmatprep.subr.bf16.mxu0 0
      %10930 = vmatpush1.bf16.msra.mxu0 %v7586
      %10931 = vmatprep.subr.bf16.mxu0 0
      %10932 = vmatpush1.bf16.msra.mxu0 %v7593
      %10933 = vmatprep.subr.bf16.mxu0 0
      %10934 = vmatpush1.bf16.msra.mxu0 %v7600
      %10935 = vmatprep.subr.bf16.mxu0 0
      %10936 = vmatpush1.bf16.msra.mxu0 %v7607
      %10937 = vmatprep.subr.bf16.mxu0 0
      %10938 = vmatpush1.bf16.msra.mxu0 %v7614
      %10939 = vmatprep.subr.bf16.mxu0 0
      %10940 = vmatpush1.bf16.msra.mxu0 %v7621
      %10941 = vmatprep.subr.bf16.mxu0 0
      %10942 = vmatpush1.bf16.msra.mxu0 %v7628
      %10943 = vmatprep.subr.bf16.mxu0 0
      %10944 = vmatpush1.bf16.msra.mxu0 %v7635
      %10945 = vmatprep.subr.bf16.mxu0 0
      %10946 = vmatpush1.bf16.msra.mxu0 %v7642
      %10947 = vmatprep.subr.bf16.mxu0 0
      %10948 = vmatpush1.bf16.msra.mxu0 %v7649
      %10949 = vmatprep.subr.bf16.mxu0 0
      %10950 = vmatpush1.bf16.msra.mxu0 %v7656
      %10951 = vmatprep.subr.bf16.mxu0 0
      %10952 = vmatpush1.bf16.msra.mxu0 %v7663
      %10953 = vmatprep.subr.bf16.mxu0 0
      %10954 = vmatpush1.bf16.msra.mxu0 %v7670
      %10955 = vmatprep.subr.bf16.mxu0 0
      %10956 = vmatpush1.bf16.msra.mxu0 %v7677
      %10957 = vmatprep.mubr.bf16.mxu0 %v5153
      %10958 = vmatmul.mubr.bf16.gmra.mrb[0].mxu0 %v5152
      %v10959 = vpop.f32.mrb[0].mxu0
      %v10960 = vadd.f32 %v10799, %v10959
      %v10961 = vpop.f32.mrb[0].mxu0
      %v10962 = vpop.f32.mrb[0].mxu0
      %v10963 = vadd.f32 %v10802, %v10962
      %v10964 = vpop.f32.mrb[0].mxu0
      %10965 = vmatprep.mubr.bf16.mxu0 %v5161
      %10966 = vmatmul.mubr.bf16.gmra.mrb[0].mxu0 %v5160
      %v10967 = vpop.f32.mrb[0].mxu0
      %v10968 = vadd.f32 %v10807, %v10967
      %v10969 = vpop.f32.mrb[0].mxu0
      %v10970 = vpop.f32.mrb[0].mxu0
      %v10971 = vadd.f32 %v10810, %v10970
      %v10972 = vpop.f32.mrb[0].mxu0
      %10973 = vmatprep.mubr.bf16.mxu0 %v5169
      %10974 = vmatmul.mubr.bf16.gmra.mrb[0].mxu0 %v5168
      %v10975 = vpop.f32.mrb[0].mxu0
      %v10976 = vadd.f32 %v10815, %v10975
      %v10977 = vpop.f32.mrb[0].mxu0
      %v10978 = vpop.f32.mrb[0].mxu0
      %v10979 = vadd.f32 %v10818, %v10978
      %v10980 = vpop.f32.mrb[0].mxu0
      %10981 = vmatprep.mubr.bf16.mxu0 %v5177
      %10982 = vmatmul.mubr.bf16.gmra.mrb[0].mxu0 %v5176
      %v10983 = vpop.f32.mrb[0].mxu0
      %v10984 = vadd.f32 %v10823, %v10983
      %v10985 = vpop.f32.mrb[0].mxu0
      %v10986 = vpop.f32.mrb[0].mxu0
      %v10987 = vadd.f32 %v10826, %v10986
      %v10988 = vpop.f32.mrb[0].mxu0
      %10989 = vmatprep.mubr.bf16.mxu0 %v5185
      %10990 = vmatmul.mubr.bf16.gmra.mrb[0].mxu0 %v5184
      %v10991 = vpop.f32.mrb[0].mxu0
      %v10992 = vadd.f32 %v10831, %v10991
      %v10993 = vpop.f32.mrb[0].mxu0
      %v10994 = vpop.f32.mrb[0].mxu0
      %v10995 = vadd.f32 %v10834, %v10994
      %v10996 = vpop.f32.mrb[0].mxu0
      %10997 = vmatprep.mubr.bf16.mxu0 %v5193
      %10998 = vmatmul.mubr.bf16.gmra.mrb[0].mxu0 %v5192
      %v10999 = vpop.f32.mrb[0].mxu0
      %v11000 = vadd.f32 %v10839, %v10999
      %v11001 = vpop.f32.mrb[0].mxu0
      %v11002 = vpop.f32.mrb[0].mxu0
      %v11003 = vadd.f32 %v10842, %v11002
      %v11004 = vpop.f32.mrb[0].mxu0
      %11005 = vmatprep.mubr.bf16.mxu0 %v5201
      %11006 = vmatmul.mubr.bf16.gmra.mrb[0].mxu0 %v5200
      %v11007 = vpop.f32.mrb[0].mxu0
      %v11008 = vadd.f32 %v10847, %v11007
      %v11009 = vpop.f32.mrb[0].mxu0
      %v11010 = vpop.f32.mrb[0].mxu0
      %v11011 = vadd.f32 %v10850, %v11010
      %v11012 = vpop.f32.mrb[0].mxu0
      %11013 = vmatprep.mubr.bf16.mxu0 %v5209
      %11014 = vmatmul.mubr.bf16.gmra.mrb[0].mxu0 %v5208
      %v11015 = vpop.f32.mrb[0].mxu0
      %v11016 = vadd.f32 %v10855, %v11015
      %v11017 = vpop.f32.mrb[0].mxu0
      %v11018 = vpop.f32.mrb[0].mxu0
      %v11019 = vadd.f32 %v10858, %v11018
      %v11020 = vpop.f32.mrb[0].mxu0
      %11021 = vmatprep.mubr.bf16.mxu0 %v5217
      %11022 = vmatmul.mubr.bf16.gmra.mrb[0].mxu0 %v5216
      %v11023 = vpop.f32.mrb[0].mxu0
      %v11024 = vadd.f32 %v10863, %v11023
      %v11025 = vpop.f32.mrb[0].mxu0
      %v11026 = vpop.f32.mrb[0].mxu0
      %v11027 = vadd.f32 %v10866, %v11026
      %v11028 = vpop.f32.mrb[0].mxu0
      %11029 = vmatprep.mubr.bf16.mxu0 %v5225
      %11030 = vmatmul.mubr.bf16.gmra.mrb[0].mxu0 %v5224
      %v11031 = vpop.f32.mrb[0].mxu0
      %v11032 = vadd.f32 %v10871, %v11031
      %v11033 = vpop.f32.mrb[0].mxu0
      %v11034 = vpop.f32.mrb[0].mxu0
      %v11035 = vadd.f32 %v10874, %v11034
      %v11036 = vpop.f32.mrb[0].mxu0
      %11037 = vmatprep.mubr.bf16.mxu0 %v5233
      %11038 = vmatmul.mubr.bf16.gmra.mrb[0].mxu0 %v5232
      %v11039 = vpop.f32.mrb[0].mxu0
      %v11040 = vadd.f32 %v10879, %v11039
      %v11041 = vpop.f32.mrb[0].mxu0
      %v11042 = vpop.f32.mrb[0].mxu0
      %v11043 = vadd.f32 %v10882, %v11042
      %v11044 = vpop.f32.mrb[0].mxu0
      %11045 = vmatprep.mubr.bf16.mxu0 %v5241
      %11046 = vmatmul.mubr.bf16.gmra.mrb[0].mxu0 %v5240
      %v11047 = vpop.f32.mrb[0].mxu0
      %v11048 = vadd.f32 %v10887, %v11047
      %v11049 = vpop.f32.mrb[0].mxu0
      %v11050 = vpop.f32.mrb[0].mxu0
      %v11051 = vadd.f32 %v10890, %v11050
      %v11052 = vpop.f32.mrb[0].mxu0
      %11053 = vmatprep.mubr.bf16.mxu0 %v5249
      %11054 = vmatmul.mubr.bf16.gmra.mrb[0].mxu0 %v5248
      %v11055 = vpop.f32.mrb[0].mxu0
      %v11056 = vadd.f32 %v10895, %v11055
      %v11057 = vpop.f32.mrb[0].mxu0
      %v11058 = vpop.f32.mrb[0].mxu0
      %v11059 = vadd.f32 %v10898, %v11058
      %v11060 = vpop.f32.mrb[0].mxu0
      %11061 = vmatprep.mubr.bf16.mxu0 %v5257
      %11062 = vmatmul.mubr.bf16.gmra.mrb[0].mxu0 %v5256
      %v11063 = vpop.f32.mrb[0].mxu0
      %v11064 = vadd.f32 %v10903, %v11063
      %v11065 = vpop.f32.mrb[0].mxu0
      %v11066 = vpop.f32.mrb[0].mxu0
      %v11067 = vadd.f32 %v10906, %v11066
      %v11068 = vpop.f32.mrb[0].mxu0
      %11069 = vmatprep.mubr.bf16.mxu0 %v5265
      %11070 = vmatmul.mubr.bf16.gmra.mrb[0].mxu0 %v5264
      %v11071 = vpop.f32.mrb[0].mxu0
      %v11072 = vadd.f32 %v10911, %v11071
      %v11073 = vpop.f32.mrb[0].mxu0
      %v11074 = vpop.f32.mrb[0].mxu0
      %v11075 = vadd.f32 %v10914, %v11074
      %v11076 = vpop.f32.mrb[0].mxu0
      %11077 = vmatprep.mubr.bf16.mxu0 %v5273
      %11078 = vmatmul.mubr.bf16.gmra.mrb[0].mxu0 %v5272
      %v11079 = vpop.f32.mrb[0].mxu0
      %v11080 = vadd.f32 %v10919, %v11079
      %v11081 = vpop.f32.mrb[0].mxu0
      %v11082 = vpop.f32.mrb[0].mxu0
      %v11083 = vadd.f32 %v10922, %v11082
      %v11084 = vpop.f32.mrb[0].mxu0
      %11085 = vdwg.mxu0
      %v11086 = vtanh.pop %v8740
      %v11087 = vtanh.pop %v8742
      %v11088 = vtanh.pop %v9512
      %v11089 = vtanh.pop %v9514
      %v11090 = vtanh.pop %v10284
      %v11091 = vtanh.pop %v10286
      %v11092 = vtanh.pop %v10960
      %v11093 = vtanh.pop %v8744
      %v11094 = vtanh.pop %v8746
      %v11095 = vtanh.pop %v9516
      %v11096 = vtanh.pop %v9518
      %v11097 = vtanh.pop %v10288
      %v11098 = vtanh.pop %v10290
      %v11099 = vtanh.pop %v10963
      %v11100 = vtanh.pop %v8750
      %v11101 = vtanh.pop %v8752
      %v11102 = vtanh.pop %v9522
      %v11103 = vtanh.pop %v9524
      %v11104 = vtanh.pop %v10294
      %v11105 = vtanh.pop %v10296
      %v11106 = vtanh.pop %v10968
      %v11107 = vtanh.pop %v8754
      %v11108 = vtanh.pop %v8756
      %v11109 = vtanh.pop %v9526
      %v11110 = vtanh.pop %v9528
      %v11111 = vtanh.pop %v10298
      %v11112 = vtanh.pop %v10300
      %v11113 = vtanh.pop %v10971
      %v11114 = vtanh.pop %v8760
      %v11115 = vtanh.pop %v8762
      %v11116 = vtanh.pop %v9532
      %v11117 = vtanh.pop %v9534
      %v11118 = vtanh.pop %v10304
      %v11119 = vtanh.pop %v10306
      %v11120 = vtanh.pop %v10976
      %v11121 = vtanh.pop %v8764
      %v11122 = vtanh.pop %v8766
      %v11123 = vtanh.pop %v9536
      %v11124 = vtanh.pop %v9538
      %v11125 = vtanh.pop %v10308
      %v11126 = vtanh.pop %v10310
      %v11127 = vtanh.pop %v10979
      %v11128 = vtanh.pop %v8770
      %v11129 = vtanh.pop %v8772
      %v11130 = vtanh.pop %v9542
      %v11131 = vtanh.pop %v9544
      %v11132 = vtanh.pop %v10314
      %v11133 = vtanh.pop %v10316
      %v11134 = vtanh.pop %v10984
      %v11135 = vtanh.pop %v8774
      %v11136 = vtanh.pop %v8776
      %v11137 = vtanh.pop %v9546
      %v11138 = vtanh.pop %v9548
      %v11139 = vtanh.pop %v10318
      %v11140 = vtanh.pop %v10320
      %v11141 = vtanh.pop %v10987
      %v11142 = vtanh.pop %v8780
      %v11143 = vtanh.pop %v8782
      %v11144 = vtanh.pop %v9552
      %v11145 = vtanh.pop %v9554
      %v11146 = vtanh.pop %v10324
      %v11147 = vtanh.pop %v10326
      %v11148 = vtanh.pop %v10992
      %v11149 = vtanh.pop %v8784
      %v11150 = vtanh.pop %v8786
      %v11151 = vtanh.pop %v9556
      %v11152 = vtanh.pop %v9558
      %v11153 = vtanh.pop %v10328
      %v11154 = vtanh.pop %v10330
      %v11155 = vtanh.pop %v10995
      %v11156 = vtanh.pop %v8790
      %v11157 = vtanh.pop %v8792
      %v11158 = vtanh.pop %v9562
      %v11159 = vtanh.pop %v9564
      %v11160 = vtanh.pop %v10334
      %v11161 = vtanh.pop %v10336
      %v11162 = vtanh.pop %v11000
      %v11163 = vtanh.pop %v8794
      %v11164 = vtanh.pop %v8796
      %v11165 = vtanh.pop %v9566
      %v11166 = vtanh.pop %v9568
      %v11167 = vtanh.pop %v10338
      %v11168 = vtanh.pop %v10340
      %v11169 = vtanh.pop %v11003
      %v11170 = vtanh.pop %v8800
      %v11171 = vtanh.pop %v8802
      %v11172 = vtanh.pop %v9572
      %v11173 = vtanh.pop %v9574
      %v11174 = vtanh.pop %v10344
      %v11175 = vtanh.pop %v10346
      %v11176 = vtanh.pop %v11008
      %v11177 = vtanh.pop %v8804
      %v11178 = vtanh.pop %v8806
      %v11179 = vtanh.pop %v9576
      %v11180 = vtanh.pop %v9578
      %v11181 = vtanh.pop %v10348
      %v11182 = vtanh.pop %v10350
      %v11183 = vtanh.pop %v11011
      %v11184 = vtanh.pop %v8810
      %v11185 = vtanh.pop %v8812
      %v11186 = vtanh.pop %v9582
      %v11187 = vtanh.pop %v9584
      %v11188 = vtanh.pop %v10354
      %v11189 = vtanh.pop %v10356
      %v11190 = vtanh.pop %v11016
      %v11191 = vtanh.pop %v8814
      %v11192 = vtanh.pop %v8816
      %v11193 = vtanh.pop %v9586
      %v11194 = vtanh.pop %v9588
      %v11195 = vtanh.pop %v10358
      %v11196 = vtanh.pop %v10360
      %v11197 = vtanh.pop %v11019
      %v11198 = vtanh.pop %v8820
      %v11199 = vtanh.pop %v8822
      %v11200 = vtanh.pop %v9592
      %v11201 = vtanh.pop %v9594
      %v11202 = vtanh.pop %v10364
      %v11203 = vtanh.pop %v10366
      %v11204 = vtanh.pop %v11024
      %v11205 = vtanh.pop %v8824
      %v11206 = vtanh.pop %v8826
      %v11207 = vtanh.pop %v9596
      %v11208 = vtanh.pop %v9598
      %v11209 = vtanh.pop %v10368
      %v11210 = vtanh.pop %v10370
      %v11211 = vtanh.pop %v11027
      %v11212 = vtanh.pop %v8830
      %v11213 = vtanh.pop %v8832
      %v11214 = vtanh.pop %v9602
      %v11215 = vtanh.pop %v9604
      %v11216 = vtanh.pop %v10374
      %v11217 = vtanh.pop %v10376
      %v11218 = vtanh.pop %v11032
      %v11219 = vtanh.pop %v8834
      %v11220 = vtanh.pop %v8836
      %v11221 = vtanh.pop %v9606
      %v11222 = vtanh.pop %v9608
      %v11223 = vtanh.pop %v10378
      %v11224 = vtanh.pop %v10380
      %v11225 = vtanh.pop %v11035
      %v11226 = vtanh.pop %v8840
      %v11227 = vtanh.pop %v8842
      %v11228 = vtanh.pop %v9612
      %v11229 = vtanh.pop %v9614
      %v11230 = vtanh.pop %v10384
      %v11231 = vtanh.pop %v10386
      %v11232 = vtanh.pop %v11040
      %v11233 = vtanh.pop %v8844
      %v11234 = vtanh.pop %v8846
      %v11235 = vtanh.pop %v9616
      %v11236 = vtanh.pop %v9618
      %v11237 = vtanh.pop %v10388
      %v11238 = vtanh.pop %v10390
      %v11239 = vtanh.pop %v11043
      %v11240 = vtanh.pop %v8850
      %v11241 = vtanh.pop %v8852
      %v11242 = vtanh.pop %v9622
      %v11243 = vtanh.pop %v9624
      %v11244 = vtanh.pop %v10394
      %v11245 = vtanh.pop %v10396
      %v11246 = vtanh.pop %v11048
      %v11247 = vtanh.pop %v8854
      %v11248 = vtanh.pop %v8856
      %v11249 = vtanh.pop %v9626
      %v11250 = vtanh.pop %v9628
      %v11251 = vtanh.pop %v10398
      %v11252 = vtanh.pop %v10400
      %v11253 = vtanh.pop %v11051
      %v11254 = vtanh.pop %v8860
      %v11255 = vtanh.pop %v8862
      %v11256 = vtanh.pop %v9632
      %v11257 = vtanh.pop %v9634
      %v11258 = vtanh.pop %v10404
      %v11259 = vtanh.pop %v10406
      %v11260 = vtanh.pop %v11056
      %v11261 = vtanh.pop %v8864
      %v11262 = vtanh.pop %v8866
      %v11263 = vtanh.pop %v9636
      %v11264 = vtanh.pop %v9638
      %v11265 = vtanh.pop %v10408
      %v11266 = vtanh.pop %v10410
      %v11267 = vtanh.pop %v11059
      %v11268 = vtanh.pop %v8870
      %v11269 = vtanh.pop %v8872
      %v11270 = vtanh.pop %v9642
      %v11271 = vtanh.pop %v9644
      %v11272 = vtanh.pop %v10414
      %v11273 = vtanh.pop %v10416
      %v11274 = vtanh.pop %v11064
      %v11275 = vtanh.pop %v8874
      %v11276 = vtanh.pop %v8876
      %v11277 = vtanh.pop %v9646
      %v11278 = vtanh.pop %v9648
      %v11279 = vtanh.pop %v10418
      %v11280 = vtanh.pop %v10420
      %v11281 = vtanh.pop %v11067
      %v11282 = vtanh.pop %v8880
      %v11283 = vtanh.pop %v8882
      %v11284 = vtanh.pop %v9652
      %v11285 = vtanh.pop %v9654
      %v11286 = vtanh.pop %v10424
      %v11287 = vtanh.pop %v10426
      %v11288 = vtanh.pop %v11072
      %v11289 = vtanh.pop %v8884
      %v11290 = vtanh.pop %v8886
      %v11291 = vtanh.pop %v9656
      %v11292 = vtanh.pop %v9658
      %v11293 = vtanh.pop %v10428
      %v11294 = vtanh.pop %v10430
      %v11295 = vtanh.pop %v11075
      %v11296 = vtanh.pop %v8890
      %v11297 = vtanh.pop %v8892
      %v11298 = vtanh.pop %v9662
      %v11299 = vtanh.pop %v9664
      %v11300 = vtanh.pop %v10434
      %v11301 = vtanh.pop %v10436
      %v11302 = vtanh.pop %v11080
      %v11303 = vtanh.pop %v8894
      %v11304 = vtanh.pop %v8896
      %v11305 = vtanh.pop %v9666
      %v11306 = vtanh.pop %v9668
      %v11307 = vtanh.pop %v10438
      %v11308 = vtanh.pop %v10440
      %v11309 = vtanh.pop %v11083
      %v11310 = vpack.c.bf16 %v11093, %v11086
      %v11311 = vpack.c.bf16 %v11094, %v11087
      %v11312 = vpack.c.bf16 %v11095, %v11088
      %v11313 = vpack.c.bf16 %v11096, %v11089
      %v11314 = vpack.c.bf16 %v11097, %v11090
      %v11315 = vpack.c.bf16 %v11098, %v11091
      %v11316 = vpack.c.bf16 %v11099, %v11092
      %v11317 = vpack.c.bf16 %v11107, %v11100
      %v11318 = vpack.c.bf16 %v11108, %v11101
      %v11319 = vpack.c.bf16 %v11109, %v11102
      %v11320 = vpack.c.bf16 %v11110, %v11103
      %v11321 = vpack.c.bf16 %v11111, %v11104
      %v11322 = vpack.c.bf16 %v11112, %v11105
      %v11323 = vpack.c.bf16 %v11113, %v11106
      %v11324 = vpack.c.bf16 %v11121, %v11114
      %v11325 = vpack.c.bf16 %v11122, %v11115
      %v11326 = vpack.c.bf16 %v11123, %v11116
      %v11327 = vpack.c.bf16 %v11124, %v11117
      %v11328 = vpack.c.bf16 %v11125, %v11118
      %v11329 = vpack.c.bf16 %v11126, %v11119
      %v11330 = vpack.c.bf16 %v11127, %v11120
      %v11331 = vpack.c.bf16 %v11135, %v11128
      %v11332 = vpack.c.bf16 %v11136, %v11129
      %v11333 = vpack.c.bf16 %v11137, %v11130
      %v11334 = vpack.c.bf16 %v11138, %v11131
      %v11335 = vpack.c.bf16 %v11139, %v11132
      %v11336 = vpack.c.bf16 %v11140, %v11133
      %v11337 = vpack.c.bf16 %v11141, %v11134
      %v11338 = vpack.c.bf16 %v11149, %v11142
      %v11339 = vpack.c.bf16 %v11150, %v11143
      %v11340 = vpack.c.bf16 %v11151, %v11144
      %v11341 = vpack.c.bf16 %v11152, %v11145
      %v11342 = vpack.c.bf16 %v11153, %v11146
      %v11343 = vpack.c.bf16 %v11154, %v11147
      %v11344 = vpack.c.bf16 %v11155, %v11148
      %v11345 = vpack.c.bf16 %v11163, %v11156
      %v11346 = vpack.c.bf16 %v11164, %v11157
      %v11347 = vpack.c.bf16 %v11165, %v11158
      %v11348 = vpack.c.bf16 %v11166, %v11159
      %v11349 = vpack.c.bf16 %v11167, %v11160
      %v11350 = vpack.c.bf16 %v11168, %v11161
      %v11351 = vpack.c.bf16 %v11169, %v11162
      %v11352 = vpack.c.bf16 %v11177, %v11170
      %v11353 = vpack.c.bf16 %v11178, %v11171
      %v11354 = vpack.c.bf16 %v11179, %v11172
      %v11355 = vpack.c.bf16 %v11180, %v11173
      %v11356 = vpack.c.bf16 %v11181, %v11174
      %v11357 = vpack.c.bf16 %v11182, %v11175
      %v11358 = vpack.c.bf16 %v11183, %v11176
      %v11359 = vpack.c.bf16 %v11191, %v11184
      %v11360 = vpack.c.bf16 %v11192, %v11185
      %v11361 = vpack.c.bf16 %v11193, %v11186
      %v11362 = vpack.c.bf16 %v11194, %v11187
      %v11363 = vpack.c.bf16 %v11195, %v11188
      %v11364 = vpack.c.bf16 %v11196, %v11189
      %v11365 = vpack.c.bf16 %v11197, %v11190
      %v11366 = vpack.c.bf16 %v11205, %v11198
      %v11367 = vpack.c.bf16 %v11206, %v11199
      %v11368 = vpack.c.bf16 %v11207, %v11200
      %v11369 = vpack.c.bf16 %v11208, %v11201
      %v11370 = vpack.c.bf16 %v11209, %v11202
      %v11371 = vpack.c.bf16 %v11210, %v11203
      %v11372 = vpack.c.bf16 %v11211, %v11204
      %v11373 = vpack.c.bf16 %v11219, %v11212
      %v11374 = vpack.c.bf16 %v11220, %v11213
      %v11375 = vpack.c.bf16 %v11221, %v11214
      %v11376 = vpack.c.bf16 %v11222, %v11215
      %v11377 = vpack.c.bf16 %v11223, %v11216
      %v11378 = vpack.c.bf16 %v11224, %v11217
      %v11379 = vpack.c.bf16 %v11225, %v11218
      %v11380 = vpack.c.bf16 %v11233, %v11226
      %v11381 = vpack.c.bf16 %v11234, %v11227
      %v11382 = vpack.c.bf16 %v11235, %v11228
      %v11383 = vpack.c.bf16 %v11236, %v11229
      %v11384 = vpack.c.bf16 %v11237, %v11230
      %v11385 = vpack.c.bf16 %v11238, %v11231
      %v11386 = vpack.c.bf16 %v11239, %v11232
      %v11387 = vpack.c.bf16 %v11247, %v11240
      %v11388 = vpack.c.bf16 %v11248, %v11241
      %v11389 = vpack.c.bf16 %v11249, %v11242
      %v11390 = vpack.c.bf16 %v11250, %v11243
      %v11391 = vpack.c.bf16 %v11251, %v11244
      %v11392 = vpack.c.bf16 %v11252, %v11245
      %v11393 = vpack.c.bf16 %v11253, %v11246
      %v11394 = vpack.c.bf16 %v11261, %v11254
      %v11395 = vpack.c.bf16 %v11262, %v11255
      %v11396 = vpack.c.bf16 %v11263, %v11256
      %v11397 = vpack.c.bf16 %v11264, %v11257
      %v11398 = vpack.c.bf16 %v11265, %v11258
      %v11399 = vpack.c.bf16 %v11266, %v11259
      %v11400 = vpack.c.bf16 %v11267, %v11260
      %v11401 = vpack.c.bf16 %v11275, %v11268
      %v11402 = vpack.c.bf16 %v11276, %v11269
      %v11403 = vpack.c.bf16 %v11277, %v11270
      %v11404 = vpack.c.bf16 %v11278, %v11271
      %v11405 = vpack.c.bf16 %v11279, %v11272
      %v11406 = vpack.c.bf16 %v11280, %v11273
      %v11407 = vpack.c.bf16 %v11281, %v11274
      %v11408 = vpack.c.bf16 %v11289, %v11282
      %v11409 = vpack.c.bf16 %v11290, %v11283
      %v11410 = vpack.c.bf16 %v11291, %v11284
      %v11411 = vpack.c.bf16 %v11292, %v11285
      %v11412 = vpack.c.bf16 %v11293, %v11286
      %v11413 = vpack.c.bf16 %v11294, %v11287
      %v11414 = vpack.c.bf16 %v11295, %v11288
      %v11415 = vpack.c.bf16 %v11303, %v11296
      %v11416 = vpack.c.bf16 %v11304, %v11297
      %v11417 = vpack.c.bf16 %v11305, %v11298
      %v11418 = vpack.c.bf16 %v11306, %v11299
      %v11419 = vpack.c.bf16 %v11307, %v11300
      %v11420 = vpack.c.bf16 %v11308, %v11301
      %v11421 = vpack.c.bf16 %v11309, %v11302
      %v11534 = vunpack.c.l.b16 %v11310
      %v11535 = vunpack.c.l.b16 %v11311
      %v11536 = vunpack.c.l.b16 %v11312
      %v11537 = vunpack.c.l.b16 %v11313
      %v11538 = vunpack.c.l.b16 %v11314
      %v11539 = vunpack.c.l.b16 %v11315
      %v11540 = vunpack.c.l.b16 %v11316
      %v11541 = vunpack.c.h.b16 %v11310
      %v11542 = vunpack.c.h.b16 %v11311
      %v11543 = vunpack.c.h.b16 %v11312
      %v11544 = vunpack.c.h.b16 %v11313
      %v11545 = vunpack.c.h.b16 %v11314
      %v11546 = vunpack.c.h.b16 %v11315
      %v11547 = vunpack.c.h.b16 %v11316
      %v11548 = vunpack.c.l.b16 %v11317
      %v11549 = vunpack.c.l.b16 %v11318
      %v11550 = vunpack.c.l.b16 %v11319
      %v11551 = vunpack.c.l.b16 %v11320
      %v11552 = vunpack.c.l.b16 %v11321
      %v11553 = vunpack.c.l.b16 %v11322
      %v11554 = vunpack.c.l.b16 %v11323
      %v11555 = vunpack.c.h.b16 %v11317
      %v11556 = vunpack.c.h.b16 %v11318
      %v11557 = vunpack.c.h.b16 %v11319
      %v11558 = vunpack.c.h.b16 %v11320
      %v11559 = vunpack.c.h.b16 %v11321
      %v11560 = vunpack.c.h.b16 %v11322
      %v11561 = vunpack.c.h.b16 %v11323
      %v11562 = vunpack.c.l.b16 %v11324
      %v11563 = vunpack.c.l.b16 %v11325
      %v11564 = vunpack.c.l.b16 %v11326
      %v11565 = vunpack.c.l.b16 %v11327
      %v11566 = vunpack.c.l.b16 %v11328
      %v11567 = vunpack.c.l.b16 %v11329
      %v11568 = vunpack.c.l.b16 %v11330
      %v11569 = vunpack.c.h.b16 %v11324
      %v11570 = vunpack.c.h.b16 %v11325
      %v11571 = vunpack.c.h.b16 %v11326
      %v11572 = vunpack.c.h.b16 %v11327
      %v11573 = vunpack.c.h.b16 %v11328
      %v11574 = vunpack.c.h.b16 %v11329
      %v11575 = vunpack.c.h.b16 %v11330
      %v11576 = vunpack.c.l.b16 %v11331
      %v11577 = vunpack.c.l.b16 %v11332
      %v11578 = vunpack.c.l.b16 %v11333
      %v11579 = vunpack.c.l.b16 %v11334
      %v11580 = vunpack.c.l.b16 %v11335
      %v11581 = vunpack.c.l.b16 %v11336
      %v11582 = vunpack.c.l.b16 %v11337
      %v11583 = vunpack.c.h.b16 %v11331
      %v11584 = vunpack.c.h.b16 %v11332
      %v11585 = vunpack.c.h.b16 %v11333
      %v11586 = vunpack.c.h.b16 %v11334
      %v11587 = vunpack.c.h.b16 %v11335
      %v11588 = vunpack.c.h.b16 %v11336
      %v11589 = vunpack.c.h.b16 %v11337
      %v11590 = vunpack.c.l.b16 %v11338
      %v11591 = vunpack.c.l.b16 %v11339
      %v11592 = vunpack.c.l.b16 %v11340
      %v11593 = vunpack.c.l.b16 %v11341
      %v11594 = vunpack.c.l.b16 %v11342
      %v11595 = vunpack.c.l.b16 %v11343
      %v11596 = vunpack.c.l.b16 %v11344
      %v11597 = vunpack.c.h.b16 %v11338
      %v11598 = vunpack.c.h.b16 %v11339
      %v11599 = vunpack.c.h.b16 %v11340
      %v11600 = vunpack.c.h.b16 %v11341
      %v11601 = vunpack.c.h.b16 %v11342
      %v11602 = vunpack.c.h.b16 %v11343
      %v11603 = vunpack.c.h.b16 %v11344
      %v11604 = vunpack.c.l.b16 %v11345
      %v11605 = vunpack.c.l.b16 %v11346
      %v11606 = vunpack.c.l.b16 %v11347
      %v11607 = vunpack.c.l.b16 %v11348
      %v11608 = vunpack.c.l.b16 %v11349
      %v11609 = vunpack.c.l.b16 %v11350
      %v11610 = vunpack.c.l.b16 %v11351
      %v11611 = vunpack.c.h.b16 %v11345
      %v11612 = vunpack.c.h.b16 %v11346
      %v11613 = vunpack.c.h.b16 %v11347
      %v11614 = vunpack.c.h.b16 %v11348
      %v11615 = vunpack.c.h.b16 %v11349
      %v11616 = vunpack.c.h.b16 %v11350
      %v11617 = vunpack.c.h.b16 %v11351
      %v11618 = vunpack.c.l.b16 %v11352
      %v11619 = vunpack.c.l.b16 %v11353
      %v11620 = vunpack.c.l.b16 %v11354
      %v11621 = vunpack.c.l.b16 %v11355
      %v11622 = vunpack.c.l.b16 %v11356
      %v11623 = vunpack.c.l.b16 %v11357
      %v11624 = vunpack.c.l.b16 %v11358
      %v11625 = vunpack.c.h.b16 %v11352
      %v11626 = vunpack.c.h.b16 %v11353
      %v11627 = vunpack.c.h.b16 %v11354
      %v11628 = vunpack.c.h.b16 %v11355
      %v11629 = vunpack.c.h.b16 %v11356
      %v11630 = vunpack.c.h.b16 %v11357
      %v11631 = vunpack.c.h.b16 %v11358
      %v11632 = vunpack.c.l.b16 %v11359
      %v11633 = vunpack.c.l.b16 %v11360
      %v11634 = vunpack.c.l.b16 %v11361
      %v11635 = vunpack.c.l.b16 %v11362
      %v11636 = vunpack.c.l.b16 %v11363
      %v11637 = vunpack.c.l.b16 %v11364
      %v11638 = vunpack.c.l.b16 %v11365
      %v11639 = vunpack.c.h.b16 %v11359
      %v11640 = vunpack.c.h.b16 %v11360
      %v11641 = vunpack.c.h.b16 %v11361
      %v11642 = vunpack.c.h.b16 %v11362
      %v11643 = vunpack.c.h.b16 %v11363
      %v11644 = vunpack.c.h.b16 %v11364
      %v11645 = vunpack.c.h.b16 %v11365
      %v11646 = vunpack.c.l.b16 %v11366
      %v11647 = vunpack.c.l.b16 %v11367
      %v11648 = vunpack.c.l.b16 %v11368
      %v11649 = vunpack.c.l.b16 %v11369
      %v11650 = vunpack.c.l.b16 %v11370
      %v11651 = vunpack.c.l.b16 %v11371
      %v11652 = vunpack.c.l.b16 %v11372
      %v11653 = vunpack.c.h.b16 %v11366
      %v11654 = vunpack.c.h.b16 %v11367
      %v11655 = vunpack.c.h.b16 %v11368
      %v11656 = vunpack.c.h.b16 %v11369
      %v11657 = vunpack.c.h.b16 %v11370
      %v11658 = vunpack.c.h.b16 %v11371
      %v11659 = vunpack.c.h.b16 %v11372
      %v11660 = vunpack.c.l.b16 %v11373
      %v11661 = vunpack.c.l.b16 %v11374
      %v11662 = vunpack.c.l.b16 %v11375
      %v11663 = vunpack.c.l.b16 %v11376
      %v11664 = vunpack.c.l.b16 %v11377
      %v11665 = vunpack.c.l.b16 %v11378
      %v11666 = vunpack.c.l.b16 %v11379
      %v11667 = vunpack.c.h.b16 %v11373
      %v11668 = vunpack.c.h.b16 %v11374
      %v11669 = vunpack.c.h.b16 %v11375
      %v11670 = vunpack.c.h.b16 %v11376
      %v11671 = vunpack.c.h.b16 %v11377
      %v11672 = vunpack.c.h.b16 %v11378
      %v11673 = vunpack.c.h.b16 %v11379
      %v11674 = vunpack.c.l.b16 %v11380
      %v11675 = vunpack.c.l.b16 %v11381
      %v11676 = vunpack.c.l.b16 %v11382
      %v11677 = vunpack.c.l.b16 %v11383
      %v11678 = vunpack.c.l.b16 %v11384
      %v11679 = vunpack.c.l.b16 %v11385
      %v11680 = vunpack.c.l.b16 %v11386
      %v11681 = vunpack.c.h.b16 %v11380
      %v11682 = vunpack.c.h.b16 %v11381
      %v11683 = vunpack.c.h.b16 %v11382
      %v11684 = vunpack.c.h.b16 %v11383
      %v11685 = vunpack.c.h.b16 %v11384
      %v11686 = vunpack.c.h.b16 %v11385
      %v11687 = vunpack.c.h.b16 %v11386
      %v11688 = vunpack.c.l.b16 %v11387
      %v11689 = vunpack.c.l.b16 %v11388
      %v11690 = vunpack.c.l.b16 %v11389
      %v11691 = vunpack.c.l.b16 %v11390
      %v11692 = vunpack.c.l.b16 %v11391
      %v11693 = vunpack.c.l.b16 %v11392
      %v11694 = vunpack.c.l.b16 %v11393
      %v11695 = vunpack.c.h.b16 %v11387
      %v11696 = vunpack.c.h.b16 %v11388
      %v11697 = vunpack.c.h.b16 %v11389
      %v11698 = vunpack.c.h.b16 %v11390
      %v11699 = vunpack.c.h.b16 %v11391
      %v11700 = vunpack.c.h.b16 %v11392
      %v11701 = vunpack.c.h.b16 %v11393
      %v11702 = vunpack.c.l.b16 %v11394
      %v11703 = vunpack.c.l.b16 %v11395
      %v11704 = vunpack.c.l.b16 %v11396
      %v11705 = vunpack.c.l.b16 %v11397
      %v11706 = vunpack.c.l.b16 %v11398
      %v11707 = vunpack.c.l.b16 %v11399
      %v11708 = vunpack.c.l.b16 %v11400
      %v11709 = vunpack.c.h.b16 %v11394
      %v11710 = vunpack.c.h.b16 %v11395
      %v11711 = vunpack.c.h.b16 %v11396
      %v11712 = vunpack.c.h.b16 %v11397
      %v11713 = vunpack.c.h.b16 %v11398
      %v11714 = vunpack.c.h.b16 %v11399
      %v11715 = vunpack.c.h.b16 %v11400
      %v11716 = vunpack.c.l.b16 %v11401
      %v11717 = vunpack.c.l.b16 %v11402
      %v11718 = vunpack.c.l.b16 %v11403
      %v11719 = vunpack.c.l.b16 %v11404
      %v11720 = vunpack.c.l.b16 %v11405
      %v11721 = vunpack.c.l.b16 %v11406
      %v11722 = vunpack.c.l.b16 %v11407
      %v11723 = vunpack.c.h.b16 %v11401
      %v11724 = vunpack.c.h.b16 %v11402
      %v11725 = vunpack.c.h.b16 %v11403
      %v11726 = vunpack.c.h.b16 %v11404
      %v11727 = vunpack.c.h.b16 %v11405
      %v11728 = vunpack.c.h.b16 %v11406
      %v11729 = vunpack.c.h.b16 %v11407
      %v11730 = vunpack.c.l.b16 %v11408
      %v11731 = vunpack.c.l.b16 %v11409
      %v11732 = vunpack.c.l.b16 %v11410
      %v11733 = vunpack.c.l.b16 %v11411
      %v11734 = vunpack.c.l.b16 %v11412
      %v11735 = vunpack.c.l.b16 %v11413
      %v11736 = vunpack.c.l.b16 %v11414
      %v11737 = vunpack.c.h.b16 %v11408
      %v11738 = vunpack.c.h.b16 %v11409
      %v11739 = vunpack.c.h.b16 %v11410
      %v11740 = vunpack.c.h.b16 %v11411
      %v11741 = vunpack.c.h.b16 %v11412
      %v11742 = vunpack.c.h.b16 %v11413
      %v11743 = vunpack.c.h.b16 %v11414
      %v11744 = vunpack.c.l.b16 %v11415
      %v11745 = vunpack.c.l.b16 %v11416
      %v11746 = vunpack.c.l.b16 %v11417
      %v11747 = vunpack.c.l.b16 %v11418
      %v11748 = vunpack.c.l.b16 %v11419
      %v11749 = vunpack.c.l.b16 %v11420
      %v11750 = vunpack.c.l.b16 %v11421
      %v11751 = vunpack.c.h.b16 %v11415
      %v11752 = vunpack.c.h.b16 %v11416
      %v11753 = vunpack.c.h.b16 %v11417
      %v11754 = vunpack.c.h.b16 %v11418
      %v11755 = vunpack.c.h.b16 %v11419
      %v11756 = vunpack.c.h.b16 %v11420
      %v11757 = vunpack.c.h.b16 %v11421
      %v11758 = vpack.c.b16 %v11535, %v11534
      %v11759 = vpack.c.b16 %v11537, %v11536
      %v11760 = vpack.c.b16 %v11539, %v11538
      %v11761 = vpack.c.b16 %v11540, %v11540
      %v11762 = vpack.c.b16 %v11542, %v11541
      %v11763 = vpack.c.b16 %v11544, %v11543
      %v11764 = vpack.c.b16 %v11546, %v11545
      %v11765 = vpack.c.b16 %v11547, %v11547
      %v11766 = vpack.c.b16 %v11549, %v11548
      %v11767 = vpack.c.b16 %v11551, %v11550
      %v11768 = vpack.c.b16 %v11553, %v11552
      %v11769 = vpack.c.b16 %v11554, %v11554
      %v11770 = vpack.c.b16 %v11556, %v11555
      %v11771 = vpack.c.b16 %v11558, %v11557
      %v11772 = vpack.c.b16 %v11560, %v11559
      %v11773 = vpack.c.b16 %v11561, %v11561
      %v11774 = vpack.c.b16 %v11563, %v11562
      %v11775 = vpack.c.b16 %v11565, %v11564
      %v11776 = vpack.c.b16 %v11567, %v11566
      %v11777 = vpack.c.b16 %v11568, %v11568
      %v11778 = vpack.c.b16 %v11570, %v11569
      %v11779 = vpack.c.b16 %v11572, %v11571
      %v11780 = vpack.c.b16 %v11574, %v11573
      %v11781 = vpack.c.b16 %v11575, %v11575
      %v11782 = vpack.c.b16 %v11577, %v11576
      %v11783 = vpack.c.b16 %v11579, %v11578
      %v11784 = vpack.c.b16 %v11581, %v11580
      %v11785 = vpack.c.b16 %v11582, %v11582
      %v11786 = vpack.c.b16 %v11584, %v11583
      %v11787 = vpack.c.b16 %v11586, %v11585
      %v11788 = vpack.c.b16 %v11588, %v11587
      %v11789 = vpack.c.b16 %v11589, %v11589
      %v11790 = vpack.c.b16 %v11591, %v11590
      %v11791 = vpack.c.b16 %v11593, %v11592
      %v11792 = vpack.c.b16 %v11595, %v11594
      %v11793 = vpack.c.b16 %v11596, %v11596
      %v11794 = vpack.c.b16 %v11598, %v11597
      %v11795 = vpack.c.b16 %v11600, %v11599
      %v11796 = vpack.c.b16 %v11602, %v11601
      %v11797 = vpack.c.b16 %v11603, %v11603
      %v11798 = vpack.c.b16 %v11605, %v11604
      %v11799 = vpack.c.b16 %v11607, %v11606
      %v11800 = vpack.c.b16 %v11609, %v11608
      %v11801 = vpack.c.b16 %v11610, %v11610
      %v11802 = vpack.c.b16 %v11612, %v11611
      %v11803 = vpack.c.b16 %v11614, %v11613
      %v11804 = vpack.c.b16 %v11616, %v11615
      %v11805 = vpack.c.b16 %v11617, %v11617
      %v11806 = vpack.c.b16 %v11619, %v11618
      %v11807 = vpack.c.b16 %v11621, %v11620
      %v11808 = vpack.c.b16 %v11623, %v11622
      %v11809 = vpack.c.b16 %v11624, %v11624
      %v11810 = vpack.c.b16 %v11626, %v11625
      %v11811 = vpack.c.b16 %v11628, %v11627
      %v11812 = vpack.c.b16 %v11630, %v11629
      %v11813 = vpack.c.b16 %v11631, %v11631
      %v11814 = vpack.c.b16 %v11633, %v11632
      %v11815 = vpack.c.b16 %v11635, %v11634
      %v11816 = vpack.c.b16 %v11637, %v11636
      %v11817 = vpack.c.b16 %v11638, %v11638
      %v11818 = vpack.c.b16 %v11640, %v11639
      %v11819 = vpack.c.b16 %v11642, %v11641
      %v11820 = vpack.c.b16 %v11644, %v11643
      %v11821 = vpack.c.b16 %v11645, %v11645
      %v11822 = vpack.c.b16 %v11647, %v11646
      %v11823 = vpack.c.b16 %v11649, %v11648
      %v11824 = vpack.c.b16 %v11651, %v11650
      %v11825 = vpack.c.b16 %v11652, %v11652
      %v11826 = vpack.c.b16 %v11654, %v11653
      %v11827 = vpack.c.b16 %v11656, %v11655
      %v11828 = vpack.c.b16 %v11658, %v11657
      %v11829 = vpack.c.b16 %v11659, %v11659
      %v11830 = vpack.c.b16 %v11661, %v11660
      %v11831 = vpack.c.b16 %v11663, %v11662
      %v11832 = vpack.c.b16 %v11665, %v11664
      %v11833 = vpack.c.b16 %v11666, %v11666
      %v11834 = vpack.c.b16 %v11668, %v11667
      %v11835 = vpack.c.b16 %v11670, %v11669
      %v11836 = vpack.c.b16 %v11672, %v11671
      %v11837 = vpack.c.b16 %v11673, %v11673
      %v11838 = vpack.c.b16 %v11675, %v11674
      %v11839 = vpack.c.b16 %v11677, %v11676
      %v11840 = vpack.c.b16 %v11679, %v11678
      %v11841 = vpack.c.b16 %v11680, %v11680
      %v11842 = vpack.c.b16 %v11682, %v11681
      %v11843 = vpack.c.b16 %v11684, %v11683
      %v11844 = vpack.c.b16 %v11686, %v11685
      %v11845 = vpack.c.b16 %v11687, %v11687
      %v11846 = vpack.c.b16 %v11689, %v11688
      %v11847 = vpack.c.b16 %v11691, %v11690
      %v11848 = vpack.c.b16 %v11693, %v11692
      %v11849 = vpack.c.b16 %v11694, %v11694
      %v11850 = vpack.c.b16 %v11696, %v11695
      %v11851 = vpack.c.b16 %v11698, %v11697
      %v11852 = vpack.c.b16 %v11700, %v11699
      %v11853 = vpack.c.b16 %v11701, %v11701
      %v11854 = vpack.c.b16 %v11703, %v11702
      %v11855 = vpack.c.b16 %v11705, %v11704
      %v11856 = vpack.c.b16 %v11707, %v11706
      %v11857 = vpack.c.b16 %v11708, %v11708
      %v11858 = vpack.c.b16 %v11710, %v11709
      %v11859 = vpack.c.b16 %v11712, %v11711
      %v11860 = vpack.c.b16 %v11714, %v11713
      %v11861 = vpack.c.b16 %v11715, %v11715
      %v11862 = vpack.c.b16 %v11717, %v11716
      %v11863 = vpack.c.b16 %v11719, %v11718
      %v11864 = vpack.c.b16 %v11721, %v11720
      %v11865 = vpack.c.b16 %v11722, %v11722
      %v11866 = vpack.c.b16 %v11724, %v11723
      %v11867 = vpack.c.b16 %v11726, %v11725
      %v11868 = vpack.c.b16 %v11728, %v11727
      %v11869 = vpack.c.b16 %v11729, %v11729
      %v11870 = vpack.c.b16 %v11731, %v11730
      %v11871 = vpack.c.b16 %v11733, %v11732
      %v11872 = vpack.c.b16 %v11735, %v11734
      %v11873 = vpack.c.b16 %v11736, %v11736
      %v11874 = vpack.c.b16 %v11738, %v11737
      %v11875 = vpack.c.b16 %v11740, %v11739
      %v11876 = vpack.c.b16 %v11742, %v11741
      %v11877 = vpack.c.b16 %v11743, %v11743
      %v11878 = vpack.c.b16 %v11745, %v11744
      %v11879 = vpack.c.b16 %v11747, %v11746
      %v11880 = vpack.c.b16 %v11749, %v11748
      %v11881 = vpack.c.b16 %v11750, %v11750
      %v11882 = vpack.c.b16 %v11752, %v11751
      %v11883 = vpack.c.b16 %v11754, %v11753
      %v11884 = vpack.c.b16 %v11756, %v11755
      %v11885 = vpack.c.b16 %v11757, %v11757
      %12014 = vst [vmem:[%s255] sm:$0xff] %v11758
      %12015 = vst [vmem:[%s255 + $0x8] sm:$0xff] %v11759
      %12016 = vst [vmem:[%s255 + $0x10] sm:$0xff] %v11760
      %vm12017 = vcmask 125952
      %12018 = vst.msk [vmem:[%s255 + $0x18] sm:$0xf] %vm12017, %v11761
      %12019 = vst [vmem:[%s255 + $0x1c] sm:$0xff] %v11762
      %12020 = vst [vmem:[%s255 + $0x24] sm:$0xff] %v11763
      %12021 = vst [vmem:[%s255 + $0x2c] sm:$0xff] %v11764
      %12022 = vst.msk [vmem:[%s255 + $0x34] sm:$0xf] %vm12017, %v11765
      %12023 = vst [vmem:[%s255 + $0x38] sm:$0xff] %v11766
      %12024 = vst [vmem:[%s255 + $0x40] sm:$0xff] %v11767
      %12025 = vst [vmem:[%s255 + $0x48] sm:$0xff] %v11768
      %12026 = vst.msk [vmem:[%s255 + $0x50] sm:$0xf] %vm12017, %v11769
      %12027 = vst [vmem:[%s255 + $0x54] sm:$0xff] %v11770
      %12028 = vst [vmem:[%s255 + $0x5c] sm:$0xff] %v11771
      %12029 = vst [vmem:[%s255 + $0x64] sm:$0xff] %v11772
      %12030 = vst.msk [vmem:[%s255 + $0x6c] sm:$0xf] %vm12017, %v11773
      %12031 = vst [vmem:[%s255 + $0x70] sm:$0xff] %v11774
      %12032 = vst [vmem:[%s255 + $0x78] sm:$0xff] %v11775
      %12033 = vst [vmem:[%s255 + $0x80] sm:$0xff] %v11776
      %12034 = vst.msk [vmem:[%s255 + $0x88] sm:$0xf] %vm12017, %v11777
      %12035 = vst [vmem:[%s255 + $0x8c] sm:$0xff] %v11778
      %12036 = vst [vmem:[%s255 + $0x94] sm:$0xff] %v11779
      %12037 = vst [vmem:[%s255 + $0x9c] sm:$0xff] %v11780
      %12038 = vst.msk [vmem:[%s255 + $0xa4] sm:$0xf] %vm12017, %v11781
      %12039 = vst [vmem:[%s255 + $0xa8] sm:$0xff] %v11782
      %12040 = vst [vmem:[%s255 + $0xb0] sm:$0xff] %v11783
      %12041 = vst [vmem:[%s255 + $0xb8] sm:$0xff] %v11784
      %12042 = vst.msk [vmem:[%s255 + $0xc0] sm:$0xf] %vm12017, %v11785
      %12043 = vst [vmem:[%s255 + $0xc4] sm:$0xff] %v11786
      %12044 = vst [vmem:[%s255 + $0xcc] sm:$0xff] %v11787
      %12045 = vst [vmem:[%s255 + $0xd4] sm:$0xff] %v11788
      %12046 = vst.msk [vmem:[%s255 + $0xdc] sm:$0xf] %vm12017, %v11789
      %12047 = vst [vmem:[%s255 + $0xe0] sm:$0xff] %v11790
      %12048 = vst [vmem:[%s255 + $0xe8] sm:$0xff] %v11791
      %12049 = vst [vmem:[%s255 + $0xf0] sm:$0xff] %v11792
      %12050 = vst.msk [vmem:[%s255 + $0xf8] sm:$0xf] %vm12017, %v11793
      %12051 = vst [vmem:[%s255 + $0xfc] sm:$0xff] %v11794
      %12052 = vst [vmem:[%s255 + $0x104] sm:$0xff] %v11795
      %12053 = vst [vmem:[%s255 + $0x10c] sm:$0xff] %v11796
      %12054 = vst.msk [vmem:[%s255 + $0x114] sm:$0xf] %vm12017, %v11797
      %12055 = vst [vmem:[%s255 + $0x118] sm:$0xff] %v11798
      %12056 = vst [vmem:[%s255 + $0x120] sm:$0xff] %v11799
      %12057 = vst [vmem:[%s255 + $0x128] sm:$0xff] %v11800
      %12058 = vst.msk [vmem:[%s255 + $0x130] sm:$0xf] %vm12017, %v11801
      %12059 = vst [vmem:[%s255 + $0x134] sm:$0xff] %v11802
      %12060 = vst [vmem:[%s255 + $0x13c] sm:$0xff] %v11803
      %12061 = vst [vmem:[%s255 + $0x144] sm:$0xff] %v11804
      %12062 = vst.msk [vmem:[%s255 + $0x14c] sm:$0xf] %vm12017, %v11805
      %12063 = vst [vmem:[%s255 + $0x150] sm:$0xff] %v11806
      %12064 = vst [vmem:[%s255 + $0x158] sm:$0xff] %v11807
      %12065 = vst [vmem:[%s255 + $0x160] sm:$0xff] %v11808
      %12066 = vst.msk [vmem:[%s255 + $0x168] sm:$0xf] %vm12017, %v11809
      %12067 = vst [vmem:[%s255 + $0x16c] sm:$0xff] %v11810
      %12068 = vst [vmem:[%s255 + $0x174] sm:$0xff] %v11811
      %12069 = vst [vmem:[%s255 + $0x17c] sm:$0xff] %v11812
      %12070 = vst.msk [vmem:[%s255 + $0x184] sm:$0xf] %vm12017, %v11813
      %12071 = vst [vmem:[%s255 + $0x188] sm:$0xff] %v11814
      %12072 = vst [vmem:[%s255 + $0x190] sm:$0xff] %v11815
      %12073 = vst [vmem:[%s255 + $0x198] sm:$0xff] %v11816
      %12074 = vst.msk [vmem:[%s255 + $0x1a0] sm:$0xf] %vm12017, %v11817
      %12075 = vst [vmem:[%s255 + $0x1a4] sm:$0xff] %v11818
      %12076 = vst [vmem:[%s255 + $0x1ac] sm:$0xff] %v11819
      %12077 = vst [vmem:[%s255 + $0x1b4] sm:$0xff] %v11820
      %12078 = vst.msk [vmem:[%s255 + $0x1bc] sm:$0xf] %vm12017, %v11821
      %12079 = vst [vmem:[%s255 + $0x1c0] sm:$0xff] %v11822
      %12080 = vst [vmem:[%s255 + $0x1c8] sm:$0xff] %v11823
      %12081 = vst [vmem:[%s255 + $0x1d0] sm:$0xff] %v11824
      %12082 = vst.msk [vmem:[%s255 + $0x1d8] sm:$0xf] %vm12017, %v11825
      %12083 = vst [vmem:[%s255 + $0x1dc] sm:$0xff] %v11826
      %12084 = vst [vmem:[%s255 + $0x1e4] sm:$0xff] %v11827
      %12085 = vst [vmem:[%s255 + $0x1ec] sm:$0xff] %v11828
      %12086 = vst.msk [vmem:[%s255 + $0x1f4] sm:$0xf] %vm12017, %v11829
      %12087 = vst [vmem:[%s255 + $0x1f8] sm:$0xff] %v11830
      %12088 = vst [vmem:[%s255 + $0x200] sm:$0xff] %v11831
      %12089 = vst [vmem:[%s255 + $0x208] sm:$0xff] %v11832
      %12090 = vst.msk [vmem:[%s255 + $0x210] sm:$0xf] %vm12017, %v11833
      %12091 = vst [vmem:[%s255 + $0x214] sm:$0xff] %v11834
      %12092 = vst [vmem:[%s255 + $0x21c] sm:$0xff] %v11835
      %12093 = vst [vmem:[%s255 + $0x224] sm:$0xff] %v11836
      %12094 = vst.msk [vmem:[%s255 + $0x22c] sm:$0xf] %vm12017, %v11837
      %12095 = vst [vmem:[%s255 + $0x230] sm:$0xff] %v11838
      %12096 = vst [vmem:[%s255 + $0x238] sm:$0xff] %v11839
      %12097 = vst [vmem:[%s255 + $0x240] sm:$0xff] %v11840
      %12098 = vst.msk [vmem:[%s255 + $0x248] sm:$0xf] %vm12017, %v11841
      %12099 = vst [vmem:[%s255 + $0x24c] sm:$0xff] %v11842
      %12100 = vst [vmem:[%s255 + $0x254] sm:$0xff] %v11843
      %12101 = vst [vmem:[%s255 + $0x25c] sm:$0xff] %v11844
      %12102 = vst.msk [vmem:[%s255 + $0x264] sm:$0xf] %vm12017, %v11845
      %12103 = vst [vmem:[%s255 + $0x268] sm:$0xff] %v11846
      %12104 = vst [vmem:[%s255 + $0x270] sm:$0xff] %v11847
      %12105 = vst [vmem:[%s255 + $0x278] sm:$0xff] %v11848
      %12106 = vst.msk [vmem:[%s255 + $0x280] sm:$0xf] %vm12017, %v11849
      %12107 = vst [vmem:[%s255 + $0x284] sm:$0xff] %v11850
      %12108 = vst [vmem:[%s255 + $0x28c] sm:$0xff] %v11851
      %12109 = vst [vmem:[%s255 + $0x294] sm:$0xff] %v11852
      %12110 = vst.msk [vmem:[%s255 + $0x29c] sm:$0xf] %vm12017, %v11853
      %12111 = vst [vmem:[%s255 + $0x2a0] sm:$0xff] %v11854
      %12112 = vst [vmem:[%s255 + $0x2a8] sm:$0xff] %v11855
      %12113 = vst [vmem:[%s255 + $0x2b0] sm:$0xff] %v11856
      %12114 = vst.msk [vmem:[%s255 + $0x2b8] sm:$0xf] %vm12017, %v11857
      %12115 = vst [vmem:[%s255 + $0x2bc] sm:$0xff] %v11858
      %12116 = vst [vmem:[%s255 + $0x2c4] sm:$0xff] %v11859
      %12117 = vst [vmem:[%s255 + $0x2cc] sm:$0xff] %v11860
      %12118 = vst.msk [vmem:[%s255 + $0x2d4] sm:$0xf] %vm12017, %v11861
      %12119 = vst [vmem:[%s255 + $0x2d8] sm:$0xff] %v11862
      %12120 = vst [vmem:[%s255 + $0x2e0] sm:$0xff] %v11863
      %12121 = vst [vmem:[%s255 + $0x2e8] sm:$0xff] %v11864
      %12122 = vst.msk [vmem:[%s255 + $0x2f0] sm:$0xf] %vm12017, %v11865
      %12123 = vst [vmem:[%s255 + $0x2f4] sm:$0xff] %v11866
      %12124 = vst [vmem:[%s255 + $0x2fc] sm:$0xff] %v11867
      %12125 = vst [vmem:[%s255 + $0x304] sm:$0xff] %v11868
      %12126 = vst.msk [vmem:[%s255 + $0x30c] sm:$0xf] %vm12017, %v11869
      %12127 = vst [vmem:[%s255 + $0x310] sm:$0xff] %v11870
      %12128 = vst [vmem:[%s255 + $0x318] sm:$0xff] %v11871
      %12129 = vst [vmem:[%s255 + $0x320] sm:$0xff] %v11872
      %12130 = vst.msk [vmem:[%s255 + $0x328] sm:$0xf] %vm12017, %v11873
      %12131 = vst [vmem:[%s255 + $0x32c] sm:$0xff] %v11874
      %12132 = vst [vmem:[%s255 + $0x334] sm:$0xff] %v11875
      %12133 = vst [vmem:[%s255 + $0x33c] sm:$0xff] %v11876
      %12134 = vst.msk [vmem:[%s255 + $0x344] sm:$0xf] %vm12017, %v11877
      %12135 = vst [vmem:[%s255 + $0x348] sm:$0xff] %v11878
      %12136 = vst [vmem:[%s255 + $0x350] sm:$0xff] %v11879
      %12137 = vst [vmem:[%s255 + $0x358] sm:$0xff] %v11880
      %12138 = vst.msk [vmem:[%s255 + $0x360] sm:$0xf] %vm12017, %v11881
      %12139 = vst [vmem:[%s255 + $0x364] sm:$0xff] %v11882
      %12140 = vst [vmem:[%s255 + $0x36c] sm:$0xff] %v11883
      %12141 = vst [vmem:[%s255 + $0x374] sm:$0xff] %v11884
      %12142 = vst.msk [vmem:[%s255 + $0x37c] sm:$0xf] %vm12017, %v11885
      %s12143 = smul.u32 32, %s17
      %p12144 = scmp.lt.s32.totalorder %s12143, 63
      %s12145 = scalar_select %p12144, %s12143, 63
      %s12146 = smul.addr %s12145, 7
      %s12147 = smul.addr %s12146, 4
      %s12148 = scalar_lea.vmem %s6, %s12147
      // Predicated region
      $region45: #{generator_forward.1} parent=43 // pred_check
        %p12149 = pneg %p166
      $region46: #{generator_forward.1} parent=43 // pred_check_branch
        %12151 = sbr.rel (%p12149) target = $region48
      $region47: #{generator_forward.1} parent=43 // pred_region
        %s12152 = smul.u32 32, %s17
      $region48: #{generator_forward.1} parent=43 // pred_fallthru
        _
    $region44: #{generator_forward.1} parent=5 // pred_fallthru
      _
    %p12153 = scmp.le.s32.totalorder 2, %s12
    // Predicated region
    $region49: #{generator_forward.1} parent=5 // pred_check
      %p12154 = pneg %p12153
    $region50: #{generator_forward.1} parent=5 // pred_check_branch
      %12156 = sbr.rel (%p12154) target = $region52
    $region51: #{generator_forward.1} parent=5 // pred_region
      %s12157 = ssub.s32 %s12, 2
      // Predicated region
      $region53: #{generator_forward.1} parent=51 // pred_check
        %p12158 = pneg %p172
      $region54: #{generator_forward.1} parent=51 // pred_check_branch
        %12160 = sbr.rel (%p12158) target = $region56
      $region55: #{generator_forward.1} parent=51 // pred_region
        %s12161 = smul.u32 32, %s18
        %p12162 = scmp.lt.s32.totalorder %s12161, 63
        %s12163 = scalar_select %p12162, %s12161, 63
        %s12164 = smul.addr %s12163, 7
        %s12165 = smul.addr %s12164, 4
        %s12166 = scalar_lea.vmem %s6, %s12165
      $region56: #{generator_forward.1} parent=51 // pred_fallthru
        _
    $region52: #{generator_forward.1} parent=5 // pred_fallthru
      _
  $region6: #{generator_forward.1} parent=0 // loop_footer
    %s16 = sadd.s32 1, %s12
  $region7: #{generator_forward.1} parent=0 // loop_footer_branch
    %11 = sbr.rel target = $region3
  $region8: #{generator_forward.1} parent=0 // loop_exit
    _

</llo_original>
